<compile_context>
chip_gen: v7x
topology: tpu7x:2x2x1
jax: 0.10.0
libtpu: 0.0.40
codegen_flags: <defaults>
</compile_context>

<pallas_src>
import functools

import jax
import jax.numpy as jnp
from jax.experimental import pallas as pl
from jax.experimental.pallas import tpu as pltpu


def _cdiv(a, b):
    return -(-a // b)


def stn3d_kernel(x_ref,
                 w1_ref, b1_ref, w2_ref, b2_ref, w3_ref, b3_ref,
                 w4_ref, b4_ref, w5_ref, b5_ref, w6_ref, b6_ref,
                 out_ref, gmax_ref, *, bt, nt, c):
    """Grid = (batch chunks [parallel], point chunks [arbitrary/reduction])."""
    ni = pl.program_id(1)

    x = x_ref[...].astype(jnp.float32)                        # (bt*nt, c)

    # ---- mlp1 ------------------------------------------------------------
    # Layer 1 has K = c (3): a 3-deep MXU pass wastes ~98% of the contraction
    # depth, so do it as c broadcast FMAs on the VPU (f32 math, bf16 weights).
    w1 = w1_ref[...].astype(jnp.float32)                      # (c, 64)
    h = b1_ref[...] + x[:, 0:1] * w1[0:1, :]
    for ci in range(1, c):
        h = h + x[:, ci:ci + 1] * w1[ci:ci + 1, :]
    h = jnp.maximum(h, 0.0).astype(jnp.bfloat16)              # (bt*nt, 64)

    # Layers 2-3: bf16 MXU matmuls with f32 accumulation, M = bt*nt rows.
    h = jnp.dot(h, w2_ref[...], preferred_element_type=jnp.float32) + b2_ref[...]
    h = jnp.maximum(h, 0.0).astype(jnp.bfloat16)              # (bt*nt, 128)
    h = jnp.dot(h, w3_ref[...], preferred_element_type=jnp.float32) + b3_ref[...]
    # Cast BEFORE the pool: relu/max commute and rounding is monotone, so
    # max(bf16(h)) == bf16(max(h)); halves the big VMEM temp + vst/vld traffic.
    h = jnp.maximum(h, 0.0).astype(jnp.bfloat16)              # (bt*nt, 1024)

    # ---- online max-pool over the points axis (reduction grid axis) -------
    hmax = jnp.max(h.reshape(bt, nt, -1), axis=1)             # (bt, 1024) bf16

    @pl.when(ni == 0)
    def _():
        gmax_ref[...] = jnp.full_like(gmax_ref, -jnp.inf)

    gmax_ref[...] = jnp.maximum(gmax_ref[...], hmax)

    # ---- mlp2 + store: once per batch chunk, on the last point chunk ------
    @pl.when(ni == pl.num_programs(1) - 1)
    def _():
        g = gmax_ref[...]                                     # (bt, 1024) bf16
        f = jnp.dot(g, w4_ref[...], preferred_element_type=jnp.float32) + b4_ref[...]
        f = jnp.maximum(f, 0.0).astype(jnp.bfloat16)          # (bt, 512)
        f = jnp.dot(f, w5_ref[...], preferred_element_type=jnp.float32) + b5_ref[...]
        f = jnp.maximum(f, 0.0).astype(jnp.bfloat16)          # (bt, 256)
        # Final layer zero-padded to 128 output lanes, identity folded into
        # its bias -> unmasked, lane-dense (bt, 128) f32 store.
        f = jnp.dot(f, w6_ref[...], preferred_element_type=jnp.float32) + b6_ref[...]
        out_ref[...] = f


_BT = 8  # batch tile: 8-aligned output blocks; mlp2 cost is negligible vs mlp1


def _vmem_budgets():
    """Generation-aware (per-step activation budget, vmem_limit_bytes)."""
    try:
        cap = int(pltpu.get_tpu_info().vmem_capacity_bytes)
    except Exception:
        cap = 64 * 1024 * 1024            # conservative (v7x-sized) default
    if cap >= 96 * 1024 * 1024:           # v5e / v6e: 128 MiB VMEM
        return 24 * 1024 * 1024, 96 * 1024 * 1024
    # v7x: 64 MiB per TensorCore -> smaller chunks, leave double-buffer headroom
    return 10 * 1024 * 1024, 48 * 1024 * 1024


def _choose_point_tiling(n, bt, act_budget, align=16):
    """Point-chunk size nt (multiple of 16 for clean bf16 sublane tiling) such
    that the per-step bf16 activations (h1+h2+h3 + lane-padded, double-buffered
    x) fit act_budget, with minimal padding of n.  Returns (nt, gn, n_pad)."""
    bytes_per_row = (64 + 128 + 1024) * 2 + 2 * 128 * 2
    n_al = _cdiv(n, align) * align
    nt_max = max(align, (act_budget // (bt * bytes_per_row)) // align * align)
    gn = _cdiv(n_al, nt_max)
    nt = _cdiv(_cdiv(n_al, gn), align) * align
    return nt, gn, nt * gn


def _prepare_params(params, C, P):
    """bf16 weights, f32 biases, identity folded into b6, last layer padded
    to P (=128) output lanes."""
    (w1, b1, w2, b2, w3, b3, w4, b4, w5, b5, w6, b6) = params
    eye = jnp.eye(C, dtype=jnp.float32).reshape(1, C * C)
    b6 = b6 + eye                                              # fold identity
    w6p = jnp.zeros((w6.shape[0], P), jnp.float32).at[:, :C * C].set(w6)
    b6p = jnp.zeros((1, P), jnp.float32).at[:, :C * C].set(b6)
    ws = [w.astype(jnp.bfloat16) for w in (w1, w2, w3, w4, w5, w6p)]
    bs = [b.astype(jnp.float32) for b in (b1, b2, b3, b4, b5, b6p)]
    return ws, bs


def stn3d_forward(x_ncw, params):
    """x_ncw: (B, C_in, N) float32, like the PyTorch module input."""
    B, C, N = x_ncw.shape
    P = max(128, _cdiv(C * C, 128) * 128)
    ws, bs = _prepare_params(params, C, P)
    wb = [a for pair in zip(ws, bs) for a in pair]             # w1,b1,...,w6,b6

    act_budget, vmem_limit = _vmem_budgets()
    BT = _BT
    NT, GN, N_pad = _choose_point_tiling(N, BT, act_budget)
    GB = max(2, _cdiv(B, BT))          # >=2 parallel steps -> both v7x cores busy
    B_pad = GB * BT

    # (B, C, N) -> (B, N, C); pad points/batch by edge replication (duplicated
    # points leave the max unchanged; padded batch rows are discarded), then
    # rearrange into per-(batch-chunk, point-chunk) contiguous bf16 row slabs.
    x = jnp.transpose(x_ncw, (0, 2, 1))
    x = jnp.pad(x, ((0, B_pad - B), (0, N_pad - N), (0, 0)), mode="edge")
    x = x.reshape(GB, BT, GN, NT, C).transpose(0, 2, 1, 3, 4)
    x = x.reshape(GB * GN * BT * NT, C).astype(jnp.bfloat16)

    flops = (2 * B_pad * N_pad * (C * 64 + 64 * 128 + 128 * 1024)
             + 2 * B_pad * (1024 * 512 + 512 * 256 + 256 * P))
    bytes_accessed = (int(x.size) * 2
                      + sum(int(a.size) * a.dtype.itemsize for a in wb)
                      + B_pad * P * 4)

    kernel = functools.partial(stn3d_kernel, bt=BT, nt=NT, c=C)
    x_spec = pl.BlockSpec((BT * NT, C), lambda bi, ni: (bi * GN + ni, 0))
    out_spec = pl.BlockSpec((BT, P), lambda bi, ni: (bi, 0))

    def const_spec(a, single_buffer):
        nd = a.ndim

        def imap(bi, ni):
            return (0,) * nd

        if single_buffer:
            # Block index never changes -> second pipeline buffer is dead VMEM.
            return pl.BlockSpec(a.shape, imap, pipeline_mode=pl.Buffered(1))
        return pl.BlockSpec(a.shape, imap)

    def build(single_buffer):
        return pl.pallas_call(
            kernel,
            out_shape=jax.ShapeDtypeStruct((B_pad, P), jnp.float32),
            grid_spec=pltpu.PrefetchScalarGridSpec(
                num_scalar_prefetch=0,
                grid=(GB, GN),
                in_specs=[x_spec] + [const_spec(a, single_buffer) for a in wb],
                out_specs=out_spec,
                scratch_shapes=[pltpu.VMEM((BT, 1024), jnp.bfloat16)],
            ),
            compiler_params=pltpu.CompilerParams(
                dimension_semantics=("parallel", "arbitrary"),
                vmem_limit_bytes=vmem_limit),
            cost_estimate=pl.CostEstimate(flops=flops, transcendentals=0,
                                          bytes_accessed=bytes_accessed),
        )

    try:
        out = build(single_buffer=True)(x, *wb)
    except Exception:
        # pl.Buffered(1) is a pure VMEM optimization; retry without it if this
        # jax build rejects single-buffered pipeline_mode on BlockSpecs.
        out = build(single_buffer=False)(x, *wb)

    return out[:B, :C * C].reshape(B, C, C)


def _fold_bn(w, b, gamma, beta, mean, var, eps=1e-5):
    """Fold eval-mode BatchNorm into (W, b) where y = x @ W + b."""
    s = gamma / jnp.sqrt(var + eps)
    return w * s[None, :], (b - mean) * s + beta


def make_params(key, input_channels=3):
    """Deterministic synthetic parameters (matmul-form weights, folded BN)."""
    C = input_channels
    dims = [(C, 64), (64, 128), (128, 1024), (1024, 512), (512, 256),
            (256, C * C)]
    keys = jax.random.split(key, 6 * len(dims))
    params = []
    for i, (cin, cout) in enumerate(dims):
        kw, kb, kg, kbe, km, kv = keys[6 * i:6 * i + 6]
        w = 0.1 * jax.random.normal(kw, (cin, cout), jnp.float32)
        b = 0.05 * jax.random.normal(kb, (cout,), jnp.float32)
        if i < 5:  # first five layers are followed by BatchNorm
            gamma = 1.0 + 0.1 * jax.random.normal(kg, (cout,), jnp.float32)
            beta = 0.05 * jax.random.normal(kbe, (cout,), jnp.float32)
            mean = 0.02 * jax.random.normal(km, (cout,), jnp.float32)
            var = jnp.abs(1.0 + 0.1 * jax.random.normal(kv, (cout,), jnp.float32))
            w, b = _fold_bn(w, b, gamma, beta, mean, var)
        params.append(w)
        params.append(b.reshape(1, cout))
    return tuple(params)


def stn3d_reference(x_ncw, params):
    """Pure-JAX reference mirroring the kernel's mixed bf16/f32 precision."""
    B, C, N = x_ncw.shape
    P = max(128, _cdiv(C * C, 128) * 128)
    ws, bs = _prepare_params(params, C, P)
    w1, w2, w3, w4, w5, w6 = ws
    b1, b2, b3, b4, b5, b6 = bs

    x = jnp.transpose(x_ncw, (0, 2, 1)).reshape(B * N, C)
    x = x.astype(jnp.bfloat16).astype(jnp.float32)
    w1f = w1.astype(jnp.float32)
    h = b1 + x[:, 0:1] * w1f[0:1, :]
    for ci in range(1, C):
        h = h + x[:, ci:ci + 1] * w1f[ci:ci + 1, :]
    h = jnp.maximum(h, 0.0).astype(jnp.bfloat16)
    h = jnp.dot(h, w2, preferred_element_type=jnp.float32) + b2
    h = jnp.maximum(h, 0.0).astype(jnp.bfloat16)
    h = jnp.dot(h, w3, preferred_element_type=jnp.float32) + b3
    h = jnp.maximum(h, 0.0).astype(jnp.bfloat16)
    g = jnp.max(h.reshape(B, N, -1), axis=1)           # == chunked running max
    f = jnp.dot(g, w4, preferred_element_type=jnp.float32) + b4
    f = jnp.maximum(f, 0.0).astype(jnp.bfloat16)
    f = jnp.dot(f, w5, preferred_element_type=jnp.float32) + b5
    f = jnp.maximum(f, 0.0).astype(jnp.bfloat16)
    f = jnp.dot(f, w6, preferred_element_type=jnp.float32) + b6
    return f[:, :C * C].reshape(B, C, C)


if __name__ == "__main__":
    key = jax.random.PRNGKey(0)
    k_x, k_p = jax.random.split(key)

    B, C_in, N = 2, 3, 16
    x = jax.random.normal(k_x, (B, C_in, N), jnp.float32)  # NCW like PyTorch
    params = make_params(k_p, input_channels=C_in)

    out = stn3d_forward(x, params)
    out = jax.block_until_ready(out)

    ref = stn3d_reference(x, params)
    assert out.shape == (B, C_in, C_in)
    assert jnp.allclose(out, ref, rtol=5e-3, atol=5e-3), "mismatch vs reference"

    print("KERNEL_OK")
</pallas_src>

<mosaic_0001>
module attributes {stable_mosaic.version = 11 : i64} {
  func.func @stn3d_kernel(%arg0: i32, %arg1: i32, %arg2: memref<128x3xbf16, #tpu.memory_space<vmem>>, %arg3: memref<3x64xbf16, #tpu.memory_space<vmem>>, %arg4: memref<1x64xf32, #tpu.memory_space<vmem>>, %arg5: memref<64x128xbf16, #tpu.memory_space<vmem>>, %arg6: memref<1x128xf32, #tpu.memory_space<vmem>>, %arg7: memref<128x1024xbf16, #tpu.memory_space<vmem>>, %arg8: memref<1x1024xf32, #tpu.memory_space<vmem>>, %arg9: memref<1024x512xbf16, #tpu.memory_space<vmem>>, %arg10: memref<1x512xf32, #tpu.memory_space<vmem>>, %arg11: memref<512x256xbf16, #tpu.memory_space<vmem>>, %arg12: memref<1x256xf32, #tpu.memory_space<vmem>>, %arg13: memref<256x128xbf16, #tpu.memory_space<vmem>>, %arg14: memref<1x128xf32, #tpu.memory_space<vmem>>, %arg15: memref<8x128xf32, #tpu.memory_space<vmem>>, %arg16: memref<8x1024xbf16, #tpu.memory_space<vmem>>) attributes {dimension_semantics = [#tpu.dimension_semantics<parallel>, #tpu.dimension_semantics<arbitrary>], iteration_bounds = array<i64: 2, 1>, scalar_prefetch = 0 : i64, scratch_operands = 1 : i64, tpu.core_type = #tpu.core_type<tc>, window_params = [{transform_indices = @transform_0, window_bounds = array<i64: 128, 3>}, {pipeline_mode = #tpu.pipeline_mode<synchronous>, transform_indices = @transform_1, window_bounds = array<i64: 3, 64>}, {pipeline_mode = #tpu.pipeline_mode<synchronous>, transform_indices = @transform_2, window_bounds = array<i64: 1, 64>}, {pipeline_mode = #tpu.pipeline_mode<synchronous>, transform_indices = @transform_3, window_bounds = array<i64: 64, 128>}, {pipeline_mode = #tpu.pipeline_mode<synchronous>, transform_indices = @transform_4, window_bounds = array<i64: 1, 128>}, {pipeline_mode = #tpu.pipeline_mode<synchronous>, transform_indices = @transform_5, window_bounds = array<i64: 128, 1024>}, {pipeline_mode = #tpu.pipeline_mode<synchronous>, transform_indices = @transform_6, window_bounds = array<i64: 1, 1024>}, {pipeline_mode = #tpu.pipeline_mode<synchronous>, transform_indices = @transform_7, window_bounds = array<i64: 1024, 512>}, {pipeline_mode = #tpu.pipeline_mode<synchronous>, transform_indices = @transform_8, window_bounds = array<i64: 1, 512>}, {pipeline_mode = #tpu.pipeline_mode<synchronous>, transform_indices = @transform_9, window_bounds = array<i64: 512, 256>}, {pipeline_mode = #tpu.pipeline_mode<synchronous>, transform_indices = @transform_10, window_bounds = array<i64: 1, 256>}, {pipeline_mode = #tpu.pipeline_mode<synchronous>, transform_indices = @transform_11, window_bounds = array<i64: 256, 128>}, {pipeline_mode = #tpu.pipeline_mode<synchronous>, transform_indices = @transform_12, window_bounds = array<i64: 1, 128>}, {transform_indices = @transform_13, window_bounds = array<i64: 8, 128>}]} {
    %c0 = arith.constant 0 : index
    %c0_0 = arith.constant 0 : index
    %0 = vector.load %arg2[%c0, %c0_0] : memref<128x3xbf16, #tpu.memory_space<vmem>>, vector<128x3xbf16>
    %1 = arith.extf %0 : vector<128x3xbf16> to vector<128x3xf32>
    %c0_1 = arith.constant 0 : index
    %c0_2 = arith.constant 0 : index
    %2 = vector.load %arg3[%c0_1, %c0_2] : memref<3x64xbf16, #tpu.memory_space<vmem>>, vector<3x64xbf16>
    %3 = arith.extf %2 : vector<3x64xbf16> to vector<3x64xf32>
    %c0_3 = arith.constant 0 : index
    %c0_4 = arith.constant 0 : index
    %4 = vector.load %arg4[%c0_3, %c0_4] : memref<1x64xf32, #tpu.memory_space<vmem>>, vector<1x64xf32>
    %5 = vector.extract_strided_slice %1 {offsets = [0, 0], sizes = [128, 1], strides = [1, 1]} : vector<128x3xf32> to vector<128x1xf32>
    %6 = vector.extract_strided_slice %3 {offsets = [0, 0], sizes = [1, 64], strides = [1, 1]} : vector<3x64xf32> to vector<1x64xf32>
    %7 = vector.broadcast %5 : vector<128x1xf32> to vector<128x64xf32>
    %8 = vector.broadcast %6 : vector<1x64xf32> to vector<128x64xf32>
    %9 = arith.mulf %7, %8 : vector<128x64xf32>
    %10 = vector.broadcast %4 : vector<1x64xf32> to vector<128x64xf32>
    %11 = arith.addf %10, %9 : vector<128x64xf32>
    %12 = vector.extract_strided_slice %1 {offsets = [0, 1], sizes = [128, 1], strides = [1, 1]} : vector<128x3xf32> to vector<128x1xf32>
    %13 = vector.extract_strided_slice %3 {offsets = [1, 0], sizes = [1, 64], strides = [1, 1]} : vector<3x64xf32> to vector<1x64xf32>
    %14 = vector.broadcast %12 : vector<128x1xf32> to vector<128x64xf32>
    %15 = vector.broadcast %13 : vector<1x64xf32> to vector<128x64xf32>
    %16 = arith.mulf %14, %15 : vector<128x64xf32>
    %17 = arith.addf %11, %16 : vector<128x64xf32>
    %18 = vector.extract_strided_slice %1 {offsets = [0, 2], sizes = [128, 1], strides = [1, 1]} : vector<128x3xf32> to vector<128x1xf32>
    %19 = vector.extract_strided_slice %3 {offsets = [2, 0], sizes = [1, 64], strides = [1, 1]} : vector<3x64xf32> to vector<1x64xf32>
    %20 = vector.broadcast %18 : vector<128x1xf32> to vector<128x64xf32>
    %21 = vector.broadcast %19 : vector<1x64xf32> to vector<128x64xf32>
    %22 = arith.mulf %20, %21 : vector<128x64xf32>
    %23 = arith.addf %17, %22 : vector<128x64xf32>
    %cst = arith.constant 0.000000e+00 : f32
    %24 = vector.broadcast %cst : f32 to vector<128x64xf32>
    %25 = arith.maximumf %23, %24 : vector<128x64xf32>
    %26 = arith.truncf %25 : vector<128x64xf32> to vector<128x64xbf16>
    %c0_5 = arith.constant 0 : index
    %c0_6 = arith.constant 0 : index
    %27 = vector.load %arg5[%c0_5, %c0_6] : memref<64x128xbf16, #tpu.memory_space<vmem>>, vector<64x128xbf16>
    %cst_7 = arith.constant dense<0.000000e+00> : vector<128x128xf32>
    %28 = tpu.matmul %26, %27, %cst_7 {dimension_numbers = #tpu.dot_dimension_numbers<[1], [0], [0], [1], [0, 0, 1, 1], [], []>} : vector<128x64xbf16>, vector<64x128xbf16>, vector<128x128xf32> -> vector<128x128xf32>
    %c0_8 = arith.constant 0 : index
    %c0_9 = arith.constant 0 : index
    %29 = vector.load %arg6[%c0_8, %c0_9] : memref<1x128xf32, #tpu.memory_space<vmem>>, vector<1x128xf32>
    %30 = vector.broadcast %29 : vector<1x128xf32> to vector<128x128xf32>
    %31 = arith.addf %28, %30 : vector<128x128xf32>
    %cst_10 = arith.constant 0.000000e+00 : f32
    %32 = vector.broadcast %cst_10 : f32 to vector<128x128xf32>
    %33 = arith.maximumf %31, %32 : vector<128x128xf32>
    %34 = arith.truncf %33 : vector<128x128xf32> to vector<128x128xbf16>
    %c0_11 = arith.constant 0 : index
    %c0_12 = arith.constant 0 : index
    %35 = vector.load %arg7[%c0_11, %c0_12] : memref<128x1024xbf16, #tpu.memory_space<vmem>>, vector<128x1024xbf16>
    %cst_13 = arith.constant dense<0.000000e+00> : vector<128x1024xf32>
    %36 = tpu.matmul %34, %35, %cst_13 {dimension_numbers = #tpu.dot_dimension_numbers<[1], [0], [0], [1], [0, 0, 1, 1], [], []>} : vector<128x128xbf16>, vector<128x1024xbf16>, vector<128x1024xf32> -> vector<128x1024xf32>
    %c0_14 = arith.constant 0 : index
    %c0_15 = arith.constant 0 : index
    %37 = vector.load %arg8[%c0_14, %c0_15] : memref<1x1024xf32, #tpu.memory_space<vmem>>, vector<1x1024xf32>
    %38 = vector.broadcast %37 : vector<1x1024xf32> to vector<128x1024xf32>
    %39 = arith.addf %36, %38 : vector<128x1024xf32>
    %cst_16 = arith.constant 0.000000e+00 : f32
    %40 = vector.broadcast %cst_16 : f32 to vector<128x1024xf32>
    %41 = arith.maximumf %39, %40 : vector<128x1024xf32>
    %42 = arith.truncf %41 : vector<128x1024xf32> to vector<128x1024xbf16>
    %43 = vector.shape_cast %42 : vector<128x1024xbf16> to vector<8x16x1024xbf16>
    %cst_17 = arith.constant dense<0xFF80> : vector<8x1024xbf16>
    %44 = vector.multi_reduction <maximumf>, %43, %cst_17 [1] : vector<8x16x1024xbf16> to vector<8x1024xbf16>
    %c0_i32 = arith.constant 0 : i32
    %45 = arith.cmpi eq, %arg1, %c0_i32 : i32
    %46 = arith.extui %45 : i1 to i32
    %c0_i32_18 = arith.constant 0 : i32
    %47 = arith.cmpi ne, %46, %c0_i32_18 : i32
    scf.if %47 {
      %cst_25 = arith.constant 0xFF80 : bf16
      %54 = vector.broadcast %cst_25 : bf16 to vector<8x1024xbf16>
      %c0_26 = arith.constant 0 : index
      %c0_27 = arith.constant 0 : index
      %55 = vector.load %arg16[%c0_26, %c0_27] : memref<8x1024xbf16, #tpu.memory_space<vmem>>, vector<8x1024xbf16>
      tpu.vector_store %arg16[%c0_26, %c0_27], %54 {strides = array<i32>} : memref<8x1024xbf16, #tpu.memory_space<vmem>>, vector<8x1024xbf16>,
    } else {
    }
    %c0_19 = arith.constant 0 : index
    %c0_20 = arith.constant 0 : index
    %48 = vector.load %arg16[%c0_19, %c0_20] : memref<8x1024xbf16, #tpu.memory_space<vmem>>, vector<8x1024xbf16>
    %49 = arith.maximumf %48, %44 : vector<8x1024xbf16>
    %c0_21 = arith.constant 0 : index
    %c0_22 = arith.constant 0 : index
    %50 = vector.load %arg16[%c0_21, %c0_22] : memref<8x1024xbf16, #tpu.memory_space<vmem>>, vector<8x1024xbf16>
    tpu.vector_store %arg16[%c0_21, %c0_22], %49 {strides = array<i32>} : memref<8x1024xbf16, #tpu.memory_space<vmem>>, vector<8x1024xbf16>,
    %c0_i32_23 = arith.constant 0 : i32
    %51 = arith.cmpi eq, %arg1, %c0_i32_23 : i32
    %52 = arith.extui %51 : i1 to i32
    %c0_i32_24 = arith.constant 0 : i32
    %53 = arith.cmpi ne, %52, %c0_i32_24 : i32
    scf.if %53 {
      %c0_25 = arith.constant 0 : index
      %c0_26 = arith.constant 0 : index
      %54 = vector.load %arg16[%c0_25, %c0_26] : memref<8x1024xbf16, #tpu.memory_space<vmem>>, vector<8x1024xbf16>
      %c0_27 = arith.constant 0 : index
      %c0_28 = arith.constant 0 : index
      %55 = vector.load %arg9[%c0_27, %c0_28] : memref<1024x512xbf16, #tpu.memory_space<vmem>>, vector<1024x512xbf16>
      %cst_29 = arith.constant dense<0.000000e+00> : vector<8x512xf32>
      %56 = tpu.matmul %54, %55, %cst_29 {dimension_numbers = #tpu.dot_dimension_numbers<[1], [0], [0], [1], [0, 0, 1, 1], [], []>} : vector<8x1024xbf16>, vector<1024x512xbf16>, vector<8x512xf32> -> vector<8x512xf32>
      %c0_30 = arith.constant 0 : index
      %c0_31 = arith.constant 0 : index
      %57 = vector.load %arg10[%c0_30, %c0_31] : memref<1x512xf32, #tpu.memory_space<vmem>>, vector<1x512xf32>
      %58 = vector.broadcast %57 : vector<1x512xf32> to vector<8x512xf32>
      %59 = arith.addf %56, %58 : vector<8x512xf32>
      %cst_32 = arith.constant 0.000000e+00 : f32
      %60 = vector.broadcast %cst_32 : f32 to vector<8x512xf32>
      %61 = arith.maximumf %59, %60 : vector<8x512xf32>
      %62 = arith.truncf %61 : vector<8x512xf32> to vector<8x512xbf16>
      %c0_33 = arith.constant 0 : index
      %c0_34 = arith.constant 0 : index
      %63 = vector.load %arg11[%c0_33, %c0_34] : memref<512x256xbf16, #tpu.memory_space<vmem>>, vector<512x256xbf16>
      %cst_35 = arith.constant dense<0.000000e+00> : vector<8x256xf32>
      %64 = tpu.matmul %62, %63, %cst_35 {dimension_numbers = #tpu.dot_dimension_numbers<[1], [0], [0], [1], [0, 0, 1, 1], [], []>} : vector<8x512xbf16>, vector<512x256xbf16>, vector<8x256xf32> -> vector<8x256xf32>
      %c0_36 = arith.constant 0 : index
      %c0_37 = arith.constant 0 : index
      %65 = vector.load %arg12[%c0_36, %c0_37] : memref<1x256xf32, #tpu.memory_space<vmem>>, vector<1x256xf32>
      %66 = vector.broadcast %65 : vector<1x256xf32> to vector<8x256xf32>
      %67 = arith.addf %64, %66 : vector<8x256xf32>
      %cst_38 = arith.constant 0.000000e+00 : f32
      %68 = vector.broadcast %cst_38 : f32 to vector<8x256xf32>
      %69 = arith.maximumf %67, %68 : vector<8x256xf32>
      %70 = arith.truncf %69 : vector<8x256xf32> to vector<8x256xbf16>
      %c0_39 = arith.constant 0 : index
      %c0_40 = arith.constant 0 : index
      %71 = vector.load %arg13[%c0_39, %c0_40] : memref<256x128xbf16, #tpu.memory_space<vmem>>, vector<256x128xbf16>
      %cst_41 = arith.constant dense<0.000000e+00> : vector<8x128xf32>
      %72 = tpu.matmul %70, %71, %cst_41 {dimension_numbers = #tpu.dot_dimension_numbers<[1], [0], [0], [1], [0, 0, 1, 1], [], []>} : vector<8x256xbf16>, vector<256x128xbf16>, vector<8x128xf32> -> vector<8x128xf32>
      %c0_42 = arith.constant 0 : index
      %c0_43 = arith.constant 0 : index
      %73 = vector.load %arg14[%c0_42, %c0_43] : memref<1x128xf32, #tpu.memory_space<vmem>>, vector<1x128xf32>
      %74 = vector.broadcast %73 : vector<1x128xf32> to vector<8x128xf32>
      %75 = arith.addf %72, %74 : vector<8x128xf32>
      %c0_44 = arith.constant 0 : index
      %c0_45 = arith.constant 0 : index
      %76 = vector.load %arg15[%c0_44, %c0_45] : memref<8x128xf32, #tpu.memory_space<vmem>>, vector<8x128xf32>
      tpu.vector_store %arg15[%c0_44, %c0_45], %75 {strides = array<i32>} : memref<8x128xf32, #tpu.memory_space<vmem>>, vector<8x128xf32>,
    } else {
    }
    return
  }
  func.func @transform_0(%arg0: i32, %arg1: i32) -> (i32, i32) {
    %c1_i32 = arith.constant 1 : i32
    %0 = arith.muli %arg0, %c1_i32 : i32
    %1 = arith.addi %0, %arg1 : i32
    %c0_i32 = arith.constant 0 : i32
    %c0_i32_0 = arith.constant 0 : i32
    return %1, %c0_i32 : i32, i32
  }
  func.func @transform_1(%arg0: i32, %arg1: i32) -> (i32, i32) {
    %c0_i32 = arith.constant 0 : i32
    %c0_i32_0 = arith.constant 0 : i32
    %c0_i32_1 = arith.constant 0 : i32
    return %c0_i32, %c0_i32_0 : i32, i32
  }
  func.func @transform_2(%arg0: i32, %arg1: i32) -> (i32, i32) {
    %c0_i32 = arith.constant 0 : i32
    %c0_i32_0 = arith.constant 0 : i32
    %c0_i32_1 = arith.constant 0 : i32
    return %c0_i32, %c0_i32_0 : i32, i32
  }
  func.func @transform_3(%arg0: i32, %arg1: i32) -> (i32, i32) {
    %c0_i32 = arith.constant 0 : i32
    %c0_i32_0 = arith.constant 0 : i32
    %c0_i32_1 = arith.constant 0 : i32
    return %c0_i32, %c0_i32_0 : i32, i32
  }
  func.func @transform_4(%arg0: i32, %arg1: i32) -> (i32, i32) {
    %c0_i32 = arith.constant 0 : i32
    %c0_i32_0 = arith.constant 0 : i32
    %c0_i32_1 = arith.constant 0 : i32
    return %c0_i32, %c0_i32_0 : i32, i32
  }
  func.func @transform_5(%arg0: i32, %arg1: i32) -> (i32, i32) {
    %c0_i32 = arith.constant 0 : i32
    %c0_i32_0 = arith.constant 0 : i32
    %c0_i32_1 = arith.constant 0 : i32
    return %c0_i32, %c0_i32_0 : i32, i32
  }
  func.func @transform_6(%arg0: i32, %arg1: i32) -> (i32, i32) {
    %c0_i32 = arith.constant 0 : i32
    %c0_i32_0 = arith.constant 0 : i32
    %c0_i32_1 = arith.constant 0 : i32
    return %c0_i32, %c0_i32_0 : i32, i32
  }
  func.func @transform_7(%arg0: i32, %arg1: i32) -> (i32, i32) {
    %c0_i32 = arith.constant 0 : i32
    %c0_i32_0 = arith.constant 0 : i32
    %c0_i32_1 = arith.constant 0 : i32
    return %c0_i32, %c0_i32_0 : i32, i32
  }
  func.func @transform_8(%arg0: i32, %arg1: i32) -> (i32, i32) {
    %c0_i32 = arith.constant 0 : i32
    %c0_i32_0 = arith.constant 0 : i32
    %c0_i32_1 = arith.constant 0 : i32
    return %c0_i32, %c0_i32_0 : i32, i32
  }
  func.func @transform_9(%arg0: i32, %arg1: i32) -> (i32, i32) {
    %c0_i32 = arith.constant 0 : i32
    %c0_i32_0 = arith.constant 0 : i32
    %c0_i32_1 = arith.constant 0 : i32
    return %c0_i32, %c0_i32_0 : i32, i32
  }
  func.func @transform_10(%arg0: i32, %arg1: i32) -> (i32, i32) {
    %c0_i32 = arith.constant 0 : i32
    %c0_i32_0 = arith.constant 0 : i32
    %c0_i32_1 = arith.constant 0 : i32
    return %c0_i32, %c0_i32_0 : i32, i32
  }
  func.func @transform_11(%arg0: i32, %arg1: i32) -> (i32, i32) {
    %c0_i32 = arith.constant 0 : i32
    %c0_i32_0 = arith.constant 0 : i32
    %c0_i32_1 = arith.constant 0 : i32
    return %c0_i32, %c0_i32_0 : i32, i32
  }
  func.func @transform_12(%arg0: i32, %arg1: i32) -> (i32, i32) {
    %c0_i32 = arith.constant 0 : i32
    %c0_i32_0 = arith.constant 0 : i32
    %c0_i32_1 = arith.constant 0 : i32
    return %c0_i32, %c0_i32_0 : i32, i32
  }
  func.func @transform_13(%arg0: i32, %arg1: i32) -> (i32, i32) {
    %c0_i32 = arith.constant 0 : i32
    %c0_i32_0 = arith.constant 0 : i32
    return %arg0, %c0_i32 : i32, i32
  }
}

module attributes {stable_mosaic.version = 11 : i64} {
  func.func @stn3d_kernel(%arg0: i32, %arg1: i32, %arg2: memref<128x3xbf16, #tpu.memory_space<vmem>>, %arg3: memref<3x64xbf16, #tpu.memory_space<vmem>>, %arg4: memref<1x64xf32, #tpu.memory_space<vmem>>, %arg5: memref<64x128xbf16, #tpu.memory_space<vmem>>, %arg6: memref<1x128xf32, #tpu.memory_space<vmem>>, %arg7: memref<128x1024xbf16, #tpu.memory_space<vmem>>, %arg8: memref<1x1024xf32, #tpu.memory_space<vmem>>, %arg9: memref<1024x512xbf16, #tpu.memory_space<vmem>>, %arg10: memref<1x512xf32, #tpu.memory_space<vmem>>, %arg11: memref<512x256xbf16, #tpu.memory_space<vmem>>, %arg12: memref<1x256xf32, #tpu.memory_space<vmem>>, %arg13: memref<256x128xbf16, #tpu.memory_space<vmem>>, %arg14: memref<1x128xf32, #tpu.memory_space<vmem>>, %arg15: memref<8x128xf32, #tpu.memory_space<vmem>>, %arg16: memref<8x1024xbf16, #tpu.memory_space<vmem>>) attributes {dimension_semantics = [#tpu.dimension_semantics<parallel>, #tpu.dimension_semantics<arbitrary>], iteration_bounds = array<i64: 2, 1>, scalar_prefetch = 0 : i64, scratch_operands = 1 : i64, tpu.core_type = #tpu.core_type<tc>, window_params = [{transform_indices = @transform_0, window_bounds = array<i64: 128, 3>}, {pipeline_mode = #tpu.pipeline_mode<synchronous>, transform_indices = @transform_1, window_bounds = array<i64: 3, 64>}, {pipeline_mode = #tpu.pipeline_mode<synchronous>, transform_indices = @transform_2, window_bounds = array<i64: 1, 64>}, {pipeline_mode = #tpu.pipeline_mode<synchronous>, transform_indices = @transform_3, window_bounds = array<i64: 64, 128>}, {pipeline_mode = #tpu.pipeline_mode<synchronous>, transform_indices = @transform_4, window_bounds = array<i64: 1, 128>}, {pipeline_mode = #tpu.pipeline_mode<synchronous>, transform_indices = @transform_5, window_bounds = array<i64: 128, 1024>}, {pipeline_mode = #tpu.pipeline_mode<synchronous>, transform_indices = @transform_6, window_bounds = array<i64: 1, 1024>}, {pipeline_mode = #tpu.pipeline_mode<synchronous>, transform_indices = @transform_7, window_bounds = array<i64: 1024, 512>}, {pipeline_mode = #tpu.pipeline_mode<synchronous>, transform_indices = @transform_8, window_bounds = array<i64: 1, 512>}, {pipeline_mode = #tpu.pipeline_mode<synchronous>, transform_indices = @transform_9, window_bounds = array<i64: 512, 256>}, {pipeline_mode = #tpu.pipeline_mode<synchronous>, transform_indices = @transform_10, window_bounds = array<i64: 1, 256>}, {pipeline_mode = #tpu.pipeline_mode<synchronous>, transform_indices = @transform_11, window_bounds = array<i64: 256, 128>}, {pipeline_mode = #tpu.pipeline_mode<synchronous>, transform_indices = @transform_12, window_bounds = array<i64: 1, 128>}, {transform_indices = @transform_13, window_bounds = array<i64: 8, 128>}]} {
    %c0 = arith.constant 0 : index
    %c0_0 = arith.constant 0 : index
    %0 = vector.load %arg2[%c0, %c0_0] : memref<128x3xbf16, #tpu.memory_space<vmem>>, vector<128x3xbf16>
    %1 = arith.extf %0 : vector<128x3xbf16> to vector<128x3xf32>
    %c0_1 = arith.constant 0 : index
    %c0_2 = arith.constant 0 : index
    %2 = vector.load %arg3[%c0_1, %c0_2] : memref<3x64xbf16, #tpu.memory_space<vmem>>, vector<3x64xbf16>
    %3 = arith.extf %2 : vector<3x64xbf16> to vector<3x64xf32>
    %c0_3 = arith.constant 0 : index
    %c0_4 = arith.constant 0 : index
    %4 = vector.load %arg4[%c0_3, %c0_4] : memref<1x64xf32, #tpu.memory_space<vmem>>, vector<1x64xf32>
    %5 = vector.extract_strided_slice %1 {offsets = [0, 0], sizes = [128, 1], strides = [1, 1]} : vector<128x3xf32> to vector<128x1xf32>
    %6 = vector.extract_strided_slice %3 {offsets = [0, 0], sizes = [1, 64], strides = [1, 1]} : vector<3x64xf32> to vector<1x64xf32>
    %7 = vector.broadcast %5 : vector<128x1xf32> to vector<128x64xf32>
    %8 = vector.broadcast %6 : vector<1x64xf32> to vector<128x64xf32>
    %9 = arith.mulf %7, %8 : vector<128x64xf32>
    %10 = vector.broadcast %4 : vector<1x64xf32> to vector<128x64xf32>
    %11 = arith.addf %10, %9 : vector<128x64xf32>
    %12 = vector.extract_strided_slice %1 {offsets = [0, 1], sizes = [128, 1], strides = [1, 1]} : vector<128x3xf32> to vector<128x1xf32>
    %13 = vector.extract_strided_slice %3 {offsets = [1, 0], sizes = [1, 64], strides = [1, 1]} : vector<3x64xf32> to vector<1x64xf32>
    %14 = vector.broadcast %12 : vector<128x1xf32> to vector<128x64xf32>
    %15 = vector.broadcast %13 : vector<1x64xf32> to vector<128x64xf32>
    %16 = arith.mulf %14, %15 : vector<128x64xf32>
    %17 = arith.addf %11, %16 : vector<128x64xf32>
    %18 = vector.extract_strided_slice %1 {offsets = [0, 2], sizes = [128, 1], strides = [1, 1]} : vector<128x3xf32> to vector<128x1xf32>
    %19 = vector.extract_strided_slice %3 {offsets = [2, 0], sizes = [1, 64], strides = [1, 1]} : vector<3x64xf32> to vector<1x64xf32>
    %20 = vector.broadcast %18 : vector<128x1xf32> to vector<128x64xf32>
    %21 = vector.broadcast %19 : vector<1x64xf32> to vector<128x64xf32>
    %22 = arith.mulf %20, %21 : vector<128x64xf32>
    %23 = arith.addf %17, %22 : vector<128x64xf32>
    %cst = arith.constant 0.000000e+00 : f32
    %24 = vector.broadcast %cst : f32 to vector<128x64xf32>
    %25 = arith.maximumf %23, %24 : vector<128x64xf32>
    %26 = arith.truncf %25 : vector<128x64xf32> to vector<128x64xbf16>
    %c0_5 = arith.constant 0 : index
    %c0_6 = arith.constant 0 : index
    %27 = vector.load %arg5[%c0_5, %c0_6] : memref<64x128xbf16, #tpu.memory_space<vmem>>, vector<64x128xbf16>
    %cst_7 = arith.constant dense<0.000000e+00> : vector<128x128xf32>
    %28 = tpu.matmul %26, %27, %cst_7 {dimension_numbers = #tpu.dot_dimension_numbers<[1], [0], [0], [1], [0, 0, 1, 1], [], []>} : vector<128x64xbf16>, vector<64x128xbf16>, vector<128x128xf32> -> vector<128x128xf32>
    %c0_8 = arith.constant 0 : index
    %c0_9 = arith.constant 0 : index
    %29 = vector.load %arg6[%c0_8, %c0_9] : memref<1x128xf32, #tpu.memory_space<vmem>>, vector<1x128xf32>
    %30 = vector.broadcast %29 : vector<1x128xf32> to vector<128x128xf32>
    %31 = arith.addf %28, %30 : vector<128x128xf32>
    %cst_10 = arith.constant 0.000000e+00 : f32
    %32 = vector.broadcast %cst_10 : f32 to vector<128x128xf32>
    %33 = arith.maximumf %31, %32 : vector<128x128xf32>
    %34 = arith.truncf %33 : vector<128x128xf32> to vector<128x128xbf16>
    %c0_11 = arith.constant 0 : index
    %c0_12 = arith.constant 0 : index
    %35 = vector.load %arg7[%c0_11, %c0_12] : memref<128x1024xbf16, #tpu.memory_space<vmem>>, vector<128x1024xbf16>
    %cst_13 = arith.constant dense<0.000000e+00> : vector<128x1024xf32>
    %36 = tpu.matmul %34, %35, %cst_13 {dimension_numbers = #tpu.dot_dimension_numbers<[1], [0], [0], [1], [0, 0, 1, 1], [], []>} : vector<128x128xbf16>, vector<128x1024xbf16>, vector<128x1024xf32> -> vector<128x1024xf32>
    %c0_14 = arith.constant 0 : index
    %c0_15 = arith.constant 0 : index
    %37 = vector.load %arg8[%c0_14, %c0_15] : memref<1x1024xf32, #tpu.memory_space<vmem>>, vector<1x1024xf32>
    %38 = vector.broadcast %37 : vector<1x1024xf32> to vector<128x1024xf32>
    %39 = arith.addf %36, %38 : vector<128x1024xf32>
    %cst_16 = arith.constant 0.000000e+00 : f32
    %40 = vector.broadcast %cst_16 : f32 to vector<128x1024xf32>
    %41 = arith.maximumf %39, %40 : vector<128x1024xf32>
    %42 = arith.truncf %41 : vector<128x1024xf32> to vector<128x1024xbf16>
    %43 = vector.shape_cast %42 : vector<128x1024xbf16> to vector<8x16x1024xbf16>
    %cst_17 = arith.constant dense<0xFF80> : vector<8x1024xbf16>
    %44 = vector.multi_reduction <maximumf>, %43, %cst_17 [1] : vector<8x16x1024xbf16> to vector<8x1024xbf16>
    %c0_i32 = arith.constant 0 : i32
    %45 = arith.cmpi eq, %arg1, %c0_i32 : i32
    %46 = arith.extui %45 : i1 to i32
    %c0_i32_18 = arith.constant 0 : i32
    %47 = arith.cmpi ne, %46, %c0_i32_18 : i32
    scf.if %47 {
      %cst_25 = arith.constant 0xFF80 : bf16
      %54 = vector.broadcast %cst_25 : bf16 to vector<8x1024xbf16>
      %c0_26 = arith.constant 0 : index
      %c0_27 = arith.constant 0 : index
      %55 = vector.load %arg16[%c0_26, %c0_27] : memref<8x1024xbf16, #tpu.memory_space<vmem>>, vector<8x1024xbf16>
      tpu.vector_store %arg16[%c0_26, %c0_27], %54 {strides = array<i32>} : memref<8x1024xbf16, #tpu.memory_space<vmem>>, vector<8x1024xbf16>,
    } else {
    }
    %c0_19 = arith.constant 0 : index
    %c0_20 = arith.constant 0 : index
    %48 = vector.load %arg16[%c0_19, %c0_20] : memref<8x1024xbf16, #tpu.memory_space<vmem>>, vector<8x1024xbf16>
    %49 = arith.maximumf %48, %44 : vector<8x1024xbf16>
    %c0_21 = arith.constant 0 : index
    %c0_22 = arith.constant 0 : index
    %50 = vector.load %arg16[%c0_21, %c0_22] : memref<8x1024xbf16, #tpu.memory_space<vmem>>, vector<8x1024xbf16>
    tpu.vector_store %arg16[%c0_21, %c0_22], %49 {strides = array<i32>} : memref<8x1024xbf16, #tpu.memory_space<vmem>>, vector<8x1024xbf16>,
    %c0_i32_23 = arith.constant 0 : i32
    %51 = arith.cmpi eq, %arg1, %c0_i32_23 : i32
    %52 = arith.extui %51 : i1 to i32
    %c0_i32_24 = arith.constant 0 : i32
    %53 = arith.cmpi ne, %52, %c0_i32_24 : i32
    scf.if %53 {
      %c0_25 = arith.constant 0 : index
      %c0_26 = arith.constant 0 : index
      %54 = vector.load %arg16[%c0_25, %c0_26] : memref<8x1024xbf16, #tpu.memory_space<vmem>>, vector<8x1024xbf16>
      %c0_27 = arith.constant 0 : index
      %c0_28 = arith.constant 0 : index
      %55 = vector.load %arg9[%c0_27, %c0_28] : memref<1024x512xbf16, #tpu.memory_space<vmem>>, vector<1024x512xbf16>
      %cst_29 = arith.constant dense<0.000000e+00> : vector<8x512xf32>
      %56 = tpu.matmul %54, %55, %cst_29 {dimension_numbers = #tpu.dot_dimension_numbers<[1], [0], [0], [1], [0, 0, 1, 1], [], []>} : vector<8x1024xbf16>, vector<1024x512xbf16>, vector<8x512xf32> -> vector<8x512xf32>
      %c0_30 = arith.constant 0 : index
      %c0_31 = arith.constant 0 : index
      %57 = vector.load %arg10[%c0_30, %c0_31] : memref<1x512xf32, #tpu.memory_space<vmem>>, vector<1x512xf32>
      %58 = vector.broadcast %57 : vector<1x512xf32> to vector<8x512xf32>
      %59 = arith.addf %56, %58 : vector<8x512xf32>
      %cst_32 = arith.constant 0.000000e+00 : f32
      %60 = vector.broadcast %cst_32 : f32 to vector<8x512xf32>
      %61 = arith.maximumf %59, %60 : vector<8x512xf32>
      %62 = arith.truncf %61 : vector<8x512xf32> to vector<8x512xbf16>
      %c0_33 = arith.constant 0 : index
      %c0_34 = arith.constant 0 : index
      %63 = vector.load %arg11[%c0_33, %c0_34] : memref<512x256xbf16, #tpu.memory_space<vmem>>, vector<512x256xbf16>
      %cst_35 = arith.constant dense<0.000000e+00> : vector<8x256xf32>
      %64 = tpu.matmul %62, %63, %cst_35 {dimension_numbers = #tpu.dot_dimension_numbers<[1], [0], [0], [1], [0, 0, 1, 1], [], []>} : vector<8x512xbf16>, vector<512x256xbf16>, vector<8x256xf32> -> vector<8x256xf32>
      %c0_36 = arith.constant 0 : index
      %c0_37 = arith.constant 0 : index
      %65 = vector.load %arg12[%c0_36, %c0_37] : memref<1x256xf32, #tpu.memory_space<vmem>>, vector<1x256xf32>
      %66 = vector.broadcast %65 : vector<1x256xf32> to vector<8x256xf32>
      %67 = arith.addf %64, %66 : vector<8x256xf32>
      %cst_38 = arith.constant 0.000000e+00 : f32
      %68 = vector.broadcast %cst_38 : f32 to vector<8x256xf32>
      %69 = arith.maximumf %67, %68 : vector<8x256xf32>
      %70 = arith.truncf %69 : vector<8x256xf32> to vector<8x256xbf16>
      %c0_39 = arith.constant 0 : index
      %c0_40 = arith.constant 0 : index
      %71 = vector.load %arg13[%c0_39, %c0_40] : memref<256x128xbf16, #tpu.memory_space<vmem>>, vector<256x128xbf16>
      %cst_41 = arith.constant dense<0.000000e+00> : vector<8x128xf32>
      %72 = tpu.matmul %70, %71, %cst_41 {dimension_numbers = #tpu.dot_dimension_numbers<[1], [0], [0], [1], [0, 0, 1, 1], [], []>} : vector<8x256xbf16>, vector<256x128xbf16>, vector<8x128xf32> -> vector<8x128xf32>
      %c0_42 = arith.constant 0 : index
      %c0_43 = arith.constant 0 : index
      %73 = vector.load %arg14[%c0_42, %c0_43] : memref<1x128xf32, #tpu.memory_space<vmem>>, vector<1x128xf32>
      %74 = vector.broadcast %73 : vector<1x128xf32> to vector<8x128xf32>
      %75 = arith.addf %72, %74 : vector<8x128xf32>
      %c0_44 = arith.constant 0 : index
      %c0_45 = arith.constant 0 : index
      %76 = vector.load %arg15[%c0_44, %c0_45] : memref<8x128xf32, #tpu.memory_space<vmem>>, vector<8x128xf32>
      tpu.vector_store %arg15[%c0_44, %c0_45], %75 {strides = array<i32>} : memref<8x128xf32, #tpu.memory_space<vmem>>, vector<8x128xf32>,
    } else {
    }
    return
  }
  func.func @transform_0(%arg0: i32, %arg1: i32) -> (i32, i32) {
    %c1_i32 = arith.constant 1 : i32
    %0 = arith.muli %arg0, %c1_i32 : i32
    %1 = arith.addi %0, %arg1 : i32
    %c0_i32 = arith.constant 0 : i32
    %c0_i32_0 = arith.constant 0 : i32
    return %1, %c0_i32 : i32, i32
  }
  func.func @transform_1(%arg0: i32, %arg1: i32) -> (i32, i32) {
    %c0_i32 = arith.constant 0 : i32
    %c0_i32_0 = arith.constant 0 : i32
    %c0_i32_1 = arith.constant 0 : i32
    return %c0_i32, %c0_i32_0 : i32, i32
  }
  func.func @transform_2(%arg0: i32, %arg1: i32) -> (i32, i32) {
    %c0_i32 = arith.constant 0 : i32
    %c0_i32_0 = arith.constant 0 : i32
    %c0_i32_1 = arith.constant 0 : i32
    return %c0_i32, %c0_i32_0 : i32, i32
  }
  func.func @transform_3(%arg0: i32, %arg1: i32) -> (i32, i32) {
    %c0_i32 = arith.constant 0 : i32
    %c0_i32_0 = arith.constant 0 : i32
    %c0_i32_1 = arith.constant 0 : i32
    return %c0_i32, %c0_i32_0 : i32, i32
  }
  func.func @transform_4(%arg0: i32, %arg1: i32) -> (i32, i32) {
    %c0_i32 = arith.constant 0 : i32
    %c0_i32_0 = arith.constant 0 : i32
    %c0_i32_1 = arith.constant 0 : i32
    return %c0_i32, %c0_i32_0 : i32, i32
  }
  func.func @transform_5(%arg0: i32, %arg1: i32) -> (i32, i32) {
    %c0_i32 = arith.constant 0 : i32
    %c0_i32_0 = arith.constant 0 : i32
    %c0_i32_1 = arith.constant 0 : i32
    return %c0_i32, %c0_i32_0 : i32, i32
  }
  func.func @transform_6(%arg0: i32, %arg1: i32) -> (i32, i32) {
    %c0_i32 = arith.constant 0 : i32
    %c0_i32_0 = arith.constant 0 : i32
    %c0_i32_1 = arith.constant 0 : i32
    return %c0_i32, %c0_i32_0 : i32, i32
  }
  func.func @transform_7(%arg0: i32, %arg1: i32) -> (i32, i32) {
    %c0_i32 = arith.constant 0 : i32
    %c0_i32_0 = arith.constant 0 : i32
    %c0_i32_1 = arith.constant 0 : i32
    return %c0_i32, %c0_i32_0 : i32, i32
  }
  func.func @transform_8(%arg0: i32, %arg1: i32) -> (i32, i32) {
    %c0_i32 = arith.constant 0 : i32
    %c0_i32_0 = arith.constant 0 : i32
    %c0_i32_1 = arith.constant 0 : i32
    return %c0_i32, %c0_i32_0 : i32, i32
  }
  func.func @transform_9(%arg0: i32, %arg1: i32) -> (i32, i32) {
    %c0_i32 = arith.constant 0 : i32
    %c0_i32_0 = arith.constant 0 : i32
    %c0_i32_1 = arith.constant 0 : i32
    return %c0_i32, %c0_i32_0 : i32, i32
  }
  func.func @transform_10(%arg0: i32, %arg1: i32) -> (i32, i32) {
    %c0_i32 = arith.constant 0 : i32
    %c0_i32_0 = arith.constant 0 : i32
    %c0_i32_1 = arith.constant 0 : i32
    return %c0_i32, %c0_i32_0 : i32, i32
  }
  func.func @transform_11(%arg0: i32, %arg1: i32) -> (i32, i32) {
    %c0_i32 = arith.constant 0 : i32
    %c0_i32_0 = arith.constant 0 : i32
    %c0_i32_1 = arith.constant 0 : i32
    return %c0_i32, %c0_i32_0 : i32, i32
  }
  func.func @transform_12(%arg0: i32, %arg1: i32) -> (i32, i32) {
    %c0_i32 = arith.constant 0 : i32
    %c0_i32_0 = arith.constant 0 : i32
    %c0_i32_1 = arith.constant 0 : i32
    return %c0_i32, %c0_i32_0 : i32, i32
  }
  func.func @transform_13(%arg0: i32, %arg1: i32) -> (i32, i32) {
    %c0_i32 = arith.constant 0 : i32
    %c0_i32_0 = arith.constant 0 : i32
    return %arg0, %c0_i32 : i32, i32
  }
}

</mosaic_0001>

<llo_original>
// kernel: tpu_custom_call.1
$region0: #{tpu_custom_call.1}
  #allocation0 [shape = 'u32[]', space=smem, size = 0x4, offset = 0x4, fixed_abs, tag = 'smem constant byte address 0x4 - core index']
  #allocation1 [shape = 'u32[144,128]{1,0:T(1,128)}', space=vmem, size = 0x12000, scoped, tag = 'internal scratch']
  #allocation2 [shape = 'bf16[8,1024]{1,0:T(8,128)(2,1)}', space=vmem, size = 0x4000, scoped, tag = 'scratch operand']
  %s0 = inlined_call_operand.vmem [shape: bf16[256,3], index: 0, kind: input, shape index: {}]
  %s1 = inlined_call_operand.hbm [shape: bf16[3,64], index: 1, kind: input, shape index: {}]
  %s2 = inlined_call_operand.vmem [shape: f32[1,64], index: 2, kind: input, shape index: {}]
  %s3 = inlined_call_operand.vmem [shape: bf16[64,128], index: 3, kind: input, shape index: {}]
  %s4 = inlined_call_operand.hbm [shape: f32[1,128], index: 4, kind: input, shape index: {}]
  %s5 = inlined_call_operand.hbm [shape: bf16[128,1024], index: 5, kind: input, shape index: {}]
  %s6 = inlined_call_operand.vmem [shape: f32[1,1024], index: 6, kind: input, shape index: {}]
  %s7 = inlined_call_operand.hbm [shape: bf16[1024,512], index: 7, kind: input, shape index: {}]
  %s8 = inlined_call_operand.vmem [shape: f32[1,512], index: 8, kind: input, shape index: {}]
  %s9 = inlined_call_operand.hbm [shape: bf16[512,256], index: 9, kind: input, shape index: {}]
  %s10 = inlined_call_operand.hbm [shape: f32[1,256], index: 10, kind: input, shape index: {}]
  %s11 = inlined_call_operand.vmem [shape: bf16[256,128], index: 11, kind: input, shape index: {}]
  %s12 = inlined_call_operand.vmem [shape: f32[1,128], index: 12, kind: input, shape index: {}]
  %s13 = inlined_call_operand.hbm [shape: f32[16,128], index: 13, kind: output, shape index: {}]
  %s14 = sld [smem:[#allocation0]]
  $region117: #{tpu_custom_call.1} parent=0
    _
  %s16 = ssub.s32 1, %s14
  %s17 = scalar_select 0, %s16, %s14
  $region1: #{tpu_custom_call.1} parent=0
    #allocation3 [shape = 'u8[1024]{0}', space=vmem, size = 0x400, scoped, tag = 'input window, operand 1, single buffered']
    #allocation4 [shape = 's32[2]{0}', space=sflag, size = 0x8, scoped, tag = 'scoped memory for tpu_custom_call.1']
    #allocation5 [shape = 's32[2]{0}', space=sflag, size = 0x8, scoped, tag = 'scoped memory for tpu_custom_call.1']
    #allocation6 [shape = 'u8[512]{0}', space=vmem, size = 0x400, scoped, tag = 'input window, operand 4, single buffered']
    #allocation7 [shape = 's32[1]{0}', space=sflag, size = 0x4, scoped, tag = 'scoped memory for tpu_custom_call.1']
    #allocation8 [shape = 'u8[262144]{0}', space=vmem, size = 0x40000, scoped, tag = 'input window, operand 5, single buffered']
    #allocation9 [shape = 'u8[1048576]{0}', space=vmem, size = 0x100000, scoped, tag = 'input window, operand 7, single buffered']
    #allocation10 [shape = 's32[1]{0}', space=sflag, size = 0x4, scoped, tag = 'scoped memory for tpu_custom_call.1']
    #allocation11 [shape = 'u8[262144]{0}', space=vmem, size = 0x40000, scoped, tag = 'input window, operand 9, single buffered']
    #allocation12 [shape = 'u8[1024]{0}', space=vmem, size = 0x400, scoped, tag = 'input window, operand 10, single buffered']
    #allocation13 [shape = 's32[1]{0}', space=sflag, size = 0x4, scoped, tag = 'scoped memory for tpu_custom_call.1']
    #allocation14 [shape = 'u8[8192]{0}', space=vmem, size = 0x2000, scoped, tag = 'output window, operand 0']
    %18 = vsyncpa [#allocation4], 0
    %19 = vsyncpa [#allocation7], 0
    %20 = vsyncpa [#allocation10], 0
    %21 = vsyncpa [#allocation13], 0
    %22 = vsyncpa [#allocation5], 0
    %s23 = scalar_lea.sflag [#allocation5], 1
    %24 = vsyncpa %s23, 0
    loop: start=0, step=1, limit=4
    $region2: #{tpu_custom_call.1} parent=1 // loop_pre_header
      _
    $region3: #{tpu_custom_call.1} parent=1 // loop_header
      %s26 = sphi 0, %s30
      %p27 = scmp.ge.s32.totalorder %s26, 4
      %s33 = sphi 0, %s45
      %s34 = sphi 0, %s41
      %s35 = sphi 0, %s33
      %s36 = sphi 0, %s34
      %s37 = sphi 0, %s35
      %s38 = sphi 0, %s36
      %s50 = sphi 0, %s52
      %s53 = sphi 0, %s50
      %s54 = sphi 0, %s53
      %s70 = sphi 0, %s54
      %s74 = sphi 0, %s74
      %s76 = sphi 0, %s74
      %s77 = sphi 0, %s76
      %s91 = sphi 0, %s77
      %s95 = sphi 0, %s95
      %s97 = sphi 0, %s95
      %s98 = sphi 0, %s97
      %s112 = sphi 0, %s98
      %s116 = sphi 0, %s116
      %s118 = sphi 0, %s116
      %s119 = sphi 0, %s118
      %s133 = sphi 0, %s119
      %s137 = sphi 0, %s137
      %s139 = sphi 0, %s137
      %s140 = sphi 0, %s139
      %s154 = sphi 0, %s140
      %s158 = sphi 0, %s158
      %s160 = sphi 0, %s158
      %s161 = sphi 0, %s160
      %s175 = sphi 0, %s161
      %s179 = sphi 0, %s179
      %s181 = sphi 0, %s179
      %s182 = sphi 0, %s181
      %s196 = sphi 0, %s182
      %s200 = sphi 0, %s200
      %s202 = sphi 0, %s200
      %s203 = sphi 0, %s202
      %s217 = sphi 0, %s203
      %s221 = sphi 0, %s221
      %s223 = sphi 0, %s221
      %s224 = sphi 0, %s223
      %s238 = sphi 0, %s224
      %s242 = sphi 0, %s242
      %s244 = sphi 0, %s242
      %s245 = sphi 0, %s244
      %s259 = sphi 0, %s245
      %s263 = sphi 0, %s263
      %s265 = sphi 0, %s263
      %s266 = sphi 0, %s265
      %s280 = sphi 0, %s266
      %s284 = sphi 0, %s284
      %s286 = sphi 0, %s284
      %s287 = sphi 0, %s286
      %s301 = sphi 0, %s287
      %s305 = sphi 0, %s305
      %s307 = sphi 0, %s305
      %s308 = sphi 0, %s307
      %s322 = sphi 0, %s308
      %s328 = sphi 0, %s330
      %s331 = sphi 0, %s328
      %s332 = sphi 0, %s331
      %s348 = sphi 0, %s332
    $region4: #{tpu_custom_call.1} parent=1 // loop_header_branch
      %29 = sbr.rel (%p27) target = $region8
    $region5: #{tpu_custom_call.1} parent=1 // loop_body
      %s31 = ssub.s32 %s26, 1
      %s32 = ssub.s32 %s26, 2
      %s39 = sadd.s32 1, %s34
      %p40 = scmp.ge.s32.totalorder %s39, 1
      %s41 = scalar_select %p40, 0, %s39
      %s42 = sadd.s32 1, %s33
      %s43 = scalar_select %p40, %s42, %s33
      %p44 = scmp.ge.s32.totalorder %s43, 2
      %s45 = scalar_select %p44, 0, %s43
      %s46 = sadd.s32 %s33, %s34
      %s47 = sadd.s32 %s45, %s41
      %s48 = ssub.s32 %s46, %s47
      %p49 = scmp.eq.s32.totalorder %s48, 0
      %s51 = sadd.s32 %s50, 1
      %s52 = scalar_select %p49, %s50, %s51
      %p55 = pneg %p49
      %p56 = scmp.eq.s32.totalorder %s26, 1
      %p57 = por %p55, %p56
      %p58 = scmp.ne.s32.totalorder %s50, %s53
      %p59 = scmp.eq.s32.totalorder %s26, 0
      %p60 = por %p58, %p59
      %p61 = scmp.ne.s32.totalorder %s50, %s53
      %p62 = scmp.eq.s32.totalorder %s31, 1
      %p63 = por %p61, %p62
      %p64 = scmp.ne.s32.totalorder %s53, %s54
      %p65 = scmp.eq.s32.totalorder %s31, 0
      %p66 = por %p64, %p65
      %p67 = scmp.ne.s32.totalorder %s53, %s54
      %p68 = scmp.eq.s32.totalorder %s32, 1
      %p69 = por %p67, %p68
      %p71 = scmp.ne.s32.totalorder %s54, %s70
      %p72 = scmp.eq.s32.totalorder %s32, 0
      %p73 = por %p71, %p72
      %s75 = sadd.s32 %s74, 1
      %p78 = scmp.eq.s32.totalorder %s26, 1
      %p79 = scmp.ne.s32.totalorder %s74, %s76
      %p80 = scmp.eq.s32.totalorder %s26, 0
      %p81 = por %p79, %p80
      %p82 = scmp.ne.s32.totalorder %s74, %s76
      %p83 = scmp.eq.s32.totalorder %s31, 1
      %p84 = por %p82, %p83
      %p85 = scmp.ne.s32.totalorder %s76, %s77
      %p86 = scmp.eq.s32.totalorder %s31, 0
      %p87 = por %p85, %p86
      %p88 = scmp.ne.s32.totalorder %s76, %s77
      %p89 = scmp.eq.s32.totalorder %s32, 1
      %p90 = por %p88, %p89
      %p92 = scmp.ne.s32.totalorder %s77, %s91
      %p93 = scmp.eq.s32.totalorder %s32, 0
      %p94 = por %p92, %p93
      %s96 = sadd.s32 %s95, 1
      %p99 = scmp.eq.s32.totalorder %s26, 1
      %p100 = scmp.ne.s32.totalorder %s95, %s97
      %p101 = scmp.eq.s32.totalorder %s26, 0
      %p102 = por %p100, %p101
      %p103 = scmp.ne.s32.totalorder %s95, %s97
      %p104 = scmp.eq.s32.totalorder %s31, 1
      %p105 = por %p103, %p104
      %p106 = scmp.ne.s32.totalorder %s97, %s98
      %p107 = scmp.eq.s32.totalorder %s31, 0
      %p108 = por %p106, %p107
      %p109 = scmp.ne.s32.totalorder %s97, %s98
      %p110 = scmp.eq.s32.totalorder %s32, 1
      %p111 = por %p109, %p110
      %p113 = scmp.ne.s32.totalorder %s98, %s112
      %p114 = scmp.eq.s32.totalorder %s32, 0
      %p115 = por %p113, %p114
      %s117 = sadd.s32 %s116, 1
      %p120 = scmp.eq.s32.totalorder %s26, 1
      %p121 = scmp.ne.s32.totalorder %s116, %s118
      %p122 = scmp.eq.s32.totalorder %s26, 0
      %p123 = por %p121, %p122
      %p124 = scmp.ne.s32.totalorder %s116, %s118
      %p125 = scmp.eq.s32.totalorder %s31, 1
      %p126 = por %p124, %p125
      %p127 = scmp.ne.s32.totalorder %s118, %s119
      %p128 = scmp.eq.s32.totalorder %s31, 0
      %p129 = por %p127, %p128
      %p130 = scmp.ne.s32.totalorder %s118, %s119
      %p131 = scmp.eq.s32.totalorder %s32, 1
      %p132 = por %p130, %p131
      %p134 = scmp.ne.s32.totalorder %s119, %s133
      %p135 = scmp.eq.s32.totalorder %s32, 0
      %p136 = por %p134, %p135
      %s138 = sadd.s32 %s137, 1
      %p141 = scmp.eq.s32.totalorder %s26, 1
      %p142 = scmp.ne.s32.totalorder %s137, %s139
      %p143 = scmp.eq.s32.totalorder %s26, 0
      %p144 = por %p142, %p143
      %p145 = scmp.ne.s32.totalorder %s137, %s139
      %p146 = scmp.eq.s32.totalorder %s31, 1
      %p147 = por %p145, %p146
      %p148 = scmp.ne.s32.totalorder %s139, %s140
      %p149 = scmp.eq.s32.totalorder %s31, 0
      %p150 = por %p148, %p149
      %p151 = scmp.ne.s32.totalorder %s139, %s140
      %p152 = scmp.eq.s32.totalorder %s32, 1
      %p153 = por %p151, %p152
      %p155 = scmp.ne.s32.totalorder %s140, %s154
      %p156 = scmp.eq.s32.totalorder %s32, 0
      %p157 = por %p155, %p156
      %s159 = sadd.s32 %s158, 1
      %p162 = scmp.eq.s32.totalorder %s26, 1
      %p163 = scmp.ne.s32.totalorder %s158, %s160
      %p164 = scmp.eq.s32.totalorder %s26, 0
      %p165 = por %p163, %p164
      %p166 = scmp.ne.s32.totalorder %s158, %s160
      %p167 = scmp.eq.s32.totalorder %s31, 1
      %p168 = por %p166, %p167
      %p169 = scmp.ne.s32.totalorder %s160, %s161
      %p170 = scmp.eq.s32.totalorder %s31, 0
      %p171 = por %p169, %p170
      %p172 = scmp.ne.s32.totalorder %s160, %s161
      %p173 = scmp.eq.s32.totalorder %s32, 1
      %p174 = por %p172, %p173
      %p176 = scmp.ne.s32.totalorder %s161, %s175
      %p177 = scmp.eq.s32.totalorder %s32, 0
      %p178 = por %p176, %p177
      %s180 = sadd.s32 %s179, 1
      %p183 = scmp.eq.s32.totalorder %s26, 1
      %p184 = scmp.ne.s32.totalorder %s179, %s181
      %p185 = scmp.eq.s32.totalorder %s26, 0
      %p186 = por %p184, %p185
      %p187 = scmp.ne.s32.totalorder %s179, %s181
      %p188 = scmp.eq.s32.totalorder %s31, 1
      %p189 = por %p187, %p188
      %p190 = scmp.ne.s32.totalorder %s181, %s182
      %p191 = scmp.eq.s32.totalorder %s31, 0
      %p192 = por %p190, %p191
      %p193 = scmp.ne.s32.totalorder %s181, %s182
      %p194 = scmp.eq.s32.totalorder %s32, 1
      %p195 = por %p193, %p194
      %p197 = scmp.ne.s32.totalorder %s182, %s196
      %p198 = scmp.eq.s32.totalorder %s32, 0
      %p199 = por %p197, %p198
      %s201 = sadd.s32 %s200, 1
      %p204 = scmp.eq.s32.totalorder %s26, 1
      %p205 = scmp.ne.s32.totalorder %s200, %s202
      %p206 = scmp.eq.s32.totalorder %s26, 0
      %p207 = por %p205, %p206
      %p208 = scmp.ne.s32.totalorder %s200, %s202
      %p209 = scmp.eq.s32.totalorder %s31, 1
      %p210 = por %p208, %p209
      %p211 = scmp.ne.s32.totalorder %s202, %s203
      %p212 = scmp.eq.s32.totalorder %s31, 0
      %p213 = por %p211, %p212
      %p214 = scmp.ne.s32.totalorder %s202, %s203
      %p215 = scmp.eq.s32.totalorder %s32, 1
      %p216 = por %p214, %p215
      %p218 = scmp.ne.s32.totalorder %s203, %s217
      %p219 = scmp.eq.s32.totalorder %s32, 0
      %p220 = por %p218, %p219
      %s222 = sadd.s32 %s221, 1
      %p225 = scmp.eq.s32.totalorder %s26, 1
      %p226 = scmp.ne.s32.totalorder %s221, %s223
      %p227 = scmp.eq.s32.totalorder %s26, 0
      %p228 = por %p226, %p227
      %p229 = scmp.ne.s32.totalorder %s221, %s223
      %p230 = scmp.eq.s32.totalorder %s31, 1
      %p231 = por %p229, %p230
      %p232 = scmp.ne.s32.totalorder %s223, %s224
      %p233 = scmp.eq.s32.totalorder %s31, 0
      %p234 = por %p232, %p233
      %p235 = scmp.ne.s32.totalorder %s223, %s224
      %p236 = scmp.eq.s32.totalorder %s32, 1
      %p237 = por %p235, %p236
      %p239 = scmp.ne.s32.totalorder %s224, %s238
      %p240 = scmp.eq.s32.totalorder %s32, 0
      %p241 = por %p239, %p240
      %s243 = sadd.s32 %s242, 1
      %p246 = scmp.eq.s32.totalorder %s26, 1
      %p247 = scmp.ne.s32.totalorder %s242, %s244
      %p248 = scmp.eq.s32.totalorder %s26, 0
      %p249 = por %p247, %p248
      %p250 = scmp.ne.s32.totalorder %s242, %s244
      %p251 = scmp.eq.s32.totalorder %s31, 1
      %p252 = por %p250, %p251
      %p253 = scmp.ne.s32.totalorder %s244, %s245
      %p254 = scmp.eq.s32.totalorder %s31, 0
      %p255 = por %p253, %p254
      %p256 = scmp.ne.s32.totalorder %s244, %s245
      %p257 = scmp.eq.s32.totalorder %s32, 1
      %p258 = por %p256, %p257
      %p260 = scmp.ne.s32.totalorder %s245, %s259
      %p261 = scmp.eq.s32.totalorder %s32, 0
      %p262 = por %p260, %p261
      %s264 = sadd.s32 %s263, 1
      %p267 = scmp.eq.s32.totalorder %s26, 1
      %p268 = scmp.ne.s32.totalorder %s263, %s265
      %p269 = scmp.eq.s32.totalorder %s26, 0
      %p270 = por %p268, %p269
      %p271 = scmp.ne.s32.totalorder %s263, %s265
      %p272 = scmp.eq.s32.totalorder %s31, 1
      %p273 = por %p271, %p272
      %p274 = scmp.ne.s32.totalorder %s265, %s266
      %p275 = scmp.eq.s32.totalorder %s31, 0
      %p276 = por %p274, %p275
      %p277 = scmp.ne.s32.totalorder %s265, %s266
      %p278 = scmp.eq.s32.totalorder %s32, 1
      %p279 = por %p277, %p278
      %p281 = scmp.ne.s32.totalorder %s266, %s280
      %p282 = scmp.eq.s32.totalorder %s32, 0
      %p283 = por %p281, %p282
      %s285 = sadd.s32 %s284, 1
      %p288 = scmp.eq.s32.totalorder %s26, 1
      %p289 = scmp.ne.s32.totalorder %s284, %s286
      %p290 = scmp.eq.s32.totalorder %s26, 0
      %p291 = por %p289, %p290
      %p292 = scmp.ne.s32.totalorder %s284, %s286
      %p293 = scmp.eq.s32.totalorder %s31, 1
      %p294 = por %p292, %p293
      %p295 = scmp.ne.s32.totalorder %s286, %s287
      %p296 = scmp.eq.s32.totalorder %s31, 0
      %p297 = por %p295, %p296
      %p298 = scmp.ne.s32.totalorder %s286, %s287
      %p299 = scmp.eq.s32.totalorder %s32, 1
      %p300 = por %p298, %p299
      %p302 = scmp.ne.s32.totalorder %s287, %s301
      %p303 = scmp.eq.s32.totalorder %s32, 0
      %p304 = por %p302, %p303
      %s306 = sadd.s32 %s305, 1
      %p309 = scmp.eq.s32.totalorder %s26, 1
      %p310 = scmp.ne.s32.totalorder %s305, %s307
      %p311 = scmp.eq.s32.totalorder %s26, 0
      %p312 = por %p310, %p311
      %p313 = scmp.ne.s32.totalorder %s305, %s307
      %p314 = scmp.eq.s32.totalorder %s31, 1
      %p315 = por %p313, %p314
      %p316 = scmp.ne.s32.totalorder %s307, %s308
      %p317 = scmp.eq.s32.totalorder %s31, 0
      %p318 = por %p316, %p317
      %p319 = scmp.ne.s32.totalorder %s307, %s308
      %p320 = scmp.eq.s32.totalorder %s32, 1
      %p321 = por %p319, %p320
      %p323 = scmp.ne.s32.totalorder %s308, %s322
      %p324 = scmp.eq.s32.totalorder %s32, 0
      %p325 = por %p323, %p324
      %s326 = ssub.s32 %s33, %s45
      %p327 = scmp.eq.s32.totalorder %s326, 0
      %s329 = sadd.s32 %s328, 1
      %s330 = scalar_select %p327, %s328, %s329
      %p333 = pneg %p327
      %p334 = scmp.eq.s32.totalorder %s26, 1
      %p335 = por %p333, %p334
      %p336 = scmp.ne.s32.totalorder %s328, %s331
      %p337 = scmp.eq.s32.totalorder %s26, 0
      %p338 = por %p336, %p337
      %p339 = scmp.ne.s32.totalorder %s328, %s331
      %p340 = scmp.eq.s32.totalorder %s31, 1
      %p341 = por %p339, %p340
      %p342 = scmp.ne.s32.totalorder %s331, %s332
      %p343 = scmp.eq.s32.totalorder %s31, 0
      %p344 = por %p342, %p343
      %p345 = scmp.ne.s32.totalorder %s331, %s332
      %p346 = scmp.eq.s32.totalorder %s32, 1
      %p347 = por %p345, %p346
      %p349 = scmp.ne.s32.totalorder %s332, %s348
      %p350 = scmp.eq.s32.totalorder %s32, 0
      %p351 = por %p349, %p350
      %p352 = scmp.le.s32.totalorder 1, %s26
      %p353 = scmp.lt.s32.totalorder %s26, 3
      %p354 = pnand %p352, %p353
      %p355 = pneg %p354
      // Predicated region
      $region9: #{tpu_custom_call.1} parent=5 // pred_check
        _
      $region10: #{tpu_custom_call.1} parent=5 // pred_check_branch
        %357 = sbr.rel (%p354) target = $region12
      $region11: #{tpu_custom_call.1} parent=5 // pred_region
        %s358 = ssub.s32 %s26, 1
        // Predicated region
        $region13: #{tpu_custom_call.1} parent=11 // pred_check
          %p359 = pneg %p87
        $region14: #{tpu_custom_call.1} parent=11 // pred_check_branch
          %361 = sbr.rel (%p359) target = $region16
        $region15: #{tpu_custom_call.1} parent=11 // pred_region
          %s363 = ssub.s32 32, 32
          %364 = vsyncadd [#allocation4], %s363
          %s366 = sshll.u32 [#allocation3], 4
          %s367 = int_to_ptr.vmem [resolvable:$true] %s366
          %369 = dma.hbm_to_vmem [thread:$0]  %s1, 32, %s367, [#allocation4]
        $region16: #{tpu_custom_call.1} parent=11 // pred_fallthru
          _
        // Predicated region
        $region17: #{tpu_custom_call.1} parent=11 // pred_check
          %p370 = pneg %p108
        $region18: #{tpu_custom_call.1} parent=11 // pred_check_branch
          %372 = sbr.rel (%p370) target = $region20
        $region19: #{tpu_custom_call.1} parent=11 // pred_region
          _
        $region20: #{tpu_custom_call.1} parent=11 // pred_fallthru
          _
        // Predicated region
        $region21: #{tpu_custom_call.1} parent=11 // pred_check
          %p373 = pneg %p129
        $region22: #{tpu_custom_call.1} parent=11 // pred_check_branch
          %375 = sbr.rel (%p373) target = $region24
        $region23: #{tpu_custom_call.1} parent=11 // pred_region
          _
        $region24: #{tpu_custom_call.1} parent=11 // pred_fallthru
          _
        // Predicated region
        $region25: #{tpu_custom_call.1} parent=11 // pred_check
          %p376 = pneg %p150
        $region26: #{tpu_custom_call.1} parent=11 // pred_check_branch
          %378 = sbr.rel (%p376) target = $region28
        $region27: #{tpu_custom_call.1} parent=11 // pred_region
          %s380 = ssub.s32 16, 16
          %381 = vsyncadd [#allocation7], %s380
          %s383 = sshll.u32 [#allocation6], 4
          %s384 = int_to_ptr.vmem [resolvable:$true] %s383
          %386 = dma.hbm_to_vmem [thread:$0]  %s4, 16, %s384, [#allocation7]
        $region28: #{tpu_custom_call.1} parent=11 // pred_fallthru
          _
        // Predicated region
        $region29: #{tpu_custom_call.1} parent=11 // pred_check
          %p387 = pneg %p171
        $region30: #{tpu_custom_call.1} parent=11 // pred_check_branch
          %389 = sbr.rel (%p387) target = $region32
        $region31: #{tpu_custom_call.1} parent=11 // pred_region
          %s391 = ssub.s32 8192, 8192
          %392 = vsyncadd [#allocation7], %s391
          %s393 = sshll.u32 [#allocation8], 4
          %s394 = int_to_ptr.vmem [resolvable:$true] %s393
          %399 = dma.hbm_to_vmem [thread:$0]  %s5, 8192, %s394, [#allocation7], 512, 512, 32
        $region32: #{tpu_custom_call.1} parent=11 // pred_fallthru
          _
        // Predicated region
        $region33: #{tpu_custom_call.1} parent=11 // pred_check
          %p400 = pneg %p192
        $region34: #{tpu_custom_call.1} parent=11 // pred_check_branch
          %402 = sbr.rel (%p400) target = $region36
        $region35: #{tpu_custom_call.1} parent=11 // pred_region
          _
        $region36: #{tpu_custom_call.1} parent=11 // pred_fallthru
          _
        // Predicated region
        $region37: #{tpu_custom_call.1} parent=11 // pred_check
          %p403 = pneg %p213
        $region38: #{tpu_custom_call.1} parent=11 // pred_check_branch
          %405 = sbr.rel (%p403) target = $region40
        $region39: #{tpu_custom_call.1} parent=11 // pred_region
          %s407 = ssub.s32 32768, 32768
          %408 = vsyncadd [#allocation10], %s407
          %s409 = sshll.u32 [#allocation9], 4
          %s410 = int_to_ptr.vmem [resolvable:$true] %s409
          %415 = dma.hbm_to_vmem [thread:$0]  %s7, 32768, %s410, [#allocation10], 256, 256, 16
        $region40: #{tpu_custom_call.1} parent=11 // pred_fallthru
          _
        // Predicated region
        $region41: #{tpu_custom_call.1} parent=11 // pred_check
          %p416 = pneg %p234
        $region42: #{tpu_custom_call.1} parent=11 // pred_check_branch
          %418 = sbr.rel (%p416) target = $region44
        $region43: #{tpu_custom_call.1} parent=11 // pred_region
          _
        $region44: #{tpu_custom_call.1} parent=11 // pred_fallthru
          _
        // Predicated region
        $region45: #{tpu_custom_call.1} parent=11 // pred_check
          %p419 = pneg %p255
        $region46: #{tpu_custom_call.1} parent=11 // pred_check_branch
          %421 = sbr.rel (%p419) target = $region48
        $region47: #{tpu_custom_call.1} parent=11 // pred_region
          %s423 = ssub.s32 8192, 8192
          %424 = vsyncadd [#allocation10], %s423
          %s425 = sshll.u32 [#allocation11], 4
          %s426 = int_to_ptr.vmem [resolvable:$true] %s425
          %431 = dma.hbm_to_vmem [thread:$0]  %s9, 8192, %s426, [#allocation10], 128, 128, 8
        $region48: #{tpu_custom_call.1} parent=11 // pred_fallthru
          _
        // Predicated region
        $region49: #{tpu_custom_call.1} parent=11 // pred_check
          %p432 = pneg %p276
        $region50: #{tpu_custom_call.1} parent=11 // pred_check_branch
          %434 = sbr.rel (%p432) target = $region52
        $region51: #{tpu_custom_call.1} parent=11 // pred_region
          %s436 = ssub.s32 32, 32
          %437 = vsyncadd [#allocation13], %s436
          %s439 = sshll.u32 [#allocation12], 4
          %s440 = int_to_ptr.vmem [resolvable:$true] %s439
          %442 = dma.hbm_to_vmem [thread:$0]  %s10, 32, %s440, [#allocation13]
        $region52: #{tpu_custom_call.1} parent=11 // pred_fallthru
          _
        // Predicated region
        $region53: #{tpu_custom_call.1} parent=11 // pred_check
          %p443 = pneg %p297
        $region54: #{tpu_custom_call.1} parent=11 // pred_check_branch
          %445 = sbr.rel (%p443) target = $region56
        $region55: #{tpu_custom_call.1} parent=11 // pred_region
          _
        $region56: #{tpu_custom_call.1} parent=11 // pred_fallthru
          _
        // Predicated region
        $region57: #{tpu_custom_call.1} parent=11 // pred_check
          %p446 = pneg %p318
        $region58: #{tpu_custom_call.1} parent=11 // pred_check_branch
          %448 = sbr.rel (%p446) target = $region60
        $region59: #{tpu_custom_call.1} parent=11 // pred_region
          _
        $region60: #{tpu_custom_call.1} parent=11 // pred_fallthru
          _
      $region12: #{tpu_custom_call.1} parent=5 // pred_fallthru
        _
      %p449 = scmp.lt.s32.totalorder %s26, 2
      // Predicated region
      $region61: #{tpu_custom_call.1} parent=5 // pred_check
        %p450 = pneg %p449
      $region62: #{tpu_custom_call.1} parent=5 // pred_check_branch
        %452 = sbr.rel (%p450) target = $region64
      $region63: #{tpu_custom_call.1} parent=5 // pred_region
        // Predicated region
        $region65: #{tpu_custom_call.1} parent=63 // pred_check
          %p453 = pneg %p60
        $region66: #{tpu_custom_call.1} parent=63 // pred_check_branch
          %455 = sbr.rel (%p453) target = $region68
        $region67: #{tpu_custom_call.1} parent=63 // pred_region
          %s456 = sadd.s32 %s33, %s34
          %s457 = smul.u32 16, %s456
          %p458 = scmp.lt.s32.totalorder %s457, 31
          %s459 = scalar_select %p458, %s457, 31
          %s460 = smul.addr %s459, 4
          %s461 = scalar_lea.vmem %s0, %s460
          %s462 = sadd.s32 %s33, %s34
          %s463 = smul.u32 16, %s462
        $region68: #{tpu_custom_call.1} parent=63 // pred_fallthru
          _
      $region64: #{tpu_custom_call.1} parent=5 // pred_fallthru
        _
      %p464 = scmp.le.s32.totalorder 1, %s26
      %p465 = scmp.lt.s32.totalorder %s26, 3
      %p466 = pnand %p464, %p465
      %p467 = pneg %p466
      // Predicated region
      $region69: #{tpu_custom_call.1} parent=5 // pred_check
        _
      $region70: #{tpu_custom_call.1} parent=5 // pred_check_branch
        %469 = sbr.rel (%p466) target = $region72
      $region71: #{tpu_custom_call.1} parent=5 // pred_region
        %s470 = ssub.s32 %s26, 1
        // Predicated region
        $region73: #{tpu_custom_call.1} parent=71 // pred_check
          %p471 = pneg %p87
        $region74: #{tpu_custom_call.1} parent=71 // pred_check_branch
          %473 = sbr.rel (%p471) target = $region76
        $region75: #{tpu_custom_call.1} parent=71 // pred_region
          %474 = dma.done [#allocation4], 32
        $region76: #{tpu_custom_call.1} parent=71 // pred_fallthru
          _
        // Predicated region
        $region77: #{tpu_custom_call.1} parent=71 // pred_check
          %p475 = pneg %p150
        $region78: #{tpu_custom_call.1} parent=71 // pred_check_branch
          %477 = sbr.rel (%p475) target = $region80
        $region79: #{tpu_custom_call.1} parent=71 // pred_region
          %478 = dma.done [#allocation7], 16
        $region80: #{tpu_custom_call.1} parent=71 // pred_fallthru
          _
        // Predicated region
        $region81: #{tpu_custom_call.1} parent=71 // pred_check
          %p479 = pneg %p171
        $region82: #{tpu_custom_call.1} parent=71 // pred_check_branch
          %481 = sbr.rel (%p479) target = $region84
        $region83: #{tpu_custom_call.1} parent=71 // pred_region
          %482 = dma.done [#allocation7], 8192
        $region84: #{tpu_custom_call.1} parent=71 // pred_fallthru
          _
        // Predicated region
        $region85: #{tpu_custom_call.1} parent=71 // pred_check
          %p483 = pneg %p213
        $region86: #{tpu_custom_call.1} parent=71 // pred_check_branch
          %485 = sbr.rel (%p483) target = $region88
        $region87: #{tpu_custom_call.1} parent=71 // pred_region
          %486 = dma.done [#allocation10], 32768
        $region88: #{tpu_custom_call.1} parent=71 // pred_fallthru
          _
        // Predicated region
        $region89: #{tpu_custom_call.1} parent=71 // pred_check
          %p487 = pneg %p255
        $region90: #{tpu_custom_call.1} parent=71 // pred_check_branch
          %489 = sbr.rel (%p487) target = $region92
        $region91: #{tpu_custom_call.1} parent=71 // pred_region
          %490 = dma.done [#allocation10], 8192
        $region92: #{tpu_custom_call.1} parent=71 // pred_fallthru
          _
        // Predicated region
        $region93: #{tpu_custom_call.1} parent=71 // pred_check
          %p491 = pneg %p276
        $region94: #{tpu_custom_call.1} parent=71 // pred_check_branch
          %493 = sbr.rel (%p491) target = $region96
        $region95: #{tpu_custom_call.1} parent=71 // pred_region
          %494 = dma.done [#allocation13], 32
        $region96: #{tpu_custom_call.1} parent=71 // pred_fallthru
          _
        %s495 = sadd.s32 %s35, %s36
        %s496 = smul.u32 16, %s495
        %p497 = scmp.lt.s32.totalorder %s496, 31
        %s498 = scalar_select %p497, %s496, 31
        %s499 = smul.addr %s498, 4
        %s500 = scalar_lea.vmem %s0, %s499
        %p501 = pneg %p66
        %p502 = pneg %p63
        %p503 = pneg %p87
        %p504 = pneg %p84
        %p505 = pneg %p108
        %p506 = pneg %p105
        %p507 = pneg %p129
        %p508 = pneg %p126
        %p509 = pneg %p150
        %p510 = pneg %p147
        %p511 = pneg %p171
        %p512 = pneg %p168
        %p513 = pneg %p192
        %p514 = pneg %p189
        %p515 = pneg %p213
        %p516 = pneg %p210
        %p517 = pneg %p234
        %p518 = pneg %p231
        %p519 = pneg %p255
        %p520 = pneg %p252
        %p521 = pneg %p276
        %p522 = pneg %p273
        %p523 = pneg %p297
        %p524 = pneg %p294
        %p525 = pneg %p318
        %p526 = pneg %p315
        %p527 = pneg %p344
        %p528 = pneg %p341
        %s529 = sand.u32 %s331, 1
        %s530 = scalar_lea.sflag [#allocation5], %s529
        %s531 = sand.u32 %s331, 1
        %s532 = smul.addr %s531, 8
        %s533 = scalar_lea.vmem [#allocation14], %s532
        %s534 = sadd.s32 %s35, %s36
        %s535 = smul.u32 16, %s534
        %p536 = scmp.lt.s32.totalorder %s535, 31
        %s537 = scalar_select %p536, %s535, 31
        %s538 = smul.addr %s537, 4
        %s539 = scalar_lea.vmem %s0, %s538
        %s540 = sadd.s32 %s35, %s36
        %s541 = smul.u32 16, %s540
        %v544 = vld [vmem:[%s539] sm:$0xf]
        %v545 = vld [vmem:[%s539 + $0x4] sm:$0xf]
        %v546 = vld [vmem:[%s539 + $0x8] sm:$0xf]
        %v547 = vld [vmem:[%s539 + $0xc] sm:$0xf]
        %v548 = vld [vmem:[%s539 + $0x10] sm:$0xf]
        %v549 = vld [vmem:[%s539 + $0x14] sm:$0xf]
        %v550 = vld [vmem:[%s539 + $0x18] sm:$0xf]
        %v551 = vld [vmem:[%s539 + $0x1c] sm:$0xf]
        %v552 = vld [vmem:[%s539 + $0x20] sm:$0xf]
        %v553 = vld [vmem:[%s539 + $0x24] sm:$0xf]
        %v554 = vld [vmem:[%s539 + $0x28] sm:$0xf]
        %v555 = vld [vmem:[%s539 + $0x2c] sm:$0xf]
        %v556 = vld [vmem:[%s539 + $0x30] sm:$0xf]
        %v557 = vld [vmem:[%s539 + $0x34] sm:$0xf]
        %v558 = vld [vmem:[%s539 + $0x38] sm:$0xf]
        %v559 = vld [vmem:[%s539 + $0x3c] sm:$0xf]
        %v560 = vunpack.c.l.bf16 %v544
        %v561 = vunpack.c.l.bf16 %v545
        %v562 = vunpack.c.l.bf16 %v546
        %v563 = vunpack.c.l.bf16 %v547
        %v564 = vunpack.c.l.bf16 %v548
        %v565 = vunpack.c.l.bf16 %v549
        %v566 = vunpack.c.l.bf16 %v550
        %v567 = vunpack.c.l.bf16 %v551
        %v568 = vunpack.c.l.bf16 %v552
        %v569 = vunpack.c.l.bf16 %v553
        %v570 = vunpack.c.l.bf16 %v554
        %v571 = vunpack.c.l.bf16 %v555
        %v572 = vunpack.c.l.bf16 %v556
        %v573 = vunpack.c.l.bf16 %v557
        %v574 = vunpack.c.l.bf16 %v558
        %v575 = vunpack.c.l.bf16 %v559
        %v576 = vld [vmem:[#allocation3] sm:$0x3]
        %v577 = vunpack.c.l.bf16 %v576
        %v578 = vld [vmem:[%s2] sm:$0x1]
        %580 = vset.pattern.permute.xlu0 0
        %581 = vperm.xlu0 %580, %v560
        %v582 = vpop.permute.xlu0 %581
        %585 = vset.pattern.permute.xlu0 0
        %586 = vperm.xlu0 %585, %v561
        %v587 = vpop.permute.xlu0 %586
        %590 = vset.pattern.permute.xlu0 0
        %591 = vperm.xlu0 %590, %v562
        %v592 = vpop.permute.xlu0 %591
        %595 = vset.pattern.permute.xlu0 0
        %596 = vperm.xlu0 %595, %v563
        %v597 = vpop.permute.xlu0 %596
        %600 = vset.pattern.permute.xlu0 0
        %601 = vperm.xlu0 %600, %v564
        %v602 = vpop.permute.xlu0 %601
        %605 = vset.pattern.permute.xlu0 0
        %606 = vperm.xlu0 %605, %v565
        %v607 = vpop.permute.xlu0 %606
        %610 = vset.pattern.permute.xlu0 0
        %611 = vperm.xlu0 %610, %v566
        %v612 = vpop.permute.xlu0 %611
        %615 = vset.pattern.permute.xlu0 0
        %616 = vperm.xlu0 %615, %v567
        %v617 = vpop.permute.xlu0 %616
        %620 = vset.pattern.permute.xlu0 0
        %621 = vperm.xlu0 %620, %v568
        %v622 = vpop.permute.xlu0 %621
        %625 = vset.pattern.permute.xlu0 0
        %626 = vperm.xlu0 %625, %v569
        %v627 = vpop.permute.xlu0 %626
        %630 = vset.pattern.permute.xlu0 0
        %631 = vperm.xlu0 %630, %v570
        %v632 = vpop.permute.xlu0 %631
        %635 = vset.pattern.permute.xlu0 0
        %636 = vperm.xlu0 %635, %v571
        %v637 = vpop.permute.xlu0 %636
        %640 = vset.pattern.permute.xlu0 0
        %641 = vperm.xlu0 %640, %v572
        %v642 = vpop.permute.xlu0 %641
        %645 = vset.pattern.permute.xlu0 0
        %646 = vperm.xlu0 %645, %v573
        %v647 = vpop.permute.xlu0 %646
        %650 = vset.pattern.permute.xlu0 0
        %651 = vperm.xlu0 %650, %v574
        %v652 = vpop.permute.xlu0 %651
        %655 = vset.pattern.permute.xlu0 0
        %656 = vperm.xlu0 %655, %v575
        %v657 = vpop.permute.xlu0 %656
        %v659 = vlaneseq
        %v660 = vshrl.u32 %v659, 7
        %v661 = vsub.s32 0, %v660
        %v662 = vrot.slane %v577, %v661
        %v663 = vmul.f32 %v582, %v662
        %v664 = vmul.f32 %v587, %v662
        %v665 = vmul.f32 %v592, %v662
        %v666 = vmul.f32 %v597, %v662
        %v667 = vmul.f32 %v602, %v662
        %v668 = vmul.f32 %v607, %v662
        %v669 = vmul.f32 %v612, %v662
        %v670 = vmul.f32 %v617, %v662
        %v671 = vmul.f32 %v622, %v662
        %v672 = vmul.f32 %v627, %v662
        %v673 = vmul.f32 %v632, %v662
        %v674 = vmul.f32 %v637, %v662
        %v675 = vmul.f32 %v642, %v662
        %v676 = vmul.f32 %v647, %v662
        %v677 = vmul.f32 %v652, %v662
        %v678 = vmul.f32 %v657, %v662
        %v680 = vlaneseq
        %v681 = vshrl.u32 %v680, 7
        %v682 = vsub.s32 0, %v681
        %v683 = vrot.slane %v578, %v682
        %v685 = vadd.f32 %v683, %v663
        %v686 = vadd.f32 %v683, %v664
        %v687 = vadd.f32 %v683, %v665
        %v688 = vadd.f32 %v683, %v666
        %v689 = vadd.f32 %v683, %v667
        %v690 = vadd.f32 %v683, %v668
        %v691 = vadd.f32 %v683, %v669
        %v692 = vadd.f32 %v683, %v670
        %v693 = vadd.f32 %v683, %v671
        %v694 = vadd.f32 %v683, %v672
        %v695 = vadd.f32 %v683, %v673
        %v696 = vadd.f32 %v683, %v674
        %v697 = vadd.f32 %v683, %v675
        %v698 = vadd.f32 %v683, %v676
        %v699 = vadd.f32 %v683, %v677
        %v700 = vadd.f32 %v683, %v678
        %701 = vset.pattern.permute.xlu0 1
        %702 = vperm.xlu0 %701, %v560
        %v703 = vpop.permute.xlu0 %702
        %705 = vset.pattern.permute.xlu0 1
        %706 = vperm.xlu0 %705, %v561
        %v707 = vpop.permute.xlu0 %706
        %709 = vset.pattern.permute.xlu0 1
        %710 = vperm.xlu0 %709, %v562
        %v711 = vpop.permute.xlu0 %710
        %713 = vset.pattern.permute.xlu0 1
        %714 = vperm.xlu0 %713, %v563
        %v715 = vpop.permute.xlu0 %714
        %717 = vset.pattern.permute.xlu0 1
        %718 = vperm.xlu0 %717, %v564
        %v719 = vpop.permute.xlu0 %718
        %721 = vset.pattern.permute.xlu0 1
        %722 = vperm.xlu0 %721, %v565
        %v723 = vpop.permute.xlu0 %722
        %725 = vset.pattern.permute.xlu0 1
        %726 = vperm.xlu0 %725, %v566
        %v727 = vpop.permute.xlu0 %726
        %729 = vset.pattern.permute.xlu0 1
        %730 = vperm.xlu0 %729, %v567
        %v731 = vpop.permute.xlu0 %730
        %733 = vset.pattern.permute.xlu0 1
        %734 = vperm.xlu0 %733, %v568
        %v735 = vpop.permute.xlu0 %734
        %737 = vset.pattern.permute.xlu0 1
        %738 = vperm.xlu0 %737, %v569
        %v739 = vpop.permute.xlu0 %738
        %741 = vset.pattern.permute.xlu0 1
        %742 = vperm.xlu0 %741, %v570
        %v743 = vpop.permute.xlu0 %742
        %745 = vset.pattern.permute.xlu0 1
        %746 = vperm.xlu0 %745, %v571
        %v747 = vpop.permute.xlu0 %746
        %749 = vset.pattern.permute.xlu0 1
        %750 = vperm.xlu0 %749, %v572
        %v751 = vpop.permute.xlu0 %750
        %753 = vset.pattern.permute.xlu0 1
        %754 = vperm.xlu0 %753, %v573
        %v755 = vpop.permute.xlu0 %754
        %757 = vset.pattern.permute.xlu0 1
        %758 = vperm.xlu0 %757, %v574
        %v759 = vpop.permute.xlu0 %758
        %761 = vset.pattern.permute.xlu0 1
        %762 = vperm.xlu0 %761, %v575
        %v763 = vpop.permute.xlu0 %762
        %v765 = vlaneseq
        %v766 = vshrl.u32 %v765, 7
        %v767 = vsub.s32 1, %v766
        %v768 = vrot.slane %v577, %v767
        %v769 = vmul.f32 %v703, %v768
        %v770 = vmul.f32 %v707, %v768
        %v771 = vmul.f32 %v711, %v768
        %v772 = vmul.f32 %v715, %v768
        %v773 = vmul.f32 %v719, %v768
        %v774 = vmul.f32 %v723, %v768
        %v775 = vmul.f32 %v727, %v768
        %v776 = vmul.f32 %v731, %v768
        %v777 = vmul.f32 %v735, %v768
        %v778 = vmul.f32 %v739, %v768
        %v779 = vmul.f32 %v743, %v768
        %v780 = vmul.f32 %v747, %v768
        %v781 = vmul.f32 %v751, %v768
        %v782 = vmul.f32 %v755, %v768
        %v783 = vmul.f32 %v759, %v768
        %v784 = vmul.f32 %v763, %v768
        %v785 = vadd.f32 %v685, %v769
        %v786 = vadd.f32 %v686, %v770
        %v787 = vadd.f32 %v687, %v771
        %v788 = vadd.f32 %v688, %v772
        %v789 = vadd.f32 %v689, %v773
        %v790 = vadd.f32 %v690, %v774
        %v791 = vadd.f32 %v691, %v775
        %v792 = vadd.f32 %v692, %v776
        %v793 = vadd.f32 %v693, %v777
        %v794 = vadd.f32 %v694, %v778
        %v795 = vadd.f32 %v695, %v779
        %v796 = vadd.f32 %v696, %v780
        %v797 = vadd.f32 %v697, %v781
        %v798 = vadd.f32 %v698, %v782
        %v799 = vadd.f32 %v699, %v783
        %v800 = vadd.f32 %v700, %v784
        %801 = vset.pattern.permute.xlu0 2
        %802 = vperm.xlu0 %801, %v560
        %v803 = vpop.permute.xlu0 %802
        %805 = vset.pattern.permute.xlu0 2
        %806 = vperm.xlu0 %805, %v561
        %v807 = vpop.permute.xlu0 %806
        %809 = vset.pattern.permute.xlu0 2
        %810 = vperm.xlu0 %809, %v562
        %v811 = vpop.permute.xlu0 %810
        %813 = vset.pattern.permute.xlu0 2
        %814 = vperm.xlu0 %813, %v563
        %v815 = vpop.permute.xlu0 %814
        %817 = vset.pattern.permute.xlu0 2
        %818 = vperm.xlu0 %817, %v564
        %v819 = vpop.permute.xlu0 %818
        %821 = vset.pattern.permute.xlu0 2
        %822 = vperm.xlu0 %821, %v565
        %v823 = vpop.permute.xlu0 %822
        %825 = vset.pattern.permute.xlu0 2
        %826 = vperm.xlu0 %825, %v566
        %v827 = vpop.permute.xlu0 %826
        %829 = vset.pattern.permute.xlu0 2
        %830 = vperm.xlu0 %829, %v567
        %v831 = vpop.permute.xlu0 %830
        %833 = vset.pattern.permute.xlu0 2
        %834 = vperm.xlu0 %833, %v568
        %v835 = vpop.permute.xlu0 %834
        %837 = vset.pattern.permute.xlu0 2
        %838 = vperm.xlu0 %837, %v569
        %v839 = vpop.permute.xlu0 %838
        %841 = vset.pattern.permute.xlu0 2
        %842 = vperm.xlu0 %841, %v570
        %v843 = vpop.permute.xlu0 %842
        %845 = vset.pattern.permute.xlu0 2
        %846 = vperm.xlu0 %845, %v571
        %v847 = vpop.permute.xlu0 %846
        %849 = vset.pattern.permute.xlu0 2
        %850 = vperm.xlu0 %849, %v572
        %v851 = vpop.permute.xlu0 %850
        %853 = vset.pattern.permute.xlu0 2
        %854 = vperm.xlu0 %853, %v573
        %v855 = vpop.permute.xlu0 %854
        %857 = vset.pattern.permute.xlu0 2
        %858 = vperm.xlu0 %857, %v574
        %v859 = vpop.permute.xlu0 %858
        %861 = vset.pattern.permute.xlu0 2
        %862 = vperm.xlu0 %861, %v575
        %v863 = vpop.permute.xlu0 %862
        %v865 = vlaneseq
        %v866 = vshrl.u32 %v865, 7
        %v867 = vsub.s32 2, %v866
        %v868 = vrot.slane %v577, %v867
        %v869 = vmul.f32 %v803, %v868
        %v870 = vmul.f32 %v807, %v868
        %v871 = vmul.f32 %v811, %v868
        %v872 = vmul.f32 %v815, %v868
        %v873 = vmul.f32 %v819, %v868
        %v874 = vmul.f32 %v823, %v868
        %v875 = vmul.f32 %v827, %v868
        %v876 = vmul.f32 %v831, %v868
        %v877 = vmul.f32 %v835, %v868
        %v878 = vmul.f32 %v839, %v868
        %v879 = vmul.f32 %v843, %v868
        %v880 = vmul.f32 %v847, %v868
        %v881 = vmul.f32 %v851, %v868
        %v882 = vmul.f32 %v855, %v868
        %v883 = vmul.f32 %v859, %v868
        %v884 = vmul.f32 %v863, %v868
        %v885 = vadd.f32 %v785, %v869
        %v886 = vadd.f32 %v786, %v870
        %v887 = vadd.f32 %v787, %v871
        %v888 = vadd.f32 %v788, %v872
        %v889 = vadd.f32 %v789, %v873
        %v890 = vadd.f32 %v790, %v874
        %v891 = vadd.f32 %v791, %v875
        %v892 = vadd.f32 %v792, %v876
        %v893 = vadd.f32 %v793, %v877
        %v894 = vadd.f32 %v794, %v878
        %v895 = vadd.f32 %v795, %v879
        %v896 = vadd.f32 %v796, %v880
        %v897 = vadd.f32 %v797, %v881
        %v898 = vadd.f32 %v798, %v882
        %v899 = vadd.f32 %v799, %v883
        %v900 = vadd.f32 %v800, %v884
        %v901 = vmax.f32 %v885, 0.0
        %v902 = vmax.f32 %v886, 0.0
        %v903 = vmax.f32 %v887, 0.0
        %v904 = vmax.f32 %v888, 0.0
        %v905 = vmax.f32 %v889, 0.0
        %v906 = vmax.f32 %v890, 0.0
        %v907 = vmax.f32 %v891, 0.0
        %v908 = vmax.f32 %v892, 0.0
        %v909 = vmax.f32 %v893, 0.0
        %v910 = vmax.f32 %v894, 0.0
        %v911 = vmax.f32 %v895, 0.0
        %v912 = vmax.f32 %v896, 0.0
        %v913 = vmax.f32 %v897, 0.0
        %v914 = vmax.f32 %v898, 0.0
        %v915 = vmax.f32 %v899, 0.0
        %v916 = vmax.f32 %v900, 0.0
        %v917 = vpack.c.bf16 %v902, %v901
        %v918 = vpack.c.bf16 %v904, %v903
        %v919 = vpack.c.bf16 %v906, %v905
        %v920 = vpack.c.bf16 %v908, %v907
        %v921 = vpack.c.bf16 %v910, %v909
        %v922 = vpack.c.bf16 %v912, %v911
        %v923 = vpack.c.bf16 %v914, %v913
        %v924 = vpack.c.bf16 %v916, %v915
        %v925 = vld [vmem:[%s3] sm:$0xf]
        %v926 = vld [vmem:[%s3 + $0x4] sm:$0xf]
        %v927 = vld [vmem:[%s3 + $0x8] sm:$0xf]
        %v928 = vld [vmem:[%s3 + $0xc] sm:$0xf]
        %v929 = vld [vmem:[%s3 + $0x10] sm:$0xf]
        %v930 = vld [vmem:[%s3 + $0x14] sm:$0xf]
        %v931 = vld [vmem:[%s3 + $0x18] sm:$0xf]
        %v932 = vld [vmem:[%s3 + $0x1c] sm:$0xf]
        %v933 = vld [vmem:[#allocation6] sm:$0x1]
        %v935 = vlaneseq
        %v936 = vshrl.u32 %v935, 7
        %v937 = vsub.s32 0, %v936
        %v938 = vrot.slane %v933, %v937
        %v948 = vunpack.c.l.b16 %v925
        %v949 = vunpack.c.l.b16 %v926
        %v950 = vunpack.c.l.b16 %v927
        %v951 = vunpack.c.l.b16 %v928
        %v952 = vunpack.c.l.b16 %v929
        %v953 = vunpack.c.l.b16 %v930
        %v954 = vunpack.c.l.b16 %v931
        %v955 = vunpack.c.l.b16 %v932
        %v956 = vpack.c.b16 %v949, %v948
        %v957 = vpack.c.b16 %v951, %v950
        %v958 = vpack.c.b16 %v953, %v952
        %v959 = vpack.c.b16 %v955, %v954
        %vm964 = vcmask 523264
        %v966 = vsel %vm964, %v917, 0
        %v969 = vsel %vm964, %v918, 0
        %v972 = vsel %vm964, %v919, 0
        %v975 = vsel %vm964, %v920, 0
        %v978 = vsel %vm964, %v921, 0
        %v981 = vsel %vm964, %v922, 0
        %v984 = vsel %vm964, %v923, 0
        %v987 = vsel %vm964, %v924, 0
        %989 = vmatprep.subr.bf16.mxu0 0
        %990 = vmatpush1.bf16.msra.mxu0 %v956
        %991 = vmatprep.subr.bf16.mxu0 0
        %992 = vmatpush1.bf16.msra.mxu0 %v957
        %993 = vmatprep.subr.bf16.mxu0 0
        %994 = vmatpush1.bf16.msra.mxu0 %v958
        %995 = vmatprep.subr.bf16.mxu0 0
        %996 = vmatpush1.bf16.msra.mxu0 %v959
        %997 = vmatprep.subr.bf16.mxu0 0
        %998 = vmatpush1.bf16.msra.mxu0 0
        %999 = vmatprep.subr.bf16.mxu0 0
        %1000 = vmatpush1.bf16.msra.mxu0 0
        %1001 = vmatprep.subr.bf16.mxu0 0
        %1002 = vmatpush1.bf16.msra.mxu0 0
        %1003 = vmatprep.subr.bf16.mxu0 0
        %1004 = vmatpush1.bf16.msra.mxu0 0
        %1005 = vmatprep.subr.bf16.mxu0 0
        %1006 = vmatpush1.bf16.msra.mxu0 0
        %1007 = vmatprep.subr.bf16.mxu0 0
        %1008 = vmatpush1.bf16.msra.mxu0 0
        %1009 = vmatprep.subr.bf16.mxu0 0
        %1010 = vmatpush1.bf16.msra.mxu0 0
        %1011 = vmatprep.subr.bf16.mxu0 0
        %1012 = vmatpush1.bf16.msra.mxu0 0
        %1013 = vmatprep.subr.bf16.mxu0 0
        %1014 = vmatpush1.bf16.msra.mxu0 0
        %1015 = vmatprep.subr.bf16.mxu0 0
        %1016 = vmatpush1.bf16.msra.mxu0 0
        %1017 = vmatprep.subr.bf16.mxu0 0
        %1018 = vmatpush1.bf16.msra.mxu0 0
        %1019 = vmatprep.subr.bf16.mxu0 0
        %1020 = vmatpush1.bf16.msra.mxu0 0
        %1021 = vmatprep.mubr.bf16.mxu0 0
        %1022 = vmatmul.mubr.bf16.gmra.mrb[0].mxu0 %v966
        %v1023 = vpop.f32.mrb[0].mxu0
        %v1024 = vadd.f32 %v938, %v1023
        %v1025 = vpop.f32.mrb[0].mxu0
        %v1026 = vpop.f32.mrb[0].mxu0
        %v1027 = vadd.f32 %v938, %v1026
        %v1028 = vpop.f32.mrb[0].mxu0
        %1029 = vmatprep.mubr.bf16.mxu0 0
        %1030 = vmatmul.mubr.bf16.gmra.mrb[0].mxu0 %v969
        %v1031 = vpop.f32.mrb[0].mxu0
        %v1032 = vadd.f32 %v938, %v1031
        %v1033 = vpop.f32.mrb[0].mxu0
        %v1034 = vpop.f32.mrb[0].mxu0
        %v1035 = vadd.f32 %v938, %v1034
        %v1036 = vpop.f32.mrb[0].mxu0
        %1037 = vmatprep.mubr.bf16.mxu0 0
        %1038 = vmatmul.mubr.bf16.gmra.mrb[0].mxu0 %v972
        %v1039 = vpop.f32.mrb[0].mxu0
        %v1040 = vadd.f32 %v938, %v1039
        %v1041 = vpop.f32.mrb[0].mxu0
        %v1042 = vpop.f32.mrb[0].mxu0
        %v1043 = vadd.f32 %v938, %v1042
        %v1044 = vpop.f32.mrb[0].mxu0
        %1045 = vmatprep.mubr.bf16.mxu0 0
        %1046 = vmatmul.mubr.bf16.gmra.mrb[0].mxu0 %v975
        %v1047 = vpop.f32.mrb[0].mxu0
        %v1048 = vadd.f32 %v938, %v1047
        %v1049 = vpop.f32.mrb[0].mxu0
        %v1050 = vpop.f32.mrb[0].mxu0
        %v1051 = vadd.f32 %v938, %v1050
        %v1052 = vpop.f32.mrb[0].mxu0
        %1053 = vmatprep.mubr.bf16.mxu0 0
        %1054 = vmatmul.mubr.bf16.gmra.mrb[0].mxu0 %v978
        %v1055 = vpop.f32.mrb[0].mxu0
        %v1056 = vadd.f32 %v938, %v1055
        %v1057 = vpop.f32.mrb[0].mxu0
        %v1058 = vpop.f32.mrb[0].mxu0
        %v1059 = vadd.f32 %v938, %v1058
        %v1060 = vpop.f32.mrb[0].mxu0
        %1061 = vmatprep.mubr.bf16.mxu0 0
        %1062 = vmatmul.mubr.bf16.gmra.mrb[0].mxu0 %v981
        %v1063 = vpop.f32.mrb[0].mxu0
        %v1064 = vadd.f32 %v938, %v1063
        %v1065 = vpop.f32.mrb[0].mxu0
        %v1066 = vpop.f32.mrb[0].mxu0
        %v1067 = vadd.f32 %v938, %v1066
        %v1068 = vpop.f32.mrb[0].mxu0
        %1069 = vmatprep.mubr.bf16.mxu0 0
        %1070 = vmatmul.mubr.bf16.gmra.mrb[0].mxu0 %v984
        %v1071 = vpop.f32.mrb[0].mxu0
        %v1072 = vadd.f32 %v938, %v1071
        %v1073 = vpop.f32.mrb[0].mxu0
        %v1074 = vpop.f32.mrb[0].mxu0
        %v1075 = vadd.f32 %v938, %v1074
        %v1076 = vpop.f32.mrb[0].mxu0
        %1077 = vmatprep.mubr.bf16.mxu0 0
        %1078 = vmatmul.mubr.bf16.gmra.mrb[0].mxu0 %v987
        %v1079 = vpop.f32.mrb[0].mxu0
        %v1080 = vadd.f32 %v938, %v1079
        %v1081 = vpop.f32.mrb[0].mxu0
        %v1082 = vpop.f32.mrb[0].mxu0
        %v1083 = vadd.f32 %v938, %v1082
        %v1084 = vpop.f32.mrb[0].mxu0
        %1085 = vdwg.mxu0
        %v1086 = vmax.f32 %v1024, 0.0
        %v1087 = vmax.f32 %v1027, 0.0
        %v1088 = vmax.f32 %v1032, 0.0
        %v1089 = vmax.f32 %v1035, 0.0
        %v1090 = vmax.f32 %v1040, 0.0
        %v1091 = vmax.f32 %v1043, 0.0
        %v1092 = vmax.f32 %v1048, 0.0
        %v1093 = vmax.f32 %v1051, 0.0
        %v1094 = vmax.f32 %v1056, 0.0
        %v1095 = vmax.f32 %v1059, 0.0
        %v1096 = vmax.f32 %v1064, 0.0
        %v1097 = vmax.f32 %v1067, 0.0
        %v1098 = vmax.f32 %v1072, 0.0
        %v1099 = vmax.f32 %v1075, 0.0
        %v1100 = vmax.f32 %v1080, 0.0
        %v1101 = vmax.f32 %v1083, 0.0
        %v1102 = vpack.c.bf16 %v1087, %v1086
        %v1103 = vpack.c.bf16 %v1089, %v1088
        %v1104 = vpack.c.bf16 %v1091, %v1090
        %v1105 = vpack.c.bf16 %v1093, %v1092
        %v1106 = vpack.c.bf16 %v1095, %v1094
        %v1107 = vpack.c.bf16 %v1097, %v1096
        %v1108 = vpack.c.bf16 %v1099, %v1098
        %v1109 = vpack.c.bf16 %v1101, %v1100
        %v1110 = vld [vmem:[#allocation8] sm:$0xff]
        %v1111 = vld [vmem:[#allocation8 + $0x8] sm:$0xff]
        %v1112 = vld [vmem:[#allocation8 + $0x10] sm:$0xff]
        %v1113 = vld [vmem:[#allocation8 + $0x18] sm:$0xff]
        %v1114 = vld [vmem:[#allocation8 + $0x20] sm:$0xff]
        %v1115 = vld [vmem:[#allocation8 + $0x28] sm:$0xff]
        %v1116 = vld [vmem:[#allocation8 + $0x30] sm:$0xff]
        %v1117 = vld [vmem:[#allocation8 + $0x38] sm:$0xff]
        %v1118 = vld [vmem:[#allocation8 + $0x40] sm:$0xff]
        %v1119 = vld [vmem:[#allocation8 + $0x48] sm:$0xff]
        %v1120 = vld [vmem:[#allocation8 + $0x50] sm:$0xff]
        %v1121 = vld [vmem:[#allocation8 + $0x58] sm:$0xff]
        %v1122 = vld [vmem:[#allocation8 + $0x60] sm:$0xff]
        %v1123 = vld [vmem:[#allocation8 + $0x68] sm:$0xff]
        %v1124 = vld [vmem:[#allocation8 + $0x70] sm:$0xff]
        %v1125 = vld [vmem:[#allocation8 + $0x78] sm:$0xff]
        %v1126 = vld [vmem:[#allocation8 + $0x80] sm:$0xff]
        %v1127 = vld [vmem:[#allocation8 + $0x88] sm:$0xff]
        %v1128 = vld [vmem:[#allocation8 + $0x90] sm:$0xff]
        %v1129 = vld [vmem:[#allocation8 + $0x98] sm:$0xff]
        %v1130 = vld [vmem:[#allocation8 + $0xa0] sm:$0xff]
        %v1131 = vld [vmem:[#allocation8 + $0xa8] sm:$0xff]
        %v1132 = vld [vmem:[#allocation8 + $0xb0] sm:$0xff]
        %v1133 = vld [vmem:[#allocation8 + $0xb8] sm:$0xff]
        %v1134 = vld [vmem:[#allocation8 + $0xc0] sm:$0xff]
        %v1135 = vld [vmem:[#allocation8 + $0xc8] sm:$0xff]
        %v1136 = vld [vmem:[#allocation8 + $0xd0] sm:$0xff]
        %v1137 = vld [vmem:[#allocation8 + $0xd8] sm:$0xff]
        %v1138 = vld [vmem:[#allocation8 + $0xe0] sm:$0xff]
        %v1139 = vld [vmem:[#allocation8 + $0xe8] sm:$0xff]
        %v1140 = vld [vmem:[#allocation8 + $0xf0] sm:$0xff]
        %v1141 = vld [vmem:[#allocation8 + $0xf8] sm:$0xff]
        %v1142 = vld [vmem:[#allocation8 + $0x100] sm:$0xff]
        %v1143 = vld [vmem:[#allocation8 + $0x108] sm:$0xff]
        %v1144 = vld [vmem:[#allocation8 + $0x110] sm:$0xff]
        %v1145 = vld [vmem:[#allocation8 + $0x118] sm:$0xff]
        %v1146 = vld [vmem:[#allocation8 + $0x120] sm:$0xff]
        %v1147 = vld [vmem:[#allocation8 + $0x128] sm:$0xff]
        %v1148 = vld [vmem:[#allocation8 + $0x130] sm:$0xff]
        %v1149 = vld [vmem:[#allocation8 + $0x138] sm:$0xff]
        %v1150 = vld [vmem:[#allocation8 + $0x140] sm:$0xff]
        %v1151 = vld [vmem:[#allocation8 + $0x148] sm:$0xff]
        %v1152 = vld [vmem:[#allocation8 + $0x150] sm:$0xff]
        %v1153 = vld [vmem:[#allocation8 + $0x158] sm:$0xff]
        %v1154 = vld [vmem:[#allocation8 + $0x160] sm:$0xff]
        %v1155 = vld [vmem:[#allocation8 + $0x168] sm:$0xff]
        %v1156 = vld [vmem:[#allocation8 + $0x170] sm:$0xff]
        %v1157 = vld [vmem:[#allocation8 + $0x178] sm:$0xff]
        %v1158 = vld [vmem:[#allocation8 + $0x180] sm:$0xff]
        %v1159 = vld [vmem:[#allocation8 + $0x188] sm:$0xff]
        %v1160 = vld [vmem:[#allocation8 + $0x190] sm:$0xff]
        %v1161 = vld [vmem:[#allocation8 + $0x198] sm:$0xff]
        %v1162 = vld [vmem:[#allocation8 + $0x1a0] sm:$0xff]
        %v1163 = vld [vmem:[#allocation8 + $0x1a8] sm:$0xff]
        %v1164 = vld [vmem:[#allocation8 + $0x1b0] sm:$0xff]
        %v1165 = vld [vmem:[#allocation8 + $0x1b8] sm:$0xff]
        %v1166 = vld [vmem:[#allocation8 + $0x1c0] sm:$0xff]
        %v1167 = vld [vmem:[#allocation8 + $0x1c8] sm:$0xff]
        %v1168 = vld [vmem:[#allocation8 + $0x1d0] sm:$0xff]
        %v1169 = vld [vmem:[#allocation8 + $0x1d8] sm:$0xff]
        %v1170 = vld [vmem:[#allocation8 + $0x1e0] sm:$0xff]
        %v1171 = vld [vmem:[#allocation8 + $0x1e8] sm:$0xff]
        %v1172 = vld [vmem:[#allocation8 + $0x1f0] sm:$0xff]
        %v1173 = vld [vmem:[#allocation8 + $0x1f8] sm:$0xff]
        %v1174 = vld [vmem:[%s6] sm:$0xff]
        %v1176 = vlaneseq
        %v1177 = vshrl.u32 %v1176, 7
        %v1178 = vsub.s32 0, %v1177
        %v1179 = vrot.slane %v1174, %v1178
        %v1180 = vlaneseq
        %v1181 = vshrl.u32 %v1180, 7
        %v1182 = vsub.s32 1, %v1181
        %v1183 = vrot.slane %v1174, %v1182
        %v1184 = vlaneseq
        %v1185 = vshrl.u32 %v1184, 7
        %v1186 = vsub.s32 2, %v1185
        %v1187 = vrot.slane %v1174, %v1186
        %v1188 = vlaneseq
        %v1189 = vshrl.u32 %v1188, 7
        %v1190 = vsub.s32 3, %v1189
        %v1191 = vrot.slane %v1174, %v1190
        %v1192 = vlaneseq
        %v1193 = vshrl.u32 %v1192, 7
        %v1194 = vsub.s32 4, %v1193
        %v1195 = vrot.slane %v1174, %v1194
        %v1196 = vlaneseq
        %v1197 = vshrl.u32 %v1196, 7
        %v1198 = vsub.s32 5, %v1197
        %v1199 = vrot.slane %v1174, %v1198
        %v1200 = vlaneseq
        %v1201 = vshrl.u32 %v1200, 7
        %v1202 = vsub.s32 6, %v1201
        %v1203 = vrot.slane %v1174, %v1202
        %v1204 = vlaneseq
        %v1205 = vshrl.u32 %v1204, 7
        %v1206 = vsub.s32 7, %v1205
        %v1207 = vrot.slane %v1174, %v1206
        %v1280 = vunpack.c.l.b16 %v1110
        %v1281 = vunpack.c.h.b16 %v1110
        %v1282 = vunpack.c.l.b16 %v1111
        %v1283 = vunpack.c.h.b16 %v1111
        %v1284 = vunpack.c.l.b16 %v1112
        %v1285 = vunpack.c.h.b16 %v1112
        %v1286 = vunpack.c.l.b16 %v1113
        %v1287 = vunpack.c.h.b16 %v1113
        %v1288 = vunpack.c.l.b16 %v1114
        %v1289 = vunpack.c.h.b16 %v1114
        %v1290 = vunpack.c.l.b16 %v1115
        %v1291 = vunpack.c.h.b16 %v1115
        %v1292 = vunpack.c.l.b16 %v1116
        %v1293 = vunpack.c.h.b16 %v1116
        %v1294 = vunpack.c.l.b16 %v1117
        %v1295 = vunpack.c.h.b16 %v1117
        %v1296 = vunpack.c.l.b16 %v1118
        %v1297 = vunpack.c.h.b16 %v1118
        %v1298 = vunpack.c.l.b16 %v1119
        %v1299 = vunpack.c.h.b16 %v1119
        %v1300 = vunpack.c.l.b16 %v1120
        %v1301 = vunpack.c.h.b16 %v1120
        %v1302 = vunpack.c.l.b16 %v1121
        %v1303 = vunpack.c.h.b16 %v1121
        %v1304 = vunpack.c.l.b16 %v1122
        %v1305 = vunpack.c.h.b16 %v1122
        %v1306 = vunpack.c.l.b16 %v1123
        %v1307 = vunpack.c.h.b16 %v1123
        %v1308 = vunpack.c.l.b16 %v1124
        %v1309 = vunpack.c.h.b16 %v1124
        %v1310 = vunpack.c.l.b16 %v1125
        %v1311 = vunpack.c.h.b16 %v1125
        %v1312 = vunpack.c.l.b16 %v1126
        %v1313 = vunpack.c.h.b16 %v1126
        %v1314 = vunpack.c.l.b16 %v1127
        %v1315 = vunpack.c.h.b16 %v1127
        %v1316 = vunpack.c.l.b16 %v1128
        %v1317 = vunpack.c.h.b16 %v1128
        %v1318 = vunpack.c.l.b16 %v1129
        %v1319 = vunpack.c.h.b16 %v1129
        %v1320 = vunpack.c.l.b16 %v1130
        %v1321 = vunpack.c.h.b16 %v1130
        %v1322 = vunpack.c.l.b16 %v1131
        %v1323 = vunpack.c.h.b16 %v1131
        %v1324 = vunpack.c.l.b16 %v1132
        %v1325 = vunpack.c.h.b16 %v1132
        %v1326 = vunpack.c.l.b16 %v1133
        %v1327 = vunpack.c.h.b16 %v1133
        %v1328 = vunpack.c.l.b16 %v1134
        %v1329 = vunpack.c.h.b16 %v1134
        %v1330 = vunpack.c.l.b16 %v1135
        %v1331 = vunpack.c.h.b16 %v1135
        %v1332 = vunpack.c.l.b16 %v1136
        %v1333 = vunpack.c.h.b16 %v1136
        %v1334 = vunpack.c.l.b16 %v1137
        %v1335 = vunpack.c.h.b16 %v1137
        %v1336 = vunpack.c.l.b16 %v1138
        %v1337 = vunpack.c.h.b16 %v1138
        %v1338 = vunpack.c.l.b16 %v1139
        %v1339 = vunpack.c.h.b16 %v1139
        %v1340 = vunpack.c.l.b16 %v1140
        %v1341 = vunpack.c.h.b16 %v1140
        %v1342 = vunpack.c.l.b16 %v1141
        %v1343 = vunpack.c.h.b16 %v1141
        %v1344 = vunpack.c.l.b16 %v1142
        %v1345 = vunpack.c.h.b16 %v1142
        %v1346 = vunpack.c.l.b16 %v1143
        %v1347 = vunpack.c.h.b16 %v1143
        %v1348 = vunpack.c.l.b16 %v1144
        %v1349 = vunpack.c.h.b16 %v1144
        %v1350 = vunpack.c.l.b16 %v1145
        %v1351 = vunpack.c.h.b16 %v1145
        %v1352 = vunpack.c.l.b16 %v1146
        %v1353 = vunpack.c.h.b16 %v1146
        %v1354 = vunpack.c.l.b16 %v1147
        %v1355 = vunpack.c.h.b16 %v1147
        %v1356 = vunpack.c.l.b16 %v1148
        %v1357 = vunpack.c.h.b16 %v1148
        %v1358 = vunpack.c.l.b16 %v1149
        %v1359 = vunpack.c.h.b16 %v1149
        %v1360 = vunpack.c.l.b16 %v1150
        %v1361 = vunpack.c.h.b16 %v1150
        %v1362 = vunpack.c.l.b16 %v1151
        %v1363 = vunpack.c.h.b16 %v1151
        %v1364 = vunpack.c.l.b16 %v1152
        %v1365 = vunpack.c.h.b16 %v1152
        %v1366 = vunpack.c.l.b16 %v1153
        %v1367 = vunpack.c.h.b16 %v1153
        %v1368 = vunpack.c.l.b16 %v1154
        %v1369 = vunpack.c.h.b16 %v1154
        %v1370 = vunpack.c.l.b16 %v1155
        %v1371 = vunpack.c.h.b16 %v1155
        %v1372 = vunpack.c.l.b16 %v1156
        %v1373 = vunpack.c.h.b16 %v1156
        %v1374 = vunpack.c.l.b16 %v1157
        %v1375 = vunpack.c.h.b16 %v1157
        %v1376 = vunpack.c.l.b16 %v1158
        %v1377 = vunpack.c.h.b16 %v1158
        %v1378 = vunpack.c.l.b16 %v1159
        %v1379 = vunpack.c.h.b16 %v1159
        %v1380 = vunpack.c.l.b16 %v1160
        %v1381 = vunpack.c.h.b16 %v1160
        %v1382 = vunpack.c.l.b16 %v1161
        %v1383 = vunpack.c.h.b16 %v1161
        %v1384 = vunpack.c.l.b16 %v1162
        %v1385 = vunpack.c.h.b16 %v1162
        %v1386 = vunpack.c.l.b16 %v1163
        %v1387 = vunpack.c.h.b16 %v1163
        %v1388 = vunpack.c.l.b16 %v1164
        %v1389 = vunpack.c.h.b16 %v1164
        %v1390 = vunpack.c.l.b16 %v1165
        %v1391 = vunpack.c.h.b16 %v1165
        %v1392 = vunpack.c.l.b16 %v1166
        %v1393 = vunpack.c.h.b16 %v1166
        %v1394 = vunpack.c.l.b16 %v1167
        %v1395 = vunpack.c.h.b16 %v1167
        %v1396 = vunpack.c.l.b16 %v1168
        %v1397 = vunpack.c.h.b16 %v1168
        %v1398 = vunpack.c.l.b16 %v1169
        %v1399 = vunpack.c.h.b16 %v1169
        %v1400 = vunpack.c.l.b16 %v1170
        %v1401 = vunpack.c.h.b16 %v1170
        %v1402 = vunpack.c.l.b16 %v1171
        %v1403 = vunpack.c.h.b16 %v1171
        %v1404 = vunpack.c.l.b16 %v1172
        %v1405 = vunpack.c.h.b16 %v1172
        %v1406 = vunpack.c.l.b16 %v1173
        %v1407 = vunpack.c.h.b16 %v1173
        %v1408 = vpack.c.b16 %v1288, %v1280
        %v1409 = vpack.c.b16 %v1289, %v1281
        %v1410 = vpack.c.b16 %v1290, %v1282
        %v1411 = vpack.c.b16 %v1291, %v1283
        %v1412 = vpack.c.b16 %v1292, %v1284
        %v1413 = vpack.c.b16 %v1293, %v1285
        %v1414 = vpack.c.b16 %v1294, %v1286
        %v1415 = vpack.c.b16 %v1295, %v1287
        %v1416 = vpack.c.b16 %v1304, %v1296
        %v1417 = vpack.c.b16 %v1305, %v1297
        %v1418 = vpack.c.b16 %v1306, %v1298
        %v1419 = vpack.c.b16 %v1307, %v1299
        %v1420 = vpack.c.b16 %v1308, %v1300
        %v1421 = vpack.c.b16 %v1309, %v1301
        %v1422 = vpack.c.b16 %v1310, %v1302
        %v1423 = vpack.c.b16 %v1311, %v1303
        %v1424 = vpack.c.b16 %v1320, %v1312
        %v1425 = vpack.c.b16 %v1321, %v1313
        %v1426 = vpack.c.b16 %v1322, %v1314
        %v1427 = vpack.c.b16 %v1323, %v1315
        %v1428 = vpack.c.b16 %v1324, %v1316
        %v1429 = vpack.c.b16 %v1325, %v1317
        %v1430 = vpack.c.b16 %v1326, %v1318
        %v1431 = vpack.c.b16 %v1327, %v1319
        %v1432 = vpack.c.b16 %v1336, %v1328
        %v1433 = vpack.c.b16 %v1337, %v1329
        %v1434 = vpack.c.b16 %v1338, %v1330
        %v1435 = vpack.c.b16 %v1339, %v1331
        %v1436 = vpack.c.b16 %v1340, %v1332
        %v1437 = vpack.c.b16 %v1341, %v1333
        %v1438 = vpack.c.b16 %v1342, %v1334
        %v1439 = vpack.c.b16 %v1343, %v1335
        %v1440 = vpack.c.b16 %v1352, %v1344
        %v1441 = vpack.c.b16 %v1353, %v1345
        %v1442 = vpack.c.b16 %v1354, %v1346
        %v1443 = vpack.c.b16 %v1355, %v1347
        %v1444 = vpack.c.b16 %v1356, %v1348
        %v1445 = vpack.c.b16 %v1357, %v1349
        %v1446 = vpack.c.b16 %v1358, %v1350
        %v1447 = vpack.c.b16 %v1359, %v1351
        %v1448 = vpack.c.b16 %v1368, %v1360
        %v1449 = vpack.c.b16 %v1369, %v1361
        %v1450 = vpack.c.b16 %v1370, %v1362
        %v1451 = vpack.c.b16 %v1371, %v1363
        %v1452 = vpack.c.b16 %v1372, %v1364
        %v1453 = vpack.c.b16 %v1373, %v1365
        %v1454 = vpack.c.b16 %v1374, %v1366
        %v1455 = vpack.c.b16 %v1375, %v1367
        %v1456 = vpack.c.b16 %v1384, %v1376
        %v1457 = vpack.c.b16 %v1385, %v1377
        %v1458 = vpack.c.b16 %v1386, %v1378
        %v1459 = vpack.c.b16 %v1387, %v1379
        %v1460 = vpack.c.b16 %v1388, %v1380
        %v1461 = vpack.c.b16 %v1389, %v1381
        %v1462 = vpack.c.b16 %v1390, %v1382
        %v1463 = vpack.c.b16 %v1391, %v1383
        %v1464 = vpack.c.b16 %v1400, %v1392
        %v1465 = vpack.c.b16 %v1401, %v1393
        %v1466 = vpack.c.b16 %v1402, %v1394
        %v1467 = vpack.c.b16 %v1403, %v1395
        %v1468 = vpack.c.b16 %v1404, %v1396
        %v1469 = vpack.c.b16 %v1405, %v1397
        %v1470 = vpack.c.b16 %v1406, %v1398
        %v1471 = vpack.c.b16 %v1407, %v1399
        %1536 = vmatprep.subr.bf16.mxu0 %v1409
        %1537 = vmatpush1.bf16.msra.mxu0 %v1408
        %1538 = vmatprep.subr.bf16.mxu0 %v1417
        %1539 = vmatpush1.bf16.msra.mxu0 %v1416
        %1540 = vmatprep.subr.bf16.mxu0 %v1425
        %1541 = vmatpush1.bf16.msra.mxu0 %v1424
        %1542 = vmatprep.subr.bf16.mxu0 %v1433
        %1543 = vmatpush1.bf16.msra.mxu0 %v1432
        %1544 = vmatprep.subr.bf16.mxu0 %v1441
        %1545 = vmatpush1.bf16.msra.mxu0 %v1440
        %1546 = vmatprep.subr.bf16.mxu0 %v1449
        %1547 = vmatpush1.bf16.msra.mxu0 %v1448
        %1548 = vmatprep.subr.bf16.mxu0 %v1457
        %1549 = vmatpush1.bf16.msra.mxu0 %v1456
        %1550 = vmatprep.subr.bf16.mxu0 %v1465
        %1551 = vmatpush1.bf16.msra.mxu0 %v1464
        %1552 = vmatprep.subr.bf16.mxu0 0
        %1553 = vmatpush1.bf16.msra.mxu0 0
        %1554 = vmatprep.subr.bf16.mxu0 0
        %1555 = vmatpush1.bf16.msra.mxu0 0
        %1556 = vmatprep.subr.bf16.mxu0 0
        %1557 = vmatpush1.bf16.msra.mxu0 0
        %1558 = vmatprep.subr.bf16.mxu0 0
        %1559 = vmatpush1.bf16.msra.mxu0 0
        %1560 = vmatprep.subr.bf16.mxu0 0
        %1561 = vmatpush1.bf16.msra.mxu0 0
        %1562 = vmatprep.subr.bf16.mxu0 0
        %1563 = vmatpush1.bf16.msra.mxu0 0
        %1564 = vmatprep.subr.bf16.mxu0 0
        %1565 = vmatpush1.bf16.msra.mxu0 0
        %1566 = vmatprep.subr.bf16.mxu0 0
        %1567 = vmatpush1.bf16.msra.mxu0 0
        %1568 = vmatprep.mubr.bf16.mxu0 0
        %1569 = vmatmul.mubr.bf16.gmra.mrb[0].mxu0 %v1102
        %v1570 = vpop.f32.mrb[0].mxu0
        %v1571 = vadd.f32 %v1179, %v1570
        %v1572 = vpop.f32.mrb[0].mxu0
        %v1573 = vadd.f32 %v1183, %v1572
        %v1574 = vpop.f32.mrb[0].mxu0
        %v1575 = vadd.f32 %v1179, %v1574
        %v1576 = vpop.f32.mrb[0].mxu0
        %v1577 = vadd.f32 %v1183, %v1576
        %1578 = vmatprep.mubr.bf16.mxu0 0
        %1579 = vmatmul.mubr.bf16.gmra.mrb[0].mxu0 %v1103
        %v1580 = vpop.f32.mrb[0].mxu0
        %v1581 = vadd.f32 %v1179, %v1580
        %v1582 = vpop.f32.mrb[0].mxu0
        %v1583 = vadd.f32 %v1183, %v1582
        %v1584 = vpop.f32.mrb[0].mxu0
        %v1585 = vadd.f32 %v1179, %v1584
        %v1586 = vpop.f32.mrb[0].mxu0
        %v1587 = vadd.f32 %v1183, %v1586
        %1588 = vmatprep.mubr.bf16.mxu0 0
        %1589 = vmatmul.mubr.bf16.gmra.mrb[0].mxu0 %v1104
        %v1590 = vpop.f32.mrb[0].mxu0
        %v1591 = vadd.f32 %v1179, %v1590
        %v1592 = vpop.f32.mrb[0].mxu0
        %v1593 = vadd.f32 %v1183, %v1592
        %v1594 = vpop.f32.mrb[0].mxu0
        %v1595 = vadd.f32 %v1179, %v1594
        %v1596 = vpop.f32.mrb[0].mxu0
        %v1597 = vadd.f32 %v1183, %v1596
        %1598 = vmatprep.mubr.bf16.mxu0 0
        %1599 = vmatmul.mubr.bf16.gmra.mrb[0].mxu0 %v1105
        %v1600 = vpop.f32.mrb[0].mxu0
        %v1601 = vadd.f32 %v1179, %v1600
        %v1602 = vpop.f32.mrb[0].mxu0
        %v1603 = vadd.f32 %v1183, %v1602
        %v1604 = vpop.f32.mrb[0].mxu0
        %v1605 = vadd.f32 %v1179, %v1604
        %v1606 = vpop.f32.mrb[0].mxu0
        %v1607 = vadd.f32 %v1183, %v1606
        %1608 = vmatprep.mubr.bf16.mxu0 0
        %1609 = vmatmul.mubr.bf16.gmra.mrb[0].mxu0 %v1106
        %v1610 = vpop.f32.mrb[0].mxu0
        %v1611 = vadd.f32 %v1179, %v1610
        %v1612 = vpop.f32.mrb[0].mxu0
        %v1613 = vadd.f32 %v1183, %v1612
        %v1614 = vpop.f32.mrb[0].mxu0
        %v1615 = vadd.f32 %v1179, %v1614
        %v1616 = vpop.f32.mrb[0].mxu0
        %v1617 = vadd.f32 %v1183, %v1616
        %1618 = vmatprep.mubr.bf16.mxu0 0
        %1619 = vmatmul.mubr.bf16.gmra.mrb[0].mxu0 %v1107
        %v1620 = vpop.f32.mrb[0].mxu0
        %v1621 = vadd.f32 %v1179, %v1620
        %v1622 = vpop.f32.mrb[0].mxu0
        %v1623 = vadd.f32 %v1183, %v1622
        %v1624 = vpop.f32.mrb[0].mxu0
        %v1625 = vadd.f32 %v1179, %v1624
        %v1626 = vpop.f32.mrb[0].mxu0
        %v1627 = vadd.f32 %v1183, %v1626
        %1628 = vmatprep.mubr.bf16.mxu0 0
        %1629 = vmatmul.mubr.bf16.gmra.mrb[0].mxu0 %v1108
        %v1630 = vpop.f32.mrb[0].mxu0
        %v1631 = vadd.f32 %v1179, %v1630
        %v1632 = vpop.f32.mrb[0].mxu0
        %v1633 = vadd.f32 %v1183, %v1632
        %v1634 = vpop.f32.mrb[0].mxu0
        %v1635 = vadd.f32 %v1179, %v1634
        %v1636 = vpop.f32.mrb[0].mxu0
        %v1637 = vadd.f32 %v1183, %v1636
        %1638 = vmatprep.mubr.bf16.mxu0 0
        %1639 = vmatmul.mubr.bf16.gmra.mrb[0].mxu0 %v1109
        %v1640 = vpop.f32.mrb[0].mxu0
        %v1641 = vadd.f32 %v1179, %v1640
        %v1642 = vpop.f32.mrb[0].mxu0
        %v1643 = vadd.f32 %v1183, %v1642
        %v1644 = vpop.f32.mrb[0].mxu0
        %v1645 = vadd.f32 %v1179, %v1644
        %v1646 = vpop.f32.mrb[0].mxu0
        %v1647 = vadd.f32 %v1183, %v1646
        %1648 = vdwg.mxu0
        %1649 = vmatprep.subr.bf16.mxu0 %v1411
        %1650 = vmatpush1.bf16.msra.mxu0 %v1410
        %1651 = vmatprep.subr.bf16.mxu0 %v1419
        %1652 = vmatpush1.bf16.msra.mxu0 %v1418
        %1653 = vmatprep.subr.bf16.mxu0 %v1427
        %1654 = vmatpush1.bf16.msra.mxu0 %v1426
        %1655 = vmatprep.subr.bf16.mxu0 %v1435
        %1656 = vmatpush1.bf16.msra.mxu0 %v1434
        %1657 = vmatprep.subr.bf16.mxu0 %v1443
        %1658 = vmatpush1.bf16.msra.mxu0 %v1442
        %1659 = vmatprep.subr.bf16.mxu0 %v1451
        %1660 = vmatpush1.bf16.msra.mxu0 %v1450
        %1661 = vmatprep.subr.bf16.mxu0 %v1459
        %1662 = vmatpush1.bf16.msra.mxu0 %v1458
        %1663 = vmatprep.subr.bf16.mxu0 %v1467
        %1664 = vmatpush1.bf16.msra.mxu0 %v1466
        %1665 = vmatprep.subr.bf16.mxu0 0
        %1666 = vmatpush1.bf16.msra.mxu0 0
        %1667 = vmatprep.subr.bf16.mxu0 0
        %1668 = vmatpush1.bf16.msra.mxu0 0
        %1669 = vmatprep.subr.bf16.mxu0 0
        %1670 = vmatpush1.bf16.msra.mxu0 0
        %1671 = vmatprep.subr.bf16.mxu0 0
        %1672 = vmatpush1.bf16.msra.mxu0 0
        %1673 = vmatprep.subr.bf16.mxu0 0
        %1674 = vmatpush1.bf16.msra.mxu0 0
        %1675 = vmatprep.subr.bf16.mxu0 0
        %1676 = vmatpush1.bf16.msra.mxu0 0
        %1677 = vmatprep.subr.bf16.mxu0 0
        %1678 = vmatpush1.bf16.msra.mxu0 0
        %1679 = vmatprep.subr.bf16.mxu0 0
        %1680 = vmatpush1.bf16.msra.mxu0 0
        %1681 = vmatprep.mubr.bf16.mxu0 0
        %1682 = vmatmul.mubr.bf16.gmra.mrb[0].mxu0 %v1102
        %v1683 = vpop.f32.mrb[0].mxu0
        %v1684 = vadd.f32 %v1187, %v1683
        %v1685 = vpop.f32.mrb[0].mxu0
        %v1686 = vadd.f32 %v1191, %v1685
        %v1687 = vpop.f32.mrb[0].mxu0
        %v1688 = vadd.f32 %v1187, %v1687
        %v1689 = vpop.f32.mrb[0].mxu0
        %v1690 = vadd.f32 %v1191, %v1689
        %1691 = vmatprep.mubr.bf16.mxu0 0
        %1692 = vmatmul.mubr.bf16.gmra.mrb[0].mxu0 %v1103
        %v1693 = vpop.f32.mrb[0].mxu0
        %v1694 = vadd.f32 %v1187, %v1693
        %v1695 = vpop.f32.mrb[0].mxu0
        %v1696 = vadd.f32 %v1191, %v1695
        %v1697 = vpop.f32.mrb[0].mxu0
        %v1698 = vadd.f32 %v1187, %v1697
        %v1699 = vpop.f32.mrb[0].mxu0
        %v1700 = vadd.f32 %v1191, %v1699
        %1701 = vmatprep.mubr.bf16.mxu0 0
        %1702 = vmatmul.mubr.bf16.gmra.mrb[0].mxu0 %v1104
        %v1703 = vpop.f32.mrb[0].mxu0
        %v1704 = vadd.f32 %v1187, %v1703
        %v1705 = vpop.f32.mrb[0].mxu0
        %v1706 = vadd.f32 %v1191, %v1705
        %v1707 = vpop.f32.mrb[0].mxu0
        %v1708 = vadd.f32 %v1187, %v1707
        %v1709 = vpop.f32.mrb[0].mxu0
        %v1710 = vadd.f32 %v1191, %v1709
        %1711 = vmatprep.mubr.bf16.mxu0 0
        %1712 = vmatmul.mubr.bf16.gmra.mrb[0].mxu0 %v1105
        %v1713 = vpop.f32.mrb[0].mxu0
        %v1714 = vadd.f32 %v1187, %v1713
        %v1715 = vpop.f32.mrb[0].mxu0
        %v1716 = vadd.f32 %v1191, %v1715
        %v1717 = vpop.f32.mrb[0].mxu0
        %v1718 = vadd.f32 %v1187, %v1717
        %v1719 = vpop.f32.mrb[0].mxu0
        %v1720 = vadd.f32 %v1191, %v1719
        %1721 = vmatprep.mubr.bf16.mxu0 0
        %1722 = vmatmul.mubr.bf16.gmra.mrb[0].mxu0 %v1106
        %v1723 = vpop.f32.mrb[0].mxu0
        %v1724 = vadd.f32 %v1187, %v1723
        %v1725 = vpop.f32.mrb[0].mxu0
        %v1726 = vadd.f32 %v1191, %v1725
        %v1727 = vpop.f32.mrb[0].mxu0
        %v1728 = vadd.f32 %v1187, %v1727
        %v1729 = vpop.f32.mrb[0].mxu0
        %v1730 = vadd.f32 %v1191, %v1729
        %1731 = vmatprep.mubr.bf16.mxu0 0
        %1732 = vmatmul.mubr.bf16.gmra.mrb[0].mxu0 %v1107
        %v1733 = vpop.f32.mrb[0].mxu0
        %v1734 = vadd.f32 %v1187, %v1733
        %v1735 = vpop.f32.mrb[0].mxu0
        %v1736 = vadd.f32 %v1191, %v1735
        %v1737 = vpop.f32.mrb[0].mxu0
        %v1738 = vadd.f32 %v1187, %v1737
        %v1739 = vpop.f32.mrb[0].mxu0
        %v1740 = vadd.f32 %v1191, %v1739
        %1741 = vmatprep.mubr.bf16.mxu0 0
        %1742 = vmatmul.mubr.bf16.gmra.mrb[0].mxu0 %v1108
        %v1743 = vpop.f32.mrb[0].mxu0
        %v1744 = vadd.f32 %v1187, %v1743
        %v1745 = vpop.f32.mrb[0].mxu0
        %v1746 = vadd.f32 %v1191, %v1745
        %v1747 = vpop.f32.mrb[0].mxu0
        %v1748 = vadd.f32 %v1187, %v1747
        %v1749 = vpop.f32.mrb[0].mxu0
        %v1750 = vadd.f32 %v1191, %v1749
        %1751 = vmatprep.mubr.bf16.mxu0 0
        %1752 = vmatmul.mubr.bf16.gmra.mrb[0].mxu0 %v1109
        %v1753 = vpop.f32.mrb[0].mxu0
        %v1754 = vadd.f32 %v1187, %v1753
        %v1755 = vpop.f32.mrb[0].mxu0
        %v1756 = vadd.f32 %v1191, %v1755
        %v1757 = vpop.f32.mrb[0].mxu0
        %v1758 = vadd.f32 %v1187, %v1757
        %v1759 = vpop.f32.mrb[0].mxu0
        %v1760 = vadd.f32 %v1191, %v1759
        %1761 = vdwg.mxu0
        %1762 = vmatprep.subr.bf16.mxu0 %v1413
        %1763 = vmatpush1.bf16.msra.mxu0 %v1412
        %1764 = vmatprep.subr.bf16.mxu0 %v1421
        %1765 = vmatpush1.bf16.msra.mxu0 %v1420
        %1766 = vmatprep.subr.bf16.mxu0 %v1429
        %1767 = vmatpush1.bf16.msra.mxu0 %v1428
        %1768 = vmatprep.subr.bf16.mxu0 %v1437
        %1769 = vmatpush1.bf16.msra.mxu0 %v1436
        %1770 = vmatprep.subr.bf16.mxu0 %v1445
        %1771 = vmatpush1.bf16.msra.mxu0 %v1444
        %1772 = vmatprep.subr.bf16.mxu0 %v1453
        %1773 = vmatpush1.bf16.msra.mxu0 %v1452
        %1774 = vmatprep.subr.bf16.mxu0 %v1461
        %1775 = vmatpush1.bf16.msra.mxu0 %v1460
        %1776 = vmatprep.subr.bf16.mxu0 %v1469
        %1777 = vmatpush1.bf16.msra.mxu0 %v1468
        %1778 = vmatprep.subr.bf16.mxu0 0
        %1779 = vmatpush1.bf16.msra.mxu0 0
        %1780 = vmatprep.subr.bf16.mxu0 0
        %1781 = vmatpush1.bf16.msra.mxu0 0
        %1782 = vmatprep.subr.bf16.mxu0 0
        %1783 = vmatpush1.bf16.msra.mxu0 0
        %1784 = vmatprep.subr.bf16.mxu0 0
        %1785 = vmatpush1.bf16.msra.mxu0 0
        %1786 = vmatprep.subr.bf16.mxu0 0
        %1787 = vmatpush1.bf16.msra.mxu0 0
        %1788 = vmatprep.subr.bf16.mxu0 0
        %1789 = vmatpush1.bf16.msra.mxu0 0
        %1790 = vmatprep.subr.bf16.mxu0 0
        %1791 = vmatpush1.bf16.msra.mxu0 0
        %1792 = vmatprep.subr.bf16.mxu0 0
        %1793 = vmatpush1.bf16.msra.mxu0 0
        %1794 = vmatprep.mubr.bf16.mxu0 0
        %1795 = vmatmul.mubr.bf16.gmra.mrb[0].mxu0 %v1102
        %v1796 = vpop.f32.mrb[0].mxu0
        %v1797 = vadd.f32 %v1195, %v1796
        %v1798 = vpop.f32.mrb[0].mxu0
        %v1799 = vadd.f32 %v1199, %v1798
        %v1800 = vpop.f32.mrb[0].mxu0
        %v1801 = vadd.f32 %v1195, %v1800
        %v1802 = vpop.f32.mrb[0].mxu0
        %v1803 = vadd.f32 %v1199, %v1802
        %1804 = vmatprep.mubr.bf16.mxu0 0
        %1805 = vmatmul.mubr.bf16.gmra.mrb[0].mxu0 %v1103
        %v1806 = vpop.f32.mrb[0].mxu0
        %v1807 = vadd.f32 %v1195, %v1806
        %v1808 = vpop.f32.mrb[0].mxu0
        %v1809 = vadd.f32 %v1199, %v1808
        %v1810 = vpop.f32.mrb[0].mxu0
        %v1811 = vadd.f32 %v1195, %v1810
        %v1812 = vpop.f32.mrb[0].mxu0
        %v1813 = vadd.f32 %v1199, %v1812
        %1814 = vmatprep.mubr.bf16.mxu0 0
        %1815 = vmatmul.mubr.bf16.gmra.mrb[0].mxu0 %v1104
        %v1816 = vpop.f32.mrb[0].mxu0
        %v1817 = vadd.f32 %v1195, %v1816
        %v1818 = vpop.f32.mrb[0].mxu0
        %v1819 = vadd.f32 %v1199, %v1818
        %v1820 = vpop.f32.mrb[0].mxu0
        %v1821 = vadd.f32 %v1195, %v1820
        %v1822 = vpop.f32.mrb[0].mxu0
        %v1823 = vadd.f32 %v1199, %v1822
        %1824 = vmatprep.mubr.bf16.mxu0 0
        %1825 = vmatmul.mubr.bf16.gmra.mrb[0].mxu0 %v1105
        %v1826 = vpop.f32.mrb[0].mxu0
        %v1827 = vadd.f32 %v1195, %v1826
        %v1828 = vpop.f32.mrb[0].mxu0
        %v1829 = vadd.f32 %v1199, %v1828
        %v1830 = vpop.f32.mrb[0].mxu0
        %v1831 = vadd.f32 %v1195, %v1830
        %v1832 = vpop.f32.mrb[0].mxu0
        %v1833 = vadd.f32 %v1199, %v1832
        %1834 = vmatprep.mubr.bf16.mxu0 0
        %1835 = vmatmul.mubr.bf16.gmra.mrb[0].mxu0 %v1106
        %v1836 = vpop.f32.mrb[0].mxu0
        %v1837 = vadd.f32 %v1195, %v1836
        %v1838 = vpop.f32.mrb[0].mxu0
        %v1839 = vadd.f32 %v1199, %v1838
        %v1840 = vpop.f32.mrb[0].mxu0
        %v1841 = vadd.f32 %v1195, %v1840
        %v1842 = vpop.f32.mrb[0].mxu0
        %v1843 = vadd.f32 %v1199, %v1842
        %1844 = vmatprep.mubr.bf16.mxu0 0
        %1845 = vmatmul.mubr.bf16.gmra.mrb[0].mxu0 %v1107
        %v1846 = vpop.f32.mrb[0].mxu0
        %v1847 = vadd.f32 %v1195, %v1846
        %v1848 = vpop.f32.mrb[0].mxu0
        %v1849 = vadd.f32 %v1199, %v1848
        %v1850 = vpop.f32.mrb[0].mxu0
        %v1851 = vadd.f32 %v1195, %v1850
        %v1852 = vpop.f32.mrb[0].mxu0
        %v1853 = vadd.f32 %v1199, %v1852
        %1854 = vmatprep.mubr.bf16.mxu0 0
        %1855 = vmatmul.mubr.bf16.gmra.mrb[0].mxu0 %v1108
        %v1856 = vpop.f32.mrb[0].mxu0
        %v1857 = vadd.f32 %v1195, %v1856
        %v1858 = vpop.f32.mrb[0].mxu0
        %v1859 = vadd.f32 %v1199, %v1858
        %v1860 = vpop.f32.mrb[0].mxu0
        %v1861 = vadd.f32 %v1195, %v1860
        %v1862 = vpop.f32.mrb[0].mxu0
        %v1863 = vadd.f32 %v1199, %v1862
        %1864 = vmatprep.mubr.bf16.mxu0 0
        %1865 = vmatmul.mubr.bf16.gmra.mrb[0].mxu0 %v1109
        %v1866 = vpop.f32.mrb[0].mxu0
        %v1867 = vadd.f32 %v1195, %v1866
        %v1868 = vpop.f32.mrb[0].mxu0
        %v1869 = vadd.f32 %v1199, %v1868
        %v1870 = vpop.f32.mrb[0].mxu0
        %v1871 = vadd.f32 %v1195, %v1870
        %v1872 = vpop.f32.mrb[0].mxu0
        %v1873 = vadd.f32 %v1199, %v1872
        %1874 = vdwg.mxu0
        %1875 = vmatprep.subr.bf16.mxu0 %v1415
        %1876 = vmatpush1.bf16.msra.mxu0 %v1414
        %1877 = vmatprep.subr.bf16.mxu0 %v1423
        %1878 = vmatpush1.bf16.msra.mxu0 %v1422
        %1879 = vmatprep.subr.bf16.mxu0 %v1431
        %1880 = vmatpush1.bf16.msra.mxu0 %v1430
        %1881 = vmatprep.subr.bf16.mxu0 %v1439
        %1882 = vmatpush1.bf16.msra.mxu0 %v1438
        %1883 = vmatprep.subr.bf16.mxu0 %v1447
        %1884 = vmatpush1.bf16.msra.mxu0 %v1446
        %1885 = vmatprep.subr.bf16.mxu0 %v1455
        %1886 = vmatpush1.bf16.msra.mxu0 %v1454
        %1887 = vmatprep.subr.bf16.mxu0 %v1463
        %1888 = vmatpush1.bf16.msra.mxu0 %v1462
        %1889 = vmatprep.subr.bf16.mxu0 %v1471
        %1890 = vmatpush1.bf16.msra.mxu0 %v1470
        %1891 = vmatprep.subr.bf16.mxu0 0
        %1892 = vmatpush1.bf16.msra.mxu0 0
        %1893 = vmatprep.subr.bf16.mxu0 0
        %1894 = vmatpush1.bf16.msra.mxu0 0
        %1895 = vmatprep.subr.bf16.mxu0 0
        %1896 = vmatpush1.bf16.msra.mxu0 0
        %1897 = vmatprep.subr.bf16.mxu0 0
        %1898 = vmatpush1.bf16.msra.mxu0 0
        %1899 = vmatprep.subr.bf16.mxu0 0
        %1900 = vmatpush1.bf16.msra.mxu0 0
        %1901 = vmatprep.subr.bf16.mxu0 0
        %1902 = vmatpush1.bf16.msra.mxu0 0
        %1903 = vmatprep.subr.bf16.mxu0 0
        %1904 = vmatpush1.bf16.msra.mxu0 0
        %1905 = vmatprep.subr.bf16.mxu0 0
        %1906 = vmatpush1.bf16.msra.mxu0 0
        %1907 = vmatprep.mubr.bf16.mxu0 0
        %1908 = vmatmul.mubr.bf16.gmra.mrb[0].mxu0 %v1102
        %v1909 = vpop.f32.mrb[0].mxu0
        %v1910 = vadd.f32 %v1203, %v1909
        %v1911 = vpop.f32.mrb[0].mxu0
        %v1912 = vadd.f32 %v1207, %v1911
        %v1913 = vpop.f32.mrb[0].mxu0
        %v1914 = vadd.f32 %v1203, %v1913
        %v1915 = vpop.f32.mrb[0].mxu0
        %v1916 = vadd.f32 %v1207, %v1915
        %1917 = vmatprep.mubr.bf16.mxu0 0
        %1918 = vmatmul.mubr.bf16.gmra.mrb[0].mxu0 %v1103
        %v1919 = vpop.f32.mrb[0].mxu0
        %v1920 = vadd.f32 %v1203, %v1919
        %v1921 = vpop.f32.mrb[0].mxu0
        %v1922 = vadd.f32 %v1207, %v1921
        %v1923 = vpop.f32.mrb[0].mxu0
        %v1924 = vadd.f32 %v1203, %v1923
        %v1925 = vpop.f32.mrb[0].mxu0
        %v1926 = vadd.f32 %v1207, %v1925
        %1927 = vmatprep.mubr.bf16.mxu0 0
        %1928 = vmatmul.mubr.bf16.gmra.mrb[0].mxu0 %v1104
        %v1929 = vpop.f32.mrb[0].mxu0
        %v1930 = vadd.f32 %v1203, %v1929
        %v1931 = vpop.f32.mrb[0].mxu0
        %v1932 = vadd.f32 %v1207, %v1931
        %v1933 = vpop.f32.mrb[0].mxu0
        %v1934 = vadd.f32 %v1203, %v1933
        %v1935 = vpop.f32.mrb[0].mxu0
        %v1936 = vadd.f32 %v1207, %v1935
        %1937 = vmatprep.mubr.bf16.mxu0 0
        %1938 = vmatmul.mubr.bf16.gmra.mrb[0].mxu0 %v1105
        %v1939 = vpop.f32.mrb[0].mxu0
        %v1940 = vadd.f32 %v1203, %v1939
        %v1941 = vpop.f32.mrb[0].mxu0
        %v1942 = vadd.f32 %v1207, %v1941
        %v1943 = vpop.f32.mrb[0].mxu0
        %v1944 = vadd.f32 %v1203, %v1943
        %v1945 = vpop.f32.mrb[0].mxu0
        %v1946 = vadd.f32 %v1207, %v1945
        %1947 = vmatprep.mubr.bf16.mxu0 0
        %1948 = vmatmul.mubr.bf16.gmra.mrb[0].mxu0 %v1106
        %v1949 = vpop.f32.mrb[0].mxu0
        %v1950 = vadd.f32 %v1203, %v1949
        %v1951 = vpop.f32.mrb[0].mxu0
        %v1952 = vadd.f32 %v1207, %v1951
        %v1953 = vpop.f32.mrb[0].mxu0
        %v1954 = vadd.f32 %v1203, %v1953
        %v1955 = vpop.f32.mrb[0].mxu0
        %v1956 = vadd.f32 %v1207, %v1955
        %1957 = vmatprep.mubr.bf16.mxu0 0
        %1958 = vmatmul.mubr.bf16.gmra.mrb[0].mxu0 %v1107
        %v1959 = vpop.f32.mrb[0].mxu0
        %v1960 = vadd.f32 %v1203, %v1959
        %v1961 = vpop.f32.mrb[0].mxu0
        %v1962 = vadd.f32 %v1207, %v1961
        %v1963 = vpop.f32.mrb[0].mxu0
        %v1964 = vadd.f32 %v1203, %v1963
        %v1965 = vpop.f32.mrb[0].mxu0
        %v1966 = vadd.f32 %v1207, %v1965
        %1967 = vmatprep.mubr.bf16.mxu0 0
        %1968 = vmatmul.mubr.bf16.gmra.mrb[0].mxu0 %v1108
        %v1969 = vpop.f32.mrb[0].mxu0
        %v1970 = vadd.f32 %v1203, %v1969
        %v1971 = vpop.f32.mrb[0].mxu0
        %v1972 = vadd.f32 %v1207, %v1971
        %v1973 = vpop.f32.mrb[0].mxu0
        %v1974 = vadd.f32 %v1203, %v1973
        %v1975 = vpop.f32.mrb[0].mxu0
        %v1976 = vadd.f32 %v1207, %v1975
        %1977 = vmatprep.mubr.bf16.mxu0 0
        %1978 = vmatmul.mubr.bf16.gmra.mrb[0].mxu0 %v1109
        %v1979 = vpop.f32.mrb[0].mxu0
        %v1980 = vadd.f32 %v1203, %v1979
        %v1981 = vpop.f32.mrb[0].mxu0
        %v1982 = vadd.f32 %v1207, %v1981
        %v1983 = vpop.f32.mrb[0].mxu0
        %v1984 = vadd.f32 %v1203, %v1983
        %v1985 = vpop.f32.mrb[0].mxu0
        %v1986 = vadd.f32 %v1207, %v1985
        %1987 = vdwg.mxu0
        %v1988 = vmax.f32 %v1571, 0.0
        %v1989 = vmax.f32 %v1573, 0.0
        %v1990 = vmax.f32 %v1684, 0.0
        %v1991 = vmax.f32 %v1686, 0.0
        %v1992 = vmax.f32 %v1797, 0.0
        %v1993 = vmax.f32 %v1799, 0.0
        %v1994 = vmax.f32 %v1910, 0.0
        %v1995 = vmax.f32 %v1912, 0.0
        %v1996 = vmax.f32 %v1575, 0.0
        %v1997 = vmax.f32 %v1577, 0.0
        %v1998 = vmax.f32 %v1688, 0.0
        %v1999 = vmax.f32 %v1690, 0.0
        %v2000 = vmax.f32 %v1801, 0.0
        %v2001 = vmax.f32 %v1803, 0.0
        %v2002 = vmax.f32 %v1914, 0.0
        %v2003 = vmax.f32 %v1916, 0.0
        %v2004 = vmax.f32 %v1581, 0.0
        %v2005 = vmax.f32 %v1583, 0.0
        %v2006 = vmax.f32 %v1694, 0.0
        %v2007 = vmax.f32 %v1696, 0.0
        %v2008 = vmax.f32 %v1807, 0.0
        %v2009 = vmax.f32 %v1809, 0.0
        %v2010 = vmax.f32 %v1920, 0.0
        %v2011 = vmax.f32 %v1922, 0.0
        %v2012 = vmax.f32 %v1585, 0.0
        %v2013 = vmax.f32 %v1587, 0.0
        %v2014 = vmax.f32 %v1698, 0.0
        %v2015 = vmax.f32 %v1700, 0.0
        %v2016 = vmax.f32 %v1811, 0.0
        %v2017 = vmax.f32 %v1813, 0.0
        %v2018 = vmax.f32 %v1924, 0.0
        %v2019 = vmax.f32 %v1926, 0.0
        %v2020 = vmax.f32 %v1591, 0.0
        %v2021 = vmax.f32 %v1593, 0.0
        %v2022 = vmax.f32 %v1704, 0.0
        %v2023 = vmax.f32 %v1706, 0.0
        %v2024 = vmax.f32 %v1817, 0.0
        %v2025 = vmax.f32 %v1819, 0.0
        %v2026 = vmax.f32 %v1930, 0.0
        %v2027 = vmax.f32 %v1932, 0.0
        %v2028 = vmax.f32 %v1595, 0.0
        %v2029 = vmax.f32 %v1597, 0.0
        %v2030 = vmax.f32 %v1708, 0.0
        %v2031 = vmax.f32 %v1710, 0.0
        %v2032 = vmax.f32 %v1821, 0.0
        %v2033 = vmax.f32 %v1823, 0.0
        %v2034 = vmax.f32 %v1934, 0.0
        %v2035 = vmax.f32 %v1936, 0.0
        %v2036 = vmax.f32 %v1601, 0.0
        %v2037 = vmax.f32 %v1603, 0.0
        %v2038 = vmax.f32 %v1714, 0.0
        %v2039 = vmax.f32 %v1716, 0.0
        %v2040 = vmax.f32 %v1827, 0.0
        %v2041 = vmax.f32 %v1829, 0.0
        %v2042 = vmax.f32 %v1940, 0.0
        %v2043 = vmax.f32 %v1942, 0.0
        %v2044 = vmax.f32 %v1605, 0.0
        %v2045 = vmax.f32 %v1607, 0.0
        %v2046 = vmax.f32 %v1718, 0.0
        %v2047 = vmax.f32 %v1720, 0.0
        %v2048 = vmax.f32 %v1831, 0.0
        %v2049 = vmax.f32 %v1833, 0.0
        %v2050 = vmax.f32 %v1944, 0.0
        %v2051 = vmax.f32 %v1946, 0.0
        %v2052 = vmax.f32 %v1611, 0.0
        %v2053 = vmax.f32 %v1613, 0.0
        %v2054 = vmax.f32 %v1724, 0.0
        %v2055 = vmax.f32 %v1726, 0.0
        %v2056 = vmax.f32 %v1837, 0.0
        %v2057 = vmax.f32 %v1839, 0.0
        %v2058 = vmax.f32 %v1950, 0.0
        %v2059 = vmax.f32 %v1952, 0.0
        %v2060 = vmax.f32 %v1615, 0.0
        %v2061 = vmax.f32 %v1617, 0.0
        %v2062 = vmax.f32 %v1728, 0.0
        %v2063 = vmax.f32 %v1730, 0.0
        %v2064 = vmax.f32 %v1841, 0.0
        %v2065 = vmax.f32 %v1843, 0.0
        %v2066 = vmax.f32 %v1954, 0.0
        %v2067 = vmax.f32 %v1956, 0.0
        %v2068 = vmax.f32 %v1621, 0.0
        %v2069 = vmax.f32 %v1623, 0.0
        %v2070 = vmax.f32 %v1734, 0.0
        %v2071 = vmax.f32 %v1736, 0.0
        %v2072 = vmax.f32 %v1847, 0.0
        %v2073 = vmax.f32 %v1849, 0.0
        %v2074 = vmax.f32 %v1960, 0.0
        %v2075 = vmax.f32 %v1962, 0.0
        %v2076 = vmax.f32 %v1625, 0.0
        %v2077 = vmax.f32 %v1627, 0.0
        %v2078 = vmax.f32 %v1738, 0.0
        %v2079 = vmax.f32 %v1740, 0.0
        %v2080 = vmax.f32 %v1851, 0.0
        %v2081 = vmax.f32 %v1853, 0.0
        %v2082 = vmax.f32 %v1964, 0.0
        %v2083 = vmax.f32 %v1966, 0.0
        %v2084 = vmax.f32 %v1631, 0.0
        %v2085 = vmax.f32 %v1633, 0.0
        %v2086 = vmax.f32 %v1744, 0.0
        %v2087 = vmax.f32 %v1746, 0.0
        %v2088 = vmax.f32 %v1857, 0.0
        %v2089 = vmax.f32 %v1859, 0.0
        %v2090 = vmax.f32 %v1970, 0.0
        %v2091 = vmax.f32 %v1972, 0.0
        %v2092 = vmax.f32 %v1635, 0.0
        %v2093 = vmax.f32 %v1637, 0.0
        %v2094 = vmax.f32 %v1748, 0.0
        %v2095 = vmax.f32 %v1750, 0.0
        %v2096 = vmax.f32 %v1861, 0.0
        %v2097 = vmax.f32 %v1863, 0.0
        %v2098 = vmax.f32 %v1974, 0.0
        %v2099 = vmax.f32 %v1976, 0.0
        %v2100 = vmax.f32 %v1641, 0.0
        %v2101 = vmax.f32 %v1643, 0.0
        %v2102 = vmax.f32 %v1754, 0.0
        %v2103 = vmax.f32 %v1756, 0.0
        %v2104 = vmax.f32 %v1867, 0.0
        %v2105 = vmax.f32 %v1869, 0.0
        %v2106 = vmax.f32 %v1980, 0.0
        %v2107 = vmax.f32 %v1982, 0.0
        %v2108 = vmax.f32 %v1645, 0.0
        %v2109 = vmax.f32 %v1647, 0.0
        %v2110 = vmax.f32 %v1758, 0.0
        %v2111 = vmax.f32 %v1760, 0.0
        %v2112 = vmax.f32 %v1871, 0.0
        %v2113 = vmax.f32 %v1873, 0.0
        %v2114 = vmax.f32 %v1984, 0.0
        %v2115 = vmax.f32 %v1986, 0.0
        %v2116 = vpack.c.bf16 %v1996, %v1988
        %v2117 = vpack.c.bf16 %v1997, %v1989
        %v2118 = vpack.c.bf16 %v1998, %v1990
        %v2119 = vpack.c.bf16 %v1999, %v1991
        %v2120 = vpack.c.bf16 %v2000, %v1992
        %v2121 = vpack.c.bf16 %v2001, %v1993
        %v2122 = vpack.c.bf16 %v2002, %v1994
        %v2123 = vpack.c.bf16 %v2003, %v1995
        %v2124 = vpack.c.bf16 %v2012, %v2004
        %v2125 = vpack.c.bf16 %v2013, %v2005
        %v2126 = vpack.c.bf16 %v2014, %v2006
        %v2127 = vpack.c.bf16 %v2015, %v2007
        %v2128 = vpack.c.bf16 %v2016, %v2008
        %v2129 = vpack.c.bf16 %v2017, %v2009
        %v2130 = vpack.c.bf16 %v2018, %v2010
        %v2131 = vpack.c.bf16 %v2019, %v2011
        %v2132 = vpack.c.bf16 %v2028, %v2020
        %v2133 = vpack.c.bf16 %v2029, %v2021
        %v2134 = vpack.c.bf16 %v2030, %v2022
        %v2135 = vpack.c.bf16 %v2031, %v2023
        %v2136 = vpack.c.bf16 %v2032, %v2024
        %v2137 = vpack.c.bf16 %v2033, %v2025
        %v2138 = vpack.c.bf16 %v2034, %v2026
        %v2139 = vpack.c.bf16 %v2035, %v2027
        %v2140 = vpack.c.bf16 %v2044, %v2036
        %v2141 = vpack.c.bf16 %v2045, %v2037
        %v2142 = vpack.c.bf16 %v2046, %v2038
        %v2143 = vpack.c.bf16 %v2047, %v2039
        %v2144 = vpack.c.bf16 %v2048, %v2040
        %v2145 = vpack.c.bf16 %v2049, %v2041
        %v2146 = vpack.c.bf16 %v2050, %v2042
        %v2147 = vpack.c.bf16 %v2051, %v2043
        %v2148 = vpack.c.bf16 %v2060, %v2052
        %v2149 = vpack.c.bf16 %v2061, %v2053
        %v2150 = vpack.c.bf16 %v2062, %v2054
        %v2151 = vpack.c.bf16 %v2063, %v2055
        %v2152 = vpack.c.bf16 %v2064, %v2056
        %v2153 = vpack.c.bf16 %v2065, %v2057
        %v2154 = vpack.c.bf16 %v2066, %v2058
        %v2155 = vpack.c.bf16 %v2067, %v2059
        %v2156 = vpack.c.bf16 %v2076, %v2068
        %v2157 = vpack.c.bf16 %v2077, %v2069
        %v2158 = vpack.c.bf16 %v2078, %v2070
        %v2159 = vpack.c.bf16 %v2079, %v2071
        %v2160 = vpack.c.bf16 %v2080, %v2072
        %v2161 = vpack.c.bf16 %v2081, %v2073
        %v2162 = vpack.c.bf16 %v2082, %v2074
        %v2163 = vpack.c.bf16 %v2083, %v2075
        %v2164 = vpack.c.bf16 %v2092, %v2084
        %v2165 = vpack.c.bf16 %v2093, %v2085
        %v2166 = vpack.c.bf16 %v2094, %v2086
        %v2167 = vpack.c.bf16 %v2095, %v2087
        %v2168 = vpack.c.bf16 %v2096, %v2088
        %v2169 = vpack.c.bf16 %v2097, %v2089
        %v2170 = vpack.c.bf16 %v2098, %v2090
        %v2171 = vpack.c.bf16 %v2099, %v2091
        %v2172 = vpack.c.bf16 %v2108, %v2100
        %v2173 = vpack.c.bf16 %v2109, %v2101
        %v2174 = vpack.c.bf16 %v2110, %v2102
        %v2175 = vpack.c.bf16 %v2111, %v2103
        %v2176 = vpack.c.bf16 %v2112, %v2104
        %v2177 = vpack.c.bf16 %v2113, %v2105
        %v2178 = vpack.c.bf16 %v2114, %v2106
        %v2179 = vpack.c.bf16 %v2115, %v2107
        %v2180 = vunpack.i.l.bf16 %v2116
        %v2181 = vunpack.i.h.bf16 %v2116
        %v2182 = vmax.f32 %v2180, %v2181
        %v2183 = vrot.slane %v2182, 4
        %v2184 = vmax.f32 %v2182, %v2183
        %v2185 = vrot.slane %v2184, 2
        %v2186 = vmax.f32 %v2184, %v2185
        %v2187 = vrot.slane %v2186, 1
        %v2188 = vmax.f32 %v2186, %v2187
        %v2189 = vpack.i.bf16 %v2188, %v2188
        %v2190 = vunpack.i.l.bf16 %v2117
        %v2191 = vunpack.i.h.bf16 %v2117
        %v2192 = vmax.f32 %v2190, %v2191
        %v2193 = vrot.slane %v2192, 4
        %v2194 = vmax.f32 %v2192, %v2193
        %v2195 = vrot.slane %v2194, 2
        %v2196 = vmax.f32 %v2194, %v2195
        %v2197 = vrot.slane %v2196, 1
        %v2198 = vmax.f32 %v2196, %v2197
        %v2199 = vpack.i.bf16 %v2198, %v2198
        %v2200 = vunpack.i.l.bf16 %v2118
        %v2201 = vunpack.i.h.bf16 %v2118
        %v2202 = vmax.f32 %v2200, %v2201
        %v2203 = vrot.slane %v2202, 4
        %v2204 = vmax.f32 %v2202, %v2203
        %v2205 = vrot.slane %v2204, 2
        %v2206 = vmax.f32 %v2204, %v2205
        %v2207 = vrot.slane %v2206, 1
        %v2208 = vmax.f32 %v2206, %v2207
        %v2209 = vpack.i.bf16 %v2208, %v2208
        %v2210 = vunpack.i.l.bf16 %v2119
        %v2211 = vunpack.i.h.bf16 %v2119
        %v2212 = vmax.f32 %v2210, %v2211
        %v2213 = vrot.slane %v2212, 4
        %v2214 = vmax.f32 %v2212, %v2213
        %v2215 = vrot.slane %v2214, 2
        %v2216 = vmax.f32 %v2214, %v2215
        %v2217 = vrot.slane %v2216, 1
        %v2218 = vmax.f32 %v2216, %v2217
        %v2219 = vpack.i.bf16 %v2218, %v2218
        %v2220 = vunpack.i.l.bf16 %v2120
        %v2221 = vunpack.i.h.bf16 %v2120
        %v2222 = vmax.f32 %v2220, %v2221
        %v2223 = vrot.slane %v2222, 4
        %v2224 = vmax.f32 %v2222, %v2223
        %v2225 = vrot.slane %v2224, 2
        %v2226 = vmax.f32 %v2224, %v2225
        %v2227 = vrot.slane %v2226, 1
        %v2228 = vmax.f32 %v2226, %v2227
        %v2229 = vpack.i.bf16 %v2228, %v2228
        %v2230 = vunpack.i.l.bf16 %v2121
        %v2231 = vunpack.i.h.bf16 %v2121
        %v2232 = vmax.f32 %v2230, %v2231
        %v2233 = vrot.slane %v2232, 4
        %v2234 = vmax.f32 %v2232, %v2233
        %v2235 = vrot.slane %v2234, 2
        %v2236 = vmax.f32 %v2234, %v2235
        %v2237 = vrot.slane %v2236, 1
        %v2238 = vmax.f32 %v2236, %v2237
        %v2239 = vpack.i.bf16 %v2238, %v2238
        %v2240 = vunpack.i.l.bf16 %v2122
        %v2241 = vunpack.i.h.bf16 %v2122
        %v2242 = vmax.f32 %v2240, %v2241
        %v2243 = vrot.slane %v2242, 4
        %v2244 = vmax.f32 %v2242, %v2243
        %v2245 = vrot.slane %v2244, 2
        %v2246 = vmax.f32 %v2244, %v2245
        %v2247 = vrot.slane %v2246, 1
        %v2248 = vmax.f32 %v2246, %v2247
        %v2249 = vpack.i.bf16 %v2248, %v2248
        %v2250 = vunpack.i.l.bf16 %v2123
        %v2251 = vunpack.i.h.bf16 %v2123
        %v2252 = vmax.f32 %v2250, %v2251
        %v2253 = vrot.slane %v2252, 4
        %v2254 = vmax.f32 %v2252, %v2253
        %v2255 = vrot.slane %v2254, 2
        %v2256 = vmax.f32 %v2254, %v2255
        %v2257 = vrot.slane %v2256, 1
        %v2258 = vmax.f32 %v2256, %v2257
        %v2259 = vpack.i.bf16 %v2258, %v2258
        %v2260 = vunpack.i.l.bf16 %v2124
        %v2261 = vunpack.i.h.bf16 %v2124
        %v2262 = vmax.f32 %v2260, %v2261
        %v2263 = vrot.slane %v2262, 4
        %v2264 = vmax.f32 %v2262, %v2263
        %v2265 = vrot.slane %v2264, 2
        %v2266 = vmax.f32 %v2264, %v2265
        %v2267 = vrot.slane %v2266, 1
        %v2268 = vmax.f32 %v2266, %v2267
        %v2269 = vpack.i.bf16 %v2268, %v2268
        %v2270 = vunpack.i.l.bf16 %v2125
        %v2271 = vunpack.i.h.bf16 %v2125
        %v2272 = vmax.f32 %v2270, %v2271
        %v2273 = vrot.slane %v2272, 4
        %v2274 = vmax.f32 %v2272, %v2273
        %v2275 = vrot.slane %v2274, 2
        %v2276 = vmax.f32 %v2274, %v2275
        %v2277 = vrot.slane %v2276, 1
        %v2278 = vmax.f32 %v2276, %v2277
        %v2279 = vpack.i.bf16 %v2278, %v2278
        %v2280 = vunpack.i.l.bf16 %v2126
        %v2281 = vunpack.i.h.bf16 %v2126
        %v2282 = vmax.f32 %v2280, %v2281
        %v2283 = vrot.slane %v2282, 4
        %v2284 = vmax.f32 %v2282, %v2283
        %v2285 = vrot.slane %v2284, 2
        %v2286 = vmax.f32 %v2284, %v2285
        %v2287 = vrot.slane %v2286, 1
        %v2288 = vmax.f32 %v2286, %v2287
        %v2289 = vpack.i.bf16 %v2288, %v2288
        %v2290 = vunpack.i.l.bf16 %v2127
        %v2291 = vunpack.i.h.bf16 %v2127
        %v2292 = vmax.f32 %v2290, %v2291
        %v2293 = vrot.slane %v2292, 4
        %v2294 = vmax.f32 %v2292, %v2293
        %v2295 = vrot.slane %v2294, 2
        %v2296 = vmax.f32 %v2294, %v2295
        %v2297 = vrot.slane %v2296, 1
        %v2298 = vmax.f32 %v2296, %v2297
        %v2299 = vpack.i.bf16 %v2298, %v2298
        %v2300 = vunpack.i.l.bf16 %v2128
        %v2301 = vunpack.i.h.bf16 %v2128
        %v2302 = vmax.f32 %v2300, %v2301
        %v2303 = vrot.slane %v2302, 4
        %v2304 = vmax.f32 %v2302, %v2303
        %v2305 = vrot.slane %v2304, 2
        %v2306 = vmax.f32 %v2304, %v2305
        %v2307 = vrot.slane %v2306, 1
        %v2308 = vmax.f32 %v2306, %v2307
        %v2309 = vpack.i.bf16 %v2308, %v2308
        %v2310 = vunpack.i.l.bf16 %v2129
        %v2311 = vunpack.i.h.bf16 %v2129
        %v2312 = vmax.f32 %v2310, %v2311
        %v2313 = vrot.slane %v2312, 4
        %v2314 = vmax.f32 %v2312, %v2313
        %v2315 = vrot.slane %v2314, 2
        %v2316 = vmax.f32 %v2314, %v2315
        %v2317 = vrot.slane %v2316, 1
        %v2318 = vmax.f32 %v2316, %v2317
        %v2319 = vpack.i.bf16 %v2318, %v2318
        %v2320 = vunpack.i.l.bf16 %v2130
        %v2321 = vunpack.i.h.bf16 %v2130
        %v2322 = vmax.f32 %v2320, %v2321
        %v2323 = vrot.slane %v2322, 4
        %v2324 = vmax.f32 %v2322, %v2323
        %v2325 = vrot.slane %v2324, 2
        %v2326 = vmax.f32 %v2324, %v2325
        %v2327 = vrot.slane %v2326, 1
        %v2328 = vmax.f32 %v2326, %v2327
        %v2329 = vpack.i.bf16 %v2328, %v2328
        %v2330 = vunpack.i.l.bf16 %v2131
        %v2331 = vunpack.i.h.bf16 %v2131
        %v2332 = vmax.f32 %v2330, %v2331
        %v2333 = vrot.slane %v2332, 4
        %v2334 = vmax.f32 %v2332, %v2333
        %v2335 = vrot.slane %v2334, 2
        %v2336 = vmax.f32 %v2334, %v2335
        %v2337 = vrot.slane %v2336, 1
        %v2338 = vmax.f32 %v2336, %v2337
        %v2339 = vpack.i.bf16 %v2338, %v2338
        %v2340 = vunpack.i.l.bf16 %v2132
        %v2341 = vunpack.i.h.bf16 %v2132
        %v2342 = vmax.f32 %v2340, %v2341
        %v2343 = vrot.slane %v2342, 4
        %v2344 = vmax.f32 %v2342, %v2343
        %v2345 = vrot.slane %v2344, 2
        %v2346 = vmax.f32 %v2344, %v2345
        %v2347 = vrot.slane %v2346, 1
        %v2348 = vmax.f32 %v2346, %v2347
        %v2349 = vpack.i.bf16 %v2348, %v2348
        %v2350 = vunpack.i.l.bf16 %v2133
        %v2351 = vunpack.i.h.bf16 %v2133
        %v2352 = vmax.f32 %v2350, %v2351
        %v2353 = vrot.slane %v2352, 4
        %v2354 = vmax.f32 %v2352, %v2353
        %v2355 = vrot.slane %v2354, 2
        %v2356 = vmax.f32 %v2354, %v2355
        %v2357 = vrot.slane %v2356, 1
        %v2358 = vmax.f32 %v2356, %v2357
        %v2359 = vpack.i.bf16 %v2358, %v2358
        %v2360 = vunpack.i.l.bf16 %v2134
        %v2361 = vunpack.i.h.bf16 %v2134
        %v2362 = vmax.f32 %v2360, %v2361
        %v2363 = vrot.slane %v2362, 4
        %v2364 = vmax.f32 %v2362, %v2363
        %v2365 = vrot.slane %v2364, 2
        %v2366 = vmax.f32 %v2364, %v2365
        %v2367 = vrot.slane %v2366, 1
        %v2368 = vmax.f32 %v2366, %v2367
        %v2369 = vpack.i.bf16 %v2368, %v2368
        %v2370 = vunpack.i.l.bf16 %v2135
        %v2371 = vunpack.i.h.bf16 %v2135
        %v2372 = vmax.f32 %v2370, %v2371
        %v2373 = vrot.slane %v2372, 4
        %v2374 = vmax.f32 %v2372, %v2373
        %v2375 = vrot.slane %v2374, 2
        %v2376 = vmax.f32 %v2374, %v2375
        %v2377 = vrot.slane %v2376, 1
        %v2378 = vmax.f32 %v2376, %v2377
        %v2379 = vpack.i.bf16 %v2378, %v2378
        %v2380 = vunpack.i.l.bf16 %v2136
        %v2381 = vunpack.i.h.bf16 %v2136
        %v2382 = vmax.f32 %v2380, %v2381
        %v2383 = vrot.slane %v2382, 4
        %v2384 = vmax.f32 %v2382, %v2383
        %v2385 = vrot.slane %v2384, 2
        %v2386 = vmax.f32 %v2384, %v2385
        %v2387 = vrot.slane %v2386, 1
        %v2388 = vmax.f32 %v2386, %v2387
        %v2389 = vpack.i.bf16 %v2388, %v2388
        %v2390 = vunpack.i.l.bf16 %v2137
        %v2391 = vunpack.i.h.bf16 %v2137
        %v2392 = vmax.f32 %v2390, %v2391
        %v2393 = vrot.slane %v2392, 4
        %v2394 = vmax.f32 %v2392, %v2393
        %v2395 = vrot.slane %v2394, 2
        %v2396 = vmax.f32 %v2394, %v2395
        %v2397 = vrot.slane %v2396, 1
        %v2398 = vmax.f32 %v2396, %v2397
        %v2399 = vpack.i.bf16 %v2398, %v2398
        %v2400 = vunpack.i.l.bf16 %v2138
        %v2401 = vunpack.i.h.bf16 %v2138
        %v2402 = vmax.f32 %v2400, %v2401
        %v2403 = vrot.slane %v2402, 4
        %v2404 = vmax.f32 %v2402, %v2403
        %v2405 = vrot.slane %v2404, 2
        %v2406 = vmax.f32 %v2404, %v2405
        %v2407 = vrot.slane %v2406, 1
        %v2408 = vmax.f32 %v2406, %v2407
        %v2409 = vpack.i.bf16 %v2408, %v2408
        %v2410 = vunpack.i.l.bf16 %v2139
        %v2411 = vunpack.i.h.bf16 %v2139
        %v2412 = vmax.f32 %v2410, %v2411
        %v2413 = vrot.slane %v2412, 4
        %v2414 = vmax.f32 %v2412, %v2413
        %v2415 = vrot.slane %v2414, 2
        %v2416 = vmax.f32 %v2414, %v2415
        %v2417 = vrot.slane %v2416, 1
        %v2418 = vmax.f32 %v2416, %v2417
        %v2419 = vpack.i.bf16 %v2418, %v2418
        %v2420 = vunpack.i.l.bf16 %v2140
        %v2421 = vunpack.i.h.bf16 %v2140
        %v2422 = vmax.f32 %v2420, %v2421
        %v2423 = vrot.slane %v2422, 4
        %v2424 = vmax.f32 %v2422, %v2423
        %v2425 = vrot.slane %v2424, 2
        %v2426 = vmax.f32 %v2424, %v2425
        %v2427 = vrot.slane %v2426, 1
        %v2428 = vmax.f32 %v2426, %v2427
        %v2429 = vpack.i.bf16 %v2428, %v2428
        %v2430 = vunpack.i.l.bf16 %v2141
        %v2431 = vunpack.i.h.bf16 %v2141
        %v2432 = vmax.f32 %v2430, %v2431
        %v2433 = vrot.slane %v2432, 4
        %v2434 = vmax.f32 %v2432, %v2433
        %v2435 = vrot.slane %v2434, 2
        %v2436 = vmax.f32 %v2434, %v2435
        %v2437 = vrot.slane %v2436, 1
        %v2438 = vmax.f32 %v2436, %v2437
        %v2439 = vpack.i.bf16 %v2438, %v2438
        %v2440 = vunpack.i.l.bf16 %v2142
        %v2441 = vunpack.i.h.bf16 %v2142
        %v2442 = vmax.f32 %v2440, %v2441
        %v2443 = vrot.slane %v2442, 4
        %v2444 = vmax.f32 %v2442, %v2443
        %v2445 = vrot.slane %v2444, 2
        %v2446 = vmax.f32 %v2444, %v2445
        %v2447 = vrot.slane %v2446, 1
        %v2448 = vmax.f32 %v2446, %v2447
        %v2449 = vpack.i.bf16 %v2448, %v2448
        %v2450 = vunpack.i.l.bf16 %v2143
        %v2451 = vunpack.i.h.bf16 %v2143
        %v2452 = vmax.f32 %v2450, %v2451
        %v2453 = vrot.slane %v2452, 4
        %v2454 = vmax.f32 %v2452, %v2453
        %v2455 = vrot.slane %v2454, 2
        %v2456 = vmax.f32 %v2454, %v2455
        %v2457 = vrot.slane %v2456, 1
        %v2458 = vmax.f32 %v2456, %v2457
        %v2459 = vpack.i.bf16 %v2458, %v2458
        %v2460 = vunpack.i.l.bf16 %v2144
        %v2461 = vunpack.i.h.bf16 %v2144
        %v2462 = vmax.f32 %v2460, %v2461
        %v2463 = vrot.slane %v2462, 4
        %v2464 = vmax.f32 %v2462, %v2463
        %v2465 = vrot.slane %v2464, 2
        %v2466 = vmax.f32 %v2464, %v2465
        %v2467 = vrot.slane %v2466, 1
        %v2468 = vmax.f32 %v2466, %v2467
        %v2469 = vpack.i.bf16 %v2468, %v2468
        %v2470 = vunpack.i.l.bf16 %v2145
        %v2471 = vunpack.i.h.bf16 %v2145
        %v2472 = vmax.f32 %v2470, %v2471
        %v2473 = vrot.slane %v2472, 4
        %v2474 = vmax.f32 %v2472, %v2473
        %v2475 = vrot.slane %v2474, 2
        %v2476 = vmax.f32 %v2474, %v2475
        %v2477 = vrot.slane %v2476, 1
        %v2478 = vmax.f32 %v2476, %v2477
        %v2479 = vpack.i.bf16 %v2478, %v2478
        %v2480 = vunpack.i.l.bf16 %v2146
        %v2481 = vunpack.i.h.bf16 %v2146
        %v2482 = vmax.f32 %v2480, %v2481
        %v2483 = vrot.slane %v2482, 4
        %v2484 = vmax.f32 %v2482, %v2483
        %v2485 = vrot.slane %v2484, 2
        %v2486 = vmax.f32 %v2484, %v2485
        %v2487 = vrot.slane %v2486, 1
        %v2488 = vmax.f32 %v2486, %v2487
        %v2489 = vpack.i.bf16 %v2488, %v2488
        %v2490 = vunpack.i.l.bf16 %v2147
        %v2491 = vunpack.i.h.bf16 %v2147
        %v2492 = vmax.f32 %v2490, %v2491
        %v2493 = vrot.slane %v2492, 4
        %v2494 = vmax.f32 %v2492, %v2493
        %v2495 = vrot.slane %v2494, 2
        %v2496 = vmax.f32 %v2494, %v2495
        %v2497 = vrot.slane %v2496, 1
        %v2498 = vmax.f32 %v2496, %v2497
        %v2499 = vpack.i.bf16 %v2498, %v2498
        %v2500 = vunpack.i.l.bf16 %v2148
        %v2501 = vunpack.i.h.bf16 %v2148
        %v2502 = vmax.f32 %v2500, %v2501
        %v2503 = vrot.slane %v2502, 4
        %v2504 = vmax.f32 %v2502, %v2503
        %v2505 = vrot.slane %v2504, 2
        %v2506 = vmax.f32 %v2504, %v2505
        %v2507 = vrot.slane %v2506, 1
        %v2508 = vmax.f32 %v2506, %v2507
        %v2509 = vpack.i.bf16 %v2508, %v2508
        %v2510 = vunpack.i.l.bf16 %v2149
        %v2511 = vunpack.i.h.bf16 %v2149
        %v2512 = vmax.f32 %v2510, %v2511
        %v2513 = vrot.slane %v2512, 4
        %v2514 = vmax.f32 %v2512, %v2513
        %v2515 = vrot.slane %v2514, 2
        %v2516 = vmax.f32 %v2514, %v2515
        %v2517 = vrot.slane %v2516, 1
        %v2518 = vmax.f32 %v2516, %v2517
        %v2519 = vpack.i.bf16 %v2518, %v2518
        %v2520 = vunpack.i.l.bf16 %v2150
        %v2521 = vunpack.i.h.bf16 %v2150
        %v2522 = vmax.f32 %v2520, %v2521
        %v2523 = vrot.slane %v2522, 4
        %v2524 = vmax.f32 %v2522, %v2523
        %v2525 = vrot.slane %v2524, 2
        %v2526 = vmax.f32 %v2524, %v2525
        %v2527 = vrot.slane %v2526, 1
        %v2528 = vmax.f32 %v2526, %v2527
        %v2529 = vpack.i.bf16 %v2528, %v2528
        %v2530 = vunpack.i.l.bf16 %v2151
        %v2531 = vunpack.i.h.bf16 %v2151
        %v2532 = vmax.f32 %v2530, %v2531
        %v2533 = vrot.slane %v2532, 4
        %v2534 = vmax.f32 %v2532, %v2533
        %v2535 = vrot.slane %v2534, 2
        %v2536 = vmax.f32 %v2534, %v2535
        %v2537 = vrot.slane %v2536, 1
        %v2538 = vmax.f32 %v2536, %v2537
        %v2539 = vpack.i.bf16 %v2538, %v2538
        %v2540 = vunpack.i.l.bf16 %v2152
        %v2541 = vunpack.i.h.bf16 %v2152
        %v2542 = vmax.f32 %v2540, %v2541
        %v2543 = vrot.slane %v2542, 4
        %v2544 = vmax.f32 %v2542, %v2543
        %v2545 = vrot.slane %v2544, 2
        %v2546 = vmax.f32 %v2544, %v2545
        %v2547 = vrot.slane %v2546, 1
        %v2548 = vmax.f32 %v2546, %v2547
        %v2549 = vpack.i.bf16 %v2548, %v2548
        %v2550 = vunpack.i.l.bf16 %v2153
        %v2551 = vunpack.i.h.bf16 %v2153
        %v2552 = vmax.f32 %v2550, %v2551
        %v2553 = vrot.slane %v2552, 4
        %v2554 = vmax.f32 %v2552, %v2553
        %v2555 = vrot.slane %v2554, 2
        %v2556 = vmax.f32 %v2554, %v2555
        %v2557 = vrot.slane %v2556, 1
        %v2558 = vmax.f32 %v2556, %v2557
        %v2559 = vpack.i.bf16 %v2558, %v2558
        %v2560 = vunpack.i.l.bf16 %v2154
        %v2561 = vunpack.i.h.bf16 %v2154
        %v2562 = vmax.f32 %v2560, %v2561
        %v2563 = vrot.slane %v2562, 4
        %v2564 = vmax.f32 %v2562, %v2563
        %v2565 = vrot.slane %v2564, 2
        %v2566 = vmax.f32 %v2564, %v2565
        %v2567 = vrot.slane %v2566, 1
        %v2568 = vmax.f32 %v2566, %v2567
        %v2569 = vpack.i.bf16 %v2568, %v2568
        %v2570 = vunpack.i.l.bf16 %v2155
        %v2571 = vunpack.i.h.bf16 %v2155
        %v2572 = vmax.f32 %v2570, %v2571
        %v2573 = vrot.slane %v2572, 4
        %v2574 = vmax.f32 %v2572, %v2573
        %v2575 = vrot.slane %v2574, 2
        %v2576 = vmax.f32 %v2574, %v2575
        %v2577 = vrot.slane %v2576, 1
        %v2578 = vmax.f32 %v2576, %v2577
        %v2579 = vpack.i.bf16 %v2578, %v2578
        %v2580 = vunpack.i.l.bf16 %v2156
        %v2581 = vunpack.i.h.bf16 %v2156
        %v2582 = vmax.f32 %v2580, %v2581
        %v2583 = vrot.slane %v2582, 4
        %v2584 = vmax.f32 %v2582, %v2583
        %v2585 = vrot.slane %v2584, 2
        %v2586 = vmax.f32 %v2584, %v2585
        %v2587 = vrot.slane %v2586, 1
        %v2588 = vmax.f32 %v2586, %v2587
        %v2589 = vpack.i.bf16 %v2588, %v2588
        %v2590 = vunpack.i.l.bf16 %v2157
        %v2591 = vunpack.i.h.bf16 %v2157
        %v2592 = vmax.f32 %v2590, %v2591
        %v2593 = vrot.slane %v2592, 4
        %v2594 = vmax.f32 %v2592, %v2593
        %v2595 = vrot.slane %v2594, 2
        %v2596 = vmax.f32 %v2594, %v2595
        %v2597 = vrot.slane %v2596, 1
        %v2598 = vmax.f32 %v2596, %v2597
        %v2599 = vpack.i.bf16 %v2598, %v2598
        %v2600 = vunpack.i.l.bf16 %v2158
        %v2601 = vunpack.i.h.bf16 %v2158
        %v2602 = vmax.f32 %v2600, %v2601
        %v2603 = vrot.slane %v2602, 4
        %v2604 = vmax.f32 %v2602, %v2603
        %v2605 = vrot.slane %v2604, 2
        %v2606 = vmax.f32 %v2604, %v2605
        %v2607 = vrot.slane %v2606, 1
        %v2608 = vmax.f32 %v2606, %v2607
        %v2609 = vpack.i.bf16 %v2608, %v2608
        %v2610 = vunpack.i.l.bf16 %v2159
        %v2611 = vunpack.i.h.bf16 %v2159
        %v2612 = vmax.f32 %v2610, %v2611
        %v2613 = vrot.slane %v2612, 4
        %v2614 = vmax.f32 %v2612, %v2613
        %v2615 = vrot.slane %v2614, 2
        %v2616 = vmax.f32 %v2614, %v2615
        %v2617 = vrot.slane %v2616, 1
        %v2618 = vmax.f32 %v2616, %v2617
        %v2619 = vpack.i.bf16 %v2618, %v2618
        %v2620 = vunpack.i.l.bf16 %v2160
        %v2621 = vunpack.i.h.bf16 %v2160
        %v2622 = vmax.f32 %v2620, %v2621
        %v2623 = vrot.slane %v2622, 4
        %v2624 = vmax.f32 %v2622, %v2623
        %v2625 = vrot.slane %v2624, 2
        %v2626 = vmax.f32 %v2624, %v2625
        %v2627 = vrot.slane %v2626, 1
        %v2628 = vmax.f32 %v2626, %v2627
        %v2629 = vpack.i.bf16 %v2628, %v2628
        %v2630 = vunpack.i.l.bf16 %v2161
        %v2631 = vunpack.i.h.bf16 %v2161
        %v2632 = vmax.f32 %v2630, %v2631
        %v2633 = vrot.slane %v2632, 4
        %v2634 = vmax.f32 %v2632, %v2633
        %v2635 = vrot.slane %v2634, 2
        %v2636 = vmax.f32 %v2634, %v2635
        %v2637 = vrot.slane %v2636, 1
        %v2638 = vmax.f32 %v2636, %v2637
        %v2639 = vpack.i.bf16 %v2638, %v2638
        %v2640 = vunpack.i.l.bf16 %v2162
        %v2641 = vunpack.i.h.bf16 %v2162
        %v2642 = vmax.f32 %v2640, %v2641
        %v2643 = vrot.slane %v2642, 4
        %v2644 = vmax.f32 %v2642, %v2643
        %v2645 = vrot.slane %v2644, 2
        %v2646 = vmax.f32 %v2644, %v2645
        %v2647 = vrot.slane %v2646, 1
        %v2648 = vmax.f32 %v2646, %v2647
        %v2649 = vpack.i.bf16 %v2648, %v2648
        %v2650 = vunpack.i.l.bf16 %v2163
        %v2651 = vunpack.i.h.bf16 %v2163
        %v2652 = vmax.f32 %v2650, %v2651
        %v2653 = vrot.slane %v2652, 4
        %v2654 = vmax.f32 %v2652, %v2653
        %v2655 = vrot.slane %v2654, 2
        %v2656 = vmax.f32 %v2654, %v2655
        %v2657 = vrot.slane %v2656, 1
        %v2658 = vmax.f32 %v2656, %v2657
        %v2659 = vpack.i.bf16 %v2658, %v2658
        %v2660 = vunpack.i.l.bf16 %v2164
        %v2661 = vunpack.i.h.bf16 %v2164
        %v2662 = vmax.f32 %v2660, %v2661
        %v2663 = vrot.slane %v2662, 4
        %v2664 = vmax.f32 %v2662, %v2663
        %v2665 = vrot.slane %v2664, 2
        %v2666 = vmax.f32 %v2664, %v2665
        %v2667 = vrot.slane %v2666, 1
        %v2668 = vmax.f32 %v2666, %v2667
        %v2669 = vpack.i.bf16 %v2668, %v2668
        %v2670 = vunpack.i.l.bf16 %v2165
        %v2671 = vunpack.i.h.bf16 %v2165
        %v2672 = vmax.f32 %v2670, %v2671
        %v2673 = vrot.slane %v2672, 4
        %v2674 = vmax.f32 %v2672, %v2673
        %v2675 = vrot.slane %v2674, 2
        %v2676 = vmax.f32 %v2674, %v2675
        %v2677 = vrot.slane %v2676, 1
        %v2678 = vmax.f32 %v2676, %v2677
        %v2679 = vpack.i.bf16 %v2678, %v2678
        %v2680 = vunpack.i.l.bf16 %v2166
        %v2681 = vunpack.i.h.bf16 %v2166
        %v2682 = vmax.f32 %v2680, %v2681
        %v2683 = vrot.slane %v2682, 4
        %v2684 = vmax.f32 %v2682, %v2683
        %v2685 = vrot.slane %v2684, 2
        %v2686 = vmax.f32 %v2684, %v2685
        %v2687 = vrot.slane %v2686, 1
        %v2688 = vmax.f32 %v2686, %v2687
        %v2689 = vpack.i.bf16 %v2688, %v2688
        %v2690 = vunpack.i.l.bf16 %v2167
        %v2691 = vunpack.i.h.bf16 %v2167
        %v2692 = vmax.f32 %v2690, %v2691
        %v2693 = vrot.slane %v2692, 4
        %v2694 = vmax.f32 %v2692, %v2693
        %v2695 = vrot.slane %v2694, 2
        %v2696 = vmax.f32 %v2694, %v2695
        %v2697 = vrot.slane %v2696, 1
        %v2698 = vmax.f32 %v2696, %v2697
        %v2699 = vpack.i.bf16 %v2698, %v2698
        %v2700 = vunpack.i.l.bf16 %v2168
        %v2701 = vunpack.i.h.bf16 %v2168
        %v2702 = vmax.f32 %v2700, %v2701
        %v2703 = vrot.slane %v2702, 4
        %v2704 = vmax.f32 %v2702, %v2703
        %v2705 = vrot.slane %v2704, 2
        %v2706 = vmax.f32 %v2704, %v2705
        %v2707 = vrot.slane %v2706, 1
        %v2708 = vmax.f32 %v2706, %v2707
        %v2709 = vpack.i.bf16 %v2708, %v2708
        %v2710 = vunpack.i.l.bf16 %v2169
        %v2711 = vunpack.i.h.bf16 %v2169
        %v2712 = vmax.f32 %v2710, %v2711
        %v2713 = vrot.slane %v2712, 4
        %v2714 = vmax.f32 %v2712, %v2713
        %v2715 = vrot.slane %v2714, 2
        %v2716 = vmax.f32 %v2714, %v2715
        %v2717 = vrot.slane %v2716, 1
        %v2718 = vmax.f32 %v2716, %v2717
        %v2719 = vpack.i.bf16 %v2718, %v2718
        %v2720 = vunpack.i.l.bf16 %v2170
        %v2721 = vunpack.i.h.bf16 %v2170
        %v2722 = vmax.f32 %v2720, %v2721
        %v2723 = vrot.slane %v2722, 4
        %v2724 = vmax.f32 %v2722, %v2723
        %v2725 = vrot.slane %v2724, 2
        %v2726 = vmax.f32 %v2724, %v2725
        %v2727 = vrot.slane %v2726, 1
        %v2728 = vmax.f32 %v2726, %v2727
        %v2729 = vpack.i.bf16 %v2728, %v2728
        %v2730 = vunpack.i.l.bf16 %v2171
        %v2731 = vunpack.i.h.bf16 %v2171
        %v2732 = vmax.f32 %v2730, %v2731
        %v2733 = vrot.slane %v2732, 4
        %v2734 = vmax.f32 %v2732, %v2733
        %v2735 = vrot.slane %v2734, 2
        %v2736 = vmax.f32 %v2734, %v2735
        %v2737 = vrot.slane %v2736, 1
        %v2738 = vmax.f32 %v2736, %v2737
        %v2739 = vpack.i.bf16 %v2738, %v2738
        %v2740 = vunpack.i.l.bf16 %v2172
        %v2741 = vunpack.i.h.bf16 %v2172
        %v2742 = vmax.f32 %v2740, %v2741
        %v2743 = vrot.slane %v2742, 4
        %v2744 = vmax.f32 %v2742, %v2743
        %v2745 = vrot.slane %v2744, 2
        %v2746 = vmax.f32 %v2744, %v2745
        %v2747 = vrot.slane %v2746, 1
        %v2748 = vmax.f32 %v2746, %v2747
        %v2749 = vpack.i.bf16 %v2748, %v2748
        %v2750 = vunpack.i.l.bf16 %v2173
        %v2751 = vunpack.i.h.bf16 %v2173
        %v2752 = vmax.f32 %v2750, %v2751
        %v2753 = vrot.slane %v2752, 4
        %v2754 = vmax.f32 %v2752, %v2753
        %v2755 = vrot.slane %v2754, 2
        %v2756 = vmax.f32 %v2754, %v2755
        %v2757 = vrot.slane %v2756, 1
        %v2758 = vmax.f32 %v2756, %v2757
        %v2759 = vpack.i.bf16 %v2758, %v2758
        %v2760 = vunpack.i.l.bf16 %v2174
        %v2761 = vunpack.i.h.bf16 %v2174
        %v2762 = vmax.f32 %v2760, %v2761
        %v2763 = vrot.slane %v2762, 4
        %v2764 = vmax.f32 %v2762, %v2763
        %v2765 = vrot.slane %v2764, 2
        %v2766 = vmax.f32 %v2764, %v2765
        %v2767 = vrot.slane %v2766, 1
        %v2768 = vmax.f32 %v2766, %v2767
        %v2769 = vpack.i.bf16 %v2768, %v2768
        %v2770 = vunpack.i.l.bf16 %v2175
        %v2771 = vunpack.i.h.bf16 %v2175
        %v2772 = vmax.f32 %v2770, %v2771
        %v2773 = vrot.slane %v2772, 4
        %v2774 = vmax.f32 %v2772, %v2773
        %v2775 = vrot.slane %v2774, 2
        %v2776 = vmax.f32 %v2774, %v2775
        %v2777 = vrot.slane %v2776, 1
        %v2778 = vmax.f32 %v2776, %v2777
        %v2779 = vpack.i.bf16 %v2778, %v2778
        %v2780 = vunpack.i.l.bf16 %v2176
        %v2781 = vunpack.i.h.bf16 %v2176
        %v2782 = vmax.f32 %v2780, %v2781
        %v2783 = vrot.slane %v2782, 4
        %v2784 = vmax.f32 %v2782, %v2783
        %v2785 = vrot.slane %v2784, 2
        %v2786 = vmax.f32 %v2784, %v2785
        %v2787 = vrot.slane %v2786, 1
        %v2788 = vmax.f32 %v2786, %v2787
        %v2789 = vpack.i.bf16 %v2788, %v2788
        %v2790 = vunpack.i.l.bf16 %v2177
        %v2791 = vunpack.i.h.bf16 %v2177
        %v2792 = vmax.f32 %v2790, %v2791
        %v2793 = vrot.slane %v2792, 4
        %v2794 = vmax.f32 %v2792, %v2793
        %v2795 = vrot.slane %v2794, 2
        %v2796 = vmax.f32 %v2794, %v2795
        %v2797 = vrot.slane %v2796, 1
        %v2798 = vmax.f32 %v2796, %v2797
        %v2799 = vpack.i.bf16 %v2798, %v2798
        %v2800 = vunpack.i.l.bf16 %v2178
        %v2801 = vunpack.i.h.bf16 %v2178
        %v2802 = vmax.f32 %v2800, %v2801
        %v2803 = vrot.slane %v2802, 4
        %v2804 = vmax.f32 %v2802, %v2803
        %v2805 = vrot.slane %v2804, 2
        %v2806 = vmax.f32 %v2804, %v2805
        %v2807 = vrot.slane %v2806, 1
        %v2808 = vmax.f32 %v2806, %v2807
        %v2809 = vpack.i.bf16 %v2808, %v2808
        %v2810 = vunpack.i.l.bf16 %v2179
        %v2811 = vunpack.i.h.bf16 %v2179
        %v2812 = vmax.f32 %v2810, %v2811
        %v2813 = vrot.slane %v2812, 4
        %v2814 = vmax.f32 %v2812, %v2813
        %v2815 = vrot.slane %v2814, 2
        %v2816 = vmax.f32 %v2814, %v2815
        %v2817 = vrot.slane %v2816, 1
        %v2818 = vmax.f32 %v2816, %v2817
        %v2819 = vpack.i.bf16 %v2818, %v2818
        %p2820 = scmp.eq.s32.totalorder %s36, 0
        // Predicated region
        $region97: #{tpu_custom_call.1} parent=71 // pred_check
          %p2821 = pneg %p2820
        $region98: #{tpu_custom_call.1} parent=71 // pred_check_branch
          %2823 = sbr.rel (%p2821) target = $region100
        $region99: #{tpu_custom_call.1} parent=71 // pred_region
          %2824 = vst [vmem:[#allocation2] sm:$0xff] 4286644096
          %2825 = vst [vmem:[#allocation2 + $0x8] sm:$0xff] 4286644096
          %2826 = vst [vmem:[#allocation2 + $0x10] sm:$0xff] 4286644096
          %2827 = vst [vmem:[#allocation2 + $0x18] sm:$0xff] 4286644096
        $region100: #{tpu_custom_call.1} parent=71 // pred_fallthru
          _
        %v2828 = vld [vmem:[#allocation2] sm:$0xff]
        %v2829 = vld [vmem:[#allocation2 + $0x8] sm:$0xff]
        %v2830 = vld [vmem:[#allocation2 + $0x10] sm:$0xff]
        %v2831 = vld [vmem:[#allocation2 + $0x18] sm:$0xff]
        %v2896 = vunpack.c.l.b16 %v2189
        %v2897 = vunpack.c.l.b16 %v2199
        %v2898 = vunpack.c.l.b16 %v2209
        %v2899 = vunpack.c.l.b16 %v2219
        %v2900 = vunpack.c.l.b16 %v2229
        %v2901 = vunpack.c.l.b16 %v2239
        %v2902 = vunpack.c.l.b16 %v2249
        %v2903 = vunpack.c.l.b16 %v2259
        %v2904 = vunpack.c.l.b16 %v2269
        %v2905 = vunpack.c.l.b16 %v2279
        %v2906 = vunpack.c.l.b16 %v2289
        %v2907 = vunpack.c.l.b16 %v2299
        %v2908 = vunpack.c.l.b16 %v2309
        %v2909 = vunpack.c.l.b16 %v2319
        %v2910 = vunpack.c.l.b16 %v2329
        %v2911 = vunpack.c.l.b16 %v2339
        %v2912 = vunpack.c.l.b16 %v2349
        %v2913 = vunpack.c.l.b16 %v2359
        %v2914 = vunpack.c.l.b16 %v2369
        %v2915 = vunpack.c.l.b16 %v2379
        %v2916 = vunpack.c.l.b16 %v2389
        %v2917 = vunpack.c.l.b16 %v2399
        %v2918 = vunpack.c.l.b16 %v2409
        %v2919 = vunpack.c.l.b16 %v2419
        %v2920 = vunpack.c.l.b16 %v2429
        %v2921 = vunpack.c.l.b16 %v2439
        %v2922 = vunpack.c.l.b16 %v2449
        %v2923 = vunpack.c.l.b16 %v2459
        %v2924 = vunpack.c.l.b16 %v2469
        %v2925 = vunpack.c.l.b16 %v2479
        %v2926 = vunpack.c.l.b16 %v2489
        %v2927 = vunpack.c.l.b16 %v2499
        %v2928 = vunpack.c.l.b16 %v2509
        %v2929 = vunpack.c.l.b16 %v2519
        %v2930 = vunpack.c.l.b16 %v2529
        %v2931 = vunpack.c.l.b16 %v2539
        %v2932 = vunpack.c.l.b16 %v2549
        %v2933 = vunpack.c.l.b16 %v2559
        %v2934 = vunpack.c.l.b16 %v2569
        %v2935 = vunpack.c.l.b16 %v2579
        %v2936 = vunpack.c.l.b16 %v2589
        %v2937 = vunpack.c.l.b16 %v2599
        %v2938 = vunpack.c.l.b16 %v2609
        %v2939 = vunpack.c.l.b16 %v2619
        %v2940 = vunpack.c.l.b16 %v2629
        %v2941 = vunpack.c.l.b16 %v2639
        %v2942 = vunpack.c.l.b16 %v2649
        %v2943 = vunpack.c.l.b16 %v2659
        %v2944 = vunpack.c.l.b16 %v2669
        %v2945 = vunpack.c.l.b16 %v2679
        %v2946 = vunpack.c.l.b16 %v2689
        %v2947 = vunpack.c.l.b16 %v2699
        %v2948 = vunpack.c.l.b16 %v2709
        %v2949 = vunpack.c.l.b16 %v2719
        %v2950 = vunpack.c.l.b16 %v2729
        %v2951 = vunpack.c.l.b16 %v2739
        %v2952 = vunpack.c.l.b16 %v2749
        %v2953 = vunpack.c.l.b16 %v2759
        %v2954 = vunpack.c.l.b16 %v2769
        %v2955 = vunpack.c.l.b16 %v2779
        %v2956 = vunpack.c.l.b16 %v2789
        %v2957 = vunpack.c.l.b16 %v2799
        %v2958 = vunpack.c.l.b16 %v2809
        %v2959 = vunpack.c.l.b16 %v2819
        %v2960 = vpack.c.b16 %v2897, %v2896
        %v2961 = vpack.c.b16 %v2899, %v2898
        %v2962 = vpack.c.b16 %v2901, %v2900
        %v2963 = vpack.c.b16 %v2903, %v2902
        %v2964 = vpack.c.b16 %v2905, %v2904
        %v2965 = vpack.c.b16 %v2907, %v2906
        %v2966 = vpack.c.b16 %v2909, %v2908
        %v2967 = vpack.c.b16 %v2911, %v2910
        %v2968 = vpack.c.b16 %v2913, %v2912
        %v2969 = vpack.c.b16 %v2915, %v2914
        %v2970 = vpack.c.b16 %v2917, %v2916
        %v2971 = vpack.c.b16 %v2919, %v2918
        %v2972 = vpack.c.b16 %v2921, %v2920
        %v2973 = vpack.c.b16 %v2923, %v2922
        %v2974 = vpack.c.b16 %v2925, %v2924
        %v2975 = vpack.c.b16 %v2927, %v2926
        %v2976 = vpack.c.b16 %v2929, %v2928
        %v2977 = vpack.c.b16 %v2931, %v2930
        %v2978 = vpack.c.b16 %v2933, %v2932
        %v2979 = vpack.c.b16 %v2935, %v2934
        %v2980 = vpack.c.b16 %v2937, %v2936
        %v2981 = vpack.c.b16 %v2939, %v2938
        %v2982 = vpack.c.b16 %v2941, %v2940
        %v2983 = vpack.c.b16 %v2943, %v2942
        %v2984 = vpack.c.b16 %v2945, %v2944
        %v2985 = vpack.c.b16 %v2947, %v2946
        %v2986 = vpack.c.b16 %v2949, %v2948
        %v2987 = vpack.c.b16 %v2951, %v2950
        %v2988 = vpack.c.b16 %v2953, %v2952
        %v2989 = vpack.c.b16 %v2955, %v2954
        %v2990 = vpack.c.b16 %v2957, %v2956
        %v2991 = vpack.c.b16 %v2959, %v2958
        %v2992 = vunpack.c.l.b16 %v2960
        %v2993 = vunpack.c.h.b16 %v2960
        %v2994 = vunpack.c.l.b16 %v2961
        %v2995 = vunpack.c.h.b16 %v2961
        %v2996 = vunpack.c.l.b16 %v2962
        %v2997 = vunpack.c.h.b16 %v2962
        %v2998 = vunpack.c.l.b16 %v2963
        %v2999 = vunpack.c.h.b16 %v2963
        %v3000 = vunpack.c.l.b16 %v2964
        %v3001 = vunpack.c.h.b16 %v2964
        %v3002 = vunpack.c.l.b16 %v2965
        %v3003 = vunpack.c.h.b16 %v2965
        %v3004 = vunpack.c.l.b16 %v2966
        %v3005 = vunpack.c.h.b16 %v2966
        %v3006 = vunpack.c.l.b16 %v2967
        %v3007 = vunpack.c.h.b16 %v2967
        %v3008 = vunpack.c.l.b16 %v2968
        %v3009 = vunpack.c.h.b16 %v2968
        %v3010 = vunpack.c.l.b16 %v2969
        %v3011 = vunpack.c.h.b16 %v2969
        %v3012 = vunpack.c.l.b16 %v2970
        %v3013 = vunpack.c.h.b16 %v2970
        %v3014 = vunpack.c.l.b16 %v2971
        %v3015 = vunpack.c.h.b16 %v2971
        %v3016 = vunpack.c.l.b16 %v2972
        %v3017 = vunpack.c.h.b16 %v2972
        %v3018 = vunpack.c.l.b16 %v2973
        %v3019 = vunpack.c.h.b16 %v2973
        %v3020 = vunpack.c.l.b16 %v2974
        %v3021 = vunpack.c.h.b16 %v2974
        %v3022 = vunpack.c.l.b16 %v2975
        %v3023 = vunpack.c.h.b16 %v2975
        %v3024 = vunpack.c.l.b16 %v2976
        %v3025 = vunpack.c.h.b16 %v2976
        %v3026 = vunpack.c.l.b16 %v2977
        %v3027 = vunpack.c.h.b16 %v2977
        %v3028 = vunpack.c.l.b16 %v2978
        %v3029 = vunpack.c.h.b16 %v2978
        %v3030 = vunpack.c.l.b16 %v2979
        %v3031 = vunpack.c.h.b16 %v2979
        %v3032 = vunpack.c.l.b16 %v2980
        %v3033 = vunpack.c.h.b16 %v2980
        %v3034 = vunpack.c.l.b16 %v2981
        %v3035 = vunpack.c.h.b16 %v2981
        %v3036 = vunpack.c.l.b16 %v2982
        %v3037 = vunpack.c.h.b16 %v2982
        %v3038 = vunpack.c.l.b16 %v2983
        %v3039 = vunpack.c.h.b16 %v2983
        %v3040 = vunpack.c.l.b16 %v2984
        %v3041 = vunpack.c.h.b16 %v2984
        %v3042 = vunpack.c.l.b16 %v2985
        %v3043 = vunpack.c.h.b16 %v2985
        %v3044 = vunpack.c.l.b16 %v2986
        %v3045 = vunpack.c.h.b16 %v2986
        %v3046 = vunpack.c.l.b16 %v2987
        %v3047 = vunpack.c.h.b16 %v2987
        %v3048 = vunpack.c.l.b16 %v2988
        %v3049 = vunpack.c.h.b16 %v2988
        %v3050 = vunpack.c.l.b16 %v2989
        %v3051 = vunpack.c.h.b16 %v2989
        %v3052 = vunpack.c.l.b16 %v2990
        %v3053 = vunpack.c.h.b16 %v2990
        %v3054 = vunpack.c.l.b16 %v2991
        %v3055 = vunpack.c.h.b16 %v2991
        %vm3056 = vcmask 1041409
        %v3057 = vsel %vm3056, %v3000, %v2992
        %vm3058 = vcmask 1042434
        %v3059 = vsel %vm3058, %v3008, %v3057
        %vm3060 = vcmask 1043459
        %v3061 = vsel %vm3060, %v3016, %v3059
        %vm3062 = vcmask 1044484
        %v3063 = vsel %vm3062, %v3024, %v3061
        %vm3064 = vcmask 1045509
        %v3065 = vsel %vm3064, %v3032, %v3063
        %vm3066 = vcmask 1046534
        %v3067 = vsel %vm3066, %v3040, %v3065
        %vm3068 = vcmask 1047559
        %v3069 = vsel %vm3068, %v3048, %v3067
        %v3070 = vsel %vm3056, %v3001, %v2993
        %v3071 = vsel %vm3058, %v3009, %v3070
        %v3072 = vsel %vm3060, %v3017, %v3071
        %v3073 = vsel %vm3062, %v3025, %v3072
        %v3074 = vsel %vm3064, %v3033, %v3073
        %v3075 = vsel %vm3066, %v3041, %v3074
        %v3076 = vsel %vm3068, %v3049, %v3075
        %v3077 = vsel %vm3056, %v3002, %v2994
        %v3078 = vsel %vm3058, %v3010, %v3077
        %v3079 = vsel %vm3060, %v3018, %v3078
        %v3080 = vsel %vm3062, %v3026, %v3079
        %v3081 = vsel %vm3064, %v3034, %v3080
        %v3082 = vsel %vm3066, %v3042, %v3081
        %v3083 = vsel %vm3068, %v3050, %v3082
        %v3084 = vsel %vm3056, %v3003, %v2995
        %v3085 = vsel %vm3058, %v3011, %v3084
        %v3086 = vsel %vm3060, %v3019, %v3085
        %v3087 = vsel %vm3062, %v3027, %v3086
        %v3088 = vsel %vm3064, %v3035, %v3087
        %v3089 = vsel %vm3066, %v3043, %v3088
        %v3090 = vsel %vm3068, %v3051, %v3089
        %v3091 = vsel %vm3056, %v3004, %v2996
        %v3092 = vsel %vm3058, %v3012, %v3091
        %v3093 = vsel %vm3060, %v3020, %v3092
        %v3094 = vsel %vm3062, %v3028, %v3093
        %v3095 = vsel %vm3064, %v3036, %v3094
        %v3096 = vsel %vm3066, %v3044, %v3095
        %v3097 = vsel %vm3068, %v3052, %v3096
        %v3098 = vsel %vm3056, %v3005, %v2997
        %v3099 = vsel %vm3058, %v3013, %v3098
        %v3100 = vsel %vm3060, %v3021, %v3099
        %v3101 = vsel %vm3062, %v3029, %v3100
        %v3102 = vsel %vm3064, %v3037, %v3101
        %v3103 = vsel %vm3066, %v3045, %v3102
        %v3104 = vsel %vm3068, %v3053, %v3103
        %v3105 = vsel %vm3056, %v3006, %v2998
        %v3106 = vsel %vm3058, %v3014, %v3105
        %v3107 = vsel %vm3060, %v3022, %v3106
        %v3108 = vsel %vm3062, %v3030, %v3107
        %v3109 = vsel %vm3064, %v3038, %v3108
        %v3110 = vsel %vm3066, %v3046, %v3109
        %v3111 = vsel %vm3068, %v3054, %v3110
        %v3112 = vsel %vm3056, %v3007, %v2999
        %v3113 = vsel %vm3058, %v3015, %v3112
        %v3114 = vsel %vm3060, %v3023, %v3113
        %v3115 = vsel %vm3062, %v3031, %v3114
        %v3116 = vsel %vm3064, %v3039, %v3115
        %v3117 = vsel %vm3066, %v3047, %v3116
        %v3118 = vsel %vm3068, %v3055, %v3117
        %v3119 = vpack.c.b16 %v3076, %v3069
        %v3120 = vpack.c.b16 %v3090, %v3083
        %v3121 = vpack.c.b16 %v3104, %v3097
        %v3122 = vpack.c.b16 %v3118, %v3111
        %v3127 = vmax.bf16 %v2828, %v3119
        %v3128 = vmax.bf16 %v2829, %v3120
        %v3129 = vmax.bf16 %v2830, %v3121
        %v3130 = vmax.bf16 %v2831, %v3122
        %3131 = vst [vmem:[#allocation2] sm:$0xff] %v3127
        %3132 = vst [vmem:[#allocation2 + $0x8] sm:$0xff] %v3128
        %3133 = vst [vmem:[#allocation2 + $0x10] sm:$0xff] %v3129
        %3134 = vst [vmem:[#allocation2 + $0x18] sm:$0xff] %v3130
        // Predicated region
        $region101: #{tpu_custom_call.1} parent=71 // pred_check
          %p3135 = pneg %p2820
        $region102: #{tpu_custom_call.1} parent=71 // pred_check_branch
          %3137 = sbr.rel (%p3135) target = $region104
        $region103: #{tpu_custom_call.1} parent=71 // pred_region
          %v3138 = vld [vmem:[#allocation2] sm:$0xff]
          %v3139 = vld [vmem:[#allocation2 + $0x8] sm:$0xff]
          %v3140 = vld [vmem:[#allocation2 + $0x10] sm:$0xff]
          %v3141 = vld [vmem:[#allocation2 + $0x18] sm:$0xff]
          %v3142 = vld [vmem:[#allocation9] sm:$0xff]
          %v3143 = vld [vmem:[#allocation9 + $0x8] sm:$0xff]
          %v3144 = vld [vmem:[#allocation9 + $0x10] sm:$0xff]
          %v3145 = vld [vmem:[#allocation9 + $0x18] sm:$0xff]
          %v3146 = vld [vmem:[#allocation9 + $0x20] sm:$0xff]
          %v3147 = vld [vmem:[#allocation9 + $0x28] sm:$0xff]
          %v3148 = vld [vmem:[#allocation9 + $0x30] sm:$0xff]
          %v3149 = vld [vmem:[#allocation9 + $0x38] sm:$0xff]
          %v3150 = vld [vmem:[#allocation9 + $0x40] sm:$0xff]
          %v3151 = vld [vmem:[#allocation9 + $0x48] sm:$0xff]
          %v3152 = vld [vmem:[#allocation9 + $0x50] sm:$0xff]
          %v3153 = vld [vmem:[#allocation9 + $0x58] sm:$0xff]
          %v3154 = vld [vmem:[#allocation9 + $0x60] sm:$0xff]
          %v3155 = vld [vmem:[#allocation9 + $0x68] sm:$0xff]
          %v3156 = vld [vmem:[#allocation9 + $0x70] sm:$0xff]
          %v3157 = vld [vmem:[#allocation9 + $0x78] sm:$0xff]
          %v3158 = vld [vmem:[#allocation9 + $0x80] sm:$0xff]
          %v3159 = vld [vmem:[#allocation9 + $0x88] sm:$0xff]
          %v3160 = vld [vmem:[#allocation9 + $0x90] sm:$0xff]
          %v3161 = vld [vmem:[#allocation9 + $0x98] sm:$0xff]
          %v3162 = vld [vmem:[#allocation9 + $0xa0] sm:$0xff]
          %v3163 = vld [vmem:[#allocation9 + $0xa8] sm:$0xff]
          %v3164 = vld [vmem:[#allocation9 + $0xb0] sm:$0xff]
          %v3165 = vld [vmem:[#allocation9 + $0xb8] sm:$0xff]
          %v3166 = vld [vmem:[#allocation9 + $0xc0] sm:$0xff]
          %v3167 = vld [vmem:[#allocation9 + $0xc8] sm:$0xff]
          %v3168 = vld [vmem:[#allocation9 + $0xd0] sm:$0xff]
          %v3169 = vld [vmem:[#allocation9 + $0xd8] sm:$0xff]
          %v3170 = vld [vmem:[#allocation9 + $0xe0] sm:$0xff]
          %v3171 = vld [vmem:[#allocation9 + $0xe8] sm:$0xff]
          %v3172 = vld [vmem:[#allocation9 + $0xf0] sm:$0xff]
          %v3173 = vld [vmem:[#allocation9 + $0xf8] sm:$0xff]
          %v3174 = vld [vmem:[#allocation9 + $0x100] sm:$0xff]
          %v3175 = vld [vmem:[#allocation9 + $0x108] sm:$0xff]
          %v3176 = vld [vmem:[#allocation9 + $0x110] sm:$0xff]
          %v3177 = vld [vmem:[#allocation9 + $0x118] sm:$0xff]
          %v3178 = vld [vmem:[#allocation9 + $0x120] sm:$0xff]
          %v3179 = vld [vmem:[#allocation9 + $0x128] sm:$0xff]
          %v3180 = vld [vmem:[#allocation9 + $0x130] sm:$0xff]
          %v3181 = vld [vmem:[#allocation9 + $0x138] sm:$0xff]
          %v3182 = vld [vmem:[#allocation9 + $0x140] sm:$0xff]
          %v3183 = vld [vmem:[#allocation9 + $0x148] sm:$0xff]
          %v3184 = vld [vmem:[#allocation9 + $0x150] sm:$0xff]
          %v3185 = vld [vmem:[#allocation9 + $0x158] sm:$0xff]
          %v3186 = vld [vmem:[#allocation9 + $0x160] sm:$0xff]
          %v3187 = vld [vmem:[#allocation9 + $0x168] sm:$0xff]
          %v3188 = vld [vmem:[#allocation9 + $0x170] sm:$0xff]
          %v3189 = vld [vmem:[#allocation9 + $0x178] sm:$0xff]
          %v3190 = vld [vmem:[#allocation9 + $0x180] sm:$0xff]
          %v3191 = vld [vmem:[#allocation9 + $0x188] sm:$0xff]
          %v3192 = vld [vmem:[#allocation9 + $0x190] sm:$0xff]
          %v3193 = vld [vmem:[#allocation9 + $0x198] sm:$0xff]
          %v3194 = vld [vmem:[#allocation9 + $0x1a0] sm:$0xff]
          %v3195 = vld [vmem:[#allocation9 + $0x1a8] sm:$0xff]
          %v3196 = vld [vmem:[#allocation9 + $0x1b0] sm:$0xff]
          %v3197 = vld [vmem:[#allocation9 + $0x1b8] sm:$0xff]
          %v3198 = vld [vmem:[#allocation9 + $0x1c0] sm:$0xff]
          %v3199 = vld [vmem:[#allocation9 + $0x1c8] sm:$0xff]
          %v3200 = vld [vmem:[#allocation9 + $0x1d0] sm:$0xff]
          %v3201 = vld [vmem:[#allocation9 + $0x1d8] sm:$0xff]
          %v3202 = vld [vmem:[#allocation9 + $0x1e0] sm:$0xff]
          %v3203 = vld [vmem:[#allocation9 + $0x1e8] sm:$0xff]
          %v3204 = vld [vmem:[#allocation9 + $0x1f0] sm:$0xff]
          %v3205 = vld [vmem:[#allocation9 + $0x1f8] sm:$0xff]
          %v3206 = vld [vmem:[#allocation9 + $0x200] sm:$0xff]
          %v3207 = vld [vmem:[#allocation9 + $0x208] sm:$0xff]
          %v3208 = vld [vmem:[#allocation9 + $0x210] sm:$0xff]
          %v3209 = vld [vmem:[#allocation9 + $0x218] sm:$0xff]
          %v3210 = vld [vmem:[#allocation9 + $0x220] sm:$0xff]
          %v3211 = vld [vmem:[#allocation9 + $0x228] sm:$0xff]
          %v3212 = vld [vmem:[#allocation9 + $0x230] sm:$0xff]
          %v3213 = vld [vmem:[#allocation9 + $0x238] sm:$0xff]
          %v3214 = vld [vmem:[#allocation9 + $0x240] sm:$0xff]
          %v3215 = vld [vmem:[#allocation9 + $0x248] sm:$0xff]
          %v3216 = vld [vmem:[#allocation9 + $0x250] sm:$0xff]
          %v3217 = vld [vmem:[#allocation9 + $0x258] sm:$0xff]
          %v3218 = vld [vmem:[#allocation9 + $0x260] sm:$0xff]
          %v3219 = vld [vmem:[#allocation9 + $0x268] sm:$0xff]
          %v3220 = vld [vmem:[#allocation9 + $0x270] sm:$0xff]
          %v3221 = vld [vmem:[#allocation9 + $0x278] sm:$0xff]
          %v3222 = vld [vmem:[#allocation9 + $0x280] sm:$0xff]
          %v3223 = vld [vmem:[#allocation9 + $0x288] sm:$0xff]
          %v3224 = vld [vmem:[#allocation9 + $0x290] sm:$0xff]
          %v3225 = vld [vmem:[#allocation9 + $0x298] sm:$0xff]
          %v3226 = vld [vmem:[#allocation9 + $0x2a0] sm:$0xff]
          %v3227 = vld [vmem:[#allocation9 + $0x2a8] sm:$0xff]
          %v3228 = vld [vmem:[#allocation9 + $0x2b0] sm:$0xff]
          %v3229 = vld [vmem:[#allocation9 + $0x2b8] sm:$0xff]
          %v3230 = vld [vmem:[#allocation9 + $0x2c0] sm:$0xff]
          %v3231 = vld [vmem:[#allocation9 + $0x2c8] sm:$0xff]
          %v3232 = vld [vmem:[#allocation9 + $0x2d0] sm:$0xff]
          %v3233 = vld [vmem:[#allocation9 + $0x2d8] sm:$0xff]
          %v3234 = vld [vmem:[#allocation9 + $0x2e0] sm:$0xff]
          %v3235 = vld [vmem:[#allocation9 + $0x2e8] sm:$0xff]
          %v3236 = vld [vmem:[#allocation9 + $0x2f0] sm:$0xff]
          %v3237 = vld [vmem:[#allocation9 + $0x2f8] sm:$0xff]
          %v3238 = vld [vmem:[#allocation9 + $0x300] sm:$0xff]
          %v3239 = vld [vmem:[#allocation9 + $0x308] sm:$0xff]
          %v3240 = vld [vmem:[#allocation9 + $0x310] sm:$0xff]
          %v3241 = vld [vmem:[#allocation9 + $0x318] sm:$0xff]
          %v3242 = vld [vmem:[#allocation9 + $0x320] sm:$0xff]
          %v3243 = vld [vmem:[#allocation9 + $0x328] sm:$0xff]
          %v3244 = vld [vmem:[#allocation9 + $0x330] sm:$0xff]
          %v3245 = vld [vmem:[#allocation9 + $0x338] sm:$0xff]
          %v3246 = vld [vmem:[#allocation9 + $0x340] sm:$0xff]
          %v3247 = vld [vmem:[#allocation9 + $0x348] sm:$0xff]
          %v3248 = vld [vmem:[#allocation9 + $0x350] sm:$0xff]
          %v3249 = vld [vmem:[#allocation9 + $0x358] sm:$0xff]
          %v3250 = vld [vmem:[#allocation9 + $0x360] sm:$0xff]
          %v3251 = vld [vmem:[#allocation9 + $0x368] sm:$0xff]
          %v3252 = vld [vmem:[#allocation9 + $0x370] sm:$0xff]
          %v3253 = vld [vmem:[#allocation9 + $0x378] sm:$0xff]
          %v3254 = vld [vmem:[#allocation9 + $0x380] sm:$0xff]
          %v3255 = vld [vmem:[#allocation9 + $0x388] sm:$0xff]
          %v3256 = vld [vmem:[#allocation9 + $0x390] sm:$0xff]
          %v3257 = vld [vmem:[#allocation9 + $0x398] sm:$0xff]
          %v3258 = vld [vmem:[#allocation9 + $0x3a0] sm:$0xff]
          %v3259 = vld [vmem:[#allocation9 + $0x3a8] sm:$0xff]
          %v3260 = vld [vmem:[#allocation9 + $0x3b0] sm:$0xff]
          %v3261 = vld [vmem:[#allocation9 + $0x3b8] sm:$0xff]
          %v3262 = vld [vmem:[#allocation9 + $0x3c0] sm:$0xff]
          %v3263 = vld [vmem:[#allocation9 + $0x3c8] sm:$0xff]
          %v3264 = vld [vmem:[#allocation9 + $0x3d0] sm:$0xff]
          %v3265 = vld [vmem:[#allocation9 + $0x3d8] sm:$0xff]
          %v3266 = vld [vmem:[#allocation9 + $0x3e0] sm:$0xff]
          %v3267 = vld [vmem:[#allocation9 + $0x3e8] sm:$0xff]
          %v3268 = vld [vmem:[#allocation9 + $0x3f0] sm:$0xff]
          %v3269 = vld [vmem:[#allocation9 + $0x3f8] sm:$0xff]
          %v3270 = vld [vmem:[#allocation9 + $0x400] sm:$0xff]
          %v3271 = vld [vmem:[#allocation9 + $0x408] sm:$0xff]
          %v3272 = vld [vmem:[#allocation9 + $0x410] sm:$0xff]
          %v3273 = vld [vmem:[#allocation9 + $0x418] sm:$0xff]
          %v3274 = vld [vmem:[#allocation9 + $0x420] sm:$0xff]
          %v3275 = vld [vmem:[#allocation9 + $0x428] sm:$0xff]
          %v3276 = vld [vmem:[#allocation9 + $0x430] sm:$0xff]
          %v3277 = vld [vmem:[#allocation9 + $0x438] sm:$0xff]
          %v3278 = vld [vmem:[#allocation9 + $0x440] sm:$0xff]
          %v3279 = vld [vmem:[#allocation9 + $0x448] sm:$0xff]
          %v3280 = vld [vmem:[#allocation9 + $0x450] sm:$0xff]
          %v3281 = vld [vmem:[#allocation9 + $0x458] sm:$0xff]
          %v3282 = vld [vmem:[#allocation9 + $0x460] sm:$0xff]
          %v3283 = vld [vmem:[#allocation9 + $0x468] sm:$0xff]
          %v3284 = vld [vmem:[#allocation9 + $0x470] sm:$0xff]
          %v3285 = vld [vmem:[#allocation9 + $0x478] sm:$0xff]
          %v3286 = vld [vmem:[#allocation9 + $0x480] sm:$0xff]
          %v3287 = vld [vmem:[#allocation9 + $0x488] sm:$0xff]
          %v3288 = vld [vmem:[#allocation9 + $0x490] sm:$0xff]
          %v3289 = vld [vmem:[#allocation9 + $0x498] sm:$0xff]
          %v3290 = vld [vmem:[#allocation9 + $0x4a0] sm:$0xff]
          %v3291 = vld [vmem:[#allocation9 + $0x4a8] sm:$0xff]
          %v3292 = vld [vmem:[#allocation9 + $0x4b0] sm:$0xff]
          %v3293 = vld [vmem:[#allocation9 + $0x4b8] sm:$0xff]
          %v3294 = vld [vmem:[#allocation9 + $0x4c0] sm:$0xff]
          %v3295 = vld [vmem:[#allocation9 + $0x4c8] sm:$0xff]
          %v3296 = vld [vmem:[#allocation9 + $0x4d0] sm:$0xff]
          %v3297 = vld [vmem:[#allocation9 + $0x4d8] sm:$0xff]
          %v3298 = vld [vmem:[#allocation9 + $0x4e0] sm:$0xff]
          %v3299 = vld [vmem:[#allocation9 + $0x4e8] sm:$0xff]
          %v3300 = vld [vmem:[#allocation9 + $0x4f0] sm:$0xff]
          %v3301 = vld [vmem:[#allocation9 + $0x4f8] sm:$0xff]
          %v3302 = vld [vmem:[#allocation9 + $0x500] sm:$0xff]
          %v3303 = vld [vmem:[#allocation9 + $0x508] sm:$0xff]
          %v3304 = vld [vmem:[#allocation9 + $0x510] sm:$0xff]
          %v3305 = vld [vmem:[#allocation9 + $0x518] sm:$0xff]
          %v3306 = vld [vmem:[#allocation9 + $0x520] sm:$0xff]
          %v3307 = vld [vmem:[#allocation9 + $0x528] sm:$0xff]
          %v3308 = vld [vmem:[#allocation9 + $0x530] sm:$0xff]
          %v3309 = vld [vmem:[#allocation9 + $0x538] sm:$0xff]
          %v3310 = vld [vmem:[#allocation9 + $0x540] sm:$0xff]
          %v3311 = vld [vmem:[#allocation9 + $0x548] sm:$0xff]
          %v3312 = vld [vmem:[#allocation9 + $0x550] sm:$0xff]
          %v3313 = vld [vmem:[#allocation9 + $0x558] sm:$0xff]
          %v3314 = vld [vmem:[#allocation9 + $0x560] sm:$0xff]
          %v3315 = vld [vmem:[#allocation9 + $0x568] sm:$0xff]
          %v3316 = vld [vmem:[#allocation9 + $0x570] sm:$0xff]
          %v3317 = vld [vmem:[#allocation9 + $0x578] sm:$0xff]
          %v3318 = vld [vmem:[#allocation9 + $0x580] sm:$0xff]
          %v3319 = vld [vmem:[#allocation9 + $0x588] sm:$0xff]
          %v3320 = vld [vmem:[#allocation9 + $0x590] sm:$0xff]
          %v3321 = vld [vmem:[#allocation9 + $0x598] sm:$0xff]
          %v3322 = vld [vmem:[#allocation9 + $0x5a0] sm:$0xff]
          %v3323 = vld [vmem:[#allocation9 + $0x5a8] sm:$0xff]
          %v3324 = vld [vmem:[#allocation9 + $0x5b0] sm:$0xff]
          %v3325 = vld [vmem:[#allocation9 + $0x5b8] sm:$0xff]
          %v3326 = vld [vmem:[#allocation9 + $0x5c0] sm:$0xff]
          %v3327 = vld [vmem:[#allocation9 + $0x5c8] sm:$0xff]
          %v3328 = vld [vmem:[#allocation9 + $0x5d0] sm:$0xff]
          %v3329 = vld [vmem:[#allocation9 + $0x5d8] sm:$0xff]
          %v3330 = vld [vmem:[#allocation9 + $0x5e0] sm:$0xff]
          %v3331 = vld [vmem:[#allocation9 + $0x5e8] sm:$0xff]
          %v3332 = vld [vmem:[#allocation9 + $0x5f0] sm:$0xff]
          %v3333 = vld [vmem:[#allocation9 + $0x5f8] sm:$0xff]
          %v3334 = vld [vmem:[#allocation9 + $0x600] sm:$0xff]
          %v3335 = vld [vmem:[#allocation9 + $0x608] sm:$0xff]
          %v3336 = vld [vmem:[#allocation9 + $0x610] sm:$0xff]
          %v3337 = vld [vmem:[#allocation9 + $0x618] sm:$0xff]
          %v3338 = vld [vmem:[#allocation9 + $0x620] sm:$0xff]
          %v3339 = vld [vmem:[#allocation9 + $0x628] sm:$0xff]
          %v3340 = vld [vmem:[#allocation9 + $0x630] sm:$0xff]
          %v3341 = vld [vmem:[#allocation9 + $0x638] sm:$0xff]
          %v3342 = vld [vmem:[#allocation9 + $0x640] sm:$0xff]
          %v3343 = vld [vmem:[#allocation9 + $0x648] sm:$0xff]
          %v3344 = vld [vmem:[#allocation9 + $0x650] sm:$0xff]
          %v3345 = vld [vmem:[#allocation9 + $0x658] sm:$0xff]
          %v3346 = vld [vmem:[#allocation9 + $0x660] sm:$0xff]
          %v3347 = vld [vmem:[#allocation9 + $0x668] sm:$0xff]
          %v3348 = vld [vmem:[#allocation9 + $0x670] sm:$0xff]
          %v3349 = vld [vmem:[#allocation9 + $0x678] sm:$0xff]
          %v3350 = vld [vmem:[#allocation9 + $0x680] sm:$0xff]
          %v3351 = vld [vmem:[#allocation9 + $0x688] sm:$0xff]
          %v3352 = vld [vmem:[#allocation9 + $0x690] sm:$0xff]
          %v3353 = vld [vmem:[#allocation9 + $0x698] sm:$0xff]
          %v3354 = vld [vmem:[#allocation9 + $0x6a0] sm:$0xff]
          %v3355 = vld [vmem:[#allocation9 + $0x6a8] sm:$0xff]
          %v3356 = vld [vmem:[#allocation9 + $0x6b0] sm:$0xff]
          %v3357 = vld [vmem:[#allocation9 + $0x6b8] sm:$0xff]
          %v3358 = vld [vmem:[#allocation9 + $0x6c0] sm:$0xff]
          %v3359 = vld [vmem:[#allocation9 + $0x6c8] sm:$0xff]
          %v3360 = vld [vmem:[#allocation9 + $0x6d0] sm:$0xff]
          %v3361 = vld [vmem:[#allocation9 + $0x6d8] sm:$0xff]
          %v3362 = vld [vmem:[#allocation9 + $0x6e0] sm:$0xff]
          %v3363 = vld [vmem:[#allocation9 + $0x6e8] sm:$0xff]
          %v3364 = vld [vmem:[#allocation9 + $0x6f0] sm:$0xff]
          %v3365 = vld [vmem:[#allocation9 + $0x6f8] sm:$0xff]
          %v3366 = vld [vmem:[#allocation9 + $0x700] sm:$0xff]
          %v3367 = vld [vmem:[#allocation9 + $0x708] sm:$0xff]
          %v3368 = vld [vmem:[#allocation9 + $0x710] sm:$0xff]
          %v3369 = vld [vmem:[#allocation9 + $0x718] sm:$0xff]
          %v3370 = vld [vmem:[#allocation9 + $0x720] sm:$0xff]
          %v3371 = vld [vmem:[#allocation9 + $0x728] sm:$0xff]
          %v3372 = vld [vmem:[#allocation9 + $0x730] sm:$0xff]
          %v3373 = vld [vmem:[#allocation9 + $0x738] sm:$0xff]
          %v3374 = vld [vmem:[#allocation9 + $0x740] sm:$0xff]
          %v3375 = vld [vmem:[#allocation9 + $0x748] sm:$0xff]
          %v3376 = vld [vmem:[#allocation9 + $0x750] sm:$0xff]
          %v3377 = vld [vmem:[#allocation9 + $0x758] sm:$0xff]
          %v3378 = vld [vmem:[#allocation9 + $0x760] sm:$0xff]
          %v3379 = vld [vmem:[#allocation9 + $0x768] sm:$0xff]
          %v3380 = vld [vmem:[#allocation9 + $0x770] sm:$0xff]
          %v3381 = vld [vmem:[#allocation9 + $0x778] sm:$0xff]
          %v3382 = vld [vmem:[#allocation9 + $0x780] sm:$0xff]
          %v3383 = vld [vmem:[#allocation9 + $0x788] sm:$0xff]
          %v3384 = vld [vmem:[#allocation9 + $0x790] sm:$0xff]
          %v3385 = vld [vmem:[#allocation9 + $0x798] sm:$0xff]
          %v3386 = vld [vmem:[#allocation9 + $0x7a0] sm:$0xff]
          %v3387 = vld [vmem:[#allocation9 + $0x7a8] sm:$0xff]
          %v3388 = vld [vmem:[#allocation9 + $0x7b0] sm:$0xff]
          %v3389 = vld [vmem:[#allocation9 + $0x7b8] sm:$0xff]
          %v3390 = vld [vmem:[#allocation9 + $0x7c0] sm:$0xff]
          %v3391 = vld [vmem:[#allocation9 + $0x7c8] sm:$0xff]
          %v3392 = vld [vmem:[#allocation9 + $0x7d0] sm:$0xff]
          %v3393 = vld [vmem:[#allocation9 + $0x7d8] sm:$0xff]
          %v3394 = vld [vmem:[#allocation9 + $0x7e0] sm:$0xff]
          %v3395 = vld [vmem:[#allocation9 + $0x7e8] sm:$0xff]
          %v3396 = vld [vmem:[#allocation9 + $0x7f0] sm:$0xff]
          %v3397 = vld [vmem:[#allocation9 + $0x7f8] sm:$0xff]
          %v3398 = vld [vmem:[%s8] sm:$0xf]
          %v3400 = vlaneseq
          %v3401 = vshrl.u32 %v3400, 7
          %v3402 = vsub.s32 0, %v3401
          %v3403 = vrot.slane %v3398, %v3402
          %v3404 = vlaneseq
          %v3405 = vshrl.u32 %v3404, 7
          %v3406 = vsub.s32 1, %v3405
          %v3407 = vrot.slane %v3398, %v3406
          %v3408 = vlaneseq
          %v3409 = vshrl.u32 %v3408, 7
          %v3410 = vsub.s32 2, %v3409
          %v3411 = vrot.slane %v3398, %v3410
          %v3412 = vlaneseq
          %v3413 = vshrl.u32 %v3412, 7
          %v3414 = vsub.s32 3, %v3413
          %v3415 = vrot.slane %v3398, %v3414
          %v3424 = vunpack.c.l.b16 %v3138
          %v3425 = vunpack.c.h.b16 %v3138
          %v3426 = vunpack.c.l.b16 %v3139
          %v3427 = vunpack.c.h.b16 %v3139
          %v3428 = vunpack.c.l.b16 %v3140
          %v3429 = vunpack.c.h.b16 %v3140
          %v3430 = vunpack.c.l.b16 %v3141
          %v3431 = vunpack.c.h.b16 %v3141
          %v3432 = vpack.c.b16 %v3424, %v3424
          %v3433 = vpack.c.b16 %v3425, %v3425
          %v3434 = vpack.c.b16 %v3426, %v3426
          %v3435 = vpack.c.b16 %v3427, %v3427
          %v3436 = vpack.c.b16 %v3428, %v3428
          %v3437 = vpack.c.b16 %v3429, %v3429
          %v3438 = vpack.c.b16 %v3430, %v3430
          %v3439 = vpack.c.b16 %v3431, %v3431
          %v3704 = vunpack.c.l.b16 %v3142
          %v3705 = vunpack.c.h.b16 %v3142
          %v3706 = vunpack.c.l.b16 %v3143
          %v3707 = vunpack.c.h.b16 %v3143
          %v3708 = vunpack.c.l.b16 %v3144
          %v3709 = vunpack.c.h.b16 %v3144
          %v3710 = vunpack.c.l.b16 %v3145
          %v3711 = vunpack.c.h.b16 %v3145
          %v3712 = vunpack.c.l.b16 %v3146
          %v3713 = vunpack.c.h.b16 %v3146
          %v3714 = vunpack.c.l.b16 %v3147
          %v3715 = vunpack.c.h.b16 %v3147
          %v3716 = vunpack.c.l.b16 %v3148
          %v3717 = vunpack.c.h.b16 %v3148
          %v3718 = vunpack.c.l.b16 %v3149
          %v3719 = vunpack.c.h.b16 %v3149
          %v3720 = vunpack.c.l.b16 %v3150
          %v3721 = vunpack.c.h.b16 %v3150
          %v3722 = vunpack.c.l.b16 %v3151
          %v3723 = vunpack.c.h.b16 %v3151
          %v3724 = vunpack.c.l.b16 %v3152
          %v3725 = vunpack.c.h.b16 %v3152
          %v3726 = vunpack.c.l.b16 %v3153
          %v3727 = vunpack.c.h.b16 %v3153
          %v3728 = vunpack.c.l.b16 %v3154
          %v3729 = vunpack.c.h.b16 %v3154
          %v3730 = vunpack.c.l.b16 %v3155
          %v3731 = vunpack.c.h.b16 %v3155
          %v3732 = vunpack.c.l.b16 %v3156
          %v3733 = vunpack.c.h.b16 %v3156
          %v3734 = vunpack.c.l.b16 %v3157
          %v3735 = vunpack.c.h.b16 %v3157
          %v3736 = vunpack.c.l.b16 %v3158
          %v3737 = vunpack.c.h.b16 %v3158
          %v3738 = vunpack.c.l.b16 %v3159
          %v3739 = vunpack.c.h.b16 %v3159
          %v3740 = vunpack.c.l.b16 %v3160
          %v3741 = vunpack.c.h.b16 %v3160
          %v3742 = vunpack.c.l.b16 %v3161
          %v3743 = vunpack.c.h.b16 %v3161
          %v3744 = vunpack.c.l.b16 %v3162
          %v3745 = vunpack.c.h.b16 %v3162
          %v3746 = vunpack.c.l.b16 %v3163
          %v3747 = vunpack.c.h.b16 %v3163
          %v3748 = vunpack.c.l.b16 %v3164
          %v3749 = vunpack.c.h.b16 %v3164
          %v3750 = vunpack.c.l.b16 %v3165
          %v3751 = vunpack.c.h.b16 %v3165
          %v3752 = vunpack.c.l.b16 %v3166
          %v3753 = vunpack.c.h.b16 %v3166
          %v3754 = vunpack.c.l.b16 %v3167
          %v3755 = vunpack.c.h.b16 %v3167
          %v3756 = vunpack.c.l.b16 %v3168
          %v3757 = vunpack.c.h.b16 %v3168
          %v3758 = vunpack.c.l.b16 %v3169
          %v3759 = vunpack.c.h.b16 %v3169
          %v3760 = vunpack.c.l.b16 %v3170
          %v3761 = vunpack.c.h.b16 %v3170
          %v3762 = vunpack.c.l.b16 %v3171
          %v3763 = vunpack.c.h.b16 %v3171
          %v3764 = vunpack.c.l.b16 %v3172
          %v3765 = vunpack.c.h.b16 %v3172
          %v3766 = vunpack.c.l.b16 %v3173
          %v3767 = vunpack.c.h.b16 %v3173
          %v3768 = vunpack.c.l.b16 %v3174
          %v3769 = vunpack.c.h.b16 %v3174
          %v3770 = vunpack.c.l.b16 %v3175
          %v3771 = vunpack.c.h.b16 %v3175
          %v3772 = vunpack.c.l.b16 %v3176
          %v3773 = vunpack.c.h.b16 %v3176
          %v3774 = vunpack.c.l.b16 %v3177
          %v3775 = vunpack.c.h.b16 %v3177
          %v3776 = vunpack.c.l.b16 %v3178
          %v3777 = vunpack.c.h.b16 %v3178
          %v3778 = vunpack.c.l.b16 %v3179
          %v3779 = vunpack.c.h.b16 %v3179
          %v3780 = vunpack.c.l.b16 %v3180
          %v3781 = vunpack.c.h.b16 %v3180
          %v3782 = vunpack.c.l.b16 %v3181
          %v3783 = vunpack.c.h.b16 %v3181
          %v3784 = vunpack.c.l.b16 %v3182
          %v3785 = vunpack.c.h.b16 %v3182
          %v3786 = vunpack.c.l.b16 %v3183
          %v3787 = vunpack.c.h.b16 %v3183
          %v3788 = vunpack.c.l.b16 %v3184
          %v3789 = vunpack.c.h.b16 %v3184
          %v3790 = vunpack.c.l.b16 %v3185
          %v3791 = vunpack.c.h.b16 %v3185
          %v3792 = vunpack.c.l.b16 %v3186
          %v3793 = vunpack.c.h.b16 %v3186
          %v3794 = vunpack.c.l.b16 %v3187
          %v3795 = vunpack.c.h.b16 %v3187
          %v3796 = vunpack.c.l.b16 %v3188
          %v3797 = vunpack.c.h.b16 %v3188
          %v3798 = vunpack.c.l.b16 %v3189
          %v3799 = vunpack.c.h.b16 %v3189
          %v3800 = vunpack.c.l.b16 %v3190
          %v3801 = vunpack.c.h.b16 %v3190
          %v3802 = vunpack.c.l.b16 %v3191
          %v3803 = vunpack.c.h.b16 %v3191
          %v3804 = vunpack.c.l.b16 %v3192
          %v3805 = vunpack.c.h.b16 %v3192
          %v3806 = vunpack.c.l.b16 %v3193
          %v3807 = vunpack.c.h.b16 %v3193
          %v3808 = vunpack.c.l.b16 %v3194
          %v3809 = vunpack.c.h.b16 %v3194
          %v3810 = vunpack.c.l.b16 %v3195
          %v3811 = vunpack.c.h.b16 %v3195
          %v3812 = vunpack.c.l.b16 %v3196
          %v3813 = vunpack.c.h.b16 %v3196
          %v3814 = vunpack.c.l.b16 %v3197
          %v3815 = vunpack.c.h.b16 %v3197
          %v3816 = vunpack.c.l.b16 %v3198
          %v3817 = vunpack.c.h.b16 %v3198
          %v3818 = vunpack.c.l.b16 %v3199
          %v3819 = vunpack.c.h.b16 %v3199
          %v3820 = vunpack.c.l.b16 %v3200
          %v3821 = vunpack.c.h.b16 %v3200
          %v3822 = vunpack.c.l.b16 %v3201
          %v3823 = vunpack.c.h.b16 %v3201
          %v3824 = vunpack.c.l.b16 %v3202
          %v3825 = vunpack.c.h.b16 %v3202
          %v3826 = vunpack.c.l.b16 %v3203
          %v3827 = vunpack.c.h.b16 %v3203
          %v3828 = vunpack.c.l.b16 %v3204
          %v3829 = vunpack.c.h.b16 %v3204
          %v3830 = vunpack.c.l.b16 %v3205
          %v3831 = vunpack.c.h.b16 %v3205
          %v3832 = vunpack.c.l.b16 %v3206
          %v3833 = vunpack.c.h.b16 %v3206
          %v3834 = vunpack.c.l.b16 %v3207
          %v3835 = vunpack.c.h.b16 %v3207
          %v3836 = vunpack.c.l.b16 %v3208
          %v3837 = vunpack.c.h.b16 %v3208
          %v3838 = vunpack.c.l.b16 %v3209
          %v3839 = vunpack.c.h.b16 %v3209
          %v3840 = vunpack.c.l.b16 %v3210
          %v3841 = vunpack.c.h.b16 %v3210
          %v3842 = vunpack.c.l.b16 %v3211
          %v3843 = vunpack.c.h.b16 %v3211
          %v3844 = vunpack.c.l.b16 %v3212
          %v3845 = vunpack.c.h.b16 %v3212
          %v3846 = vunpack.c.l.b16 %v3213
          %v3847 = vunpack.c.h.b16 %v3213
          %v3848 = vunpack.c.l.b16 %v3214
          %v3849 = vunpack.c.h.b16 %v3214
          %v3850 = vunpack.c.l.b16 %v3215
          %v3851 = vunpack.c.h.b16 %v3215
          %v3852 = vunpack.c.l.b16 %v3216
          %v3853 = vunpack.c.h.b16 %v3216
          %v3854 = vunpack.c.l.b16 %v3217
          %v3855 = vunpack.c.h.b16 %v3217
          %v3856 = vunpack.c.l.b16 %v3218
          %v3857 = vunpack.c.h.b16 %v3218
          %v3858 = vunpack.c.l.b16 %v3219
          %v3859 = vunpack.c.h.b16 %v3219
          %v3860 = vunpack.c.l.b16 %v3220
          %v3861 = vunpack.c.h.b16 %v3220
          %v3862 = vunpack.c.l.b16 %v3221
          %v3863 = vunpack.c.h.b16 %v3221
          %v3864 = vunpack.c.l.b16 %v3222
          %v3865 = vunpack.c.h.b16 %v3222
          %v3866 = vunpack.c.l.b16 %v3223
          %v3867 = vunpack.c.h.b16 %v3223
          %v3868 = vunpack.c.l.b16 %v3224
          %v3869 = vunpack.c.h.b16 %v3224
          %v3870 = vunpack.c.l.b16 %v3225
          %v3871 = vunpack.c.h.b16 %v3225
          %v3872 = vunpack.c.l.b16 %v3226
          %v3873 = vunpack.c.h.b16 %v3226
          %v3874 = vunpack.c.l.b16 %v3227
          %v3875 = vunpack.c.h.b16 %v3227
          %v3876 = vunpack.c.l.b16 %v3228
          %v3877 = vunpack.c.h.b16 %v3228
          %v3878 = vunpack.c.l.b16 %v3229
          %v3879 = vunpack.c.h.b16 %v3229
          %v3880 = vunpack.c.l.b16 %v3230
          %v3881 = vunpack.c.h.b16 %v3230
          %v3882 = vunpack.c.l.b16 %v3231
          %v3883 = vunpack.c.h.b16 %v3231
          %v3884 = vunpack.c.l.b16 %v3232
          %v3885 = vunpack.c.h.b16 %v3232
          %v3886 = vunpack.c.l.b16 %v3233
          %v3887 = vunpack.c.h.b16 %v3233
          %v3888 = vunpack.c.l.b16 %v3234
          %v3889 = vunpack.c.h.b16 %v3234
          %v3890 = vunpack.c.l.b16 %v3235
          %v3891 = vunpack.c.h.b16 %v3235
          %v3892 = vunpack.c.l.b16 %v3236
          %v3893 = vunpack.c.h.b16 %v3236
          %v3894 = vunpack.c.l.b16 %v3237
          %v3895 = vunpack.c.h.b16 %v3237
          %v3896 = vunpack.c.l.b16 %v3238
          %v3897 = vunpack.c.h.b16 %v3238
          %v3898 = vunpack.c.l.b16 %v3239
          %v3899 = vunpack.c.h.b16 %v3239
          %v3900 = vunpack.c.l.b16 %v3240
          %v3901 = vunpack.c.h.b16 %v3240
          %v3902 = vunpack.c.l.b16 %v3241
          %v3903 = vunpack.c.h.b16 %v3241
          %v3904 = vunpack.c.l.b16 %v3242
          %v3905 = vunpack.c.h.b16 %v3242
          %v3906 = vunpack.c.l.b16 %v3243
          %v3907 = vunpack.c.h.b16 %v3243
          %v3908 = vunpack.c.l.b16 %v3244
          %v3909 = vunpack.c.h.b16 %v3244
          %v3910 = vunpack.c.l.b16 %v3245
          %v3911 = vunpack.c.h.b16 %v3245
          %v3912 = vunpack.c.l.b16 %v3246
          %v3913 = vunpack.c.h.b16 %v3246
          %v3914 = vunpack.c.l.b16 %v3247
          %v3915 = vunpack.c.h.b16 %v3247
          %v3916 = vunpack.c.l.b16 %v3248
          %v3917 = vunpack.c.h.b16 %v3248
          %v3918 = vunpack.c.l.b16 %v3249
          %v3919 = vunpack.c.h.b16 %v3249
          %v3920 = vunpack.c.l.b16 %v3250
          %v3921 = vunpack.c.h.b16 %v3250
          %v3922 = vunpack.c.l.b16 %v3251
          %v3923 = vunpack.c.h.b16 %v3251
          %v3924 = vunpack.c.l.b16 %v3252
          %v3925 = vunpack.c.h.b16 %v3252
          %v3926 = vunpack.c.l.b16 %v3253
          %v3927 = vunpack.c.h.b16 %v3253
          %v3928 = vunpack.c.l.b16 %v3254
          %v3929 = vunpack.c.h.b16 %v3254
          %v3930 = vunpack.c.l.b16 %v3255
          %v3931 = vunpack.c.h.b16 %v3255
          %v3932 = vunpack.c.l.b16 %v3256
          %v3933 = vunpack.c.h.b16 %v3256
          %v3934 = vunpack.c.l.b16 %v3257
          %v3935 = vunpack.c.h.b16 %v3257
          %v3936 = vunpack.c.l.b16 %v3258
          %v3937 = vunpack.c.h.b16 %v3258
          %v3938 = vunpack.c.l.b16 %v3259
          %v3939 = vunpack.c.h.b16 %v3259
          %v3940 = vunpack.c.l.b16 %v3260
          %v3941 = vunpack.c.h.b16 %v3260
          %v3942 = vunpack.c.l.b16 %v3261
          %v3943 = vunpack.c.h.b16 %v3261
          %v3944 = vunpack.c.l.b16 %v3262
          %v3945 = vunpack.c.h.b16 %v3262
          %v3946 = vunpack.c.l.b16 %v3263
          %v3947 = vunpack.c.h.b16 %v3263
          %v3948 = vunpack.c.l.b16 %v3264
          %v3949 = vunpack.c.h.b16 %v3264
          %v3950 = vunpack.c.l.b16 %v3265
          %v3951 = vunpack.c.h.b16 %v3265
          %v3952 = vunpack.c.l.b16 %v3266
          %v3953 = vunpack.c.h.b16 %v3266
          %v3954 = vunpack.c.l.b16 %v3267
          %v3955 = vunpack.c.h.b16 %v3267
          %v3956 = vunpack.c.l.b16 %v3268
          %v3957 = vunpack.c.h.b16 %v3268
          %v3958 = vunpack.c.l.b16 %v3269
          %v3959 = vunpack.c.h.b16 %v3269
          %v3960 = vunpack.c.l.b16 %v3270
          %v3961 = vunpack.c.h.b16 %v3270
          %v3962 = vunpack.c.l.b16 %v3271
          %v3963 = vunpack.c.h.b16 %v3271
          %v3964 = vunpack.c.l.b16 %v3272
          %v3965 = vunpack.c.h.b16 %v3272
          %v3966 = vunpack.c.l.b16 %v3273
          %v3967 = vunpack.c.h.b16 %v3273
          %v3968 = vunpack.c.l.b16 %v3274
          %v3969 = vunpack.c.h.b16 %v3274
          %v3970 = vunpack.c.l.b16 %v3275
          %v3971 = vunpack.c.h.b16 %v3275
          %v3972 = vunpack.c.l.b16 %v3276
          %v3973 = vunpack.c.h.b16 %v3276
          %v3974 = vunpack.c.l.b16 %v3277
          %v3975 = vunpack.c.h.b16 %v3277
          %v3976 = vunpack.c.l.b16 %v3278
          %v3977 = vunpack.c.h.b16 %v3278
          %v3978 = vunpack.c.l.b16 %v3279
          %v3979 = vunpack.c.h.b16 %v3279
          %v3980 = vunpack.c.l.b16 %v3280
          %v3981 = vunpack.c.h.b16 %v3280
          %v3982 = vunpack.c.l.b16 %v3281
          %v3983 = vunpack.c.h.b16 %v3281
          %v3984 = vunpack.c.l.b16 %v3282
          %v3985 = vunpack.c.h.b16 %v3282
          %v3986 = vunpack.c.l.b16 %v3283
          %v3987 = vunpack.c.h.b16 %v3283
          %v3988 = vunpack.c.l.b16 %v3284
          %v3989 = vunpack.c.h.b16 %v3284
          %v3990 = vunpack.c.l.b16 %v3285
          %v3991 = vunpack.c.h.b16 %v3285
          %v3992 = vunpack.c.l.b16 %v3286
          %v3993 = vunpack.c.h.b16 %v3286
          %v3994 = vunpack.c.l.b16 %v3287
          %v3995 = vunpack.c.h.b16 %v3287
          %v3996 = vunpack.c.l.b16 %v3288
          %v3997 = vunpack.c.h.b16 %v3288
          %v3998 = vunpack.c.l.b16 %v3289
          %v3999 = vunpack.c.h.b16 %v3289
          %v4000 = vunpack.c.l.b16 %v3290
          %v4001 = vunpack.c.h.b16 %v3290
          %v4002 = vunpack.c.l.b16 %v3291
          %v4003 = vunpack.c.h.b16 %v3291
          %v4004 = vunpack.c.l.b16 %v3292
          %v4005 = vunpack.c.h.b16 %v3292
          %v4006 = vunpack.c.l.b16 %v3293
          %v4007 = vunpack.c.h.b16 %v3293
          %v4008 = vunpack.c.l.b16 %v3294
          %v4009 = vunpack.c.h.b16 %v3294
          %v4010 = vunpack.c.l.b16 %v3295
          %v4011 = vunpack.c.h.b16 %v3295
          %v4012 = vunpack.c.l.b16 %v3296
          %v4013 = vunpack.c.h.b16 %v3296
          %v4014 = vunpack.c.l.b16 %v3297
          %v4015 = vunpack.c.h.b16 %v3297
          %v4016 = vunpack.c.l.b16 %v3298
          %v4017 = vunpack.c.h.b16 %v3298
          %v4018 = vunpack.c.l.b16 %v3299
          %v4019 = vunpack.c.h.b16 %v3299
          %v4020 = vunpack.c.l.b16 %v3300
          %v4021 = vunpack.c.h.b16 %v3300
          %v4022 = vunpack.c.l.b16 %v3301
          %v4023 = vunpack.c.h.b16 %v3301
          %v4024 = vunpack.c.l.b16 %v3302
          %v4025 = vunpack.c.h.b16 %v3302
          %v4026 = vunpack.c.l.b16 %v3303
          %v4027 = vunpack.c.h.b16 %v3303
          %v4028 = vunpack.c.l.b16 %v3304
          %v4029 = vunpack.c.h.b16 %v3304
          %v4030 = vunpack.c.l.b16 %v3305
          %v4031 = vunpack.c.h.b16 %v3305
          %v4032 = vunpack.c.l.b16 %v3306
          %v4033 = vunpack.c.h.b16 %v3306
          %v4034 = vunpack.c.l.b16 %v3307
          %v4035 = vunpack.c.h.b16 %v3307
          %v4036 = vunpack.c.l.b16 %v3308
          %v4037 = vunpack.c.h.b16 %v3308
          %v4038 = vunpack.c.l.b16 %v3309
          %v4039 = vunpack.c.h.b16 %v3309
          %v4040 = vunpack.c.l.b16 %v3310
          %v4041 = vunpack.c.h.b16 %v3310
          %v4042 = vunpack.c.l.b16 %v3311
          %v4043 = vunpack.c.h.b16 %v3311
          %v4044 = vunpack.c.l.b16 %v3312
          %v4045 = vunpack.c.h.b16 %v3312
          %v4046 = vunpack.c.l.b16 %v3313
          %v4047 = vunpack.c.h.b16 %v3313
          %v4048 = vunpack.c.l.b16 %v3314
          %v4049 = vunpack.c.h.b16 %v3314
          %v4050 = vunpack.c.l.b16 %v3315
          %v4051 = vunpack.c.h.b16 %v3315
          %v4052 = vunpack.c.l.b16 %v3316
          %v4053 = vunpack.c.h.b16 %v3316
          %v4054 = vunpack.c.l.b16 %v3317
          %v4055 = vunpack.c.h.b16 %v3317
          %v4056 = vunpack.c.l.b16 %v3318
          %v4057 = vunpack.c.h.b16 %v3318
          %v4058 = vunpack.c.l.b16 %v3319
          %v4059 = vunpack.c.h.b16 %v3319
          %v4060 = vunpack.c.l.b16 %v3320
          %v4061 = vunpack.c.h.b16 %v3320
          %v4062 = vunpack.c.l.b16 %v3321
          %v4063 = vunpack.c.h.b16 %v3321
          %v4064 = vunpack.c.l.b16 %v3322
          %v4065 = vunpack.c.h.b16 %v3322
          %v4066 = vunpack.c.l.b16 %v3323
          %v4067 = vunpack.c.h.b16 %v3323
          %v4068 = vunpack.c.l.b16 %v3324
          %v4069 = vunpack.c.h.b16 %v3324
          %v4070 = vunpack.c.l.b16 %v3325
          %v4071 = vunpack.c.h.b16 %v3325
          %v4072 = vunpack.c.l.b16 %v3326
          %v4073 = vunpack.c.h.b16 %v3326
          %v4074 = vunpack.c.l.b16 %v3327
          %v4075 = vunpack.c.h.b16 %v3327
          %v4076 = vunpack.c.l.b16 %v3328
          %v4077 = vunpack.c.h.b16 %v3328
          %v4078 = vunpack.c.l.b16 %v3329
          %v4079 = vunpack.c.h.b16 %v3329
          %v4080 = vunpack.c.l.b16 %v3330
          %v4081 = vunpack.c.h.b16 %v3330
          %v4082 = vunpack.c.l.b16 %v3331
          %v4083 = vunpack.c.h.b16 %v3331
          %v4084 = vunpack.c.l.b16 %v3332
          %v4085 = vunpack.c.h.b16 %v3332
          %v4086 = vunpack.c.l.b16 %v3333
          %v4087 = vunpack.c.h.b16 %v3333
          %v4088 = vunpack.c.l.b16 %v3334
          %v4089 = vunpack.c.h.b16 %v3334
          %v4090 = vunpack.c.l.b16 %v3335
          %v4091 = vunpack.c.h.b16 %v3335
          %v4092 = vunpack.c.l.b16 %v3336
          %v4093 = vunpack.c.h.b16 %v3336
          %v4094 = vunpack.c.l.b16 %v3337
          %v4095 = vunpack.c.h.b16 %v3337
          %v4096 = vunpack.c.l.b16 %v3338
          %v4097 = vunpack.c.h.b16 %v3338
          %v4098 = vunpack.c.l.b16 %v3339
          %v4099 = vunpack.c.h.b16 %v3339
          %v4100 = vunpack.c.l.b16 %v3340
          %v4101 = vunpack.c.h.b16 %v3340
          %v4102 = vunpack.c.l.b16 %v3341
          %v4103 = vunpack.c.h.b16 %v3341
          %v4104 = vunpack.c.l.b16 %v3342
          %v4105 = vunpack.c.h.b16 %v3342
          %v4106 = vunpack.c.l.b16 %v3343
          %v4107 = vunpack.c.h.b16 %v3343
          %v4108 = vunpack.c.l.b16 %v3344
          %v4109 = vunpack.c.h.b16 %v3344
          %v4110 = vunpack.c.l.b16 %v3345
          %v4111 = vunpack.c.h.b16 %v3345
          %v4112 = vunpack.c.l.b16 %v3346
          %v4113 = vunpack.c.h.b16 %v3346
          %v4114 = vunpack.c.l.b16 %v3347
          %v4115 = vunpack.c.h.b16 %v3347
          %v4116 = vunpack.c.l.b16 %v3348
          %v4117 = vunpack.c.h.b16 %v3348
          %v4118 = vunpack.c.l.b16 %v3349
          %v4119 = vunpack.c.h.b16 %v3349
          %v4120 = vunpack.c.l.b16 %v3350
          %v4121 = vunpack.c.h.b16 %v3350
          %v4122 = vunpack.c.l.b16 %v3351
          %v4123 = vunpack.c.h.b16 %v3351
          %v4124 = vunpack.c.l.b16 %v3352
          %v4125 = vunpack.c.h.b16 %v3352
          %v4126 = vunpack.c.l.b16 %v3353
          %v4127 = vunpack.c.h.b16 %v3353
          %v4128 = vunpack.c.l.b16 %v3354
          %v4129 = vunpack.c.h.b16 %v3354
          %v4130 = vunpack.c.l.b16 %v3355
          %v4131 = vunpack.c.h.b16 %v3355
          %v4132 = vunpack.c.l.b16 %v3356
          %v4133 = vunpack.c.h.b16 %v3356
          %v4134 = vunpack.c.l.b16 %v3357
          %v4135 = vunpack.c.h.b16 %v3357
          %v4136 = vunpack.c.l.b16 %v3358
          %v4137 = vunpack.c.h.b16 %v3358
          %v4138 = vunpack.c.l.b16 %v3359
          %v4139 = vunpack.c.h.b16 %v3359
          %v4140 = vunpack.c.l.b16 %v3360
          %v4141 = vunpack.c.h.b16 %v3360
          %v4142 = vunpack.c.l.b16 %v3361
          %v4143 = vunpack.c.h.b16 %v3361
          %v4144 = vunpack.c.l.b16 %v3362
          %v4145 = vunpack.c.h.b16 %v3362
          %v4146 = vunpack.c.l.b16 %v3363
          %v4147 = vunpack.c.h.b16 %v3363
          %v4148 = vunpack.c.l.b16 %v3364
          %v4149 = vunpack.c.h.b16 %v3364
          %v4150 = vunpack.c.l.b16 %v3365
          %v4151 = vunpack.c.h.b16 %v3365
          %v4152 = vunpack.c.l.b16 %v3366
          %v4153 = vunpack.c.h.b16 %v3366
          %v4154 = vunpack.c.l.b16 %v3367
          %v4155 = vunpack.c.h.b16 %v3367
          %v4156 = vunpack.c.l.b16 %v3368
          %v4157 = vunpack.c.h.b16 %v3368
          %v4158 = vunpack.c.l.b16 %v3369
          %v4159 = vunpack.c.h.b16 %v3369
          %v4160 = vunpack.c.l.b16 %v3370
          %v4161 = vunpack.c.h.b16 %v3370
          %v4162 = vunpack.c.l.b16 %v3371
          %v4163 = vunpack.c.h.b16 %v3371
          %v4164 = vunpack.c.l.b16 %v3372
          %v4165 = vunpack.c.h.b16 %v3372
          %v4166 = vunpack.c.l.b16 %v3373
          %v4167 = vunpack.c.h.b16 %v3373
          %v4168 = vunpack.c.l.b16 %v3374
          %v4169 = vunpack.c.h.b16 %v3374
          %v4170 = vunpack.c.l.b16 %v3375
          %v4171 = vunpack.c.h.b16 %v3375
          %v4172 = vunpack.c.l.b16 %v3376
          %v4173 = vunpack.c.h.b16 %v3376
          %v4174 = vunpack.c.l.b16 %v3377
          %v4175 = vunpack.c.h.b16 %v3377
          %v4176 = vunpack.c.l.b16 %v3378
          %v4177 = vunpack.c.h.b16 %v3378
          %v4178 = vunpack.c.l.b16 %v3379
          %v4179 = vunpack.c.h.b16 %v3379
          %v4180 = vunpack.c.l.b16 %v3380
          %v4181 = vunpack.c.h.b16 %v3380
          %v4182 = vunpack.c.l.b16 %v3381
          %v4183 = vunpack.c.h.b16 %v3381
          %v4184 = vunpack.c.l.b16 %v3382
          %v4185 = vunpack.c.h.b16 %v3382
          %v4186 = vunpack.c.l.b16 %v3383
          %v4187 = vunpack.c.h.b16 %v3383
          %v4188 = vunpack.c.l.b16 %v3384
          %v4189 = vunpack.c.h.b16 %v3384
          %v4190 = vunpack.c.l.b16 %v3385
          %v4191 = vunpack.c.h.b16 %v3385
          %v4192 = vunpack.c.l.b16 %v3386
          %v4193 = vunpack.c.h.b16 %v3386
          %v4194 = vunpack.c.l.b16 %v3387
          %v4195 = vunpack.c.h.b16 %v3387
          %v4196 = vunpack.c.l.b16 %v3388
          %v4197 = vunpack.c.h.b16 %v3388
          %v4198 = vunpack.c.l.b16 %v3389
          %v4199 = vunpack.c.h.b16 %v3389
          %v4200 = vunpack.c.l.b16 %v3390
          %v4201 = vunpack.c.h.b16 %v3390
          %v4202 = vunpack.c.l.b16 %v3391
          %v4203 = vunpack.c.h.b16 %v3391
          %v4204 = vunpack.c.l.b16 %v3392
          %v4205 = vunpack.c.h.b16 %v3392
          %v4206 = vunpack.c.l.b16 %v3393
          %v4207 = vunpack.c.h.b16 %v3393
          %v4208 = vunpack.c.l.b16 %v3394
          %v4209 = vunpack.c.h.b16 %v3394
          %v4210 = vunpack.c.l.b16 %v3395
          %v4211 = vunpack.c.h.b16 %v3395
          %v4212 = vunpack.c.l.b16 %v3396
          %v4213 = vunpack.c.h.b16 %v3396
          %v4214 = vunpack.c.l.b16 %v3397
          %v4215 = vunpack.c.h.b16 %v3397
          %v4216 = vpack.c.b16 %v3708, %v3704
          %v4217 = vpack.c.b16 %v3709, %v3705
          %v4218 = vpack.c.b16 %v3710, %v3706
          %v4219 = vpack.c.b16 %v3711, %v3707
          %v4220 = vpack.c.b16 %v3716, %v3712
          %v4221 = vpack.c.b16 %v3717, %v3713
          %v4222 = vpack.c.b16 %v3718, %v3714
          %v4223 = vpack.c.b16 %v3719, %v3715
          %v4224 = vpack.c.b16 %v3724, %v3720
          %v4225 = vpack.c.b16 %v3725, %v3721
          %v4226 = vpack.c.b16 %v3726, %v3722
          %v4227 = vpack.c.b16 %v3727, %v3723
          %v4228 = vpack.c.b16 %v3732, %v3728
          %v4229 = vpack.c.b16 %v3733, %v3729
          %v4230 = vpack.c.b16 %v3734, %v3730
          %v4231 = vpack.c.b16 %v3735, %v3731
          %v4232 = vpack.c.b16 %v3740, %v3736
          %v4233 = vpack.c.b16 %v3741, %v3737
          %v4234 = vpack.c.b16 %v3742, %v3738
          %v4235 = vpack.c.b16 %v3743, %v3739
          %v4236 = vpack.c.b16 %v3748, %v3744
          %v4237 = vpack.c.b16 %v3749, %v3745
          %v4238 = vpack.c.b16 %v3750, %v3746
          %v4239 = vpack.c.b16 %v3751, %v3747
          %v4240 = vpack.c.b16 %v3756, %v3752
          %v4241 = vpack.c.b16 %v3757, %v3753
          %v4242 = vpack.c.b16 %v3758, %v3754
          %v4243 = vpack.c.b16 %v3759, %v3755
          %v4244 = vpack.c.b16 %v3764, %v3760
          %v4245 = vpack.c.b16 %v3765, %v3761
          %v4246 = vpack.c.b16 %v3766, %v3762
          %v4247 = vpack.c.b16 %v3767, %v3763
          %v4248 = vpack.c.b16 %v3772, %v3768
          %v4249 = vpack.c.b16 %v3773, %v3769
          %v4250 = vpack.c.b16 %v3774, %v3770
          %v4251 = vpack.c.b16 %v3775, %v3771
          %v4252 = vpack.c.b16 %v3780, %v3776
          %v4253 = vpack.c.b16 %v3781, %v3777
          %v4254 = vpack.c.b16 %v3782, %v3778
          %v4255 = vpack.c.b16 %v3783, %v3779
          %v4256 = vpack.c.b16 %v3788, %v3784
          %v4257 = vpack.c.b16 %v3789, %v3785
          %v4258 = vpack.c.b16 %v3790, %v3786
          %v4259 = vpack.c.b16 %v3791, %v3787
          %v4260 = vpack.c.b16 %v3796, %v3792
          %v4261 = vpack.c.b16 %v3797, %v3793
          %v4262 = vpack.c.b16 %v3798, %v3794
          %v4263 = vpack.c.b16 %v3799, %v3795
          %v4264 = vpack.c.b16 %v3804, %v3800
          %v4265 = vpack.c.b16 %v3805, %v3801
          %v4266 = vpack.c.b16 %v3806, %v3802
          %v4267 = vpack.c.b16 %v3807, %v3803
          %v4268 = vpack.c.b16 %v3812, %v3808
          %v4269 = vpack.c.b16 %v3813, %v3809
          %v4270 = vpack.c.b16 %v3814, %v3810
          %v4271 = vpack.c.b16 %v3815, %v3811
          %v4272 = vpack.c.b16 %v3820, %v3816
          %v4273 = vpack.c.b16 %v3821, %v3817
          %v4274 = vpack.c.b16 %v3822, %v3818
          %v4275 = vpack.c.b16 %v3823, %v3819
          %v4276 = vpack.c.b16 %v3828, %v3824
          %v4277 = vpack.c.b16 %v3829, %v3825
          %v4278 = vpack.c.b16 %v3830, %v3826
          %v4279 = vpack.c.b16 %v3831, %v3827
          %v4280 = vpack.c.b16 %v3836, %v3832
          %v4281 = vpack.c.b16 %v3837, %v3833
          %v4282 = vpack.c.b16 %v3838, %v3834
          %v4283 = vpack.c.b16 %v3839, %v3835
          %v4284 = vpack.c.b16 %v3844, %v3840
          %v4285 = vpack.c.b16 %v3845, %v3841
          %v4286 = vpack.c.b16 %v3846, %v3842
          %v4287 = vpack.c.b16 %v3847, %v3843
          %v4288 = vpack.c.b16 %v3852, %v3848
          %v4289 = vpack.c.b16 %v3853, %v3849
          %v4290 = vpack.c.b16 %v3854, %v3850
          %v4291 = vpack.c.b16 %v3855, %v3851
          %v4292 = vpack.c.b16 %v3860, %v3856
          %v4293 = vpack.c.b16 %v3861, %v3857
          %v4294 = vpack.c.b16 %v3862, %v3858
          %v4295 = vpack.c.b16 %v3863, %v3859
          %v4296 = vpack.c.b16 %v3868, %v3864
          %v4297 = vpack.c.b16 %v3869, %v3865
          %v4298 = vpack.c.b16 %v3870, %v3866
          %v4299 = vpack.c.b16 %v3871, %v3867
          %v4300 = vpack.c.b16 %v3876, %v3872
          %v4301 = vpack.c.b16 %v3877, %v3873
          %v4302 = vpack.c.b16 %v3878, %v3874
          %v4303 = vpack.c.b16 %v3879, %v3875
          %v4304 = vpack.c.b16 %v3884, %v3880
          %v4305 = vpack.c.b16 %v3885, %v3881
          %v4306 = vpack.c.b16 %v3886, %v3882
          %v4307 = vpack.c.b16 %v3887, %v3883
          %v4308 = vpack.c.b16 %v3892, %v3888
          %v4309 = vpack.c.b16 %v3893, %v3889
          %v4310 = vpack.c.b16 %v3894, %v3890
          %v4311 = vpack.c.b16 %v3895, %v3891
          %v4312 = vpack.c.b16 %v3900, %v3896
          %v4313 = vpack.c.b16 %v3901, %v3897
          %v4314 = vpack.c.b16 %v3902, %v3898
          %v4315 = vpack.c.b16 %v3903, %v3899
          %v4316 = vpack.c.b16 %v3908, %v3904
          %v4317 = vpack.c.b16 %v3909, %v3905
          %v4318 = vpack.c.b16 %v3910, %v3906
          %v4319 = vpack.c.b16 %v3911, %v3907
          %v4320 = vpack.c.b16 %v3916, %v3912
          %v4321 = vpack.c.b16 %v3917, %v3913
          %v4322 = vpack.c.b16 %v3918, %v3914
          %v4323 = vpack.c.b16 %v3919, %v3915
          %v4324 = vpack.c.b16 %v3924, %v3920
          %v4325 = vpack.c.b16 %v3925, %v3921
          %v4326 = vpack.c.b16 %v3926, %v3922
          %v4327 = vpack.c.b16 %v3927, %v3923
          %v4328 = vpack.c.b16 %v3932, %v3928
          %v4329 = vpack.c.b16 %v3933, %v3929
          %v4330 = vpack.c.b16 %v3934, %v3930
          %v4331 = vpack.c.b16 %v3935, %v3931
          %v4332 = vpack.c.b16 %v3940, %v3936
          %v4333 = vpack.c.b16 %v3941, %v3937
          %v4334 = vpack.c.b16 %v3942, %v3938
          %v4335 = vpack.c.b16 %v3943, %v3939
          %v4336 = vpack.c.b16 %v3948, %v3944
          %v4337 = vpack.c.b16 %v3949, %v3945
          %v4338 = vpack.c.b16 %v3950, %v3946
          %v4339 = vpack.c.b16 %v3951, %v3947
          %v4340 = vpack.c.b16 %v3956, %v3952
          %v4341 = vpack.c.b16 %v3957, %v3953
          %v4342 = vpack.c.b16 %v3958, %v3954
          %v4343 = vpack.c.b16 %v3959, %v3955
          %v4344 = vpack.c.b16 %v3964, %v3960
          %v4345 = vpack.c.b16 %v3965, %v3961
          %v4346 = vpack.c.b16 %v3966, %v3962
          %v4347 = vpack.c.b16 %v3967, %v3963
          %v4348 = vpack.c.b16 %v3972, %v3968
          %v4349 = vpack.c.b16 %v3973, %v3969
          %v4350 = vpack.c.b16 %v3974, %v3970
          %v4351 = vpack.c.b16 %v3975, %v3971
          %v4352 = vpack.c.b16 %v3980, %v3976
          %v4353 = vpack.c.b16 %v3981, %v3977
          %v4354 = vpack.c.b16 %v3982, %v3978
          %v4355 = vpack.c.b16 %v3983, %v3979
          %v4356 = vpack.c.b16 %v3988, %v3984
          %v4357 = vpack.c.b16 %v3989, %v3985
          %v4358 = vpack.c.b16 %v3990, %v3986
          %v4359 = vpack.c.b16 %v3991, %v3987
          %v4360 = vpack.c.b16 %v3996, %v3992
          %v4361 = vpack.c.b16 %v3997, %v3993
          %v4362 = vpack.c.b16 %v3998, %v3994
          %v4363 = vpack.c.b16 %v3999, %v3995
          %v4364 = vpack.c.b16 %v4004, %v4000
          %v4365 = vpack.c.b16 %v4005, %v4001
          %v4366 = vpack.c.b16 %v4006, %v4002
          %v4367 = vpack.c.b16 %v4007, %v4003
          %v4368 = vpack.c.b16 %v4012, %v4008
          %v4369 = vpack.c.b16 %v4013, %v4009
          %v4370 = vpack.c.b16 %v4014, %v4010
          %v4371 = vpack.c.b16 %v4015, %v4011
          %v4372 = vpack.c.b16 %v4020, %v4016
          %v4373 = vpack.c.b16 %v4021, %v4017
          %v4374 = vpack.c.b16 %v4022, %v4018
          %v4375 = vpack.c.b16 %v4023, %v4019
          %v4376 = vpack.c.b16 %v4028, %v4024
          %v4377 = vpack.c.b16 %v4029, %v4025
          %v4378 = vpack.c.b16 %v4030, %v4026
          %v4379 = vpack.c.b16 %v4031, %v4027
          %v4380 = vpack.c.b16 %v4036, %v4032
          %v4381 = vpack.c.b16 %v4037, %v4033
          %v4382 = vpack.c.b16 %v4038, %v4034
          %v4383 = vpack.c.b16 %v4039, %v4035
          %v4384 = vpack.c.b16 %v4044, %v4040
          %v4385 = vpack.c.b16 %v4045, %v4041
          %v4386 = vpack.c.b16 %v4046, %v4042
          %v4387 = vpack.c.b16 %v4047, %v4043
          %v4388 = vpack.c.b16 %v4052, %v4048
          %v4389 = vpack.c.b16 %v4053, %v4049
          %v4390 = vpack.c.b16 %v4054, %v4050
          %v4391 = vpack.c.b16 %v4055, %v4051
          %v4392 = vpack.c.b16 %v4060, %v4056
          %v4393 = vpack.c.b16 %v4061, %v4057
          %v4394 = vpack.c.b16 %v4062, %v4058
          %v4395 = vpack.c.b16 %v4063, %v4059
          %v4396 = vpack.c.b16 %v4068, %v4064
          %v4397 = vpack.c.b16 %v4069, %v4065
          %v4398 = vpack.c.b16 %v4070, %v4066
          %v4399 = vpack.c.b16 %v4071, %v4067
          %v4400 = vpack.c.b16 %v4076, %v4072
          %v4401 = vpack.c.b16 %v4077, %v4073
          %v4402 = vpack.c.b16 %v4078, %v4074
          %v4403 = vpack.c.b16 %v4079, %v4075
          %v4404 = vpack.c.b16 %v4084, %v4080
          %v4405 = vpack.c.b16 %v4085, %v4081
          %v4406 = vpack.c.b16 %v4086, %v4082
          %v4407 = vpack.c.b16 %v4087, %v4083
          %v4408 = vpack.c.b16 %v4092, %v4088
          %v4409 = vpack.c.b16 %v4093, %v4089
          %v4410 = vpack.c.b16 %v4094, %v4090
          %v4411 = vpack.c.b16 %v4095, %v4091
          %v4412 = vpack.c.b16 %v4100, %v4096
          %v4413 = vpack.c.b16 %v4101, %v4097
          %v4414 = vpack.c.b16 %v4102, %v4098
          %v4415 = vpack.c.b16 %v4103, %v4099
          %v4416 = vpack.c.b16 %v4108, %v4104
          %v4417 = vpack.c.b16 %v4109, %v4105
          %v4418 = vpack.c.b16 %v4110, %v4106
          %v4419 = vpack.c.b16 %v4111, %v4107
          %v4420 = vpack.c.b16 %v4116, %v4112
          %v4421 = vpack.c.b16 %v4117, %v4113
          %v4422 = vpack.c.b16 %v4118, %v4114
          %v4423 = vpack.c.b16 %v4119, %v4115
          %v4424 = vpack.c.b16 %v4124, %v4120
          %v4425 = vpack.c.b16 %v4125, %v4121
          %v4426 = vpack.c.b16 %v4126, %v4122
          %v4427 = vpack.c.b16 %v4127, %v4123
          %v4428 = vpack.c.b16 %v4132, %v4128
          %v4429 = vpack.c.b16 %v4133, %v4129
          %v4430 = vpack.c.b16 %v4134, %v4130
          %v4431 = vpack.c.b16 %v4135, %v4131
          %v4432 = vpack.c.b16 %v4140, %v4136
          %v4433 = vpack.c.b16 %v4141, %v4137
          %v4434 = vpack.c.b16 %v4142, %v4138
          %v4435 = vpack.c.b16 %v4143, %v4139
          %v4436 = vpack.c.b16 %v4148, %v4144
          %v4437 = vpack.c.b16 %v4149, %v4145
          %v4438 = vpack.c.b16 %v4150, %v4146
          %v4439 = vpack.c.b16 %v4151, %v4147
          %v4440 = vpack.c.b16 %v4156, %v4152
          %v4441 = vpack.c.b16 %v4157, %v4153
          %v4442 = vpack.c.b16 %v4158, %v4154
          %v4443 = vpack.c.b16 %v4159, %v4155
          %v4444 = vpack.c.b16 %v4164, %v4160
          %v4445 = vpack.c.b16 %v4165, %v4161
          %v4446 = vpack.c.b16 %v4166, %v4162
          %v4447 = vpack.c.b16 %v4167, %v4163
          %v4448 = vpack.c.b16 %v4172, %v4168
          %v4449 = vpack.c.b16 %v4173, %v4169
          %v4450 = vpack.c.b16 %v4174, %v4170
          %v4451 = vpack.c.b16 %v4175, %v4171
          %v4452 = vpack.c.b16 %v4180, %v4176
          %v4453 = vpack.c.b16 %v4181, %v4177
          %v4454 = vpack.c.b16 %v4182, %v4178
          %v4455 = vpack.c.b16 %v4183, %v4179
          %v4456 = vpack.c.b16 %v4188, %v4184
          %v4457 = vpack.c.b16 %v4189, %v4185
          %v4458 = vpack.c.b16 %v4190, %v4186
          %v4459 = vpack.c.b16 %v4191, %v4187
          %v4460 = vpack.c.b16 %v4196, %v4192
          %v4461 = vpack.c.b16 %v4197, %v4193
          %v4462 = vpack.c.b16 %v4198, %v4194
          %v4463 = vpack.c.b16 %v4199, %v4195
          %v4464 = vpack.c.b16 %v4204, %v4200
          %v4465 = vpack.c.b16 %v4205, %v4201
          %v4466 = vpack.c.b16 %v4206, %v4202
          %v4467 = vpack.c.b16 %v4207, %v4203
          %v4468 = vpack.c.b16 %v4212, %v4208
          %v4469 = vpack.c.b16 %v4213, %v4209
          %v4470 = vpack.c.b16 %v4214, %v4210
          %v4471 = vpack.c.b16 %v4215, %v4211
          %4728 = vmatprep.subr.bf16.mxu0 %v4217
          %4729 = vmatpush1.bf16.msra.mxu0 %v4216
          %4730 = vmatprep.subr.bf16.mxu0 %v4221
          %4731 = vmatpush1.bf16.msra.mxu0 %v4220
          %4732 = vmatprep.subr.bf16.mxu0 %v4225
          %4733 = vmatpush1.bf16.msra.mxu0 %v4224
          %4734 = vmatprep.subr.bf16.mxu0 %v4229
          %4735 = vmatpush1.bf16.msra.mxu0 %v4228
          %4736 = vmatprep.subr.bf16.mxu0 %v4233
          %4737 = vmatpush1.bf16.msra.mxu0 %v4232
          %4738 = vmatprep.subr.bf16.mxu0 %v4237
          %4739 = vmatpush1.bf16.msra.mxu0 %v4236
          %4740 = vmatprep.subr.bf16.mxu0 %v4241
          %4741 = vmatpush1.bf16.msra.mxu0 %v4240
          %4742 = vmatprep.subr.bf16.mxu0 %v4245
          %4743 = vmatpush1.bf16.msra.mxu0 %v4244
          %4744 = vmatprep.subr.bf16.mxu0 %v4249
          %4745 = vmatpush1.bf16.msra.mxu0 %v4248
          %4746 = vmatprep.subr.bf16.mxu0 %v4253
          %4747 = vmatpush1.bf16.msra.mxu0 %v4252
          %4748 = vmatprep.subr.bf16.mxu0 %v4257
          %4749 = vmatpush1.bf16.msra.mxu0 %v4256
          %4750 = vmatprep.subr.bf16.mxu0 %v4261
          %4751 = vmatpush1.bf16.msra.mxu0 %v4260
          %4752 = vmatprep.subr.bf16.mxu0 %v4265
          %4753 = vmatpush1.bf16.msra.mxu0 %v4264
          %4754 = vmatprep.subr.bf16.mxu0 %v4269
          %4755 = vmatpush1.bf16.msra.mxu0 %v4268
          %4756 = vmatprep.subr.bf16.mxu0 %v4273
          %4757 = vmatpush1.bf16.msra.mxu0 %v4272
          %4758 = vmatprep.subr.bf16.mxu0 %v4277
          %4759 = vmatpush1.bf16.msra.mxu0 %v4276
          %4760 = vmatprep.mubr.bf16.mxu0 %v3433
          %4761 = vmatmul.mubr.bf16.gmra.mrb[0].mxu0 %v3432
          %v4762 = vpop.f32.mrb[0].mxu0
          %v4763 = vadd.f32 %v3403, %v4762
          %v4764 = vpop.f32.mrb[0].mxu0
          %v4765 = vadd.f32 %v3407, %v4764
          %v4766 = vpop.f32.mrb[0].mxu0
          %v4767 = vpop.f32.mrb[0].mxu0
          %4768 = vdwg.mxu0
          %4769 = vmatprep.subr.bf16.mxu0 %v4281
          %4770 = vmatpush1.bf16.msra.mxu0 %v4280
          %4771 = vmatprep.subr.bf16.mxu0 %v4285
          %4772 = vmatpush1.bf16.msra.mxu0 %v4284
          %4773 = vmatprep.subr.bf16.mxu0 %v4289
          %4774 = vmatpush1.bf16.msra.mxu0 %v4288
          %4775 = vmatprep.subr.bf16.mxu0 %v4293
          %4776 = vmatpush1.bf16.msra.mxu0 %v4292
          %4777 = vmatprep.subr.bf16.mxu0 %v4297
          %4778 = vmatpush1.bf16.msra.mxu0 %v4296
          %4779 = vmatprep.subr.bf16.mxu0 %v4301
          %4780 = vmatpush1.bf16.msra.mxu0 %v4300
          %4781 = vmatprep.subr.bf16.mxu0 %v4305
          %4782 = vmatpush1.bf16.msra.mxu0 %v4304
          %4783 = vmatprep.subr.bf16.mxu0 %v4309
          %4784 = vmatpush1.bf16.msra.mxu0 %v4308
          %4785 = vmatprep.subr.bf16.mxu0 %v4313
          %4786 = vmatpush1.bf16.msra.mxu0 %v4312
          %4787 = vmatprep.subr.bf16.mxu0 %v4317
          %4788 = vmatpush1.bf16.msra.mxu0 %v4316
          %4789 = vmatprep.subr.bf16.mxu0 %v4321
          %4790 = vmatpush1.bf16.msra.mxu0 %v4320
          %4791 = vmatprep.subr.bf16.mxu0 %v4325
          %4792 = vmatpush1.bf16.msra.mxu0 %v4324
          %4793 = vmatprep.subr.bf16.mxu0 %v4329
          %4794 = vmatpush1.bf16.msra.mxu0 %v4328
          %4795 = vmatprep.subr.bf16.mxu0 %v4333
          %4796 = vmatpush1.bf16.msra.mxu0 %v4332
          %4797 = vmatprep.subr.bf16.mxu0 %v4337
          %4798 = vmatpush1.bf16.msra.mxu0 %v4336
          %4799 = vmatprep.subr.bf16.mxu0 %v4341
          %4800 = vmatpush1.bf16.msra.mxu0 %v4340
          %4801 = vmatprep.mubr.bf16.mxu0 %v3435
          %4802 = vmatmul.mubr.bf16.gmra.mrb[0].mxu0 %v3434
          %v4803 = vpop.f32.mrb[0].mxu0
          %v4804 = vadd.f32 %v4763, %v4803
          %v4805 = vpop.f32.mrb[0].mxu0
          %v4806 = vadd.f32 %v4765, %v4805
          %v4807 = vpop.f32.mrb[0].mxu0
          %v4808 = vpop.f32.mrb[0].mxu0
          %4809 = vdwg.mxu0
          %4810 = vmatprep.subr.bf16.mxu0 %v4345
          %4811 = vmatpush1.bf16.msra.mxu0 %v4344
          %4812 = vmatprep.subr.bf16.mxu0 %v4349
          %4813 = vmatpush1.bf16.msra.mxu0 %v4348
          %4814 = vmatprep.subr.bf16.mxu0 %v4353
          %4815 = vmatpush1.bf16.msra.mxu0 %v4352
          %4816 = vmatprep.subr.bf16.mxu0 %v4357
          %4817 = vmatpush1.bf16.msra.mxu0 %v4356
          %4818 = vmatprep.subr.bf16.mxu0 %v4361
          %4819 = vmatpush1.bf16.msra.mxu0 %v4360
          %4820 = vmatprep.subr.bf16.mxu0 %v4365
          %4821 = vmatpush1.bf16.msra.mxu0 %v4364
          %4822 = vmatprep.subr.bf16.mxu0 %v4369
          %4823 = vmatpush1.bf16.msra.mxu0 %v4368
          %4824 = vmatprep.subr.bf16.mxu0 %v4373
          %4825 = vmatpush1.bf16.msra.mxu0 %v4372
          %4826 = vmatprep.subr.bf16.mxu0 %v4377
          %4827 = vmatpush1.bf16.msra.mxu0 %v4376
          %4828 = vmatprep.subr.bf16.mxu0 %v4381
          %4829 = vmatpush1.bf16.msra.mxu0 %v4380
          %4830 = vmatprep.subr.bf16.mxu0 %v4385
          %4831 = vmatpush1.bf16.msra.mxu0 %v4384
          %4832 = vmatprep.subr.bf16.mxu0 %v4389
          %4833 = vmatpush1.bf16.msra.mxu0 %v4388
          %4834 = vmatprep.subr.bf16.mxu0 %v4393
          %4835 = vmatpush1.bf16.msra.mxu0 %v4392
          %4836 = vmatprep.subr.bf16.mxu0 %v4397
          %4837 = vmatpush1.bf16.msra.mxu0 %v4396
          %4838 = vmatprep.subr.bf16.mxu0 %v4401
          %4839 = vmatpush1.bf16.msra.mxu0 %v4400
          %4840 = vmatprep.subr.bf16.mxu0 %v4405
          %4841 = vmatpush1.bf16.msra.mxu0 %v4404
          %4842 = vmatprep.mubr.bf16.mxu0 %v3437
          %4843 = vmatmul.mubr.bf16.gmra.mrb[0].mxu0 %v3436
          %v4844 = vpop.f32.mrb[0].mxu0
          %v4845 = vadd.f32 %v4804, %v4844
          %v4846 = vpop.f32.mrb[0].mxu0
          %v4847 = vadd.f32 %v4806, %v4846
          %v4848 = vpop.f32.mrb[0].mxu0
          %v4849 = vpop.f32.mrb[0].mxu0
          %4850 = vdwg.mxu0
          %4851 = vmatprep.subr.bf16.mxu0 %v4409
          %4852 = vmatpush1.bf16.msra.mxu0 %v4408
          %4853 = vmatprep.subr.bf16.mxu0 %v4413
          %4854 = vmatpush1.bf16.msra.mxu0 %v4412
          %4855 = vmatprep.subr.bf16.mxu0 %v4417
          %4856 = vmatpush1.bf16.msra.mxu0 %v4416
          %4857 = vmatprep.subr.bf16.mxu0 %v4421
          %4858 = vmatpush1.bf16.msra.mxu0 %v4420
          %4859 = vmatprep.subr.bf16.mxu0 %v4425
          %4860 = vmatpush1.bf16.msra.mxu0 %v4424
          %4861 = vmatprep.subr.bf16.mxu0 %v4429
          %4862 = vmatpush1.bf16.msra.mxu0 %v4428
          %4863 = vmatprep.subr.bf16.mxu0 %v4433
          %4864 = vmatpush1.bf16.msra.mxu0 %v4432
          %4865 = vmatprep.subr.bf16.mxu0 %v4437
          %4866 = vmatpush1.bf16.msra.mxu0 %v4436
          %4867 = vmatprep.subr.bf16.mxu0 %v4441
          %4868 = vmatpush1.bf16.msra.mxu0 %v4440
          %4869 = vmatprep.subr.bf16.mxu0 %v4445
          %4870 = vmatpush1.bf16.msra.mxu0 %v4444
          %4871 = vmatprep.subr.bf16.mxu0 %v4449
          %4872 = vmatpush1.bf16.msra.mxu0 %v4448
          %4873 = vmatprep.subr.bf16.mxu0 %v4453
          %4874 = vmatpush1.bf16.msra.mxu0 %v4452
          %4875 = vmatprep.subr.bf16.mxu0 %v4457
          %4876 = vmatpush1.bf16.msra.mxu0 %v4456
          %4877 = vmatprep.subr.bf16.mxu0 %v4461
          %4878 = vmatpush1.bf16.msra.mxu0 %v4460
          %4879 = vmatprep.subr.bf16.mxu0 %v4465
          %4880 = vmatpush1.bf16.msra.mxu0 %v4464
          %4881 = vmatprep.subr.bf16.mxu0 %v4469
          %4882 = vmatpush1.bf16.msra.mxu0 %v4468
          %4883 = vmatprep.mubr.bf16.mxu0 %v3439
          %4884 = vmatmul.mubr.bf16.gmra.mrb[0].mxu0 %v3438
          %v4885 = vpop.f32.mrb[0].mxu0
          %v4886 = vadd.f32 %v4845, %v4885
          %v4887 = vpop.f32.mrb[0].mxu0
          %v4888 = vadd.f32 %v4847, %v4887
          %v4889 = vpop.f32.mrb[0].mxu0
          %v4890 = vpop.f32.mrb[0].mxu0
          %4891 = vdwg.mxu0
          %4892 = vmatprep.subr.bf16.mxu0 %v4219
          %4893 = vmatpush1.bf16.msra.mxu0 %v4218
          %4894 = vmatprep.subr.bf16.mxu0 %v4223
          %4895 = vmatpush1.bf16.msra.mxu0 %v4222
          %4896 = vmatprep.subr.bf16.mxu0 %v4227
          %4897 = vmatpush1.bf16.msra.mxu0 %v4226
          %4898 = vmatprep.subr.bf16.mxu0 %v4231
          %4899 = vmatpush1.bf16.msra.mxu0 %v4230
          %4900 = vmatprep.subr.bf16.mxu0 %v4235
          %4901 = vmatpush1.bf16.msra.mxu0 %v4234
          %4902 = vmatprep.subr.bf16.mxu0 %v4239
          %4903 = vmatpush1.bf16.msra.mxu0 %v4238
          %4904 = vmatprep.subr.bf16.mxu0 %v4243
          %4905 = vmatpush1.bf16.msra.mxu0 %v4242
          %4906 = vmatprep.subr.bf16.mxu0 %v4247
          %4907 = vmatpush1.bf16.msra.mxu0 %v4246
          %4908 = vmatprep.subr.bf16.mxu0 %v4251
          %4909 = vmatpush1.bf16.msra.mxu0 %v4250
          %4910 = vmatprep.subr.bf16.mxu0 %v4255
          %4911 = vmatpush1.bf16.msra.mxu0 %v4254
          %4912 = vmatprep.subr.bf16.mxu0 %v4259
          %4913 = vmatpush1.bf16.msra.mxu0 %v4258
          %4914 = vmatprep.subr.bf16.mxu0 %v4263
          %4915 = vmatpush1.bf16.msra.mxu0 %v4262
          %4916 = vmatprep.subr.bf16.mxu0 %v4267
          %4917 = vmatpush1.bf16.msra.mxu0 %v4266
          %4918 = vmatprep.subr.bf16.mxu0 %v4271
          %4919 = vmatpush1.bf16.msra.mxu0 %v4270
          %4920 = vmatprep.subr.bf16.mxu0 %v4275
          %4921 = vmatpush1.bf16.msra.mxu0 %v4274
          %4922 = vmatprep.subr.bf16.mxu0 %v4279
          %4923 = vmatpush1.bf16.msra.mxu0 %v4278
          %4924 = vmatprep.mubr.bf16.mxu0 %v3433
          %4925 = vmatmul.mubr.bf16.gmra.mrb[0].mxu0 %v3432
          %v4926 = vpop.f32.mrb[0].mxu0
          %v4927 = vadd.f32 %v3411, %v4926
          %v4928 = vpop.f32.mrb[0].mxu0
          %v4929 = vadd.f32 %v3415, %v4928
          %v4930 = vpop.f32.mrb[0].mxu0
          %v4931 = vpop.f32.mrb[0].mxu0
          %4932 = vdwg.mxu0
          %4933 = vmatprep.subr.bf16.mxu0 %v4283
          %4934 = vmatpush1.bf16.msra.mxu0 %v4282
          %4935 = vmatprep.subr.bf16.mxu0 %v4287
          %4936 = vmatpush1.bf16.msra.mxu0 %v4286
          %4937 = vmatprep.subr.bf16.mxu0 %v4291
          %4938 = vmatpush1.bf16.msra.mxu0 %v4290
          %4939 = vmatprep.subr.bf16.mxu0 %v4295
          %4940 = vmatpush1.bf16.msra.mxu0 %v4294
          %4941 = vmatprep.subr.bf16.mxu0 %v4299
          %4942 = vmatpush1.bf16.msra.mxu0 %v4298
          %4943 = vmatprep.subr.bf16.mxu0 %v4303
          %4944 = vmatpush1.bf16.msra.mxu0 %v4302
          %4945 = vmatprep.subr.bf16.mxu0 %v4307
          %4946 = vmatpush1.bf16.msra.mxu0 %v4306
          %4947 = vmatprep.subr.bf16.mxu0 %v4311
          %4948 = vmatpush1.bf16.msra.mxu0 %v4310
          %4949 = vmatprep.subr.bf16.mxu0 %v4315
          %4950 = vmatpush1.bf16.msra.mxu0 %v4314
          %4951 = vmatprep.subr.bf16.mxu0 %v4319
          %4952 = vmatpush1.bf16.msra.mxu0 %v4318
          %4953 = vmatprep.subr.bf16.mxu0 %v4323
          %4954 = vmatpush1.bf16.msra.mxu0 %v4322
          %4955 = vmatprep.subr.bf16.mxu0 %v4327
          %4956 = vmatpush1.bf16.msra.mxu0 %v4326
          %4957 = vmatprep.subr.bf16.mxu0 %v4331
          %4958 = vmatpush1.bf16.msra.mxu0 %v4330
          %4959 = vmatprep.subr.bf16.mxu0 %v4335
          %4960 = vmatpush1.bf16.msra.mxu0 %v4334
          %4961 = vmatprep.subr.bf16.mxu0 %v4339
          %4962 = vmatpush1.bf16.msra.mxu0 %v4338
          %4963 = vmatprep.subr.bf16.mxu0 %v4343
          %4964 = vmatpush1.bf16.msra.mxu0 %v4342
          %4965 = vmatprep.mubr.bf16.mxu0 %v3435
          %4966 = vmatmul.mubr.bf16.gmra.mrb[0].mxu0 %v3434
          %v4967 = vpop.f32.mrb[0].mxu0
          %v4968 = vadd.f32 %v4927, %v4967
          %v4969 = vpop.f32.mrb[0].mxu0
          %v4970 = vadd.f32 %v4929, %v4969
          %v4971 = vpop.f32.mrb[0].mxu0
          %v4972 = vpop.f32.mrb[0].mxu0
          %4973 = vdwg.mxu0
          %4974 = vmatprep.subr.bf16.mxu0 %v4347
          %4975 = vmatpush1.bf16.msra.mxu0 %v4346
          %4976 = vmatprep.subr.bf16.mxu0 %v4351
          %4977 = vmatpush1.bf16.msra.mxu0 %v4350
          %4978 = vmatprep.subr.bf16.mxu0 %v4355
          %4979 = vmatpush1.bf16.msra.mxu0 %v4354
          %4980 = vmatprep.subr.bf16.mxu0 %v4359
          %4981 = vmatpush1.bf16.msra.mxu0 %v4358
          %4982 = vmatprep.subr.bf16.mxu0 %v4363
          %4983 = vmatpush1.bf16.msra.mxu0 %v4362
          %4984 = vmatprep.subr.bf16.mxu0 %v4367
          %4985 = vmatpush1.bf16.msra.mxu0 %v4366
          %4986 = vmatprep.subr.bf16.mxu0 %v4371
          %4987 = vmatpush1.bf16.msra.mxu0 %v4370
          %4988 = vmatprep.subr.bf16.mxu0 %v4375
          %4989 = vmatpush1.bf16.msra.mxu0 %v4374
          %4990 = vmatprep.subr.bf16.mxu0 %v4379
          %4991 = vmatpush1.bf16.msra.mxu0 %v4378
          %4992 = vmatprep.subr.bf16.mxu0 %v4383
          %4993 = vmatpush1.bf16.msra.mxu0 %v4382
          %4994 = vmatprep.subr.bf16.mxu0 %v4387
          %4995 = vmatpush1.bf16.msra.mxu0 %v4386
          %4996 = vmatprep.subr.bf16.mxu0 %v4391
          %4997 = vmatpush1.bf16.msra.mxu0 %v4390
          %4998 = vmatprep.subr.bf16.mxu0 %v4395
          %4999 = vmatpush1.bf16.msra.mxu0 %v4394
          %5000 = vmatprep.subr.bf16.mxu0 %v4399
          %5001 = vmatpush1.bf16.msra.mxu0 %v4398
          %5002 = vmatprep.subr.bf16.mxu0 %v4403
          %5003 = vmatpush1.bf16.msra.mxu0 %v4402
          %5004 = vmatprep.subr.bf16.mxu0 %v4407
          %5005 = vmatpush1.bf16.msra.mxu0 %v4406
          %5006 = vmatprep.mubr.bf16.mxu0 %v3437
          %5007 = vmatmul.mubr.bf16.gmra.mrb[0].mxu0 %v3436
          %v5008 = vpop.f32.mrb[0].mxu0
          %v5009 = vadd.f32 %v4968, %v5008
          %v5010 = vpop.f32.mrb[0].mxu0
          %v5011 = vadd.f32 %v4970, %v5010
          %v5012 = vpop.f32.mrb[0].mxu0
          %v5013 = vpop.f32.mrb[0].mxu0
          %5014 = vdwg.mxu0
          %5015 = vmatprep.subr.bf16.mxu0 %v4411
          %5016 = vmatpush1.bf16.msra.mxu0 %v4410
          %5017 = vmatprep.subr.bf16.mxu0 %v4415
          %5018 = vmatpush1.bf16.msra.mxu0 %v4414
          %5019 = vmatprep.subr.bf16.mxu0 %v4419
          %5020 = vmatpush1.bf16.msra.mxu0 %v4418
          %5021 = vmatprep.subr.bf16.mxu0 %v4423
          %5022 = vmatpush1.bf16.msra.mxu0 %v4422
          %5023 = vmatprep.subr.bf16.mxu0 %v4427
          %5024 = vmatpush1.bf16.msra.mxu0 %v4426
          %5025 = vmatprep.subr.bf16.mxu0 %v4431
          %5026 = vmatpush1.bf16.msra.mxu0 %v4430
          %5027 = vmatprep.subr.bf16.mxu0 %v4435
          %5028 = vmatpush1.bf16.msra.mxu0 %v4434
          %5029 = vmatprep.subr.bf16.mxu0 %v4439
          %5030 = vmatpush1.bf16.msra.mxu0 %v4438
          %5031 = vmatprep.subr.bf16.mxu0 %v4443
          %5032 = vmatpush1.bf16.msra.mxu0 %v4442
          %5033 = vmatprep.subr.bf16.mxu0 %v4447
          %5034 = vmatpush1.bf16.msra.mxu0 %v4446
          %5035 = vmatprep.subr.bf16.mxu0 %v4451
          %5036 = vmatpush1.bf16.msra.mxu0 %v4450
          %5037 = vmatprep.subr.bf16.mxu0 %v4455
          %5038 = vmatpush1.bf16.msra.mxu0 %v4454
          %5039 = vmatprep.subr.bf16.mxu0 %v4459
          %5040 = vmatpush1.bf16.msra.mxu0 %v4458
          %5041 = vmatprep.subr.bf16.mxu0 %v4463
          %5042 = vmatpush1.bf16.msra.mxu0 %v4462
          %5043 = vmatprep.subr.bf16.mxu0 %v4467
          %5044 = vmatpush1.bf16.msra.mxu0 %v4466
          %5045 = vmatprep.subr.bf16.mxu0 %v4471
          %5046 = vmatpush1.bf16.msra.mxu0 %v4470
          %5047 = vmatprep.mubr.bf16.mxu0 %v3439
          %5048 = vmatmul.mubr.bf16.gmra.mrb[0].mxu0 %v3438
          %v5049 = vpop.f32.mrb[0].mxu0
          %v5050 = vadd.f32 %v5009, %v5049
          %v5051 = vpop.f32.mrb[0].mxu0
          %v5052 = vadd.f32 %v5011, %v5051
          %v5053 = vpop.f32.mrb[0].mxu0
          %v5054 = vpop.f32.mrb[0].mxu0
          %5055 = vdwg.mxu0
          %v5056 = vmax.f32 %v4886, 0.0
          %v5057 = vmax.f32 %v4888, 0.0
          %v5058 = vmax.f32 %v5050, 0.0
          %v5059 = vmax.f32 %v5052, 0.0
          %v5060 = vpack.c.bf16 %v5056, %v5056
          %v5061 = vpack.c.bf16 %v5057, %v5057
          %v5062 = vpack.c.bf16 %v5058, %v5058
          %v5063 = vpack.c.bf16 %v5059, %v5059
          %v5064 = vld [vmem:[#allocation11] sm:$0xff]
          %v5065 = vld [vmem:[#allocation11 + $0x8] sm:$0xff]
          %v5066 = vld [vmem:[#allocation11 + $0x10] sm:$0xff]
          %v5067 = vld [vmem:[#allocation11 + $0x18] sm:$0xff]
          %v5068 = vld [vmem:[#allocation11 + $0x20] sm:$0xff]
          %v5069 = vld [vmem:[#allocation11 + $0x28] sm:$0xff]
          %v5070 = vld [vmem:[#allocation11 + $0x30] sm:$0xff]
          %v5071 = vld [vmem:[#allocation11 + $0x38] sm:$0xff]
          %v5072 = vld [vmem:[#allocation11 + $0x40] sm:$0xff]
          %v5073 = vld [vmem:[#allocation11 + $0x48] sm:$0xff]
          %v5074 = vld [vmem:[#allocation11 + $0x50] sm:$0xff]
          %v5075 = vld [vmem:[#allocation11 + $0x58] sm:$0xff]
          %v5076 = vld [vmem:[#allocation11 + $0x60] sm:$0xff]
          %v5077 = vld [vmem:[#allocation11 + $0x68] sm:$0xff]
          %v5078 = vld [vmem:[#allocation11 + $0x70] sm:$0xff]
          %v5079 = vld [vmem:[#allocation11 + $0x78] sm:$0xff]
          %v5080 = vld [vmem:[#allocation11 + $0x80] sm:$0xff]
          %v5081 = vld [vmem:[#allocation11 + $0x88] sm:$0xff]
          %v5082 = vld [vmem:[#allocation11 + $0x90] sm:$0xff]
          %v5083 = vld [vmem:[#allocation11 + $0x98] sm:$0xff]
          %v5084 = vld [vmem:[#allocation11 + $0xa0] sm:$0xff]
          %v5085 = vld [vmem:[#allocation11 + $0xa8] sm:$0xff]
          %v5086 = vld [vmem:[#allocation11 + $0xb0] sm:$0xff]
          %v5087 = vld [vmem:[#allocation11 + $0xb8] sm:$0xff]
          %v5088 = vld [vmem:[#allocation11 + $0xc0] sm:$0xff]
          %v5089 = vld [vmem:[#allocation11 + $0xc8] sm:$0xff]
          %v5090 = vld [vmem:[#allocation11 + $0xd0] sm:$0xff]
          %v5091 = vld [vmem:[#allocation11 + $0xd8] sm:$0xff]
          %v5092 = vld [vmem:[#allocation11 + $0xe0] sm:$0xff]
          %v5093 = vld [vmem:[#allocation11 + $0xe8] sm:$0xff]
          %v5094 = vld [vmem:[#allocation11 + $0xf0] sm:$0xff]
          %v5095 = vld [vmem:[#allocation11 + $0xf8] sm:$0xff]
          %v5096 = vld [vmem:[#allocation11 + $0x100] sm:$0xff]
          %v5097 = vld [vmem:[#allocation11 + $0x108] sm:$0xff]
          %v5098 = vld [vmem:[#allocation11 + $0x110] sm:$0xff]
          %v5099 = vld [vmem:[#allocation11 + $0x118] sm:$0xff]
          %v5100 = vld [vmem:[#allocation11 + $0x120] sm:$0xff]
          %v5101 = vld [vmem:[#allocation11 + $0x128] sm:$0xff]
          %v5102 = vld [vmem:[#allocation11 + $0x130] sm:$0xff]
          %v5103 = vld [vmem:[#allocation11 + $0x138] sm:$0xff]
          %v5104 = vld [vmem:[#allocation11 + $0x140] sm:$0xff]
          %v5105 = vld [vmem:[#allocation11 + $0x148] sm:$0xff]
          %v5106 = vld [vmem:[#allocation11 + $0x150] sm:$0xff]
          %v5107 = vld [vmem:[#allocation11 + $0x158] sm:$0xff]
          %v5108 = vld [vmem:[#allocation11 + $0x160] sm:$0xff]
          %v5109 = vld [vmem:[#allocation11 + $0x168] sm:$0xff]
          %v5110 = vld [vmem:[#allocation11 + $0x170] sm:$0xff]
          %v5111 = vld [vmem:[#allocation11 + $0x178] sm:$0xff]
          %v5112 = vld [vmem:[#allocation11 + $0x180] sm:$0xff]
          %v5113 = vld [vmem:[#allocation11 + $0x188] sm:$0xff]
          %v5114 = vld [vmem:[#allocation11 + $0x190] sm:$0xff]
          %v5115 = vld [vmem:[#allocation11 + $0x198] sm:$0xff]
          %v5116 = vld [vmem:[#allocation11 + $0x1a0] sm:$0xff]
          %v5117 = vld [vmem:[#allocation11 + $0x1a8] sm:$0xff]
          %v5118 = vld [vmem:[#allocation11 + $0x1b0] sm:$0xff]
          %v5119 = vld [vmem:[#allocation11 + $0x1b8] sm:$0xff]
          %v5120 = vld [vmem:[#allocation11 + $0x1c0] sm:$0xff]
          %v5121 = vld [vmem:[#allocation11 + $0x1c8] sm:$0xff]
          %v5122 = vld [vmem:[#allocation11 + $0x1d0] sm:$0xff]
          %v5123 = vld [vmem:[#allocation11 + $0x1d8] sm:$0xff]
          %v5124 = vld [vmem:[#allocation11 + $0x1e0] sm:$0xff]
          %v5125 = vld [vmem:[#allocation11 + $0x1e8] sm:$0xff]
          %v5126 = vld [vmem:[#allocation11 + $0x1f0] sm:$0xff]
          %v5127 = vld [vmem:[#allocation11 + $0x1f8] sm:$0xff]
          %v5128 = vld [vmem:[#allocation12] sm:$0x3]
          %v5130 = vlaneseq
          %v5131 = vshrl.u32 %v5130, 7
          %v5132 = vsub.s32 0, %v5131
          %v5133 = vrot.slane %v5128, %v5132
          %v5134 = vlaneseq
          %v5135 = vshrl.u32 %v5134, 7
          %v5136 = vsub.s32 1, %v5135
          %v5137 = vrot.slane %v5128, %v5136
          %v5204 = vunpack.c.l.b16 %v5064
          %v5205 = vunpack.c.h.b16 %v5064
          %v5206 = vunpack.c.l.b16 %v5065
          %v5207 = vunpack.c.h.b16 %v5065
          %v5208 = vunpack.c.l.b16 %v5066
          %v5209 = vunpack.c.h.b16 %v5066
          %v5210 = vunpack.c.l.b16 %v5067
          %v5211 = vunpack.c.h.b16 %v5067
          %v5212 = vunpack.c.l.b16 %v5068
          %v5213 = vunpack.c.h.b16 %v5068
          %v5214 = vunpack.c.l.b16 %v5069
          %v5215 = vunpack.c.h.b16 %v5069
          %v5216 = vunpack.c.l.b16 %v5070
          %v5217 = vunpack.c.h.b16 %v5070
          %v5218 = vunpack.c.l.b16 %v5071
          %v5219 = vunpack.c.h.b16 %v5071
          %v5220 = vunpack.c.l.b16 %v5072
          %v5221 = vunpack.c.h.b16 %v5072
          %v5222 = vunpack.c.l.b16 %v5073
          %v5223 = vunpack.c.h.b16 %v5073
          %v5224 = vunpack.c.l.b16 %v5074
          %v5225 = vunpack.c.h.b16 %v5074
          %v5226 = vunpack.c.l.b16 %v5075
          %v5227 = vunpack.c.h.b16 %v5075
          %v5228 = vunpack.c.l.b16 %v5076
          %v5229 = vunpack.c.h.b16 %v5076
          %v5230 = vunpack.c.l.b16 %v5077
          %v5231 = vunpack.c.h.b16 %v5077
          %v5232 = vunpack.c.l.b16 %v5078
          %v5233 = vunpack.c.h.b16 %v5078
          %v5234 = vunpack.c.l.b16 %v5079
          %v5235 = vunpack.c.h.b16 %v5079
          %v5236 = vunpack.c.l.b16 %v5080
          %v5237 = vunpack.c.h.b16 %v5080
          %v5238 = vunpack.c.l.b16 %v5081
          %v5239 = vunpack.c.h.b16 %v5081
          %v5240 = vunpack.c.l.b16 %v5082
          %v5241 = vunpack.c.h.b16 %v5082
          %v5242 = vunpack.c.l.b16 %v5083
          %v5243 = vunpack.c.h.b16 %v5083
          %v5244 = vunpack.c.l.b16 %v5084
          %v5245 = vunpack.c.h.b16 %v5084
          %v5246 = vunpack.c.l.b16 %v5085
          %v5247 = vunpack.c.h.b16 %v5085
          %v5248 = vunpack.c.l.b16 %v5086
          %v5249 = vunpack.c.h.b16 %v5086
          %v5250 = vunpack.c.l.b16 %v5087
          %v5251 = vunpack.c.h.b16 %v5087
          %v5252 = vunpack.c.l.b16 %v5088
          %v5253 = vunpack.c.h.b16 %v5088
          %v5254 = vunpack.c.l.b16 %v5089
          %v5255 = vunpack.c.h.b16 %v5089
          %v5256 = vunpack.c.l.b16 %v5090
          %v5257 = vunpack.c.h.b16 %v5090
          %v5258 = vunpack.c.l.b16 %v5091
          %v5259 = vunpack.c.h.b16 %v5091
          %v5260 = vunpack.c.l.b16 %v5092
          %v5261 = vunpack.c.h.b16 %v5092
          %v5262 = vunpack.c.l.b16 %v5093
          %v5263 = vunpack.c.h.b16 %v5093
          %v5264 = vunpack.c.l.b16 %v5094
          %v5265 = vunpack.c.h.b16 %v5094
          %v5266 = vunpack.c.l.b16 %v5095
          %v5267 = vunpack.c.h.b16 %v5095
          %v5268 = vunpack.c.l.b16 %v5096
          %v5269 = vunpack.c.h.b16 %v5096
          %v5270 = vunpack.c.l.b16 %v5097
          %v5271 = vunpack.c.h.b16 %v5097
          %v5272 = vunpack.c.l.b16 %v5098
          %v5273 = vunpack.c.h.b16 %v5098
          %v5274 = vunpack.c.l.b16 %v5099
          %v5275 = vunpack.c.h.b16 %v5099
          %v5276 = vunpack.c.l.b16 %v5100
          %v5277 = vunpack.c.h.b16 %v5100
          %v5278 = vunpack.c.l.b16 %v5101
          %v5279 = vunpack.c.h.b16 %v5101
          %v5280 = vunpack.c.l.b16 %v5102
          %v5281 = vunpack.c.h.b16 %v5102
          %v5282 = vunpack.c.l.b16 %v5103
          %v5283 = vunpack.c.h.b16 %v5103
          %v5284 = vunpack.c.l.b16 %v5104
          %v5285 = vunpack.c.h.b16 %v5104
          %v5286 = vunpack.c.l.b16 %v5105
          %v5287 = vunpack.c.h.b16 %v5105
          %v5288 = vunpack.c.l.b16 %v5106
          %v5289 = vunpack.c.h.b16 %v5106
          %v5290 = vunpack.c.l.b16 %v5107
          %v5291 = vunpack.c.h.b16 %v5107
          %v5292 = vunpack.c.l.b16 %v5108
          %v5293 = vunpack.c.h.b16 %v5108
          %v5294 = vunpack.c.l.b16 %v5109
          %v5295 = vunpack.c.h.b16 %v5109
          %v5296 = vunpack.c.l.b16 %v5110
          %v5297 = vunpack.c.h.b16 %v5110
          %v5298 = vunpack.c.l.b16 %v5111
          %v5299 = vunpack.c.h.b16 %v5111
          %v5300 = vunpack.c.l.b16 %v5112
          %v5301 = vunpack.c.h.b16 %v5112
          %v5302 = vunpack.c.l.b16 %v5113
          %v5303 = vunpack.c.h.b16 %v5113
          %v5304 = vunpack.c.l.b16 %v5114
          %v5305 = vunpack.c.h.b16 %v5114
          %v5306 = vunpack.c.l.b16 %v5115
          %v5307 = vunpack.c.h.b16 %v5115
          %v5308 = vunpack.c.l.b16 %v5116
          %v5309 = vunpack.c.h.b16 %v5116
          %v5310 = vunpack.c.l.b16 %v5117
          %v5311 = vunpack.c.h.b16 %v5117
          %v5312 = vunpack.c.l.b16 %v5118
          %v5313 = vunpack.c.h.b16 %v5118
          %v5314 = vunpack.c.l.b16 %v5119
          %v5315 = vunpack.c.h.b16 %v5119
          %v5316 = vunpack.c.l.b16 %v5120
          %v5317 = vunpack.c.h.b16 %v5120
          %v5318 = vunpack.c.l.b16 %v5121
          %v5319 = vunpack.c.h.b16 %v5121
          %v5320 = vunpack.c.l.b16 %v5122
          %v5321 = vunpack.c.h.b16 %v5122
          %v5322 = vunpack.c.l.b16 %v5123
          %v5323 = vunpack.c.h.b16 %v5123
          %v5324 = vunpack.c.l.b16 %v5124
          %v5325 = vunpack.c.h.b16 %v5124
          %v5326 = vunpack.c.l.b16 %v5125
          %v5327 = vunpack.c.h.b16 %v5125
          %v5328 = vunpack.c.l.b16 %v5126
          %v5329 = vunpack.c.h.b16 %v5126
          %v5330 = vunpack.c.l.b16 %v5127
          %v5331 = vunpack.c.h.b16 %v5127
          %v5332 = vpack.c.b16 %v5206, %v5204
          %v5333 = vpack.c.b16 %v5207, %v5205
          %v5334 = vpack.c.b16 %v5210, %v5208
          %v5335 = vpack.c.b16 %v5211, %v5209
          %v5336 = vpack.c.b16 %v5214, %v5212
          %v5337 = vpack.c.b16 %v5215, %v5213
          %v5338 = vpack.c.b16 %v5218, %v5216
          %v5339 = vpack.c.b16 %v5219, %v5217
          %v5340 = vpack.c.b16 %v5222, %v5220
          %v5341 = vpack.c.b16 %v5223, %v5221
          %v5342 = vpack.c.b16 %v5226, %v5224
          %v5343 = vpack.c.b16 %v5227, %v5225
          %v5344 = vpack.c.b16 %v5230, %v5228
          %v5345 = vpack.c.b16 %v5231, %v5229
          %v5346 = vpack.c.b16 %v5234, %v5232
          %v5347 = vpack.c.b16 %v5235, %v5233
          %v5348 = vpack.c.b16 %v5238, %v5236
          %v5349 = vpack.c.b16 %v5239, %v5237
          %v5350 = vpack.c.b16 %v5242, %v5240
          %v5351 = vpack.c.b16 %v5243, %v5241
          %v5352 = vpack.c.b16 %v5246, %v5244
          %v5353 = vpack.c.b16 %v5247, %v5245
          %v5354 = vpack.c.b16 %v5250, %v5248
          %v5355 = vpack.c.b16 %v5251, %v5249
          %v5356 = vpack.c.b16 %v5254, %v5252
          %v5357 = vpack.c.b16 %v5255, %v5253
          %v5358 = vpack.c.b16 %v5258, %v5256
          %v5359 = vpack.c.b16 %v5259, %v5257
          %v5360 = vpack.c.b16 %v5262, %v5260
          %v5361 = vpack.c.b16 %v5263, %v5261
          %v5362 = vpack.c.b16 %v5266, %v5264
          %v5363 = vpack.c.b16 %v5267, %v5265
          %v5364 = vpack.c.b16 %v5270, %v5268
          %v5365 = vpack.c.b16 %v5271, %v5269
          %v5366 = vpack.c.b16 %v5274, %v5272
          %v5367 = vpack.c.b16 %v5275, %v5273
          %v5368 = vpack.c.b16 %v5278, %v5276
          %v5369 = vpack.c.b16 %v5279, %v5277
          %v5370 = vpack.c.b16 %v5282, %v5280
          %v5371 = vpack.c.b16 %v5283, %v5281
          %v5372 = vpack.c.b16 %v5286, %v5284
          %v5373 = vpack.c.b16 %v5287, %v5285
          %v5374 = vpack.c.b16 %v5290, %v5288
          %v5375 = vpack.c.b16 %v5291, %v5289
          %v5376 = vpack.c.b16 %v5294, %v5292
          %v5377 = vpack.c.b16 %v5295, %v5293
          %v5378 = vpack.c.b16 %v5298, %v5296
          %v5379 = vpack.c.b16 %v5299, %v5297
          %v5380 = vpack.c.b16 %v5302, %v5300
          %v5381 = vpack.c.b16 %v5303, %v5301
          %v5382 = vpack.c.b16 %v5306, %v5304
          %v5383 = vpack.c.b16 %v5307, %v5305
          %v5384 = vpack.c.b16 %v5310, %v5308
          %v5385 = vpack.c.b16 %v5311, %v5309
          %v5386 = vpack.c.b16 %v5314, %v5312
          %v5387 = vpack.c.b16 %v5315, %v5313
          %v5388 = vpack.c.b16 %v5318, %v5316
          %v5389 = vpack.c.b16 %v5319, %v5317
          %v5390 = vpack.c.b16 %v5322, %v5320
          %v5391 = vpack.c.b16 %v5323, %v5321
          %v5392 = vpack.c.b16 %v5326, %v5324
          %v5393 = vpack.c.b16 %v5327, %v5325
          %v5394 = vpack.c.b16 %v5330, %v5328
          %v5395 = vpack.c.b16 %v5331, %v5329
          %5460 = vmatprep.subr.bf16.mxu0 %v5333
          %5461 = vmatpush1.bf16.msra.mxu0 %v5332
          %5462 = vmatprep.subr.bf16.mxu0 %v5335
          %5463 = vmatpush1.bf16.msra.mxu0 %v5334
          %5464 = vmatprep.subr.bf16.mxu0 %v5337
          %5465 = vmatpush1.bf16.msra.mxu0 %v5336
          %5466 = vmatprep.subr.bf16.mxu0 %v5339
          %5467 = vmatpush1.bf16.msra.mxu0 %v5338
          %5468 = vmatprep.subr.bf16.mxu0 %v5341
          %5469 = vmatpush1.bf16.msra.mxu0 %v5340
          %5470 = vmatprep.subr.bf16.mxu0 %v5343
          %5471 = vmatpush1.bf16.msra.mxu0 %v5342
          %5472 = vmatprep.subr.bf16.mxu0 %v5345
          %5473 = vmatpush1.bf16.msra.mxu0 %v5344
          %5474 = vmatprep.subr.bf16.mxu0 %v5347
          %5475 = vmatpush1.bf16.msra.mxu0 %v5346
          %5476 = vmatprep.subr.bf16.mxu0 %v5349
          %5477 = vmatpush1.bf16.msra.mxu0 %v5348
          %5478 = vmatprep.subr.bf16.mxu0 %v5351
          %5479 = vmatpush1.bf16.msra.mxu0 %v5350
          %5480 = vmatprep.subr.bf16.mxu0 %v5353
          %5481 = vmatpush1.bf16.msra.mxu0 %v5352
          %5482 = vmatprep.subr.bf16.mxu0 %v5355
          %5483 = vmatpush1.bf16.msra.mxu0 %v5354
          %5484 = vmatprep.subr.bf16.mxu0 %v5357
          %5485 = vmatpush1.bf16.msra.mxu0 %v5356
          %5486 = vmatprep.subr.bf16.mxu0 %v5359
          %5487 = vmatpush1.bf16.msra.mxu0 %v5358
          %5488 = vmatprep.subr.bf16.mxu0 %v5361
          %5489 = vmatpush1.bf16.msra.mxu0 %v5360
          %5490 = vmatprep.subr.bf16.mxu0 %v5363
          %5491 = vmatpush1.bf16.msra.mxu0 %v5362
          %5492 = vmatprep.mubr.bf16.mxu0 %v5061
          %5493 = vmatmul.mubr.bf16.gmra.mrb[0].mxu0 %v5060
          %v5494 = vpop.f32.mrb[0].mxu0
          %v5495 = vadd.f32 %v5133, %v5494
          %v5496 = vpop.f32.mrb[0].mxu0
          %v5497 = vadd.f32 %v5137, %v5496
          %v5498 = vpop.f32.mrb[0].mxu0
          %v5499 = vpop.f32.mrb[0].mxu0
          %5500 = vdwg.mxu0
          %5501 = vmatprep.subr.bf16.mxu0 %v5365
          %5502 = vmatpush1.bf16.msra.mxu0 %v5364
          %5503 = vmatprep.subr.bf16.mxu0 %v5367
          %5504 = vmatpush1.bf16.msra.mxu0 %v5366
          %5505 = vmatprep.subr.bf16.mxu0 %v5369
          %5506 = vmatpush1.bf16.msra.mxu0 %v5368
          %5507 = vmatprep.subr.bf16.mxu0 %v5371
          %5508 = vmatpush1.bf16.msra.mxu0 %v5370
          %5509 = vmatprep.subr.bf16.mxu0 %v5373
          %5510 = vmatpush1.bf16.msra.mxu0 %v5372
          %5511 = vmatprep.subr.bf16.mxu0 %v5375
          %5512 = vmatpush1.bf16.msra.mxu0 %v5374
          %5513 = vmatprep.subr.bf16.mxu0 %v5377
          %5514 = vmatpush1.bf16.msra.mxu0 %v5376
          %5515 = vmatprep.subr.bf16.mxu0 %v5379
          %5516 = vmatpush1.bf16.msra.mxu0 %v5378
          %5517 = vmatprep.subr.bf16.mxu0 %v5381
          %5518 = vmatpush1.bf16.msra.mxu0 %v5380
          %5519 = vmatprep.subr.bf16.mxu0 %v5383
          %5520 = vmatpush1.bf16.msra.mxu0 %v5382
          %5521 = vmatprep.subr.bf16.mxu0 %v5385
          %5522 = vmatpush1.bf16.msra.mxu0 %v5384
          %5523 = vmatprep.subr.bf16.mxu0 %v5387
          %5524 = vmatpush1.bf16.msra.mxu0 %v5386
          %5525 = vmatprep.subr.bf16.mxu0 %v5389
          %5526 = vmatpush1.bf16.msra.mxu0 %v5388
          %5527 = vmatprep.subr.bf16.mxu0 %v5391
          %5528 = vmatpush1.bf16.msra.mxu0 %v5390
          %5529 = vmatprep.subr.bf16.mxu0 %v5393
          %5530 = vmatpush1.bf16.msra.mxu0 %v5392
          %5531 = vmatprep.subr.bf16.mxu0 %v5395
          %5532 = vmatpush1.bf16.msra.mxu0 %v5394
          %5533 = vmatprep.mubr.bf16.mxu0 %v5063
          %5534 = vmatmul.mubr.bf16.gmra.mrb[0].mxu0 %v5062
          %v5535 = vpop.f32.mrb[0].mxu0
          %v5536 = vadd.f32 %v5495, %v5535
          %v5537 = vpop.f32.mrb[0].mxu0
          %v5538 = vadd.f32 %v5497, %v5537
          %v5539 = vpop.f32.mrb[0].mxu0
          %v5540 = vpop.f32.mrb[0].mxu0
          %5541 = vdwg.mxu0
          %v5542 = vmax.f32 %v5536, 0.0
          %v5543 = vmax.f32 %v5538, 0.0
          %v5544 = vpack.c.bf16 %v5542, %v5542
          %v5545 = vpack.c.bf16 %v5543, %v5543
          %v5546 = vld [vmem:[%s11] sm:$0xf]
          %v5547 = vld [vmem:[%s11 + $0x4] sm:$0xf]
          %v5548 = vld [vmem:[%s11 + $0x8] sm:$0xf]
          %v5549 = vld [vmem:[%s11 + $0xc] sm:$0xf]
          %v5550 = vld [vmem:[%s11 + $0x10] sm:$0xf]
          %v5551 = vld [vmem:[%s11 + $0x14] sm:$0xf]
          %v5552 = vld [vmem:[%s11 + $0x18] sm:$0xf]
          %v5553 = vld [vmem:[%s11 + $0x1c] sm:$0xf]
          %v5554 = vld [vmem:[%s11 + $0x20] sm:$0xf]
          %v5555 = vld [vmem:[%s11 + $0x24] sm:$0xf]
          %v5556 = vld [vmem:[%s11 + $0x28] sm:$0xf]
          %v5557 = vld [vmem:[%s11 + $0x2c] sm:$0xf]
          %v5558 = vld [vmem:[%s11 + $0x30] sm:$0xf]
          %v5559 = vld [vmem:[%s11 + $0x34] sm:$0xf]
          %v5560 = vld [vmem:[%s11 + $0x38] sm:$0xf]
          %v5561 = vld [vmem:[%s11 + $0x3c] sm:$0xf]
          %v5562 = vld [vmem:[%s11 + $0x40] sm:$0xf]
          %v5563 = vld [vmem:[%s11 + $0x44] sm:$0xf]
          %v5564 = vld [vmem:[%s11 + $0x48] sm:$0xf]
          %v5565 = vld [vmem:[%s11 + $0x4c] sm:$0xf]
          %v5566 = vld [vmem:[%s11 + $0x50] sm:$0xf]
          %v5567 = vld [vmem:[%s11 + $0x54] sm:$0xf]
          %v5568 = vld [vmem:[%s11 + $0x58] sm:$0xf]
          %v5569 = vld [vmem:[%s11 + $0x5c] sm:$0xf]
          %v5570 = vld [vmem:[%s11 + $0x60] sm:$0xf]
          %v5571 = vld [vmem:[%s11 + $0x64] sm:$0xf]
          %v5572 = vld [vmem:[%s11 + $0x68] sm:$0xf]
          %v5573 = vld [vmem:[%s11 + $0x6c] sm:$0xf]
          %v5574 = vld [vmem:[%s11 + $0x70] sm:$0xf]
          %v5575 = vld [vmem:[%s11 + $0x74] sm:$0xf]
          %v5576 = vld [vmem:[%s11 + $0x78] sm:$0xf]
          %v5577 = vld [vmem:[%s11 + $0x7c] sm:$0xf]
          %v5578 = vld [vmem:[%s12] sm:$0x1]
          %v5580 = vlaneseq
          %v5581 = vshrl.u32 %v5580, 7
          %v5582 = vsub.s32 0, %v5581
          %v5583 = vrot.slane %v5578, %v5582
          %v5617 = vunpack.c.l.b16 %v5546
          %v5618 = vunpack.c.l.b16 %v5547
          %v5619 = vunpack.c.l.b16 %v5548
          %v5620 = vunpack.c.l.b16 %v5549
          %v5621 = vunpack.c.l.b16 %v5550
          %v5622 = vunpack.c.l.b16 %v5551
          %v5623 = vunpack.c.l.b16 %v5552
          %v5624 = vunpack.c.l.b16 %v5553
          %v5625 = vunpack.c.l.b16 %v5554
          %v5626 = vunpack.c.l.b16 %v5555
          %v5627 = vunpack.c.l.b16 %v5556
          %v5628 = vunpack.c.l.b16 %v5557
          %v5629 = vunpack.c.l.b16 %v5558
          %v5630 = vunpack.c.l.b16 %v5559
          %v5631 = vunpack.c.l.b16 %v5560
          %v5632 = vunpack.c.l.b16 %v5561
          %v5633 = vunpack.c.l.b16 %v5562
          %v5634 = vunpack.c.l.b16 %v5563
          %v5635 = vunpack.c.l.b16 %v5564
          %v5636 = vunpack.c.l.b16 %v5565
          %v5637 = vunpack.c.l.b16 %v5566
          %v5638 = vunpack.c.l.b16 %v5567
          %v5639 = vunpack.c.l.b16 %v5568
          %v5640 = vunpack.c.l.b16 %v5569
          %v5641 = vunpack.c.l.b16 %v5570
          %v5642 = vunpack.c.l.b16 %v5571
          %v5643 = vunpack.c.l.b16 %v5572
          %v5644 = vunpack.c.l.b16 %v5573
          %v5645 = vunpack.c.l.b16 %v5574
          %v5646 = vunpack.c.l.b16 %v5575
          %v5647 = vunpack.c.l.b16 %v5576
          %v5648 = vunpack.c.l.b16 %v5577
          %v5649 = vpack.c.b16 %v5618, %v5617
          %v5650 = vpack.c.b16 %v5620, %v5619
          %v5651 = vpack.c.b16 %v5622, %v5621
          %v5652 = vpack.c.b16 %v5624, %v5623
          %v5653 = vpack.c.b16 %v5626, %v5625
          %v5654 = vpack.c.b16 %v5628, %v5627
          %v5655 = vpack.c.b16 %v5630, %v5629
          %v5656 = vpack.c.b16 %v5632, %v5631
          %v5657 = vpack.c.b16 %v5634, %v5633
          %v5658 = vpack.c.b16 %v5636, %v5635
          %v5659 = vpack.c.b16 %v5638, %v5637
          %v5660 = vpack.c.b16 %v5640, %v5639
          %v5661 = vpack.c.b16 %v5642, %v5641
          %v5662 = vpack.c.b16 %v5644, %v5643
          %v5663 = vpack.c.b16 %v5646, %v5645
          %v5664 = vpack.c.b16 %v5648, %v5647
          %5681 = vmatprep.subr.bf16.mxu0 0
          %5682 = vmatpush1.bf16.msra.mxu0 %v5649
          %5683 = vmatprep.subr.bf16.mxu0 0
          %5684 = vmatpush1.bf16.msra.mxu0 %v5650
          %5685 = vmatprep.subr.bf16.mxu0 0
          %5686 = vmatpush1.bf16.msra.mxu0 %v5651
          %5687 = vmatprep.subr.bf16.mxu0 0
          %5688 = vmatpush1.bf16.msra.mxu0 %v5652
          %5689 = vmatprep.subr.bf16.mxu0 0
          %5690 = vmatpush1.bf16.msra.mxu0 %v5653
          %5691 = vmatprep.subr.bf16.mxu0 0
          %5692 = vmatpush1.bf16.msra.mxu0 %v5654
          %5693 = vmatprep.subr.bf16.mxu0 0
          %5694 = vmatpush1.bf16.msra.mxu0 %v5655
          %5695 = vmatprep.subr.bf16.mxu0 0
          %5696 = vmatpush1.bf16.msra.mxu0 %v5656
          %5697 = vmatprep.subr.bf16.mxu0 0
          %5698 = vmatpush1.bf16.msra.mxu0 %v5657
          %5699 = vmatprep.subr.bf16.mxu0 0
          %5700 = vmatpush1.bf16.msra.mxu0 %v5658
          %5701 = vmatprep.subr.bf16.mxu0 0
          %5702 = vmatpush1.bf16.msra.mxu0 %v5659
          %5703 = vmatprep.subr.bf16.mxu0 0
          %5704 = vmatpush1.bf16.msra.mxu0 %v5660
          %5705 = vmatprep.subr.bf16.mxu0 0
          %5706 = vmatpush1.bf16.msra.mxu0 %v5661
          %5707 = vmatprep.subr.bf16.mxu0 0
          %5708 = vmatpush1.bf16.msra.mxu0 %v5662
          %5709 = vmatprep.subr.bf16.mxu0 0
          %5710 = vmatpush1.bf16.msra.mxu0 %v5663
          %5711 = vmatprep.subr.bf16.mxu0 0
          %5712 = vmatpush1.bf16.msra.mxu0 %v5664
          %5713 = vmatprep.mubr.bf16.mxu0 %v5545
          %5714 = vmatmul.mubr.bf16.gmra.mrb[0].mxu0 %v5544
          %v5715 = vpop.f32.mrb[0].mxu0
          %v5716 = vadd.f32 %v5583, %v5715
          %v5717 = vpop.f32.mrb[0].mxu0
          %v5718 = vpop.f32.mrb[0].mxu0
          %v5719 = vpop.f32.mrb[0].mxu0
          %5720 = vdwg.mxu0
          %5721 = vst [vmem:[%s533] sm:$0xff] %v5716
        $region104: #{tpu_custom_call.1} parent=71 // pred_fallthru
          _
        %s5722 = sand.u32 %s331, 1
        %s5723 = scalar_lea.sflag [#allocation5], %s5722
        %s5724 = sand.u32 %s331, 1
        %s5725 = smul.addr %s5724, 8
        %s5726 = scalar_lea.vmem [#allocation14], %s5725
        // Predicated region
        $region105: #{tpu_custom_call.1} parent=71 // pred_check
          %p5727 = pneg %p341
        $region106: #{tpu_custom_call.1} parent=71 // pred_check_branch
          %5729 = sbr.rel (%p5727) target = $region108
        $region107: #{tpu_custom_call.1} parent=71 // pred_region
          %s5731 = ssub.s32 128, 128
          %5732 = vsyncadd %s5723, %s5731
          %s5733 = smul.addr %s35, 128
          %s5734 = scalar_lea.hbm %s13, %s5733
          %s5736 = sshll.u32 %s5726, 4
          %s5737 = int_to_ptr.vmem [resolvable:$true] %s5736
          %5739 = dma.vmem_to_hbm [thread:$0]  %s5737, 128, %s5734, %s5723
        $region108: #{tpu_custom_call.1} parent=71 // pred_fallthru
          _
      $region72: #{tpu_custom_call.1} parent=5 // pred_fallthru
        _
      %p5740 = scmp.le.s32.totalorder 2, %s26
      // Predicated region
      $region109: #{tpu_custom_call.1} parent=5 // pred_check
        %p5741 = pneg %p5740
      $region110: #{tpu_custom_call.1} parent=5 // pred_check_branch
        %5743 = sbr.rel (%p5741) target = $region112
      $region111: #{tpu_custom_call.1} parent=5 // pred_region
        %s5744 = ssub.s32 %s26, 2
        // Predicated region
        $region113: #{tpu_custom_call.1} parent=111 // pred_check
          %p5745 = pneg %p347
        $region114: #{tpu_custom_call.1} parent=111 // pred_check_branch
          %5747 = sbr.rel (%p5745) target = $region116
        $region115: #{tpu_custom_call.1} parent=111 // pred_region
          %s5748 = sand.u32 %s332, 1
          %s5749 = scalar_lea.sflag [#allocation5], %s5748
          %s5750 = sand.u32 %s332, 1
          %s5751 = smul.addr %s5750, 8
          %s5752 = scalar_lea.vmem [#allocation14], %s5751
          %5753 = dma.done %s5749, 128
        $region116: #{tpu_custom_call.1} parent=111 // pred_fallthru
          _
      $region112: #{tpu_custom_call.1} parent=5 // pred_fallthru
        _
    $region6: #{tpu_custom_call.1} parent=1 // loop_footer
      %s30 = sadd.s32 1, %s26
    $region7: #{tpu_custom_call.1} parent=1 // loop_footer_branch
      %25 = sbr.rel target = $region3
    $region8: #{tpu_custom_call.1} parent=1 // loop_exit
      _
    %5754 = vsyncpa [#allocation4], 1
    %s5755 = scalar_lea.sflag [#allocation4], 1
    %5756 = vsyncpa %s5755, 1
    %5757 = vsyncpa [#allocation7], 1
    %5758 = vsyncpa [#allocation10], 1
    %5759 = vsyncpa [#allocation13], 1
    %5760 = vsyncpa [#allocation5], 1
    %s5761 = scalar_lea.sflag [#allocation5], 1
    %5762 = vsyncpa %s5761, 1

// kernel: tpu_custom_call.1
$region0: #{tpu_custom_call.1}
  #allocation0 [shape = 'u32[]', space=smem, size = 0x4, offset = 0x4, fixed_abs, tag = 'smem constant byte address 0x4 - core index']
  #allocation1 [shape = 'u32[144,128]{1,0:T(1,128)}', space=vmem, size = 0x12000, scoped, tag = 'internal scratch']
  #allocation2 [shape = 'bf16[8,1024]{1,0:T(8,128)(2,1)}', space=vmem, size = 0x4000, scoped, tag = 'scratch operand']
  %s0 = inlined_call_operand.vmem [shape: bf16[256,3], index: 0, kind: input, shape index: {}]
  %s1 = inlined_call_operand.hbm [shape: bf16[3,64], index: 1, kind: input, shape index: {}]
  %s2 = inlined_call_operand.vmem [shape: f32[1,64], index: 2, kind: input, shape index: {}]
  %s3 = inlined_call_operand.vmem [shape: bf16[64,128], index: 3, kind: input, shape index: {}]
  %s4 = inlined_call_operand.hbm [shape: f32[1,128], index: 4, kind: input, shape index: {}]
  %s5 = inlined_call_operand.hbm [shape: bf16[128,1024], index: 5, kind: input, shape index: {}]
  %s6 = inlined_call_operand.vmem [shape: f32[1,1024], index: 6, kind: input, shape index: {}]
  %s7 = inlined_call_operand.hbm [shape: bf16[1024,512], index: 7, kind: input, shape index: {}]
  %s8 = inlined_call_operand.vmem [shape: f32[1,512], index: 8, kind: input, shape index: {}]
  %s9 = inlined_call_operand.hbm [shape: bf16[512,256], index: 9, kind: input, shape index: {}]
  %s10 = inlined_call_operand.hbm [shape: f32[1,256], index: 10, kind: input, shape index: {}]
  %s11 = inlined_call_operand.vmem [shape: bf16[256,128], index: 11, kind: input, shape index: {}]
  %s12 = inlined_call_operand.vmem [shape: f32[1,128], index: 12, kind: input, shape index: {}]
  %s13 = inlined_call_operand.hbm [shape: f32[16,128], index: 13, kind: output, shape index: {}]
  %s14 = sld [smem:[#allocation0]]
  $region117: #{tpu_custom_call.1} parent=0
    _
  %s16 = ssub.s32 1, %s14
  %s17 = scalar_select 0, %s16, %s14
  $region1: #{tpu_custom_call.1} parent=0
    #allocation3 [shape = 'u8[1024]{0}', space=vmem, size = 0x400, scoped, tag = 'input window, operand 1, single buffered']
    #allocation4 [shape = 's32[2]{0}', space=sflag, size = 0x8, scoped, tag = 'scoped memory for tpu_custom_call.1']
    #allocation5 [shape = 's32[2]{0}', space=sflag, size = 0x8, scoped, tag = 'scoped memory for tpu_custom_call.1']
    #allocation6 [shape = 'u8[512]{0}', space=vmem, size = 0x400, scoped, tag = 'input window, operand 4, single buffered']
    #allocation7 [shape = 's32[1]{0}', space=sflag, size = 0x4, scoped, tag = 'scoped memory for tpu_custom_call.1']
    #allocation8 [shape = 'u8[262144]{0}', space=vmem, size = 0x40000, scoped, tag = 'input window, operand 5, single buffered']
    #allocation9 [shape = 'u8[1048576]{0}', space=vmem, size = 0x100000, scoped, tag = 'input window, operand 7, single buffered']
    #allocation10 [shape = 's32[1]{0}', space=sflag, size = 0x4, scoped, tag = 'scoped memory for tpu_custom_call.1']
    #allocation11 [shape = 'u8[262144]{0}', space=vmem, size = 0x40000, scoped, tag = 'input window, operand 9, single buffered']
    #allocation12 [shape = 'u8[1024]{0}', space=vmem, size = 0x400, scoped, tag = 'input window, operand 10, single buffered']
    #allocation13 [shape = 's32[1]{0}', space=sflag, size = 0x4, scoped, tag = 'scoped memory for tpu_custom_call.1']
    #allocation14 [shape = 'u8[8192]{0}', space=vmem, size = 0x2000, scoped, tag = 'output window, operand 0']
    %18 = vsyncpa [#allocation4], 0
    %19 = vsyncpa [#allocation7], 0
    %20 = vsyncpa [#allocation10], 0
    %21 = vsyncpa [#allocation13], 0
    %22 = vsyncpa [#allocation5], 0
    %s23 = scalar_lea.sflag [#allocation5], 1
    %24 = vsyncpa %s23, 0
    loop: start=0, step=1, limit=4
    $region2: #{tpu_custom_call.1} parent=1 // loop_pre_header
      _
    $region3: #{tpu_custom_call.1} parent=1 // loop_header
      %s26 = sphi 0, %s30
      %p27 = scmp.ge.s32.totalorder %s26, 4
      %s33 = sphi 0, %s45
      %s34 = sphi 0, %s41
      %s35 = sphi 0, %s33
      %s36 = sphi 0, %s34
      %s37 = sphi 0, %s35
      %s38 = sphi 0, %s36
      %s50 = sphi 0, %s52
      %s53 = sphi 0, %s50
      %s54 = sphi 0, %s53
      %s70 = sphi 0, %s54
      %s74 = sphi 0, %s74
      %s76 = sphi 0, %s74
      %s77 = sphi 0, %s76
      %s91 = sphi 0, %s77
      %s95 = sphi 0, %s95
      %s97 = sphi 0, %s95
      %s98 = sphi 0, %s97
      %s112 = sphi 0, %s98
      %s116 = sphi 0, %s116
      %s118 = sphi 0, %s116
      %s119 = sphi 0, %s118
      %s133 = sphi 0, %s119
      %s137 = sphi 0, %s137
      %s139 = sphi 0, %s137
      %s140 = sphi 0, %s139
      %s154 = sphi 0, %s140
      %s158 = sphi 0, %s158
      %s160 = sphi 0, %s158
      %s161 = sphi 0, %s160
      %s175 = sphi 0, %s161
      %s179 = sphi 0, %s179
      %s181 = sphi 0, %s179
      %s182 = sphi 0, %s181
      %s196 = sphi 0, %s182
      %s200 = sphi 0, %s200
      %s202 = sphi 0, %s200
      %s203 = sphi 0, %s202
      %s217 = sphi 0, %s203
      %s221 = sphi 0, %s221
      %s223 = sphi 0, %s221
      %s224 = sphi 0, %s223
      %s238 = sphi 0, %s224
      %s242 = sphi 0, %s242
      %s244 = sphi 0, %s242
      %s245 = sphi 0, %s244
      %s259 = sphi 0, %s245
      %s263 = sphi 0, %s263
      %s265 = sphi 0, %s263
      %s266 = sphi 0, %s265
      %s280 = sphi 0, %s266
      %s284 = sphi 0, %s284
      %s286 = sphi 0, %s284
      %s287 = sphi 0, %s286
      %s301 = sphi 0, %s287
      %s305 = sphi 0, %s305
      %s307 = sphi 0, %s305
      %s308 = sphi 0, %s307
      %s322 = sphi 0, %s308
      %s328 = sphi 0, %s330
      %s331 = sphi 0, %s328
      %s332 = sphi 0, %s331
      %s348 = sphi 0, %s332
    $region4: #{tpu_custom_call.1} parent=1 // loop_header_branch
      %29 = sbr.rel (%p27) target = $region8
    $region5: #{tpu_custom_call.1} parent=1 // loop_body
      %s31 = ssub.s32 %s26, 1
      %s32 = ssub.s32 %s26, 2
      %s39 = sadd.s32 1, %s34
      %p40 = scmp.ge.s32.totalorder %s39, 1
      %s41 = scalar_select %p40, 0, %s39
      %s42 = sadd.s32 1, %s33
      %s43 = scalar_select %p40, %s42, %s33
      %p44 = scmp.ge.s32.totalorder %s43, 2
      %s45 = scalar_select %p44, 0, %s43
      %s46 = sadd.s32 %s33, %s34
      %s47 = sadd.s32 %s45, %s41
      %s48 = ssub.s32 %s46, %s47
      %p49 = scmp.eq.s32.totalorder %s48, 0
      %s51 = sadd.s32 %s50, 1
      %s52 = scalar_select %p49, %s50, %s51
      %p55 = pneg %p49
      %p56 = scmp.eq.s32.totalorder %s26, 1
      %p57 = por %p55, %p56
      %p58 = scmp.ne.s32.totalorder %s50, %s53
      %p59 = scmp.eq.s32.totalorder %s26, 0
      %p60 = por %p58, %p59
      %p61 = scmp.ne.s32.totalorder %s50, %s53
      %p62 = scmp.eq.s32.totalorder %s31, 1
      %p63 = por %p61, %p62
      %p64 = scmp.ne.s32.totalorder %s53, %s54
      %p65 = scmp.eq.s32.totalorder %s31, 0
      %p66 = por %p64, %p65
      %p67 = scmp.ne.s32.totalorder %s53, %s54
      %p68 = scmp.eq.s32.totalorder %s32, 1
      %p69 = por %p67, %p68
      %p71 = scmp.ne.s32.totalorder %s54, %s70
      %p72 = scmp.eq.s32.totalorder %s32, 0
      %p73 = por %p71, %p72
      %s75 = sadd.s32 %s74, 1
      %p78 = scmp.eq.s32.totalorder %s26, 1
      %p79 = scmp.ne.s32.totalorder %s74, %s76
      %p80 = scmp.eq.s32.totalorder %s26, 0
      %p81 = por %p79, %p80
      %p82 = scmp.ne.s32.totalorder %s74, %s76
      %p83 = scmp.eq.s32.totalorder %s31, 1
      %p84 = por %p82, %p83
      %p85 = scmp.ne.s32.totalorder %s76, %s77
      %p86 = scmp.eq.s32.totalorder %s31, 0
      %p87 = por %p85, %p86
      %p88 = scmp.ne.s32.totalorder %s76, %s77
      %p89 = scmp.eq.s32.totalorder %s32, 1
      %p90 = por %p88, %p89
      %p92 = scmp.ne.s32.totalorder %s77, %s91
      %p93 = scmp.eq.s32.totalorder %s32, 0
      %p94 = por %p92, %p93
      %s96 = sadd.s32 %s95, 1
      %p99 = scmp.eq.s32.totalorder %s26, 1
      %p100 = scmp.ne.s32.totalorder %s95, %s97
      %p101 = scmp.eq.s32.totalorder %s26, 0
      %p102 = por %p100, %p101
      %p103 = scmp.ne.s32.totalorder %s95, %s97
      %p104 = scmp.eq.s32.totalorder %s31, 1
      %p105 = por %p103, %p104
      %p106 = scmp.ne.s32.totalorder %s97, %s98
      %p107 = scmp.eq.s32.totalorder %s31, 0
      %p108 = por %p106, %p107
      %p109 = scmp.ne.s32.totalorder %s97, %s98
      %p110 = scmp.eq.s32.totalorder %s32, 1
      %p111 = por %p109, %p110
      %p113 = scmp.ne.s32.totalorder %s98, %s112
      %p114 = scmp.eq.s32.totalorder %s32, 0
      %p115 = por %p113, %p114
      %s117 = sadd.s32 %s116, 1
      %p120 = scmp.eq.s32.totalorder %s26, 1
      %p121 = scmp.ne.s32.totalorder %s116, %s118
      %p122 = scmp.eq.s32.totalorder %s26, 0
      %p123 = por %p121, %p122
      %p124 = scmp.ne.s32.totalorder %s116, %s118
      %p125 = scmp.eq.s32.totalorder %s31, 1
      %p126 = por %p124, %p125
      %p127 = scmp.ne.s32.totalorder %s118, %s119
      %p128 = scmp.eq.s32.totalorder %s31, 0
      %p129 = por %p127, %p128
      %p130 = scmp.ne.s32.totalorder %s118, %s119
      %p131 = scmp.eq.s32.totalorder %s32, 1
      %p132 = por %p130, %p131
      %p134 = scmp.ne.s32.totalorder %s119, %s133
      %p135 = scmp.eq.s32.totalorder %s32, 0
      %p136 = por %p134, %p135
      %s138 = sadd.s32 %s137, 1
      %p141 = scmp.eq.s32.totalorder %s26, 1
      %p142 = scmp.ne.s32.totalorder %s137, %s139
      %p143 = scmp.eq.s32.totalorder %s26, 0
      %p144 = por %p142, %p143
      %p145 = scmp.ne.s32.totalorder %s137, %s139
      %p146 = scmp.eq.s32.totalorder %s31, 1
      %p147 = por %p145, %p146
      %p148 = scmp.ne.s32.totalorder %s139, %s140
      %p149 = scmp.eq.s32.totalorder %s31, 0
      %p150 = por %p148, %p149
      %p151 = scmp.ne.s32.totalorder %s139, %s140
      %p152 = scmp.eq.s32.totalorder %s32, 1
      %p153 = por %p151, %p152
      %p155 = scmp.ne.s32.totalorder %s140, %s154
      %p156 = scmp.eq.s32.totalorder %s32, 0
      %p157 = por %p155, %p156
      %s159 = sadd.s32 %s158, 1
      %p162 = scmp.eq.s32.totalorder %s26, 1
      %p163 = scmp.ne.s32.totalorder %s158, %s160
      %p164 = scmp.eq.s32.totalorder %s26, 0
      %p165 = por %p163, %p164
      %p166 = scmp.ne.s32.totalorder %s158, %s160
      %p167 = scmp.eq.s32.totalorder %s31, 1
      %p168 = por %p166, %p167
      %p169 = scmp.ne.s32.totalorder %s160, %s161
      %p170 = scmp.eq.s32.totalorder %s31, 0
      %p171 = por %p169, %p170
      %p172 = scmp.ne.s32.totalorder %s160, %s161
      %p173 = scmp.eq.s32.totalorder %s32, 1
      %p174 = por %p172, %p173
      %p176 = scmp.ne.s32.totalorder %s161, %s175
      %p177 = scmp.eq.s32.totalorder %s32, 0
      %p178 = por %p176, %p177
      %s180 = sadd.s32 %s179, 1
      %p183 = scmp.eq.s32.totalorder %s26, 1
      %p184 = scmp.ne.s32.totalorder %s179, %s181
      %p185 = scmp.eq.s32.totalorder %s26, 0
      %p186 = por %p184, %p185
      %p187 = scmp.ne.s32.totalorder %s179, %s181
      %p188 = scmp.eq.s32.totalorder %s31, 1
      %p189 = por %p187, %p188
      %p190 = scmp.ne.s32.totalorder %s181, %s182
      %p191 = scmp.eq.s32.totalorder %s31, 0
      %p192 = por %p190, %p191
      %p193 = scmp.ne.s32.totalorder %s181, %s182
      %p194 = scmp.eq.s32.totalorder %s32, 1
      %p195 = por %p193, %p194
      %p197 = scmp.ne.s32.totalorder %s182, %s196
      %p198 = scmp.eq.s32.totalorder %s32, 0
      %p199 = por %p197, %p198
      %s201 = sadd.s32 %s200, 1
      %p204 = scmp.eq.s32.totalorder %s26, 1
      %p205 = scmp.ne.s32.totalorder %s200, %s202
      %p206 = scmp.eq.s32.totalorder %s26, 0
      %p207 = por %p205, %p206
      %p208 = scmp.ne.s32.totalorder %s200, %s202
      %p209 = scmp.eq.s32.totalorder %s31, 1
      %p210 = por %p208, %p209
      %p211 = scmp.ne.s32.totalorder %s202, %s203
      %p212 = scmp.eq.s32.totalorder %s31, 0
      %p213 = por %p211, %p212
      %p214 = scmp.ne.s32.totalorder %s202, %s203
      %p215 = scmp.eq.s32.totalorder %s32, 1
      %p216 = por %p214, %p215
      %p218 = scmp.ne.s32.totalorder %s203, %s217
      %p219 = scmp.eq.s32.totalorder %s32, 0
      %p220 = por %p218, %p219
      %s222 = sadd.s32 %s221, 1
      %p225 = scmp.eq.s32.totalorder %s26, 1
      %p226 = scmp.ne.s32.totalorder %s221, %s223
      %p227 = scmp.eq.s32.totalorder %s26, 0
      %p228 = por %p226, %p227
      %p229 = scmp.ne.s32.totalorder %s221, %s223
      %p230 = scmp.eq.s32.totalorder %s31, 1
      %p231 = por %p229, %p230
      %p232 = scmp.ne.s32.totalorder %s223, %s224
      %p233 = scmp.eq.s32.totalorder %s31, 0
      %p234 = por %p232, %p233
      %p235 = scmp.ne.s32.totalorder %s223, %s224
      %p236 = scmp.eq.s32.totalorder %s32, 1
      %p237 = por %p235, %p236
      %p239 = scmp.ne.s32.totalorder %s224, %s238
      %p240 = scmp.eq.s32.totalorder %s32, 0
      %p241 = por %p239, %p240
      %s243 = sadd.s32 %s242, 1
      %p246 = scmp.eq.s32.totalorder %s26, 1
      %p247 = scmp.ne.s32.totalorder %s242, %s244
      %p248 = scmp.eq.s32.totalorder %s26, 0
      %p249 = por %p247, %p248
      %p250 = scmp.ne.s32.totalorder %s242, %s244
      %p251 = scmp.eq.s32.totalorder %s31, 1
      %p252 = por %p250, %p251
      %p253 = scmp.ne.s32.totalorder %s244, %s245
      %p254 = scmp.eq.s32.totalorder %s31, 0
      %p255 = por %p253, %p254
      %p256 = scmp.ne.s32.totalorder %s244, %s245
      %p257 = scmp.eq.s32.totalorder %s32, 1
      %p258 = por %p256, %p257
      %p260 = scmp.ne.s32.totalorder %s245, %s259
      %p261 = scmp.eq.s32.totalorder %s32, 0
      %p262 = por %p260, %p261
      %s264 = sadd.s32 %s263, 1
      %p267 = scmp.eq.s32.totalorder %s26, 1
      %p268 = scmp.ne.s32.totalorder %s263, %s265
      %p269 = scmp.eq.s32.totalorder %s26, 0
      %p270 = por %p268, %p269
      %p271 = scmp.ne.s32.totalorder %s263, %s265
      %p272 = scmp.eq.s32.totalorder %s31, 1
      %p273 = por %p271, %p272
      %p274 = scmp.ne.s32.totalorder %s265, %s266
      %p275 = scmp.eq.s32.totalorder %s31, 0
      %p276 = por %p274, %p275
      %p277 = scmp.ne.s32.totalorder %s265, %s266
      %p278 = scmp.eq.s32.totalorder %s32, 1
      %p279 = por %p277, %p278
      %p281 = scmp.ne.s32.totalorder %s266, %s280
      %p282 = scmp.eq.s32.totalorder %s32, 0
      %p283 = por %p281, %p282
      %s285 = sadd.s32 %s284, 1
      %p288 = scmp.eq.s32.totalorder %s26, 1
      %p289 = scmp.ne.s32.totalorder %s284, %s286
      %p290 = scmp.eq.s32.totalorder %s26, 0
      %p291 = por %p289, %p290
      %p292 = scmp.ne.s32.totalorder %s284, %s286
      %p293 = scmp.eq.s32.totalorder %s31, 1
      %p294 = por %p292, %p293
      %p295 = scmp.ne.s32.totalorder %s286, %s287
      %p296 = scmp.eq.s32.totalorder %s31, 0
      %p297 = por %p295, %p296
      %p298 = scmp.ne.s32.totalorder %s286, %s287
      %p299 = scmp.eq.s32.totalorder %s32, 1
      %p300 = por %p298, %p299
      %p302 = scmp.ne.s32.totalorder %s287, %s301
      %p303 = scmp.eq.s32.totalorder %s32, 0
      %p304 = por %p302, %p303
      %s306 = sadd.s32 %s305, 1
      %p309 = scmp.eq.s32.totalorder %s26, 1
      %p310 = scmp.ne.s32.totalorder %s305, %s307
      %p311 = scmp.eq.s32.totalorder %s26, 0
      %p312 = por %p310, %p311
      %p313 = scmp.ne.s32.totalorder %s305, %s307
      %p314 = scmp.eq.s32.totalorder %s31, 1
      %p315 = por %p313, %p314
      %p316 = scmp.ne.s32.totalorder %s307, %s308
      %p317 = scmp.eq.s32.totalorder %s31, 0
      %p318 = por %p316, %p317
      %p319 = scmp.ne.s32.totalorder %s307, %s308
      %p320 = scmp.eq.s32.totalorder %s32, 1
      %p321 = por %p319, %p320
      %p323 = scmp.ne.s32.totalorder %s308, %s322
      %p324 = scmp.eq.s32.totalorder %s32, 0
      %p325 = por %p323, %p324
      %s326 = ssub.s32 %s33, %s45
      %p327 = scmp.eq.s32.totalorder %s326, 0
      %s329 = sadd.s32 %s328, 1
      %s330 = scalar_select %p327, %s328, %s329
      %p333 = pneg %p327
      %p334 = scmp.eq.s32.totalorder %s26, 1
      %p335 = por %p333, %p334
      %p336 = scmp.ne.s32.totalorder %s328, %s331
      %p337 = scmp.eq.s32.totalorder %s26, 0
      %p338 = por %p336, %p337
      %p339 = scmp.ne.s32.totalorder %s328, %s331
      %p340 = scmp.eq.s32.totalorder %s31, 1
      %p341 = por %p339, %p340
      %p342 = scmp.ne.s32.totalorder %s331, %s332
      %p343 = scmp.eq.s32.totalorder %s31, 0
      %p344 = por %p342, %p343
      %p345 = scmp.ne.s32.totalorder %s331, %s332
      %p346 = scmp.eq.s32.totalorder %s32, 1
      %p347 = por %p345, %p346
      %p349 = scmp.ne.s32.totalorder %s332, %s348
      %p350 = scmp.eq.s32.totalorder %s32, 0
      %p351 = por %p349, %p350
      %p352 = scmp.le.s32.totalorder 1, %s26
      %p353 = scmp.lt.s32.totalorder %s26, 3
      %p354 = pnand %p352, %p353
      %p355 = pneg %p354
      // Predicated region
      $region9: #{tpu_custom_call.1} parent=5 // pred_check
        _
      $region10: #{tpu_custom_call.1} parent=5 // pred_check_branch
        %357 = sbr.rel (%p354) target = $region12
      $region11: #{tpu_custom_call.1} parent=5 // pred_region
        %s358 = ssub.s32 %s26, 1
        // Predicated region
        $region13: #{tpu_custom_call.1} parent=11 // pred_check
          %p359 = pneg %p87
        $region14: #{tpu_custom_call.1} parent=11 // pred_check_branch
          %361 = sbr.rel (%p359) target = $region16
        $region15: #{tpu_custom_call.1} parent=11 // pred_region
          %s363 = ssub.s32 32, 32
          %364 = vsyncadd [#allocation4], %s363
          %s366 = sshll.u32 [#allocation3], 4
          %s367 = int_to_ptr.vmem [resolvable:$true] %s366
          %369 = dma.hbm_to_vmem [thread:$0]  %s1, 32, %s367, [#allocation4]
        $region16: #{tpu_custom_call.1} parent=11 // pred_fallthru
          _
        // Predicated region
        $region17: #{tpu_custom_call.1} parent=11 // pred_check
          %p370 = pneg %p108
        $region18: #{tpu_custom_call.1} parent=11 // pred_check_branch
          %372 = sbr.rel (%p370) target = $region20
        $region19: #{tpu_custom_call.1} parent=11 // pred_region
          _
        $region20: #{tpu_custom_call.1} parent=11 // pred_fallthru
          _
        // Predicated region
        $region21: #{tpu_custom_call.1} parent=11 // pred_check
          %p373 = pneg %p129
        $region22: #{tpu_custom_call.1} parent=11 // pred_check_branch
          %375 = sbr.rel (%p373) target = $region24
        $region23: #{tpu_custom_call.1} parent=11 // pred_region
          _
        $region24: #{tpu_custom_call.1} parent=11 // pred_fallthru
          _
        // Predicated region
        $region25: #{tpu_custom_call.1} parent=11 // pred_check
          %p376 = pneg %p150
        $region26: #{tpu_custom_call.1} parent=11 // pred_check_branch
          %378 = sbr.rel (%p376) target = $region28
        $region27: #{tpu_custom_call.1} parent=11 // pred_region
          %s380 = ssub.s32 16, 16
          %381 = vsyncadd [#allocation7], %s380
          %s383 = sshll.u32 [#allocation6], 4
          %s384 = int_to_ptr.vmem [resolvable:$true] %s383
          %386 = dma.hbm_to_vmem [thread:$0]  %s4, 16, %s384, [#allocation7]
        $region28: #{tpu_custom_call.1} parent=11 // pred_fallthru
          _
        // Predicated region
        $region29: #{tpu_custom_call.1} parent=11 // pred_check
          %p387 = pneg %p171
        $region30: #{tpu_custom_call.1} parent=11 // pred_check_branch
          %389 = sbr.rel (%p387) target = $region32
        $region31: #{tpu_custom_call.1} parent=11 // pred_region
          %s391 = ssub.s32 8192, 8192
          %392 = vsyncadd [#allocation7], %s391
          %s393 = sshll.u32 [#allocation8], 4
          %s394 = int_to_ptr.vmem [resolvable:$true] %s393
          %399 = dma.hbm_to_vmem [thread:$0]  %s5, 8192, %s394, [#allocation7], 512, 512, 32
        $region32: #{tpu_custom_call.1} parent=11 // pred_fallthru
          _
        // Predicated region
        $region33: #{tpu_custom_call.1} parent=11 // pred_check
          %p400 = pneg %p192
        $region34: #{tpu_custom_call.1} parent=11 // pred_check_branch
          %402 = sbr.rel (%p400) target = $region36
        $region35: #{tpu_custom_call.1} parent=11 // pred_region
          _
        $region36: #{tpu_custom_call.1} parent=11 // pred_fallthru
          _
        // Predicated region
        $region37: #{tpu_custom_call.1} parent=11 // pred_check
          %p403 = pneg %p213
        $region38: #{tpu_custom_call.1} parent=11 // pred_check_branch
          %405 = sbr.rel (%p403) target = $region40
        $region39: #{tpu_custom_call.1} parent=11 // pred_region
          %s407 = ssub.s32 32768, 32768
          %408 = vsyncadd [#allocation10], %s407
          %s409 = sshll.u32 [#allocation9], 4
          %s410 = int_to_ptr.vmem [resolvable:$true] %s409
          %415 = dma.hbm_to_vmem [thread:$0]  %s7, 32768, %s410, [#allocation10], 256, 256, 16
        $region40: #{tpu_custom_call.1} parent=11 // pred_fallthru
          _
        // Predicated region
        $region41: #{tpu_custom_call.1} parent=11 // pred_check
          %p416 = pneg %p234
        $region42: #{tpu_custom_call.1} parent=11 // pred_check_branch
          %418 = sbr.rel (%p416) target = $region44
        $region43: #{tpu_custom_call.1} parent=11 // pred_region
          _
        $region44: #{tpu_custom_call.1} parent=11 // pred_fallthru
          _
        // Predicated region
        $region45: #{tpu_custom_call.1} parent=11 // pred_check
          %p419 = pneg %p255
        $region46: #{tpu_custom_call.1} parent=11 // pred_check_branch
          %421 = sbr.rel (%p419) target = $region48
        $region47: #{tpu_custom_call.1} parent=11 // pred_region
          %s423 = ssub.s32 8192, 8192
          %424 = vsyncadd [#allocation10], %s423
          %s425 = sshll.u32 [#allocation11], 4
          %s426 = int_to_ptr.vmem [resolvable:$true] %s425
          %431 = dma.hbm_to_vmem [thread:$0]  %s9, 8192, %s426, [#allocation10], 128, 128, 8
        $region48: #{tpu_custom_call.1} parent=11 // pred_fallthru
          _
        // Predicated region
        $region49: #{tpu_custom_call.1} parent=11 // pred_check
          %p432 = pneg %p276
        $region50: #{tpu_custom_call.1} parent=11 // pred_check_branch
          %434 = sbr.rel (%p432) target = $region52
        $region51: #{tpu_custom_call.1} parent=11 // pred_region
          %s436 = ssub.s32 32, 32
          %437 = vsyncadd [#allocation13], %s436
          %s439 = sshll.u32 [#allocation12], 4
          %s440 = int_to_ptr.vmem [resolvable:$true] %s439
          %442 = dma.hbm_to_vmem [thread:$0]  %s10, 32, %s440, [#allocation13]
        $region52: #{tpu_custom_call.1} parent=11 // pred_fallthru
          _
        // Predicated region
        $region53: #{tpu_custom_call.1} parent=11 // pred_check
          %p443 = pneg %p297
        $region54: #{tpu_custom_call.1} parent=11 // pred_check_branch
          %445 = sbr.rel (%p443) target = $region56
        $region55: #{tpu_custom_call.1} parent=11 // pred_region
          _
        $region56: #{tpu_custom_call.1} parent=11 // pred_fallthru
          _
        // Predicated region
        $region57: #{tpu_custom_call.1} parent=11 // pred_check
          %p446 = pneg %p318
        $region58: #{tpu_custom_call.1} parent=11 // pred_check_branch
          %448 = sbr.rel (%p446) target = $region60
        $region59: #{tpu_custom_call.1} parent=11 // pred_region
          _
        $region60: #{tpu_custom_call.1} parent=11 // pred_fallthru
          _
      $region12: #{tpu_custom_call.1} parent=5 // pred_fallthru
        _
      %p449 = scmp.lt.s32.totalorder %s26, 2
      // Predicated region
      $region61: #{tpu_custom_call.1} parent=5 // pred_check
        %p450 = pneg %p449
      $region62: #{tpu_custom_call.1} parent=5 // pred_check_branch
        %452 = sbr.rel (%p450) target = $region64
      $region63: #{tpu_custom_call.1} parent=5 // pred_region
        // Predicated region
        $region65: #{tpu_custom_call.1} parent=63 // pred_check
          %p453 = pneg %p60
        $region66: #{tpu_custom_call.1} parent=63 // pred_check_branch
          %455 = sbr.rel (%p453) target = $region68
        $region67: #{tpu_custom_call.1} parent=63 // pred_region
          %s456 = sadd.s32 %s33, %s34
          %s457 = smul.u32 16, %s456
          %p458 = scmp.lt.s32.totalorder %s457, 31
          %s459 = scalar_select %p458, %s457, 31
          %s460 = smul.addr %s459, 4
          %s461 = scalar_lea.vmem %s0, %s460
          %s462 = sadd.s32 %s33, %s34
          %s463 = smul.u32 16, %s462
        $region68: #{tpu_custom_call.1} parent=63 // pred_fallthru
          _
      $region64: #{tpu_custom_call.1} parent=5 // pred_fallthru
        _
      %p464 = scmp.le.s32.totalorder 1, %s26
      %p465 = scmp.lt.s32.totalorder %s26, 3
      %p466 = pnand %p464, %p465
      %p467 = pneg %p466
      // Predicated region
      $region69: #{tpu_custom_call.1} parent=5 // pred_check
        _
      $region70: #{tpu_custom_call.1} parent=5 // pred_check_branch
        %469 = sbr.rel (%p466) target = $region72
      $region71: #{tpu_custom_call.1} parent=5 // pred_region
        %s470 = ssub.s32 %s26, 1
        // Predicated region
        $region73: #{tpu_custom_call.1} parent=71 // pred_check
          %p471 = pneg %p87
        $region74: #{tpu_custom_call.1} parent=71 // pred_check_branch
          %473 = sbr.rel (%p471) target = $region76
        $region75: #{tpu_custom_call.1} parent=71 // pred_region
          %474 = dma.done [#allocation4], 32
        $region76: #{tpu_custom_call.1} parent=71 // pred_fallthru
          _
        // Predicated region
        $region77: #{tpu_custom_call.1} parent=71 // pred_check
          %p475 = pneg %p150
        $region78: #{tpu_custom_call.1} parent=71 // pred_check_branch
          %477 = sbr.rel (%p475) target = $region80
        $region79: #{tpu_custom_call.1} parent=71 // pred_region
          %478 = dma.done [#allocation7], 16
        $region80: #{tpu_custom_call.1} parent=71 // pred_fallthru
          _
        // Predicated region
        $region81: #{tpu_custom_call.1} parent=71 // pred_check
          %p479 = pneg %p171
        $region82: #{tpu_custom_call.1} parent=71 // pred_check_branch
          %481 = sbr.rel (%p479) target = $region84
        $region83: #{tpu_custom_call.1} parent=71 // pred_region
          %482 = dma.done [#allocation7], 8192
        $region84: #{tpu_custom_call.1} parent=71 // pred_fallthru
          _
        // Predicated region
        $region85: #{tpu_custom_call.1} parent=71 // pred_check
          %p483 = pneg %p213
        $region86: #{tpu_custom_call.1} parent=71 // pred_check_branch
          %485 = sbr.rel (%p483) target = $region88
        $region87: #{tpu_custom_call.1} parent=71 // pred_region
          %486 = dma.done [#allocation10], 32768
        $region88: #{tpu_custom_call.1} parent=71 // pred_fallthru
          _
        // Predicated region
        $region89: #{tpu_custom_call.1} parent=71 // pred_check
          %p487 = pneg %p255
        $region90: #{tpu_custom_call.1} parent=71 // pred_check_branch
          %489 = sbr.rel (%p487) target = $region92
        $region91: #{tpu_custom_call.1} parent=71 // pred_region
          %490 = dma.done [#allocation10], 8192
        $region92: #{tpu_custom_call.1} parent=71 // pred_fallthru
          _
        // Predicated region
        $region93: #{tpu_custom_call.1} parent=71 // pred_check
          %p491 = pneg %p276
        $region94: #{tpu_custom_call.1} parent=71 // pred_check_branch
          %493 = sbr.rel (%p491) target = $region96
        $region95: #{tpu_custom_call.1} parent=71 // pred_region
          %494 = dma.done [#allocation13], 32
        $region96: #{tpu_custom_call.1} parent=71 // pred_fallthru
          _
        %s495 = sadd.s32 %s35, %s36
        %s496 = smul.u32 16, %s495
        %p497 = scmp.lt.s32.totalorder %s496, 31
        %s498 = scalar_select %p497, %s496, 31
        %s499 = smul.addr %s498, 4
        %s500 = scalar_lea.vmem %s0, %s499
        %p501 = pneg %p66
        %p502 = pneg %p63
        %p503 = pneg %p87
        %p504 = pneg %p84
        %p505 = pneg %p108
        %p506 = pneg %p105
        %p507 = pneg %p129
        %p508 = pneg %p126
        %p509 = pneg %p150
        %p510 = pneg %p147
        %p511 = pneg %p171
        %p512 = pneg %p168
        %p513 = pneg %p192
        %p514 = pneg %p189
        %p515 = pneg %p213
        %p516 = pneg %p210
        %p517 = pneg %p234
        %p518 = pneg %p231
        %p519 = pneg %p255
        %p520 = pneg %p252
        %p521 = pneg %p276
        %p522 = pneg %p273
        %p523 = pneg %p297
        %p524 = pneg %p294
        %p525 = pneg %p318
        %p526 = pneg %p315
        %p527 = pneg %p344
        %p528 = pneg %p341
        %s529 = sand.u32 %s331, 1
        %s530 = scalar_lea.sflag [#allocation5], %s529
        %s531 = sand.u32 %s331, 1
        %s532 = smul.addr %s531, 8
        %s533 = scalar_lea.vmem [#allocation14], %s532
        %s534 = sadd.s32 %s35, %s36
        %s535 = smul.u32 16, %s534
        %p536 = scmp.lt.s32.totalorder %s535, 31
        %s537 = scalar_select %p536, %s535, 31
        %s538 = smul.addr %s537, 4
        %s539 = scalar_lea.vmem %s0, %s538
        %s540 = sadd.s32 %s35, %s36
        %s541 = smul.u32 16, %s540
        %v544 = vld [vmem:[%s539] sm:$0xf]
        %v545 = vld [vmem:[%s539 + $0x4] sm:$0xf]
        %v546 = vld [vmem:[%s539 + $0x8] sm:$0xf]
        %v547 = vld [vmem:[%s539 + $0xc] sm:$0xf]
        %v548 = vld [vmem:[%s539 + $0x10] sm:$0xf]
        %v549 = vld [vmem:[%s539 + $0x14] sm:$0xf]
        %v550 = vld [vmem:[%s539 + $0x18] sm:$0xf]
        %v551 = vld [vmem:[%s539 + $0x1c] sm:$0xf]
        %v552 = vld [vmem:[%s539 + $0x20] sm:$0xf]
        %v553 = vld [vmem:[%s539 + $0x24] sm:$0xf]
        %v554 = vld [vmem:[%s539 + $0x28] sm:$0xf]
        %v555 = vld [vmem:[%s539 + $0x2c] sm:$0xf]
        %v556 = vld [vmem:[%s539 + $0x30] sm:$0xf]
        %v557 = vld [vmem:[%s539 + $0x34] sm:$0xf]
        %v558 = vld [vmem:[%s539 + $0x38] sm:$0xf]
        %v559 = vld [vmem:[%s539 + $0x3c] sm:$0xf]
        %v560 = vunpack.c.l.bf16 %v544
        %v561 = vunpack.c.l.bf16 %v545
        %v562 = vunpack.c.l.bf16 %v546
        %v563 = vunpack.c.l.bf16 %v547
        %v564 = vunpack.c.l.bf16 %v548
        %v565 = vunpack.c.l.bf16 %v549
        %v566 = vunpack.c.l.bf16 %v550
        %v567 = vunpack.c.l.bf16 %v551
        %v568 = vunpack.c.l.bf16 %v552
        %v569 = vunpack.c.l.bf16 %v553
        %v570 = vunpack.c.l.bf16 %v554
        %v571 = vunpack.c.l.bf16 %v555
        %v572 = vunpack.c.l.bf16 %v556
        %v573 = vunpack.c.l.bf16 %v557
        %v574 = vunpack.c.l.bf16 %v558
        %v575 = vunpack.c.l.bf16 %v559
        %v576 = vld [vmem:[#allocation3] sm:$0x3]
        %v577 = vunpack.c.l.bf16 %v576
        %v578 = vld [vmem:[%s2] sm:$0x1]
        %580 = vset.pattern.permute.xlu0 0
        %581 = vperm.xlu0 %580, %v560
        %v582 = vpop.permute.xlu0 %581
        %585 = vset.pattern.permute.xlu0 0
        %586 = vperm.xlu0 %585, %v561
        %v587 = vpop.permute.xlu0 %586
        %590 = vset.pattern.permute.xlu0 0
        %591 = vperm.xlu0 %590, %v562
        %v592 = vpop.permute.xlu0 %591
        %595 = vset.pattern.permute.xlu0 0
        %596 = vperm.xlu0 %595, %v563
        %v597 = vpop.permute.xlu0 %596
        %600 = vset.pattern.permute.xlu0 0
        %601 = vperm.xlu0 %600, %v564
        %v602 = vpop.permute.xlu0 %601
        %605 = vset.pattern.permute.xlu0 0
        %606 = vperm.xlu0 %605, %v565
        %v607 = vpop.permute.xlu0 %606
        %610 = vset.pattern.permute.xlu0 0
        %611 = vperm.xlu0 %610, %v566
        %v612 = vpop.permute.xlu0 %611
        %615 = vset.pattern.permute.xlu0 0
        %616 = vperm.xlu0 %615, %v567
        %v617 = vpop.permute.xlu0 %616
        %620 = vset.pattern.permute.xlu0 0
        %621 = vperm.xlu0 %620, %v568
        %v622 = vpop.permute.xlu0 %621
        %625 = vset.pattern.permute.xlu0 0
        %626 = vperm.xlu0 %625, %v569
        %v627 = vpop.permute.xlu0 %626
        %630 = vset.pattern.permute.xlu0 0
        %631 = vperm.xlu0 %630, %v570
        %v632 = vpop.permute.xlu0 %631
        %635 = vset.pattern.permute.xlu0 0
        %636 = vperm.xlu0 %635, %v571
        %v637 = vpop.permute.xlu0 %636
        %640 = vset.pattern.permute.xlu0 0
        %641 = vperm.xlu0 %640, %v572
        %v642 = vpop.permute.xlu0 %641
        %645 = vset.pattern.permute.xlu0 0
        %646 = vperm.xlu0 %645, %v573
        %v647 = vpop.permute.xlu0 %646
        %650 = vset.pattern.permute.xlu0 0
        %651 = vperm.xlu0 %650, %v574
        %v652 = vpop.permute.xlu0 %651
        %655 = vset.pattern.permute.xlu0 0
        %656 = vperm.xlu0 %655, %v575
        %v657 = vpop.permute.xlu0 %656
        %v659 = vlaneseq
        %v660 = vshrl.u32 %v659, 7
        %v661 = vsub.s32 0, %v660
        %v662 = vrot.slane %v577, %v661
        %v663 = vmul.f32 %v582, %v662
        %v664 = vmul.f32 %v587, %v662
        %v665 = vmul.f32 %v592, %v662
        %v666 = vmul.f32 %v597, %v662
        %v667 = vmul.f32 %v602, %v662
        %v668 = vmul.f32 %v607, %v662
        %v669 = vmul.f32 %v612, %v662
        %v670 = vmul.f32 %v617, %v662
        %v671 = vmul.f32 %v622, %v662
        %v672 = vmul.f32 %v627, %v662
        %v673 = vmul.f32 %v632, %v662
        %v674 = vmul.f32 %v637, %v662
        %v675 = vmul.f32 %v642, %v662
        %v676 = vmul.f32 %v647, %v662
        %v677 = vmul.f32 %v652, %v662
        %v678 = vmul.f32 %v657, %v662
        %v680 = vlaneseq
        %v681 = vshrl.u32 %v680, 7
        %v682 = vsub.s32 0, %v681
        %v683 = vrot.slane %v578, %v682
        %v685 = vadd.f32 %v683, %v663
        %v686 = vadd.f32 %v683, %v664
        %v687 = vadd.f32 %v683, %v665
        %v688 = vadd.f32 %v683, %v666
        %v689 = vadd.f32 %v683, %v667
        %v690 = vadd.f32 %v683, %v668
        %v691 = vadd.f32 %v683, %v669
        %v692 = vadd.f32 %v683, %v670
        %v693 = vadd.f32 %v683, %v671
        %v694 = vadd.f32 %v683, %v672
        %v695 = vadd.f32 %v683, %v673
        %v696 = vadd.f32 %v683, %v674
        %v697 = vadd.f32 %v683, %v675
        %v698 = vadd.f32 %v683, %v676
        %v699 = vadd.f32 %v683, %v677
        %v700 = vadd.f32 %v683, %v678
        %701 = vset.pattern.permute.xlu0 1
        %702 = vperm.xlu0 %701, %v560
        %v703 = vpop.permute.xlu0 %702
        %705 = vset.pattern.permute.xlu0 1
        %706 = vperm.xlu0 %705, %v561
        %v707 = vpop.permute.xlu0 %706
        %709 = vset.pattern.permute.xlu0 1
        %710 = vperm.xlu0 %709, %v562
        %v711 = vpop.permute.xlu0 %710
        %713 = vset.pattern.permute.xlu0 1
        %714 = vperm.xlu0 %713, %v563
        %v715 = vpop.permute.xlu0 %714
        %717 = vset.pattern.permute.xlu0 1
        %718 = vperm.xlu0 %717, %v564
        %v719 = vpop.permute.xlu0 %718
        %721 = vset.pattern.permute.xlu0 1
        %722 = vperm.xlu0 %721, %v565
        %v723 = vpop.permute.xlu0 %722
        %725 = vset.pattern.permute.xlu0 1
        %726 = vperm.xlu0 %725, %v566
        %v727 = vpop.permute.xlu0 %726
        %729 = vset.pattern.permute.xlu0 1
        %730 = vperm.xlu0 %729, %v567
        %v731 = vpop.permute.xlu0 %730
        %733 = vset.pattern.permute.xlu0 1
        %734 = vperm.xlu0 %733, %v568
        %v735 = vpop.permute.xlu0 %734
        %737 = vset.pattern.permute.xlu0 1
        %738 = vperm.xlu0 %737, %v569
        %v739 = vpop.permute.xlu0 %738
        %741 = vset.pattern.permute.xlu0 1
        %742 = vperm.xlu0 %741, %v570
        %v743 = vpop.permute.xlu0 %742
        %745 = vset.pattern.permute.xlu0 1
        %746 = vperm.xlu0 %745, %v571
        %v747 = vpop.permute.xlu0 %746
        %749 = vset.pattern.permute.xlu0 1
        %750 = vperm.xlu0 %749, %v572
        %v751 = vpop.permute.xlu0 %750
        %753 = vset.pattern.permute.xlu0 1
        %754 = vperm.xlu0 %753, %v573
        %v755 = vpop.permute.xlu0 %754
        %757 = vset.pattern.permute.xlu0 1
        %758 = vperm.xlu0 %757, %v574
        %v759 = vpop.permute.xlu0 %758
        %761 = vset.pattern.permute.xlu0 1
        %762 = vperm.xlu0 %761, %v575
        %v763 = vpop.permute.xlu0 %762
        %v765 = vlaneseq
        %v766 = vshrl.u32 %v765, 7
        %v767 = vsub.s32 1, %v766
        %v768 = vrot.slane %v577, %v767
        %v769 = vmul.f32 %v703, %v768
        %v770 = vmul.f32 %v707, %v768
        %v771 = vmul.f32 %v711, %v768
        %v772 = vmul.f32 %v715, %v768
        %v773 = vmul.f32 %v719, %v768
        %v774 = vmul.f32 %v723, %v768
        %v775 = vmul.f32 %v727, %v768
        %v776 = vmul.f32 %v731, %v768
        %v777 = vmul.f32 %v735, %v768
        %v778 = vmul.f32 %v739, %v768
        %v779 = vmul.f32 %v743, %v768
        %v780 = vmul.f32 %v747, %v768
        %v781 = vmul.f32 %v751, %v768
        %v782 = vmul.f32 %v755, %v768
        %v783 = vmul.f32 %v759, %v768
        %v784 = vmul.f32 %v763, %v768
        %v785 = vadd.f32 %v685, %v769
        %v786 = vadd.f32 %v686, %v770
        %v787 = vadd.f32 %v687, %v771
        %v788 = vadd.f32 %v688, %v772
        %v789 = vadd.f32 %v689, %v773
        %v790 = vadd.f32 %v690, %v774
        %v791 = vadd.f32 %v691, %v775
        %v792 = vadd.f32 %v692, %v776
        %v793 = vadd.f32 %v693, %v777
        %v794 = vadd.f32 %v694, %v778
        %v795 = vadd.f32 %v695, %v779
        %v796 = vadd.f32 %v696, %v780
        %v797 = vadd.f32 %v697, %v781
        %v798 = vadd.f32 %v698, %v782
        %v799 = vadd.f32 %v699, %v783
        %v800 = vadd.f32 %v700, %v784
        %801 = vset.pattern.permute.xlu0 2
        %802 = vperm.xlu0 %801, %v560
        %v803 = vpop.permute.xlu0 %802
        %805 = vset.pattern.permute.xlu0 2
        %806 = vperm.xlu0 %805, %v561
        %v807 = vpop.permute.xlu0 %806
        %809 = vset.pattern.permute.xlu0 2
        %810 = vperm.xlu0 %809, %v562
        %v811 = vpop.permute.xlu0 %810
        %813 = vset.pattern.permute.xlu0 2
        %814 = vperm.xlu0 %813, %v563
        %v815 = vpop.permute.xlu0 %814
        %817 = vset.pattern.permute.xlu0 2
        %818 = vperm.xlu0 %817, %v564
        %v819 = vpop.permute.xlu0 %818
        %821 = vset.pattern.permute.xlu0 2
        %822 = vperm.xlu0 %821, %v565
        %v823 = vpop.permute.xlu0 %822
        %825 = vset.pattern.permute.xlu0 2
        %826 = vperm.xlu0 %825, %v566
        %v827 = vpop.permute.xlu0 %826
        %829 = vset.pattern.permute.xlu0 2
        %830 = vperm.xlu0 %829, %v567
        %v831 = vpop.permute.xlu0 %830
        %833 = vset.pattern.permute.xlu0 2
        %834 = vperm.xlu0 %833, %v568
        %v835 = vpop.permute.xlu0 %834
        %837 = vset.pattern.permute.xlu0 2
        %838 = vperm.xlu0 %837, %v569
        %v839 = vpop.permute.xlu0 %838
        %841 = vset.pattern.permute.xlu0 2
        %842 = vperm.xlu0 %841, %v570
        %v843 = vpop.permute.xlu0 %842
        %845 = vset.pattern.permute.xlu0 2
        %846 = vperm.xlu0 %845, %v571
        %v847 = vpop.permute.xlu0 %846
        %849 = vset.pattern.permute.xlu0 2
        %850 = vperm.xlu0 %849, %v572
        %v851 = vpop.permute.xlu0 %850
        %853 = vset.pattern.permute.xlu0 2
        %854 = vperm.xlu0 %853, %v573
        %v855 = vpop.permute.xlu0 %854
        %857 = vset.pattern.permute.xlu0 2
        %858 = vperm.xlu0 %857, %v574
        %v859 = vpop.permute.xlu0 %858
        %861 = vset.pattern.permute.xlu0 2
        %862 = vperm.xlu0 %861, %v575
        %v863 = vpop.permute.xlu0 %862
        %v865 = vlaneseq
        %v866 = vshrl.u32 %v865, 7
        %v867 = vsub.s32 2, %v866
        %v868 = vrot.slane %v577, %v867
        %v869 = vmul.f32 %v803, %v868
        %v870 = vmul.f32 %v807, %v868
        %v871 = vmul.f32 %v811, %v868
        %v872 = vmul.f32 %v815, %v868
        %v873 = vmul.f32 %v819, %v868
        %v874 = vmul.f32 %v823, %v868
        %v875 = vmul.f32 %v827, %v868
        %v876 = vmul.f32 %v831, %v868
        %v877 = vmul.f32 %v835, %v868
        %v878 = vmul.f32 %v839, %v868
        %v879 = vmul.f32 %v843, %v868
        %v880 = vmul.f32 %v847, %v868
        %v881 = vmul.f32 %v851, %v868
        %v882 = vmul.f32 %v855, %v868
        %v883 = vmul.f32 %v859, %v868
        %v884 = vmul.f32 %v863, %v868
        %v885 = vadd.f32 %v785, %v869
        %v886 = vadd.f32 %v786, %v870
        %v887 = vadd.f32 %v787, %v871
        %v888 = vadd.f32 %v788, %v872
        %v889 = vadd.f32 %v789, %v873
        %v890 = vadd.f32 %v790, %v874
        %v891 = vadd.f32 %v791, %v875
        %v892 = vadd.f32 %v792, %v876
        %v893 = vadd.f32 %v793, %v877
        %v894 = vadd.f32 %v794, %v878
        %v895 = vadd.f32 %v795, %v879
        %v896 = vadd.f32 %v796, %v880
        %v897 = vadd.f32 %v797, %v881
        %v898 = vadd.f32 %v798, %v882
        %v899 = vadd.f32 %v799, %v883
        %v900 = vadd.f32 %v800, %v884
        %v901 = vmax.f32 %v885, 0.0
        %v902 = vmax.f32 %v886, 0.0
        %v903 = vmax.f32 %v887, 0.0
        %v904 = vmax.f32 %v888, 0.0
        %v905 = vmax.f32 %v889, 0.0
        %v906 = vmax.f32 %v890, 0.0
        %v907 = vmax.f32 %v891, 0.0
        %v908 = vmax.f32 %v892, 0.0
        %v909 = vmax.f32 %v893, 0.0
        %v910 = vmax.f32 %v894, 0.0
        %v911 = vmax.f32 %v895, 0.0
        %v912 = vmax.f32 %v896, 0.0
        %v913 = vmax.f32 %v897, 0.0
        %v914 = vmax.f32 %v898, 0.0
        %v915 = vmax.f32 %v899, 0.0
        %v916 = vmax.f32 %v900, 0.0
        %v917 = vpack.c.bf16 %v902, %v901
        %v918 = vpack.c.bf16 %v904, %v903
        %v919 = vpack.c.bf16 %v906, %v905
        %v920 = vpack.c.bf16 %v908, %v907
        %v921 = vpack.c.bf16 %v910, %v909
        %v922 = vpack.c.bf16 %v912, %v911
        %v923 = vpack.c.bf16 %v914, %v913
        %v924 = vpack.c.bf16 %v916, %v915
        %v925 = vld [vmem:[%s3] sm:$0xf]
        %v926 = vld [vmem:[%s3 + $0x4] sm:$0xf]
        %v927 = vld [vmem:[%s3 + $0x8] sm:$0xf]
        %v928 = vld [vmem:[%s3 + $0xc] sm:$0xf]
        %v929 = vld [vmem:[%s3 + $0x10] sm:$0xf]
        %v930 = vld [vmem:[%s3 + $0x14] sm:$0xf]
        %v931 = vld [vmem:[%s3 + $0x18] sm:$0xf]
        %v932 = vld [vmem:[%s3 + $0x1c] sm:$0xf]
        %v933 = vld [vmem:[#allocation6] sm:$0x1]
        %v935 = vlaneseq
        %v936 = vshrl.u32 %v935, 7
        %v937 = vsub.s32 0, %v936
        %v938 = vrot.slane %v933, %v937
        %v948 = vunpack.c.l.b16 %v925
        %v949 = vunpack.c.l.b16 %v926
        %v950 = vunpack.c.l.b16 %v927
        %v951 = vunpack.c.l.b16 %v928
        %v952 = vunpack.c.l.b16 %v929
        %v953 = vunpack.c.l.b16 %v930
        %v954 = vunpack.c.l.b16 %v931
        %v955 = vunpack.c.l.b16 %v932
        %v956 = vpack.c.b16 %v949, %v948
        %v957 = vpack.c.b16 %v951, %v950
        %v958 = vpack.c.b16 %v953, %v952
        %v959 = vpack.c.b16 %v955, %v954
        %vm964 = vcmask 523264
        %v966 = vsel %vm964, %v917, 0
        %v969 = vsel %vm964, %v918, 0
        %v972 = vsel %vm964, %v919, 0
        %v975 = vsel %vm964, %v920, 0
        %v978 = vsel %vm964, %v921, 0
        %v981 = vsel %vm964, %v922, 0
        %v984 = vsel %vm964, %v923, 0
        %v987 = vsel %vm964, %v924, 0
        %989 = vmatprep.subr.bf16.mxu0 0
        %990 = vmatpush1.bf16.msra.mxu0 %v956
        %991 = vmatprep.subr.bf16.mxu0 0
        %992 = vmatpush1.bf16.msra.mxu0 %v957
        %993 = vmatprep.subr.bf16.mxu0 0
        %994 = vmatpush1.bf16.msra.mxu0 %v958
        %995 = vmatprep.subr.bf16.mxu0 0
        %996 = vmatpush1.bf16.msra.mxu0 %v959
        %997 = vmatprep.subr.bf16.mxu0 0
        %998 = vmatpush1.bf16.msra.mxu0 0
        %999 = vmatprep.subr.bf16.mxu0 0
        %1000 = vmatpush1.bf16.msra.mxu0 0
        %1001 = vmatprep.subr.bf16.mxu0 0
        %1002 = vmatpush1.bf16.msra.mxu0 0
        %1003 = vmatprep.subr.bf16.mxu0 0
        %1004 = vmatpush1.bf16.msra.mxu0 0
        %1005 = vmatprep.subr.bf16.mxu0 0
        %1006 = vmatpush1.bf16.msra.mxu0 0
        %1007 = vmatprep.subr.bf16.mxu0 0
        %1008 = vmatpush1.bf16.msra.mxu0 0
        %1009 = vmatprep.subr.bf16.mxu0 0
        %1010 = vmatpush1.bf16.msra.mxu0 0
        %1011 = vmatprep.subr.bf16.mxu0 0
        %1012 = vmatpush1.bf16.msra.mxu0 0
        %1013 = vmatprep.subr.bf16.mxu0 0
        %1014 = vmatpush1.bf16.msra.mxu0 0
        %1015 = vmatprep.subr.bf16.mxu0 0
        %1016 = vmatpush1.bf16.msra.mxu0 0
        %1017 = vmatprep.subr.bf16.mxu0 0
        %1018 = vmatpush1.bf16.msra.mxu0 0
        %1019 = vmatprep.subr.bf16.mxu0 0
        %1020 = vmatpush1.bf16.msra.mxu0 0
        %1021 = vmatprep.mubr.bf16.mxu0 0
        %1022 = vmatmul.mubr.bf16.gmra.mrb[0].mxu0 %v966
        %v1023 = vpop.f32.mrb[0].mxu0
        %v1024 = vadd.f32 %v938, %v1023
        %v1025 = vpop.f32.mrb[0].mxu0
        %v1026 = vpop.f32.mrb[0].mxu0
        %v1027 = vadd.f32 %v938, %v1026
        %v1028 = vpop.f32.mrb[0].mxu0
        %1029 = vmatprep.mubr.bf16.mxu0 0
        %1030 = vmatmul.mubr.bf16.gmra.mrb[0].mxu0 %v969
        %v1031 = vpop.f32.mrb[0].mxu0
        %v1032 = vadd.f32 %v938, %v1031
        %v1033 = vpop.f32.mrb[0].mxu0
        %v1034 = vpop.f32.mrb[0].mxu0
        %v1035 = vadd.f32 %v938, %v1034
        %v1036 = vpop.f32.mrb[0].mxu0
        %1037 = vmatprep.mubr.bf16.mxu0 0
        %1038 = vmatmul.mubr.bf16.gmra.mrb[0].mxu0 %v972
        %v1039 = vpop.f32.mrb[0].mxu0
        %v1040 = vadd.f32 %v938, %v1039
        %v1041 = vpop.f32.mrb[0].mxu0
        %v1042 = vpop.f32.mrb[0].mxu0
        %v1043 = vadd.f32 %v938, %v1042
        %v1044 = vpop.f32.mrb[0].mxu0
        %1045 = vmatprep.mubr.bf16.mxu0 0
        %1046 = vmatmul.mubr.bf16.gmra.mrb[0].mxu0 %v975
        %v1047 = vpop.f32.mrb[0].mxu0
        %v1048 = vadd.f32 %v938, %v1047
        %v1049 = vpop.f32.mrb[0].mxu0
        %v1050 = vpop.f32.mrb[0].mxu0
        %v1051 = vadd.f32 %v938, %v1050
        %v1052 = vpop.f32.mrb[0].mxu0
        %1053 = vmatprep.mubr.bf16.mxu0 0
        %1054 = vmatmul.mubr.bf16.gmra.mrb[0].mxu0 %v978
        %v1055 = vpop.f32.mrb[0].mxu0
        %v1056 = vadd.f32 %v938, %v1055
        %v1057 = vpop.f32.mrb[0].mxu0
        %v1058 = vpop.f32.mrb[0].mxu0
        %v1059 = vadd.f32 %v938, %v1058
        %v1060 = vpop.f32.mrb[0].mxu0
        %1061 = vmatprep.mubr.bf16.mxu0 0
        %1062 = vmatmul.mubr.bf16.gmra.mrb[0].mxu0 %v981
        %v1063 = vpop.f32.mrb[0].mxu0
        %v1064 = vadd.f32 %v938, %v1063
        %v1065 = vpop.f32.mrb[0].mxu0
        %v1066 = vpop.f32.mrb[0].mxu0
        %v1067 = vadd.f32 %v938, %v1066
        %v1068 = vpop.f32.mrb[0].mxu0
        %1069 = vmatprep.mubr.bf16.mxu0 0
        %1070 = vmatmul.mubr.bf16.gmra.mrb[0].mxu0 %v984
        %v1071 = vpop.f32.mrb[0].mxu0
        %v1072 = vadd.f32 %v938, %v1071
        %v1073 = vpop.f32.mrb[0].mxu0
        %v1074 = vpop.f32.mrb[0].mxu0
        %v1075 = vadd.f32 %v938, %v1074
        %v1076 = vpop.f32.mrb[0].mxu0
        %1077 = vmatprep.mubr.bf16.mxu0 0
        %1078 = vmatmul.mubr.bf16.gmra.mrb[0].mxu0 %v987
        %v1079 = vpop.f32.mrb[0].mxu0
        %v1080 = vadd.f32 %v938, %v1079
        %v1081 = vpop.f32.mrb[0].mxu0
        %v1082 = vpop.f32.mrb[0].mxu0
        %v1083 = vadd.f32 %v938, %v1082
        %v1084 = vpop.f32.mrb[0].mxu0
        %1085 = vdwg.mxu0
        %v1086 = vmax.f32 %v1024, 0.0
        %v1087 = vmax.f32 %v1027, 0.0
        %v1088 = vmax.f32 %v1032, 0.0
        %v1089 = vmax.f32 %v1035, 0.0
        %v1090 = vmax.f32 %v1040, 0.0
        %v1091 = vmax.f32 %v1043, 0.0
        %v1092 = vmax.f32 %v1048, 0.0
        %v1093 = vmax.f32 %v1051, 0.0
        %v1094 = vmax.f32 %v1056, 0.0
        %v1095 = vmax.f32 %v1059, 0.0
        %v1096 = vmax.f32 %v1064, 0.0
        %v1097 = vmax.f32 %v1067, 0.0
        %v1098 = vmax.f32 %v1072, 0.0
        %v1099 = vmax.f32 %v1075, 0.0
        %v1100 = vmax.f32 %v1080, 0.0
        %v1101 = vmax.f32 %v1083, 0.0
        %v1102 = vpack.c.bf16 %v1087, %v1086
        %v1103 = vpack.c.bf16 %v1089, %v1088
        %v1104 = vpack.c.bf16 %v1091, %v1090
        %v1105 = vpack.c.bf16 %v1093, %v1092
        %v1106 = vpack.c.bf16 %v1095, %v1094
        %v1107 = vpack.c.bf16 %v1097, %v1096
        %v1108 = vpack.c.bf16 %v1099, %v1098
        %v1109 = vpack.c.bf16 %v1101, %v1100
        %v1110 = vld [vmem:[#allocation8] sm:$0xff]
        %v1111 = vld [vmem:[#allocation8 + $0x8] sm:$0xff]
        %v1112 = vld [vmem:[#allocation8 + $0x10] sm:$0xff]
        %v1113 = vld [vmem:[#allocation8 + $0x18] sm:$0xff]
        %v1114 = vld [vmem:[#allocation8 + $0x20] sm:$0xff]
        %v1115 = vld [vmem:[#allocation8 + $0x28] sm:$0xff]
        %v1116 = vld [vmem:[#allocation8 + $0x30] sm:$0xff]
        %v1117 = vld [vmem:[#allocation8 + $0x38] sm:$0xff]
        %v1118 = vld [vmem:[#allocation8 + $0x40] sm:$0xff]
        %v1119 = vld [vmem:[#allocation8 + $0x48] sm:$0xff]
        %v1120 = vld [vmem:[#allocation8 + $0x50] sm:$0xff]
        %v1121 = vld [vmem:[#allocation8 + $0x58] sm:$0xff]
        %v1122 = vld [vmem:[#allocation8 + $0x60] sm:$0xff]
        %v1123 = vld [vmem:[#allocation8 + $0x68] sm:$0xff]
        %v1124 = vld [vmem:[#allocation8 + $0x70] sm:$0xff]
        %v1125 = vld [vmem:[#allocation8 + $0x78] sm:$0xff]
        %v1126 = vld [vmem:[#allocation8 + $0x80] sm:$0xff]
        %v1127 = vld [vmem:[#allocation8 + $0x88] sm:$0xff]
        %v1128 = vld [vmem:[#allocation8 + $0x90] sm:$0xff]
        %v1129 = vld [vmem:[#allocation8 + $0x98] sm:$0xff]
        %v1130 = vld [vmem:[#allocation8 + $0xa0] sm:$0xff]
        %v1131 = vld [vmem:[#allocation8 + $0xa8] sm:$0xff]
        %v1132 = vld [vmem:[#allocation8 + $0xb0] sm:$0xff]
        %v1133 = vld [vmem:[#allocation8 + $0xb8] sm:$0xff]
        %v1134 = vld [vmem:[#allocation8 + $0xc0] sm:$0xff]
        %v1135 = vld [vmem:[#allocation8 + $0xc8] sm:$0xff]
        %v1136 = vld [vmem:[#allocation8 + $0xd0] sm:$0xff]
        %v1137 = vld [vmem:[#allocation8 + $0xd8] sm:$0xff]
        %v1138 = vld [vmem:[#allocation8 + $0xe0] sm:$0xff]
        %v1139 = vld [vmem:[#allocation8 + $0xe8] sm:$0xff]
        %v1140 = vld [vmem:[#allocation8 + $0xf0] sm:$0xff]
        %v1141 = vld [vmem:[#allocation8 + $0xf8] sm:$0xff]
        %v1142 = vld [vmem:[#allocation8 + $0x100] sm:$0xff]
        %v1143 = vld [vmem:[#allocation8 + $0x108] sm:$0xff]
        %v1144 = vld [vmem:[#allocation8 + $0x110] sm:$0xff]
        %v1145 = vld [vmem:[#allocation8 + $0x118] sm:$0xff]
        %v1146 = vld [vmem:[#allocation8 + $0x120] sm:$0xff]
        %v1147 = vld [vmem:[#allocation8 + $0x128] sm:$0xff]
        %v1148 = vld [vmem:[#allocation8 + $0x130] sm:$0xff]
        %v1149 = vld [vmem:[#allocation8 + $0x138] sm:$0xff]
        %v1150 = vld [vmem:[#allocation8 + $0x140] sm:$0xff]
        %v1151 = vld [vmem:[#allocation8 + $0x148] sm:$0xff]
        %v1152 = vld [vmem:[#allocation8 + $0x150] sm:$0xff]
        %v1153 = vld [vmem:[#allocation8 + $0x158] sm:$0xff]
        %v1154 = vld [vmem:[#allocation8 + $0x160] sm:$0xff]
        %v1155 = vld [vmem:[#allocation8 + $0x168] sm:$0xff]
        %v1156 = vld [vmem:[#allocation8 + $0x170] sm:$0xff]
        %v1157 = vld [vmem:[#allocation8 + $0x178] sm:$0xff]
        %v1158 = vld [vmem:[#allocation8 + $0x180] sm:$0xff]
        %v1159 = vld [vmem:[#allocation8 + $0x188] sm:$0xff]
        %v1160 = vld [vmem:[#allocation8 + $0x190] sm:$0xff]
        %v1161 = vld [vmem:[#allocation8 + $0x198] sm:$0xff]
        %v1162 = vld [vmem:[#allocation8 + $0x1a0] sm:$0xff]
        %v1163 = vld [vmem:[#allocation8 + $0x1a8] sm:$0xff]
        %v1164 = vld [vmem:[#allocation8 + $0x1b0] sm:$0xff]
        %v1165 = vld [vmem:[#allocation8 + $0x1b8] sm:$0xff]
        %v1166 = vld [vmem:[#allocation8 + $0x1c0] sm:$0xff]
        %v1167 = vld [vmem:[#allocation8 + $0x1c8] sm:$0xff]
        %v1168 = vld [vmem:[#allocation8 + $0x1d0] sm:$0xff]
        %v1169 = vld [vmem:[#allocation8 + $0x1d8] sm:$0xff]
        %v1170 = vld [vmem:[#allocation8 + $0x1e0] sm:$0xff]
        %v1171 = vld [vmem:[#allocation8 + $0x1e8] sm:$0xff]
        %v1172 = vld [vmem:[#allocation8 + $0x1f0] sm:$0xff]
        %v1173 = vld [vmem:[#allocation8 + $0x1f8] sm:$0xff]
        %v1174 = vld [vmem:[%s6] sm:$0xff]
        %v1176 = vlaneseq
        %v1177 = vshrl.u32 %v1176, 7
        %v1178 = vsub.s32 0, %v1177
        %v1179 = vrot.slane %v1174, %v1178
        %v1180 = vlaneseq
        %v1181 = vshrl.u32 %v1180, 7
        %v1182 = vsub.s32 1, %v1181
        %v1183 = vrot.slane %v1174, %v1182
        %v1184 = vlaneseq
        %v1185 = vshrl.u32 %v1184, 7
        %v1186 = vsub.s32 2, %v1185
        %v1187 = vrot.slane %v1174, %v1186
        %v1188 = vlaneseq
        %v1189 = vshrl.u32 %v1188, 7
        %v1190 = vsub.s32 3, %v1189
        %v1191 = vrot.slane %v1174, %v1190
        %v1192 = vlaneseq
        %v1193 = vshrl.u32 %v1192, 7
        %v1194 = vsub.s32 4, %v1193
        %v1195 = vrot.slane %v1174, %v1194
        %v1196 = vlaneseq
        %v1197 = vshrl.u32 %v1196, 7
        %v1198 = vsub.s32 5, %v1197
        %v1199 = vrot.slane %v1174, %v1198
        %v1200 = vlaneseq
        %v1201 = vshrl.u32 %v1200, 7
        %v1202 = vsub.s32 6, %v1201
        %v1203 = vrot.slane %v1174, %v1202
        %v1204 = vlaneseq
        %v1205 = vshrl.u32 %v1204, 7
        %v1206 = vsub.s32 7, %v1205
        %v1207 = vrot.slane %v1174, %v1206
        %v1280 = vunpack.c.l.b16 %v1110
        %v1281 = vunpack.c.h.b16 %v1110
        %v1282 = vunpack.c.l.b16 %v1111
        %v1283 = vunpack.c.h.b16 %v1111
        %v1284 = vunpack.c.l.b16 %v1112
        %v1285 = vunpack.c.h.b16 %v1112
        %v1286 = vunpack.c.l.b16 %v1113
        %v1287 = vunpack.c.h.b16 %v1113
        %v1288 = vunpack.c.l.b16 %v1114
        %v1289 = vunpack.c.h.b16 %v1114
        %v1290 = vunpack.c.l.b16 %v1115
        %v1291 = vunpack.c.h.b16 %v1115
        %v1292 = vunpack.c.l.b16 %v1116
        %v1293 = vunpack.c.h.b16 %v1116
        %v1294 = vunpack.c.l.b16 %v1117
        %v1295 = vunpack.c.h.b16 %v1117
        %v1296 = vunpack.c.l.b16 %v1118
        %v1297 = vunpack.c.h.b16 %v1118
        %v1298 = vunpack.c.l.b16 %v1119
        %v1299 = vunpack.c.h.b16 %v1119
        %v1300 = vunpack.c.l.b16 %v1120
        %v1301 = vunpack.c.h.b16 %v1120
        %v1302 = vunpack.c.l.b16 %v1121
        %v1303 = vunpack.c.h.b16 %v1121
        %v1304 = vunpack.c.l.b16 %v1122
        %v1305 = vunpack.c.h.b16 %v1122
        %v1306 = vunpack.c.l.b16 %v1123
        %v1307 = vunpack.c.h.b16 %v1123
        %v1308 = vunpack.c.l.b16 %v1124
        %v1309 = vunpack.c.h.b16 %v1124
        %v1310 = vunpack.c.l.b16 %v1125
        %v1311 = vunpack.c.h.b16 %v1125
        %v1312 = vunpack.c.l.b16 %v1126
        %v1313 = vunpack.c.h.b16 %v1126
        %v1314 = vunpack.c.l.b16 %v1127
        %v1315 = vunpack.c.h.b16 %v1127
        %v1316 = vunpack.c.l.b16 %v1128
        %v1317 = vunpack.c.h.b16 %v1128
        %v1318 = vunpack.c.l.b16 %v1129
        %v1319 = vunpack.c.h.b16 %v1129
        %v1320 = vunpack.c.l.b16 %v1130
        %v1321 = vunpack.c.h.b16 %v1130
        %v1322 = vunpack.c.l.b16 %v1131
        %v1323 = vunpack.c.h.b16 %v1131
        %v1324 = vunpack.c.l.b16 %v1132
        %v1325 = vunpack.c.h.b16 %v1132
        %v1326 = vunpack.c.l.b16 %v1133
        %v1327 = vunpack.c.h.b16 %v1133
        %v1328 = vunpack.c.l.b16 %v1134
        %v1329 = vunpack.c.h.b16 %v1134
        %v1330 = vunpack.c.l.b16 %v1135
        %v1331 = vunpack.c.h.b16 %v1135
        %v1332 = vunpack.c.l.b16 %v1136
        %v1333 = vunpack.c.h.b16 %v1136
        %v1334 = vunpack.c.l.b16 %v1137
        %v1335 = vunpack.c.h.b16 %v1137
        %v1336 = vunpack.c.l.b16 %v1138
        %v1337 = vunpack.c.h.b16 %v1138
        %v1338 = vunpack.c.l.b16 %v1139
        %v1339 = vunpack.c.h.b16 %v1139
        %v1340 = vunpack.c.l.b16 %v1140
        %v1341 = vunpack.c.h.b16 %v1140
        %v1342 = vunpack.c.l.b16 %v1141
        %v1343 = vunpack.c.h.b16 %v1141
        %v1344 = vunpack.c.l.b16 %v1142
        %v1345 = vunpack.c.h.b16 %v1142
        %v1346 = vunpack.c.l.b16 %v1143
        %v1347 = vunpack.c.h.b16 %v1143
        %v1348 = vunpack.c.l.b16 %v1144
        %v1349 = vunpack.c.h.b16 %v1144
        %v1350 = vunpack.c.l.b16 %v1145
        %v1351 = vunpack.c.h.b16 %v1145
        %v1352 = vunpack.c.l.b16 %v1146
        %v1353 = vunpack.c.h.b16 %v1146
        %v1354 = vunpack.c.l.b16 %v1147
        %v1355 = vunpack.c.h.b16 %v1147
        %v1356 = vunpack.c.l.b16 %v1148
        %v1357 = vunpack.c.h.b16 %v1148
        %v1358 = vunpack.c.l.b16 %v1149
        %v1359 = vunpack.c.h.b16 %v1149
        %v1360 = vunpack.c.l.b16 %v1150
        %v1361 = vunpack.c.h.b16 %v1150
        %v1362 = vunpack.c.l.b16 %v1151
        %v1363 = vunpack.c.h.b16 %v1151
        %v1364 = vunpack.c.l.b16 %v1152
        %v1365 = vunpack.c.h.b16 %v1152
        %v1366 = vunpack.c.l.b16 %v1153
        %v1367 = vunpack.c.h.b16 %v1153
        %v1368 = vunpack.c.l.b16 %v1154
        %v1369 = vunpack.c.h.b16 %v1154
        %v1370 = vunpack.c.l.b16 %v1155
        %v1371 = vunpack.c.h.b16 %v1155
        %v1372 = vunpack.c.l.b16 %v1156
        %v1373 = vunpack.c.h.b16 %v1156
        %v1374 = vunpack.c.l.b16 %v1157
        %v1375 = vunpack.c.h.b16 %v1157
        %v1376 = vunpack.c.l.b16 %v1158
        %v1377 = vunpack.c.h.b16 %v1158
        %v1378 = vunpack.c.l.b16 %v1159
        %v1379 = vunpack.c.h.b16 %v1159
        %v1380 = vunpack.c.l.b16 %v1160
        %v1381 = vunpack.c.h.b16 %v1160
        %v1382 = vunpack.c.l.b16 %v1161
        %v1383 = vunpack.c.h.b16 %v1161
        %v1384 = vunpack.c.l.b16 %v1162
        %v1385 = vunpack.c.h.b16 %v1162
        %v1386 = vunpack.c.l.b16 %v1163
        %v1387 = vunpack.c.h.b16 %v1163
        %v1388 = vunpack.c.l.b16 %v1164
        %v1389 = vunpack.c.h.b16 %v1164
        %v1390 = vunpack.c.l.b16 %v1165
        %v1391 = vunpack.c.h.b16 %v1165
        %v1392 = vunpack.c.l.b16 %v1166
        %v1393 = vunpack.c.h.b16 %v1166
        %v1394 = vunpack.c.l.b16 %v1167
        %v1395 = vunpack.c.h.b16 %v1167
        %v1396 = vunpack.c.l.b16 %v1168
        %v1397 = vunpack.c.h.b16 %v1168
        %v1398 = vunpack.c.l.b16 %v1169
        %v1399 = vunpack.c.h.b16 %v1169
        %v1400 = vunpack.c.l.b16 %v1170
        %v1401 = vunpack.c.h.b16 %v1170
        %v1402 = vunpack.c.l.b16 %v1171
        %v1403 = vunpack.c.h.b16 %v1171
        %v1404 = vunpack.c.l.b16 %v1172
        %v1405 = vunpack.c.h.b16 %v1172
        %v1406 = vunpack.c.l.b16 %v1173
        %v1407 = vunpack.c.h.b16 %v1173
        %v1408 = vpack.c.b16 %v1288, %v1280
        %v1409 = vpack.c.b16 %v1289, %v1281
        %v1410 = vpack.c.b16 %v1290, %v1282
        %v1411 = vpack.c.b16 %v1291, %v1283
        %v1412 = vpack.c.b16 %v1292, %v1284
        %v1413 = vpack.c.b16 %v1293, %v1285
        %v1414 = vpack.c.b16 %v1294, %v1286
        %v1415 = vpack.c.b16 %v1295, %v1287
        %v1416 = vpack.c.b16 %v1304, %v1296
        %v1417 = vpack.c.b16 %v1305, %v1297
        %v1418 = vpack.c.b16 %v1306, %v1298
        %v1419 = vpack.c.b16 %v1307, %v1299
        %v1420 = vpack.c.b16 %v1308, %v1300
        %v1421 = vpack.c.b16 %v1309, %v1301
        %v1422 = vpack.c.b16 %v1310, %v1302
        %v1423 = vpack.c.b16 %v1311, %v1303
        %v1424 = vpack.c.b16 %v1320, %v1312
        %v1425 = vpack.c.b16 %v1321, %v1313
        %v1426 = vpack.c.b16 %v1322, %v1314
        %v1427 = vpack.c.b16 %v1323, %v1315
        %v1428 = vpack.c.b16 %v1324, %v1316
        %v1429 = vpack.c.b16 %v1325, %v1317
        %v1430 = vpack.c.b16 %v1326, %v1318
        %v1431 = vpack.c.b16 %v1327, %v1319
        %v1432 = vpack.c.b16 %v1336, %v1328
        %v1433 = vpack.c.b16 %v1337, %v1329
        %v1434 = vpack.c.b16 %v1338, %v1330
        %v1435 = vpack.c.b16 %v1339, %v1331
        %v1436 = vpack.c.b16 %v1340, %v1332
        %v1437 = vpack.c.b16 %v1341, %v1333
        %v1438 = vpack.c.b16 %v1342, %v1334
        %v1439 = vpack.c.b16 %v1343, %v1335
        %v1440 = vpack.c.b16 %v1352, %v1344
        %v1441 = vpack.c.b16 %v1353, %v1345
        %v1442 = vpack.c.b16 %v1354, %v1346
        %v1443 = vpack.c.b16 %v1355, %v1347
        %v1444 = vpack.c.b16 %v1356, %v1348
        %v1445 = vpack.c.b16 %v1357, %v1349
        %v1446 = vpack.c.b16 %v1358, %v1350
        %v1447 = vpack.c.b16 %v1359, %v1351
        %v1448 = vpack.c.b16 %v1368, %v1360
        %v1449 = vpack.c.b16 %v1369, %v1361
        %v1450 = vpack.c.b16 %v1370, %v1362
        %v1451 = vpack.c.b16 %v1371, %v1363
        %v1452 = vpack.c.b16 %v1372, %v1364
        %v1453 = vpack.c.b16 %v1373, %v1365
        %v1454 = vpack.c.b16 %v1374, %v1366
        %v1455 = vpack.c.b16 %v1375, %v1367
        %v1456 = vpack.c.b16 %v1384, %v1376
        %v1457 = vpack.c.b16 %v1385, %v1377
        %v1458 = vpack.c.b16 %v1386, %v1378
        %v1459 = vpack.c.b16 %v1387, %v1379
        %v1460 = vpack.c.b16 %v1388, %v1380
        %v1461 = vpack.c.b16 %v1389, %v1381
        %v1462 = vpack.c.b16 %v1390, %v1382
        %v1463 = vpack.c.b16 %v1391, %v1383
        %v1464 = vpack.c.b16 %v1400, %v1392
        %v1465 = vpack.c.b16 %v1401, %v1393
        %v1466 = vpack.c.b16 %v1402, %v1394
        %v1467 = vpack.c.b16 %v1403, %v1395
        %v1468 = vpack.c.b16 %v1404, %v1396
        %v1469 = vpack.c.b16 %v1405, %v1397
        %v1470 = vpack.c.b16 %v1406, %v1398
        %v1471 = vpack.c.b16 %v1407, %v1399
        %1536 = vmatprep.subr.bf16.mxu0 %v1409
        %1537 = vmatpush1.bf16.msra.mxu0 %v1408
        %1538 = vmatprep.subr.bf16.mxu0 %v1417
        %1539 = vmatpush1.bf16.msra.mxu0 %v1416
        %1540 = vmatprep.subr.bf16.mxu0 %v1425
        %1541 = vmatpush1.bf16.msra.mxu0 %v1424
        %1542 = vmatprep.subr.bf16.mxu0 %v1433
        %1543 = vmatpush1.bf16.msra.mxu0 %v1432
        %1544 = vmatprep.subr.bf16.mxu0 %v1441
        %1545 = vmatpush1.bf16.msra.mxu0 %v1440
        %1546 = vmatprep.subr.bf16.mxu0 %v1449
        %1547 = vmatpush1.bf16.msra.mxu0 %v1448
        %1548 = vmatprep.subr.bf16.mxu0 %v1457
        %1549 = vmatpush1.bf16.msra.mxu0 %v1456
        %1550 = vmatprep.subr.bf16.mxu0 %v1465
        %1551 = vmatpush1.bf16.msra.mxu0 %v1464
        %1552 = vmatprep.subr.bf16.mxu0 0
        %1553 = vmatpush1.bf16.msra.mxu0 0
        %1554 = vmatprep.subr.bf16.mxu0 0
        %1555 = vmatpush1.bf16.msra.mxu0 0
        %1556 = vmatprep.subr.bf16.mxu0 0
        %1557 = vmatpush1.bf16.msra.mxu0 0
        %1558 = vmatprep.subr.bf16.mxu0 0
        %1559 = vmatpush1.bf16.msra.mxu0 0
        %1560 = vmatprep.subr.bf16.mxu0 0
        %1561 = vmatpush1.bf16.msra.mxu0 0
        %1562 = vmatprep.subr.bf16.mxu0 0
        %1563 = vmatpush1.bf16.msra.mxu0 0
        %1564 = vmatprep.subr.bf16.mxu0 0
        %1565 = vmatpush1.bf16.msra.mxu0 0
        %1566 = vmatprep.subr.bf16.mxu0 0
        %1567 = vmatpush1.bf16.msra.mxu0 0
        %1568 = vmatprep.mubr.bf16.mxu0 0
        %1569 = vmatmul.mubr.bf16.gmra.mrb[0].mxu0 %v1102
        %v1570 = vpop.f32.mrb[0].mxu0
        %v1571 = vadd.f32 %v1179, %v1570
        %v1572 = vpop.f32.mrb[0].mxu0
        %v1573 = vadd.f32 %v1183, %v1572
        %v1574 = vpop.f32.mrb[0].mxu0
        %v1575 = vadd.f32 %v1179, %v1574
        %v1576 = vpop.f32.mrb[0].mxu0
        %v1577 = vadd.f32 %v1183, %v1576
        %1578 = vmatprep.mubr.bf16.mxu0 0
        %1579 = vmatmul.mubr.bf16.gmra.mrb[0].mxu0 %v1103
        %v1580 = vpop.f32.mrb[0].mxu0
        %v1581 = vadd.f32 %v1179, %v1580
        %v1582 = vpop.f32.mrb[0].mxu0
        %v1583 = vadd.f32 %v1183, %v1582
        %v1584 = vpop.f32.mrb[0].mxu0
        %v1585 = vadd.f32 %v1179, %v1584
        %v1586 = vpop.f32.mrb[0].mxu0
        %v1587 = vadd.f32 %v1183, %v1586
        %1588 = vmatprep.mubr.bf16.mxu0 0
        %1589 = vmatmul.mubr.bf16.gmra.mrb[0].mxu0 %v1104
        %v1590 = vpop.f32.mrb[0].mxu0
        %v1591 = vadd.f32 %v1179, %v1590
        %v1592 = vpop.f32.mrb[0].mxu0
        %v1593 = vadd.f32 %v1183, %v1592
        %v1594 = vpop.f32.mrb[0].mxu0
        %v1595 = vadd.f32 %v1179, %v1594
        %v1596 = vpop.f32.mrb[0].mxu0
        %v1597 = vadd.f32 %v1183, %v1596
        %1598 = vmatprep.mubr.bf16.mxu0 0
        %1599 = vmatmul.mubr.bf16.gmra.mrb[0].mxu0 %v1105
        %v1600 = vpop.f32.mrb[0].mxu0
        %v1601 = vadd.f32 %v1179, %v1600
        %v1602 = vpop.f32.mrb[0].mxu0
        %v1603 = vadd.f32 %v1183, %v1602
        %v1604 = vpop.f32.mrb[0].mxu0
        %v1605 = vadd.f32 %v1179, %v1604
        %v1606 = vpop.f32.mrb[0].mxu0
        %v1607 = vadd.f32 %v1183, %v1606
        %1608 = vmatprep.mubr.bf16.mxu0 0
        %1609 = vmatmul.mubr.bf16.gmra.mrb[0].mxu0 %v1106
        %v1610 = vpop.f32.mrb[0].mxu0
        %v1611 = vadd.f32 %v1179, %v1610
        %v1612 = vpop.f32.mrb[0].mxu0
        %v1613 = vadd.f32 %v1183, %v1612
        %v1614 = vpop.f32.mrb[0].mxu0
        %v1615 = vadd.f32 %v1179, %v1614
        %v1616 = vpop.f32.mrb[0].mxu0
        %v1617 = vadd.f32 %v1183, %v1616
        %1618 = vmatprep.mubr.bf16.mxu0 0
        %1619 = vmatmul.mubr.bf16.gmra.mrb[0].mxu0 %v1107
        %v1620 = vpop.f32.mrb[0].mxu0
        %v1621 = vadd.f32 %v1179, %v1620
        %v1622 = vpop.f32.mrb[0].mxu0
        %v1623 = vadd.f32 %v1183, %v1622
        %v1624 = vpop.f32.mrb[0].mxu0
        %v1625 = vadd.f32 %v1179, %v1624
        %v1626 = vpop.f32.mrb[0].mxu0
        %v1627 = vadd.f32 %v1183, %v1626
        %1628 = vmatprep.mubr.bf16.mxu0 0
        %1629 = vmatmul.mubr.bf16.gmra.mrb[0].mxu0 %v1108
        %v1630 = vpop.f32.mrb[0].mxu0
        %v1631 = vadd.f32 %v1179, %v1630
        %v1632 = vpop.f32.mrb[0].mxu0
        %v1633 = vadd.f32 %v1183, %v1632
        %v1634 = vpop.f32.mrb[0].mxu0
        %v1635 = vadd.f32 %v1179, %v1634
        %v1636 = vpop.f32.mrb[0].mxu0
        %v1637 = vadd.f32 %v1183, %v1636
        %1638 = vmatprep.mubr.bf16.mxu0 0
        %1639 = vmatmul.mubr.bf16.gmra.mrb[0].mxu0 %v1109
        %v1640 = vpop.f32.mrb[0].mxu0
        %v1641 = vadd.f32 %v1179, %v1640
        %v1642 = vpop.f32.mrb[0].mxu0
        %v1643 = vadd.f32 %v1183, %v1642
        %v1644 = vpop.f32.mrb[0].mxu0
        %v1645 = vadd.f32 %v1179, %v1644
        %v1646 = vpop.f32.mrb[0].mxu0
        %v1647 = vadd.f32 %v1183, %v1646
        %1648 = vdwg.mxu0
        %1649 = vmatprep.subr.bf16.mxu0 %v1411
        %1650 = vmatpush1.bf16.msra.mxu0 %v1410
        %1651 = vmatprep.subr.bf16.mxu0 %v1419
        %1652 = vmatpush1.bf16.msra.mxu0 %v1418
        %1653 = vmatprep.subr.bf16.mxu0 %v1427
        %1654 = vmatpush1.bf16.msra.mxu0 %v1426
        %1655 = vmatprep.subr.bf16.mxu0 %v1435
        %1656 = vmatpush1.bf16.msra.mxu0 %v1434
        %1657 = vmatprep.subr.bf16.mxu0 %v1443
        %1658 = vmatpush1.bf16.msra.mxu0 %v1442
        %1659 = vmatprep.subr.bf16.mxu0 %v1451
        %1660 = vmatpush1.bf16.msra.mxu0 %v1450
        %1661 = vmatprep.subr.bf16.mxu0 %v1459
        %1662 = vmatpush1.bf16.msra.mxu0 %v1458
        %1663 = vmatprep.subr.bf16.mxu0 %v1467
        %1664 = vmatpush1.bf16.msra.mxu0 %v1466
        %1665 = vmatprep.subr.bf16.mxu0 0
        %1666 = vmatpush1.bf16.msra.mxu0 0
        %1667 = vmatprep.subr.bf16.mxu0 0
        %1668 = vmatpush1.bf16.msra.mxu0 0
        %1669 = vmatprep.subr.bf16.mxu0 0
        %1670 = vmatpush1.bf16.msra.mxu0 0
        %1671 = vmatprep.subr.bf16.mxu0 0
        %1672 = vmatpush1.bf16.msra.mxu0 0
        %1673 = vmatprep.subr.bf16.mxu0 0
        %1674 = vmatpush1.bf16.msra.mxu0 0
        %1675 = vmatprep.subr.bf16.mxu0 0
        %1676 = vmatpush1.bf16.msra.mxu0 0
        %1677 = vmatprep.subr.bf16.mxu0 0
        %1678 = vmatpush1.bf16.msra.mxu0 0
        %1679 = vmatprep.subr.bf16.mxu0 0
        %1680 = vmatpush1.bf16.msra.mxu0 0
        %1681 = vmatprep.mubr.bf16.mxu0 0
        %1682 = vmatmul.mubr.bf16.gmra.mrb[0].mxu0 %v1102
        %v1683 = vpop.f32.mrb[0].mxu0
        %v1684 = vadd.f32 %v1187, %v1683
        %v1685 = vpop.f32.mrb[0].mxu0
        %v1686 = vadd.f32 %v1191, %v1685
        %v1687 = vpop.f32.mrb[0].mxu0
        %v1688 = vadd.f32 %v1187, %v1687
        %v1689 = vpop.f32.mrb[0].mxu0
        %v1690 = vadd.f32 %v1191, %v1689
        %1691 = vmatprep.mubr.bf16.mxu0 0
        %1692 = vmatmul.mubr.bf16.gmra.mrb[0].mxu0 %v1103
        %v1693 = vpop.f32.mrb[0].mxu0
        %v1694 = vadd.f32 %v1187, %v1693
        %v1695 = vpop.f32.mrb[0].mxu0
        %v1696 = vadd.f32 %v1191, %v1695
        %v1697 = vpop.f32.mrb[0].mxu0
        %v1698 = vadd.f32 %v1187, %v1697
        %v1699 = vpop.f32.mrb[0].mxu0
        %v1700 = vadd.f32 %v1191, %v1699
        %1701 = vmatprep.mubr.bf16.mxu0 0
        %1702 = vmatmul.mubr.bf16.gmra.mrb[0].mxu0 %v1104
        %v1703 = vpop.f32.mrb[0].mxu0
        %v1704 = vadd.f32 %v1187, %v1703
        %v1705 = vpop.f32.mrb[0].mxu0
        %v1706 = vadd.f32 %v1191, %v1705
        %v1707 = vpop.f32.mrb[0].mxu0
        %v1708 = vadd.f32 %v1187, %v1707
        %v1709 = vpop.f32.mrb[0].mxu0
        %v1710 = vadd.f32 %v1191, %v1709
        %1711 = vmatprep.mubr.bf16.mxu0 0
        %1712 = vmatmul.mubr.bf16.gmra.mrb[0].mxu0 %v1105
        %v1713 = vpop.f32.mrb[0].mxu0
        %v1714 = vadd.f32 %v1187, %v1713
        %v1715 = vpop.f32.mrb[0].mxu0
        %v1716 = vadd.f32 %v1191, %v1715
        %v1717 = vpop.f32.mrb[0].mxu0
        %v1718 = vadd.f32 %v1187, %v1717
        %v1719 = vpop.f32.mrb[0].mxu0
        %v1720 = vadd.f32 %v1191, %v1719
        %1721 = vmatprep.mubr.bf16.mxu0 0
        %1722 = vmatmul.mubr.bf16.gmra.mrb[0].mxu0 %v1106
        %v1723 = vpop.f32.mrb[0].mxu0
        %v1724 = vadd.f32 %v1187, %v1723
        %v1725 = vpop.f32.mrb[0].mxu0
        %v1726 = vadd.f32 %v1191, %v1725
        %v1727 = vpop.f32.mrb[0].mxu0
        %v1728 = vadd.f32 %v1187, %v1727
        %v1729 = vpop.f32.mrb[0].mxu0
        %v1730 = vadd.f32 %v1191, %v1729
        %1731 = vmatprep.mubr.bf16.mxu0 0
        %1732 = vmatmul.mubr.bf16.gmra.mrb[0].mxu0 %v1107
        %v1733 = vpop.f32.mrb[0].mxu0
        %v1734 = vadd.f32 %v1187, %v1733
        %v1735 = vpop.f32.mrb[0].mxu0
        %v1736 = vadd.f32 %v1191, %v1735
        %v1737 = vpop.f32.mrb[0].mxu0
        %v1738 = vadd.f32 %v1187, %v1737
        %v1739 = vpop.f32.mrb[0].mxu0
        %v1740 = vadd.f32 %v1191, %v1739
        %1741 = vmatprep.mubr.bf16.mxu0 0
        %1742 = vmatmul.mubr.bf16.gmra.mrb[0].mxu0 %v1108
        %v1743 = vpop.f32.mrb[0].mxu0
        %v1744 = vadd.f32 %v1187, %v1743
        %v1745 = vpop.f32.mrb[0].mxu0
        %v1746 = vadd.f32 %v1191, %v1745
        %v1747 = vpop.f32.mrb[0].mxu0
        %v1748 = vadd.f32 %v1187, %v1747
        %v1749 = vpop.f32.mrb[0].mxu0
        %v1750 = vadd.f32 %v1191, %v1749
        %1751 = vmatprep.mubr.bf16.mxu0 0
        %1752 = vmatmul.mubr.bf16.gmra.mrb[0].mxu0 %v1109
        %v1753 = vpop.f32.mrb[0].mxu0
        %v1754 = vadd.f32 %v1187, %v1753
        %v1755 = vpop.f32.mrb[0].mxu0
        %v1756 = vadd.f32 %v1191, %v1755
        %v1757 = vpop.f32.mrb[0].mxu0
        %v1758 = vadd.f32 %v1187, %v1757
        %v1759 = vpop.f32.mrb[0].mxu0
        %v1760 = vadd.f32 %v1191, %v1759
        %1761 = vdwg.mxu0
        %1762 = vmatprep.subr.bf16.mxu0 %v1413
        %1763 = vmatpush1.bf16.msra.mxu0 %v1412
        %1764 = vmatprep.subr.bf16.mxu0 %v1421
        %1765 = vmatpush1.bf16.msra.mxu0 %v1420
        %1766 = vmatprep.subr.bf16.mxu0 %v1429
        %1767 = vmatpush1.bf16.msra.mxu0 %v1428
        %1768 = vmatprep.subr.bf16.mxu0 %v1437
        %1769 = vmatpush1.bf16.msra.mxu0 %v1436
        %1770 = vmatprep.subr.bf16.mxu0 %v1445
        %1771 = vmatpush1.bf16.msra.mxu0 %v1444
        %1772 = vmatprep.subr.bf16.mxu0 %v1453
        %1773 = vmatpush1.bf16.msra.mxu0 %v1452
        %1774 = vmatprep.subr.bf16.mxu0 %v1461
        %1775 = vmatpush1.bf16.msra.mxu0 %v1460
        %1776 = vmatprep.subr.bf16.mxu0 %v1469
        %1777 = vmatpush1.bf16.msra.mxu0 %v1468
        %1778 = vmatprep.subr.bf16.mxu0 0
        %1779 = vmatpush1.bf16.msra.mxu0 0
        %1780 = vmatprep.subr.bf16.mxu0 0
        %1781 = vmatpush1.bf16.msra.mxu0 0
        %1782 = vmatprep.subr.bf16.mxu0 0
        %1783 = vmatpush1.bf16.msra.mxu0 0
        %1784 = vmatprep.subr.bf16.mxu0 0
        %1785 = vmatpush1.bf16.msra.mxu0 0
        %1786 = vmatprep.subr.bf16.mxu0 0
        %1787 = vmatpush1.bf16.msra.mxu0 0
        %1788 = vmatprep.subr.bf16.mxu0 0
        %1789 = vmatpush1.bf16.msra.mxu0 0
        %1790 = vmatprep.subr.bf16.mxu0 0
        %1791 = vmatpush1.bf16.msra.mxu0 0
        %1792 = vmatprep.subr.bf16.mxu0 0
        %1793 = vmatpush1.bf16.msra.mxu0 0
        %1794 = vmatprep.mubr.bf16.mxu0 0
        %1795 = vmatmul.mubr.bf16.gmra.mrb[0].mxu0 %v1102
        %v1796 = vpop.f32.mrb[0].mxu0
        %v1797 = vadd.f32 %v1195, %v1796
        %v1798 = vpop.f32.mrb[0].mxu0
        %v1799 = vadd.f32 %v1199, %v1798
        %v1800 = vpop.f32.mrb[0].mxu0
        %v1801 = vadd.f32 %v1195, %v1800
        %v1802 = vpop.f32.mrb[0].mxu0
        %v1803 = vadd.f32 %v1199, %v1802
        %1804 = vmatprep.mubr.bf16.mxu0 0
        %1805 = vmatmul.mubr.bf16.gmra.mrb[0].mxu0 %v1103
        %v1806 = vpop.f32.mrb[0].mxu0
        %v1807 = vadd.f32 %v1195, %v1806
        %v1808 = vpop.f32.mrb[0].mxu0
        %v1809 = vadd.f32 %v1199, %v1808
        %v1810 = vpop.f32.mrb[0].mxu0
        %v1811 = vadd.f32 %v1195, %v1810
        %v1812 = vpop.f32.mrb[0].mxu0
        %v1813 = vadd.f32 %v1199, %v1812
        %1814 = vmatprep.mubr.bf16.mxu0 0
        %1815 = vmatmul.mubr.bf16.gmra.mrb[0].mxu0 %v1104
        %v1816 = vpop.f32.mrb[0].mxu0
        %v1817 = vadd.f32 %v1195, %v1816
        %v1818 = vpop.f32.mrb[0].mxu0
        %v1819 = vadd.f32 %v1199, %v1818
        %v1820 = vpop.f32.mrb[0].mxu0
        %v1821 = vadd.f32 %v1195, %v1820
        %v1822 = vpop.f32.mrb[0].mxu0
        %v1823 = vadd.f32 %v1199, %v1822
        %1824 = vmatprep.mubr.bf16.mxu0 0
        %1825 = vmatmul.mubr.bf16.gmra.mrb[0].mxu0 %v1105
        %v1826 = vpop.f32.mrb[0].mxu0
        %v1827 = vadd.f32 %v1195, %v1826
        %v1828 = vpop.f32.mrb[0].mxu0
        %v1829 = vadd.f32 %v1199, %v1828
        %v1830 = vpop.f32.mrb[0].mxu0
        %v1831 = vadd.f32 %v1195, %v1830
        %v1832 = vpop.f32.mrb[0].mxu0
        %v1833 = vadd.f32 %v1199, %v1832
        %1834 = vmatprep.mubr.bf16.mxu0 0
        %1835 = vmatmul.mubr.bf16.gmra.mrb[0].mxu0 %v1106
        %v1836 = vpop.f32.mrb[0].mxu0
        %v1837 = vadd.f32 %v1195, %v1836
        %v1838 = vpop.f32.mrb[0].mxu0
        %v1839 = vadd.f32 %v1199, %v1838
        %v1840 = vpop.f32.mrb[0].mxu0
        %v1841 = vadd.f32 %v1195, %v1840
        %v1842 = vpop.f32.mrb[0].mxu0
        %v1843 = vadd.f32 %v1199, %v1842
        %1844 = vmatprep.mubr.bf16.mxu0 0
        %1845 = vmatmul.mubr.bf16.gmra.mrb[0].mxu0 %v1107
        %v1846 = vpop.f32.mrb[0].mxu0
        %v1847 = vadd.f32 %v1195, %v1846
        %v1848 = vpop.f32.mrb[0].mxu0
        %v1849 = vadd.f32 %v1199, %v1848
        %v1850 = vpop.f32.mrb[0].mxu0
        %v1851 = vadd.f32 %v1195, %v1850
        %v1852 = vpop.f32.mrb[0].mxu0
        %v1853 = vadd.f32 %v1199, %v1852
        %1854 = vmatprep.mubr.bf16.mxu0 0
        %1855 = vmatmul.mubr.bf16.gmra.mrb[0].mxu0 %v1108
        %v1856 = vpop.f32.mrb[0].mxu0
        %v1857 = vadd.f32 %v1195, %v1856
        %v1858 = vpop.f32.mrb[0].mxu0
        %v1859 = vadd.f32 %v1199, %v1858
        %v1860 = vpop.f32.mrb[0].mxu0
        %v1861 = vadd.f32 %v1195, %v1860
        %v1862 = vpop.f32.mrb[0].mxu0
        %v1863 = vadd.f32 %v1199, %v1862
        %1864 = vmatprep.mubr.bf16.mxu0 0
        %1865 = vmatmul.mubr.bf16.gmra.mrb[0].mxu0 %v1109
        %v1866 = vpop.f32.mrb[0].mxu0
        %v1867 = vadd.f32 %v1195, %v1866
        %v1868 = vpop.f32.mrb[0].mxu0
        %v1869 = vadd.f32 %v1199, %v1868
        %v1870 = vpop.f32.mrb[0].mxu0
        %v1871 = vadd.f32 %v1195, %v1870
        %v1872 = vpop.f32.mrb[0].mxu0
        %v1873 = vadd.f32 %v1199, %v1872
        %1874 = vdwg.mxu0
        %1875 = vmatprep.subr.bf16.mxu0 %v1415
        %1876 = vmatpush1.bf16.msra.mxu0 %v1414
        %1877 = vmatprep.subr.bf16.mxu0 %v1423
        %1878 = vmatpush1.bf16.msra.mxu0 %v1422
        %1879 = vmatprep.subr.bf16.mxu0 %v1431
        %1880 = vmatpush1.bf16.msra.mxu0 %v1430
        %1881 = vmatprep.subr.bf16.mxu0 %v1439
        %1882 = vmatpush1.bf16.msra.mxu0 %v1438
        %1883 = vmatprep.subr.bf16.mxu0 %v1447
        %1884 = vmatpush1.bf16.msra.mxu0 %v1446
        %1885 = vmatprep.subr.bf16.mxu0 %v1455
        %1886 = vmatpush1.bf16.msra.mxu0 %v1454
        %1887 = vmatprep.subr.bf16.mxu0 %v1463
        %1888 = vmatpush1.bf16.msra.mxu0 %v1462
        %1889 = vmatprep.subr.bf16.mxu0 %v1471
        %1890 = vmatpush1.bf16.msra.mxu0 %v1470
        %1891 = vmatprep.subr.bf16.mxu0 0
        %1892 = vmatpush1.bf16.msra.mxu0 0
        %1893 = vmatprep.subr.bf16.mxu0 0
        %1894 = vmatpush1.bf16.msra.mxu0 0
        %1895 = vmatprep.subr.bf16.mxu0 0
        %1896 = vmatpush1.bf16.msra.mxu0 0
        %1897 = vmatprep.subr.bf16.mxu0 0
        %1898 = vmatpush1.bf16.msra.mxu0 0
        %1899 = vmatprep.subr.bf16.mxu0 0
        %1900 = vmatpush1.bf16.msra.mxu0 0
        %1901 = vmatprep.subr.bf16.mxu0 0
        %1902 = vmatpush1.bf16.msra.mxu0 0
        %1903 = vmatprep.subr.bf16.mxu0 0
        %1904 = vmatpush1.bf16.msra.mxu0 0
        %1905 = vmatprep.subr.bf16.mxu0 0
        %1906 = vmatpush1.bf16.msra.mxu0 0
        %1907 = vmatprep.mubr.bf16.mxu0 0
        %1908 = vmatmul.mubr.bf16.gmra.mrb[0].mxu0 %v1102
        %v1909 = vpop.f32.mrb[0].mxu0
        %v1910 = vadd.f32 %v1203, %v1909
        %v1911 = vpop.f32.mrb[0].mxu0
        %v1912 = vadd.f32 %v1207, %v1911
        %v1913 = vpop.f32.mrb[0].mxu0
        %v1914 = vadd.f32 %v1203, %v1913
        %v1915 = vpop.f32.mrb[0].mxu0
        %v1916 = vadd.f32 %v1207, %v1915
        %1917 = vmatprep.mubr.bf16.mxu0 0
        %1918 = vmatmul.mubr.bf16.gmra.mrb[0].mxu0 %v1103
        %v1919 = vpop.f32.mrb[0].mxu0
        %v1920 = vadd.f32 %v1203, %v1919
        %v1921 = vpop.f32.mrb[0].mxu0
        %v1922 = vadd.f32 %v1207, %v1921
        %v1923 = vpop.f32.mrb[0].mxu0
        %v1924 = vadd.f32 %v1203, %v1923
        %v1925 = vpop.f32.mrb[0].mxu0
        %v1926 = vadd.f32 %v1207, %v1925
        %1927 = vmatprep.mubr.bf16.mxu0 0
        %1928 = vmatmul.mubr.bf16.gmra.mrb[0].mxu0 %v1104
        %v1929 = vpop.f32.mrb[0].mxu0
        %v1930 = vadd.f32 %v1203, %v1929
        %v1931 = vpop.f32.mrb[0].mxu0
        %v1932 = vadd.f32 %v1207, %v1931
        %v1933 = vpop.f32.mrb[0].mxu0
        %v1934 = vadd.f32 %v1203, %v1933
        %v1935 = vpop.f32.mrb[0].mxu0
        %v1936 = vadd.f32 %v1207, %v1935
        %1937 = vmatprep.mubr.bf16.mxu0 0
        %1938 = vmatmul.mubr.bf16.gmra.mrb[0].mxu0 %v1105
        %v1939 = vpop.f32.mrb[0].mxu0
        %v1940 = vadd.f32 %v1203, %v1939
        %v1941 = vpop.f32.mrb[0].mxu0
        %v1942 = vadd.f32 %v1207, %v1941
        %v1943 = vpop.f32.mrb[0].mxu0
        %v1944 = vadd.f32 %v1203, %v1943
        %v1945 = vpop.f32.mrb[0].mxu0
        %v1946 = vadd.f32 %v1207, %v1945
        %1947 = vmatprep.mubr.bf16.mxu0 0
        %1948 = vmatmul.mubr.bf16.gmra.mrb[0].mxu0 %v1106
        %v1949 = vpop.f32.mrb[0].mxu0
        %v1950 = vadd.f32 %v1203, %v1949
        %v1951 = vpop.f32.mrb[0].mxu0
        %v1952 = vadd.f32 %v1207, %v1951
        %v1953 = vpop.f32.mrb[0].mxu0
        %v1954 = vadd.f32 %v1203, %v1953
        %v1955 = vpop.f32.mrb[0].mxu0
        %v1956 = vadd.f32 %v1207, %v1955
        %1957 = vmatprep.mubr.bf16.mxu0 0
        %1958 = vmatmul.mubr.bf16.gmra.mrb[0].mxu0 %v1107
        %v1959 = vpop.f32.mrb[0].mxu0
        %v1960 = vadd.f32 %v1203, %v1959
        %v1961 = vpop.f32.mrb[0].mxu0
        %v1962 = vadd.f32 %v1207, %v1961
        %v1963 = vpop.f32.mrb[0].mxu0
        %v1964 = vadd.f32 %v1203, %v1963
        %v1965 = vpop.f32.mrb[0].mxu0
        %v1966 = vadd.f32 %v1207, %v1965
        %1967 = vmatprep.mubr.bf16.mxu0 0
        %1968 = vmatmul.mubr.bf16.gmra.mrb[0].mxu0 %v1108
        %v1969 = vpop.f32.mrb[0].mxu0
        %v1970 = vadd.f32 %v1203, %v1969
        %v1971 = vpop.f32.mrb[0].mxu0
        %v1972 = vadd.f32 %v1207, %v1971
        %v1973 = vpop.f32.mrb[0].mxu0
        %v1974 = vadd.f32 %v1203, %v1973
        %v1975 = vpop.f32.mrb[0].mxu0
        %v1976 = vadd.f32 %v1207, %v1975
        %1977 = vmatprep.mubr.bf16.mxu0 0
        %1978 = vmatmul.mubr.bf16.gmra.mrb[0].mxu0 %v1109
        %v1979 = vpop.f32.mrb[0].mxu0
        %v1980 = vadd.f32 %v1203, %v1979
        %v1981 = vpop.f32.mrb[0].mxu0
        %v1982 = vadd.f32 %v1207, %v1981
        %v1983 = vpop.f32.mrb[0].mxu0
        %v1984 = vadd.f32 %v1203, %v1983
        %v1985 = vpop.f32.mrb[0].mxu0
        %v1986 = vadd.f32 %v1207, %v1985
        %1987 = vdwg.mxu0
        %v1988 = vmax.f32 %v1571, 0.0
        %v1989 = vmax.f32 %v1573, 0.0
        %v1990 = vmax.f32 %v1684, 0.0
        %v1991 = vmax.f32 %v1686, 0.0
        %v1992 = vmax.f32 %v1797, 0.0
        %v1993 = vmax.f32 %v1799, 0.0
        %v1994 = vmax.f32 %v1910, 0.0
        %v1995 = vmax.f32 %v1912, 0.0
        %v1996 = vmax.f32 %v1575, 0.0
        %v1997 = vmax.f32 %v1577, 0.0
        %v1998 = vmax.f32 %v1688, 0.0
        %v1999 = vmax.f32 %v1690, 0.0
        %v2000 = vmax.f32 %v1801, 0.0
        %v2001 = vmax.f32 %v1803, 0.0
        %v2002 = vmax.f32 %v1914, 0.0
        %v2003 = vmax.f32 %v1916, 0.0
        %v2004 = vmax.f32 %v1581, 0.0
        %v2005 = vmax.f32 %v1583, 0.0
        %v2006 = vmax.f32 %v1694, 0.0
        %v2007 = vmax.f32 %v1696, 0.0
        %v2008 = vmax.f32 %v1807, 0.0
        %v2009 = vmax.f32 %v1809, 0.0
        %v2010 = vmax.f32 %v1920, 0.0
        %v2011 = vmax.f32 %v1922, 0.0
        %v2012 = vmax.f32 %v1585, 0.0
        %v2013 = vmax.f32 %v1587, 0.0
        %v2014 = vmax.f32 %v1698, 0.0
        %v2015 = vmax.f32 %v1700, 0.0
        %v2016 = vmax.f32 %v1811, 0.0
        %v2017 = vmax.f32 %v1813, 0.0
        %v2018 = vmax.f32 %v1924, 0.0
        %v2019 = vmax.f32 %v1926, 0.0
        %v2020 = vmax.f32 %v1591, 0.0
        %v2021 = vmax.f32 %v1593, 0.0
        %v2022 = vmax.f32 %v1704, 0.0
        %v2023 = vmax.f32 %v1706, 0.0
        %v2024 = vmax.f32 %v1817, 0.0
        %v2025 = vmax.f32 %v1819, 0.0
        %v2026 = vmax.f32 %v1930, 0.0
        %v2027 = vmax.f32 %v1932, 0.0
        %v2028 = vmax.f32 %v1595, 0.0
        %v2029 = vmax.f32 %v1597, 0.0
        %v2030 = vmax.f32 %v1708, 0.0
        %v2031 = vmax.f32 %v1710, 0.0
        %v2032 = vmax.f32 %v1821, 0.0
        %v2033 = vmax.f32 %v1823, 0.0
        %v2034 = vmax.f32 %v1934, 0.0
        %v2035 = vmax.f32 %v1936, 0.0
        %v2036 = vmax.f32 %v1601, 0.0
        %v2037 = vmax.f32 %v1603, 0.0
        %v2038 = vmax.f32 %v1714, 0.0
        %v2039 = vmax.f32 %v1716, 0.0
        %v2040 = vmax.f32 %v1827, 0.0
        %v2041 = vmax.f32 %v1829, 0.0
        %v2042 = vmax.f32 %v1940, 0.0
        %v2043 = vmax.f32 %v1942, 0.0
        %v2044 = vmax.f32 %v1605, 0.0
        %v2045 = vmax.f32 %v1607, 0.0
        %v2046 = vmax.f32 %v1718, 0.0
        %v2047 = vmax.f32 %v1720, 0.0
        %v2048 = vmax.f32 %v1831, 0.0
        %v2049 = vmax.f32 %v1833, 0.0
        %v2050 = vmax.f32 %v1944, 0.0
        %v2051 = vmax.f32 %v1946, 0.0
        %v2052 = vmax.f32 %v1611, 0.0
        %v2053 = vmax.f32 %v1613, 0.0
        %v2054 = vmax.f32 %v1724, 0.0
        %v2055 = vmax.f32 %v1726, 0.0
        %v2056 = vmax.f32 %v1837, 0.0
        %v2057 = vmax.f32 %v1839, 0.0
        %v2058 = vmax.f32 %v1950, 0.0
        %v2059 = vmax.f32 %v1952, 0.0
        %v2060 = vmax.f32 %v1615, 0.0
        %v2061 = vmax.f32 %v1617, 0.0
        %v2062 = vmax.f32 %v1728, 0.0
        %v2063 = vmax.f32 %v1730, 0.0
        %v2064 = vmax.f32 %v1841, 0.0
        %v2065 = vmax.f32 %v1843, 0.0
        %v2066 = vmax.f32 %v1954, 0.0
        %v2067 = vmax.f32 %v1956, 0.0
        %v2068 = vmax.f32 %v1621, 0.0
        %v2069 = vmax.f32 %v1623, 0.0
        %v2070 = vmax.f32 %v1734, 0.0
        %v2071 = vmax.f32 %v1736, 0.0
        %v2072 = vmax.f32 %v1847, 0.0
        %v2073 = vmax.f32 %v1849, 0.0
        %v2074 = vmax.f32 %v1960, 0.0
        %v2075 = vmax.f32 %v1962, 0.0
        %v2076 = vmax.f32 %v1625, 0.0
        %v2077 = vmax.f32 %v1627, 0.0
        %v2078 = vmax.f32 %v1738, 0.0
        %v2079 = vmax.f32 %v1740, 0.0
        %v2080 = vmax.f32 %v1851, 0.0
        %v2081 = vmax.f32 %v1853, 0.0
        %v2082 = vmax.f32 %v1964, 0.0
        %v2083 = vmax.f32 %v1966, 0.0
        %v2084 = vmax.f32 %v1631, 0.0
        %v2085 = vmax.f32 %v1633, 0.0
        %v2086 = vmax.f32 %v1744, 0.0
        %v2087 = vmax.f32 %v1746, 0.0
        %v2088 = vmax.f32 %v1857, 0.0
        %v2089 = vmax.f32 %v1859, 0.0
        %v2090 = vmax.f32 %v1970, 0.0
        %v2091 = vmax.f32 %v1972, 0.0
        %v2092 = vmax.f32 %v1635, 0.0
        %v2093 = vmax.f32 %v1637, 0.0
        %v2094 = vmax.f32 %v1748, 0.0
        %v2095 = vmax.f32 %v1750, 0.0
        %v2096 = vmax.f32 %v1861, 0.0
        %v2097 = vmax.f32 %v1863, 0.0
        %v2098 = vmax.f32 %v1974, 0.0
        %v2099 = vmax.f32 %v1976, 0.0
        %v2100 = vmax.f32 %v1641, 0.0
        %v2101 = vmax.f32 %v1643, 0.0
        %v2102 = vmax.f32 %v1754, 0.0
        %v2103 = vmax.f32 %v1756, 0.0
        %v2104 = vmax.f32 %v1867, 0.0
        %v2105 = vmax.f32 %v1869, 0.0
        %v2106 = vmax.f32 %v1980, 0.0
        %v2107 = vmax.f32 %v1982, 0.0
        %v2108 = vmax.f32 %v1645, 0.0
        %v2109 = vmax.f32 %v1647, 0.0
        %v2110 = vmax.f32 %v1758, 0.0
        %v2111 = vmax.f32 %v1760, 0.0
        %v2112 = vmax.f32 %v1871, 0.0
        %v2113 = vmax.f32 %v1873, 0.0
        %v2114 = vmax.f32 %v1984, 0.0
        %v2115 = vmax.f32 %v1986, 0.0
        %v2116 = vpack.c.bf16 %v1996, %v1988
        %v2117 = vpack.c.bf16 %v1997, %v1989
        %v2118 = vpack.c.bf16 %v1998, %v1990
        %v2119 = vpack.c.bf16 %v1999, %v1991
        %v2120 = vpack.c.bf16 %v2000, %v1992
        %v2121 = vpack.c.bf16 %v2001, %v1993
        %v2122 = vpack.c.bf16 %v2002, %v1994
        %v2123 = vpack.c.bf16 %v2003, %v1995
        %v2124 = vpack.c.bf16 %v2012, %v2004
        %v2125 = vpack.c.bf16 %v2013, %v2005
        %v2126 = vpack.c.bf16 %v2014, %v2006
        %v2127 = vpack.c.bf16 %v2015, %v2007
        %v2128 = vpack.c.bf16 %v2016, %v2008
        %v2129 = vpack.c.bf16 %v2017, %v2009
        %v2130 = vpack.c.bf16 %v2018, %v2010
        %v2131 = vpack.c.bf16 %v2019, %v2011
        %v2132 = vpack.c.bf16 %v2028, %v2020
        %v2133 = vpack.c.bf16 %v2029, %v2021
        %v2134 = vpack.c.bf16 %v2030, %v2022
        %v2135 = vpack.c.bf16 %v2031, %v2023
        %v2136 = vpack.c.bf16 %v2032, %v2024
        %v2137 = vpack.c.bf16 %v2033, %v2025
        %v2138 = vpack.c.bf16 %v2034, %v2026
        %v2139 = vpack.c.bf16 %v2035, %v2027
        %v2140 = vpack.c.bf16 %v2044, %v2036
        %v2141 = vpack.c.bf16 %v2045, %v2037
        %v2142 = vpack.c.bf16 %v2046, %v2038
        %v2143 = vpack.c.bf16 %v2047, %v2039
        %v2144 = vpack.c.bf16 %v2048, %v2040
        %v2145 = vpack.c.bf16 %v2049, %v2041
        %v2146 = vpack.c.bf16 %v2050, %v2042
        %v2147 = vpack.c.bf16 %v2051, %v2043
        %v2148 = vpack.c.bf16 %v2060, %v2052
        %v2149 = vpack.c.bf16 %v2061, %v2053
        %v2150 = vpack.c.bf16 %v2062, %v2054
        %v2151 = vpack.c.bf16 %v2063, %v2055
        %v2152 = vpack.c.bf16 %v2064, %v2056
        %v2153 = vpack.c.bf16 %v2065, %v2057
        %v2154 = vpack.c.bf16 %v2066, %v2058
        %v2155 = vpack.c.bf16 %v2067, %v2059
        %v2156 = vpack.c.bf16 %v2076, %v2068
        %v2157 = vpack.c.bf16 %v2077, %v2069
        %v2158 = vpack.c.bf16 %v2078, %v2070
        %v2159 = vpack.c.bf16 %v2079, %v2071
        %v2160 = vpack.c.bf16 %v2080, %v2072
        %v2161 = vpack.c.bf16 %v2081, %v2073
        %v2162 = vpack.c.bf16 %v2082, %v2074
        %v2163 = vpack.c.bf16 %v2083, %v2075
        %v2164 = vpack.c.bf16 %v2092, %v2084
        %v2165 = vpack.c.bf16 %v2093, %v2085
        %v2166 = vpack.c.bf16 %v2094, %v2086
        %v2167 = vpack.c.bf16 %v2095, %v2087
        %v2168 = vpack.c.bf16 %v2096, %v2088
        %v2169 = vpack.c.bf16 %v2097, %v2089
        %v2170 = vpack.c.bf16 %v2098, %v2090
        %v2171 = vpack.c.bf16 %v2099, %v2091
        %v2172 = vpack.c.bf16 %v2108, %v2100
        %v2173 = vpack.c.bf16 %v2109, %v2101
        %v2174 = vpack.c.bf16 %v2110, %v2102
        %v2175 = vpack.c.bf16 %v2111, %v2103
        %v2176 = vpack.c.bf16 %v2112, %v2104
        %v2177 = vpack.c.bf16 %v2113, %v2105
        %v2178 = vpack.c.bf16 %v2114, %v2106
        %v2179 = vpack.c.bf16 %v2115, %v2107
        %v2180 = vunpack.i.l.bf16 %v2116
        %v2181 = vunpack.i.h.bf16 %v2116
        %v2182 = vmax.f32 %v2180, %v2181
        %v2183 = vrot.slane %v2182, 4
        %v2184 = vmax.f32 %v2182, %v2183
        %v2185 = vrot.slane %v2184, 2
        %v2186 = vmax.f32 %v2184, %v2185
        %v2187 = vrot.slane %v2186, 1
        %v2188 = vmax.f32 %v2186, %v2187
        %v2189 = vpack.i.bf16 %v2188, %v2188
        %v2190 = vunpack.i.l.bf16 %v2117
        %v2191 = vunpack.i.h.bf16 %v2117
        %v2192 = vmax.f32 %v2190, %v2191
        %v2193 = vrot.slane %v2192, 4
        %v2194 = vmax.f32 %v2192, %v2193
        %v2195 = vrot.slane %v2194, 2
        %v2196 = vmax.f32 %v2194, %v2195
        %v2197 = vrot.slane %v2196, 1
        %v2198 = vmax.f32 %v2196, %v2197
        %v2199 = vpack.i.bf16 %v2198, %v2198
        %v2200 = vunpack.i.l.bf16 %v2118
        %v2201 = vunpack.i.h.bf16 %v2118
        %v2202 = vmax.f32 %v2200, %v2201
        %v2203 = vrot.slane %v2202, 4
        %v2204 = vmax.f32 %v2202, %v2203
        %v2205 = vrot.slane %v2204, 2
        %v2206 = vmax.f32 %v2204, %v2205
        %v2207 = vrot.slane %v2206, 1
        %v2208 = vmax.f32 %v2206, %v2207
        %v2209 = vpack.i.bf16 %v2208, %v2208
        %v2210 = vunpack.i.l.bf16 %v2119
        %v2211 = vunpack.i.h.bf16 %v2119
        %v2212 = vmax.f32 %v2210, %v2211
        %v2213 = vrot.slane %v2212, 4
        %v2214 = vmax.f32 %v2212, %v2213
        %v2215 = vrot.slane %v2214, 2
        %v2216 = vmax.f32 %v2214, %v2215
        %v2217 = vrot.slane %v2216, 1
        %v2218 = vmax.f32 %v2216, %v2217
        %v2219 = vpack.i.bf16 %v2218, %v2218
        %v2220 = vunpack.i.l.bf16 %v2120
        %v2221 = vunpack.i.h.bf16 %v2120
        %v2222 = vmax.f32 %v2220, %v2221
        %v2223 = vrot.slane %v2222, 4
        %v2224 = vmax.f32 %v2222, %v2223
        %v2225 = vrot.slane %v2224, 2
        %v2226 = vmax.f32 %v2224, %v2225
        %v2227 = vrot.slane %v2226, 1
        %v2228 = vmax.f32 %v2226, %v2227
        %v2229 = vpack.i.bf16 %v2228, %v2228
        %v2230 = vunpack.i.l.bf16 %v2121
        %v2231 = vunpack.i.h.bf16 %v2121
        %v2232 = vmax.f32 %v2230, %v2231
        %v2233 = vrot.slane %v2232, 4
        %v2234 = vmax.f32 %v2232, %v2233
        %v2235 = vrot.slane %v2234, 2
        %v2236 = vmax.f32 %v2234, %v2235
        %v2237 = vrot.slane %v2236, 1
        %v2238 = vmax.f32 %v2236, %v2237
        %v2239 = vpack.i.bf16 %v2238, %v2238
        %v2240 = vunpack.i.l.bf16 %v2122
        %v2241 = vunpack.i.h.bf16 %v2122
        %v2242 = vmax.f32 %v2240, %v2241
        %v2243 = vrot.slane %v2242, 4
        %v2244 = vmax.f32 %v2242, %v2243
        %v2245 = vrot.slane %v2244, 2
        %v2246 = vmax.f32 %v2244, %v2245
        %v2247 = vrot.slane %v2246, 1
        %v2248 = vmax.f32 %v2246, %v2247
        %v2249 = vpack.i.bf16 %v2248, %v2248
        %v2250 = vunpack.i.l.bf16 %v2123
        %v2251 = vunpack.i.h.bf16 %v2123
        %v2252 = vmax.f32 %v2250, %v2251
        %v2253 = vrot.slane %v2252, 4
        %v2254 = vmax.f32 %v2252, %v2253
        %v2255 = vrot.slane %v2254, 2
        %v2256 = vmax.f32 %v2254, %v2255
        %v2257 = vrot.slane %v2256, 1
        %v2258 = vmax.f32 %v2256, %v2257
        %v2259 = vpack.i.bf16 %v2258, %v2258
        %v2260 = vunpack.i.l.bf16 %v2124
        %v2261 = vunpack.i.h.bf16 %v2124
        %v2262 = vmax.f32 %v2260, %v2261
        %v2263 = vrot.slane %v2262, 4
        %v2264 = vmax.f32 %v2262, %v2263
        %v2265 = vrot.slane %v2264, 2
        %v2266 = vmax.f32 %v2264, %v2265
        %v2267 = vrot.slane %v2266, 1
        %v2268 = vmax.f32 %v2266, %v2267
        %v2269 = vpack.i.bf16 %v2268, %v2268
        %v2270 = vunpack.i.l.bf16 %v2125
        %v2271 = vunpack.i.h.bf16 %v2125
        %v2272 = vmax.f32 %v2270, %v2271
        %v2273 = vrot.slane %v2272, 4
        %v2274 = vmax.f32 %v2272, %v2273
        %v2275 = vrot.slane %v2274, 2
        %v2276 = vmax.f32 %v2274, %v2275
        %v2277 = vrot.slane %v2276, 1
        %v2278 = vmax.f32 %v2276, %v2277
        %v2279 = vpack.i.bf16 %v2278, %v2278
        %v2280 = vunpack.i.l.bf16 %v2126
        %v2281 = vunpack.i.h.bf16 %v2126
        %v2282 = vmax.f32 %v2280, %v2281
        %v2283 = vrot.slane %v2282, 4
        %v2284 = vmax.f32 %v2282, %v2283
        %v2285 = vrot.slane %v2284, 2
        %v2286 = vmax.f32 %v2284, %v2285
        %v2287 = vrot.slane %v2286, 1
        %v2288 = vmax.f32 %v2286, %v2287
        %v2289 = vpack.i.bf16 %v2288, %v2288
        %v2290 = vunpack.i.l.bf16 %v2127
        %v2291 = vunpack.i.h.bf16 %v2127
        %v2292 = vmax.f32 %v2290, %v2291
        %v2293 = vrot.slane %v2292, 4
        %v2294 = vmax.f32 %v2292, %v2293
        %v2295 = vrot.slane %v2294, 2
        %v2296 = vmax.f32 %v2294, %v2295
        %v2297 = vrot.slane %v2296, 1
        %v2298 = vmax.f32 %v2296, %v2297
        %v2299 = vpack.i.bf16 %v2298, %v2298
        %v2300 = vunpack.i.l.bf16 %v2128
        %v2301 = vunpack.i.h.bf16 %v2128
        %v2302 = vmax.f32 %v2300, %v2301
        %v2303 = vrot.slane %v2302, 4
        %v2304 = vmax.f32 %v2302, %v2303
        %v2305 = vrot.slane %v2304, 2
        %v2306 = vmax.f32 %v2304, %v2305
        %v2307 = vrot.slane %v2306, 1
        %v2308 = vmax.f32 %v2306, %v2307
        %v2309 = vpack.i.bf16 %v2308, %v2308
        %v2310 = vunpack.i.l.bf16 %v2129
        %v2311 = vunpack.i.h.bf16 %v2129
        %v2312 = vmax.f32 %v2310, %v2311
        %v2313 = vrot.slane %v2312, 4
        %v2314 = vmax.f32 %v2312, %v2313
        %v2315 = vrot.slane %v2314, 2
        %v2316 = vmax.f32 %v2314, %v2315
        %v2317 = vrot.slane %v2316, 1
        %v2318 = vmax.f32 %v2316, %v2317
        %v2319 = vpack.i.bf16 %v2318, %v2318
        %v2320 = vunpack.i.l.bf16 %v2130
        %v2321 = vunpack.i.h.bf16 %v2130
        %v2322 = vmax.f32 %v2320, %v2321
        %v2323 = vrot.slane %v2322, 4
        %v2324 = vmax.f32 %v2322, %v2323
        %v2325 = vrot.slane %v2324, 2
        %v2326 = vmax.f32 %v2324, %v2325
        %v2327 = vrot.slane %v2326, 1
        %v2328 = vmax.f32 %v2326, %v2327
        %v2329 = vpack.i.bf16 %v2328, %v2328
        %v2330 = vunpack.i.l.bf16 %v2131
        %v2331 = vunpack.i.h.bf16 %v2131
        %v2332 = vmax.f32 %v2330, %v2331
        %v2333 = vrot.slane %v2332, 4
        %v2334 = vmax.f32 %v2332, %v2333
        %v2335 = vrot.slane %v2334, 2
        %v2336 = vmax.f32 %v2334, %v2335
        %v2337 = vrot.slane %v2336, 1
        %v2338 = vmax.f32 %v2336, %v2337
        %v2339 = vpack.i.bf16 %v2338, %v2338
        %v2340 = vunpack.i.l.bf16 %v2132
        %v2341 = vunpack.i.h.bf16 %v2132
        %v2342 = vmax.f32 %v2340, %v2341
        %v2343 = vrot.slane %v2342, 4
        %v2344 = vmax.f32 %v2342, %v2343
        %v2345 = vrot.slane %v2344, 2
        %v2346 = vmax.f32 %v2344, %v2345
        %v2347 = vrot.slane %v2346, 1
        %v2348 = vmax.f32 %v2346, %v2347
        %v2349 = vpack.i.bf16 %v2348, %v2348
        %v2350 = vunpack.i.l.bf16 %v2133
        %v2351 = vunpack.i.h.bf16 %v2133
        %v2352 = vmax.f32 %v2350, %v2351
        %v2353 = vrot.slane %v2352, 4
        %v2354 = vmax.f32 %v2352, %v2353
        %v2355 = vrot.slane %v2354, 2
        %v2356 = vmax.f32 %v2354, %v2355
        %v2357 = vrot.slane %v2356, 1
        %v2358 = vmax.f32 %v2356, %v2357
        %v2359 = vpack.i.bf16 %v2358, %v2358
        %v2360 = vunpack.i.l.bf16 %v2134
        %v2361 = vunpack.i.h.bf16 %v2134
        %v2362 = vmax.f32 %v2360, %v2361
        %v2363 = vrot.slane %v2362, 4
        %v2364 = vmax.f32 %v2362, %v2363
        %v2365 = vrot.slane %v2364, 2
        %v2366 = vmax.f32 %v2364, %v2365
        %v2367 = vrot.slane %v2366, 1
        %v2368 = vmax.f32 %v2366, %v2367
        %v2369 = vpack.i.bf16 %v2368, %v2368
        %v2370 = vunpack.i.l.bf16 %v2135
        %v2371 = vunpack.i.h.bf16 %v2135
        %v2372 = vmax.f32 %v2370, %v2371
        %v2373 = vrot.slane %v2372, 4
        %v2374 = vmax.f32 %v2372, %v2373
        %v2375 = vrot.slane %v2374, 2
        %v2376 = vmax.f32 %v2374, %v2375
        %v2377 = vrot.slane %v2376, 1
        %v2378 = vmax.f32 %v2376, %v2377
        %v2379 = vpack.i.bf16 %v2378, %v2378
        %v2380 = vunpack.i.l.bf16 %v2136
        %v2381 = vunpack.i.h.bf16 %v2136
        %v2382 = vmax.f32 %v2380, %v2381
        %v2383 = vrot.slane %v2382, 4
        %v2384 = vmax.f32 %v2382, %v2383
        %v2385 = vrot.slane %v2384, 2
        %v2386 = vmax.f32 %v2384, %v2385
        %v2387 = vrot.slane %v2386, 1
        %v2388 = vmax.f32 %v2386, %v2387
        %v2389 = vpack.i.bf16 %v2388, %v2388
        %v2390 = vunpack.i.l.bf16 %v2137
        %v2391 = vunpack.i.h.bf16 %v2137
        %v2392 = vmax.f32 %v2390, %v2391
        %v2393 = vrot.slane %v2392, 4
        %v2394 = vmax.f32 %v2392, %v2393
        %v2395 = vrot.slane %v2394, 2
        %v2396 = vmax.f32 %v2394, %v2395
        %v2397 = vrot.slane %v2396, 1
        %v2398 = vmax.f32 %v2396, %v2397
        %v2399 = vpack.i.bf16 %v2398, %v2398
        %v2400 = vunpack.i.l.bf16 %v2138
        %v2401 = vunpack.i.h.bf16 %v2138
        %v2402 = vmax.f32 %v2400, %v2401
        %v2403 = vrot.slane %v2402, 4
        %v2404 = vmax.f32 %v2402, %v2403
        %v2405 = vrot.slane %v2404, 2
        %v2406 = vmax.f32 %v2404, %v2405
        %v2407 = vrot.slane %v2406, 1
        %v2408 = vmax.f32 %v2406, %v2407
        %v2409 = vpack.i.bf16 %v2408, %v2408
        %v2410 = vunpack.i.l.bf16 %v2139
        %v2411 = vunpack.i.h.bf16 %v2139
        %v2412 = vmax.f32 %v2410, %v2411
        %v2413 = vrot.slane %v2412, 4
        %v2414 = vmax.f32 %v2412, %v2413
        %v2415 = vrot.slane %v2414, 2
        %v2416 = vmax.f32 %v2414, %v2415
        %v2417 = vrot.slane %v2416, 1
        %v2418 = vmax.f32 %v2416, %v2417
        %v2419 = vpack.i.bf16 %v2418, %v2418
        %v2420 = vunpack.i.l.bf16 %v2140
        %v2421 = vunpack.i.h.bf16 %v2140
        %v2422 = vmax.f32 %v2420, %v2421
        %v2423 = vrot.slane %v2422, 4
        %v2424 = vmax.f32 %v2422, %v2423
        %v2425 = vrot.slane %v2424, 2
        %v2426 = vmax.f32 %v2424, %v2425
        %v2427 = vrot.slane %v2426, 1
        %v2428 = vmax.f32 %v2426, %v2427
        %v2429 = vpack.i.bf16 %v2428, %v2428
        %v2430 = vunpack.i.l.bf16 %v2141
        %v2431 = vunpack.i.h.bf16 %v2141
        %v2432 = vmax.f32 %v2430, %v2431
        %v2433 = vrot.slane %v2432, 4
        %v2434 = vmax.f32 %v2432, %v2433
        %v2435 = vrot.slane %v2434, 2
        %v2436 = vmax.f32 %v2434, %v2435
        %v2437 = vrot.slane %v2436, 1
        %v2438 = vmax.f32 %v2436, %v2437
        %v2439 = vpack.i.bf16 %v2438, %v2438
        %v2440 = vunpack.i.l.bf16 %v2142
        %v2441 = vunpack.i.h.bf16 %v2142
        %v2442 = vmax.f32 %v2440, %v2441
        %v2443 = vrot.slane %v2442, 4
        %v2444 = vmax.f32 %v2442, %v2443
        %v2445 = vrot.slane %v2444, 2
        %v2446 = vmax.f32 %v2444, %v2445
        %v2447 = vrot.slane %v2446, 1
        %v2448 = vmax.f32 %v2446, %v2447
        %v2449 = vpack.i.bf16 %v2448, %v2448
        %v2450 = vunpack.i.l.bf16 %v2143
        %v2451 = vunpack.i.h.bf16 %v2143
        %v2452 = vmax.f32 %v2450, %v2451
        %v2453 = vrot.slane %v2452, 4
        %v2454 = vmax.f32 %v2452, %v2453
        %v2455 = vrot.slane %v2454, 2
        %v2456 = vmax.f32 %v2454, %v2455
        %v2457 = vrot.slane %v2456, 1
        %v2458 = vmax.f32 %v2456, %v2457
        %v2459 = vpack.i.bf16 %v2458, %v2458
        %v2460 = vunpack.i.l.bf16 %v2144
        %v2461 = vunpack.i.h.bf16 %v2144
        %v2462 = vmax.f32 %v2460, %v2461
        %v2463 = vrot.slane %v2462, 4
        %v2464 = vmax.f32 %v2462, %v2463
        %v2465 = vrot.slane %v2464, 2
        %v2466 = vmax.f32 %v2464, %v2465
        %v2467 = vrot.slane %v2466, 1
        %v2468 = vmax.f32 %v2466, %v2467
        %v2469 = vpack.i.bf16 %v2468, %v2468
        %v2470 = vunpack.i.l.bf16 %v2145
        %v2471 = vunpack.i.h.bf16 %v2145
        %v2472 = vmax.f32 %v2470, %v2471
        %v2473 = vrot.slane %v2472, 4
        %v2474 = vmax.f32 %v2472, %v2473
        %v2475 = vrot.slane %v2474, 2
        %v2476 = vmax.f32 %v2474, %v2475
        %v2477 = vrot.slane %v2476, 1
        %v2478 = vmax.f32 %v2476, %v2477
        %v2479 = vpack.i.bf16 %v2478, %v2478
        %v2480 = vunpack.i.l.bf16 %v2146
        %v2481 = vunpack.i.h.bf16 %v2146
        %v2482 = vmax.f32 %v2480, %v2481
        %v2483 = vrot.slane %v2482, 4
        %v2484 = vmax.f32 %v2482, %v2483
        %v2485 = vrot.slane %v2484, 2
        %v2486 = vmax.f32 %v2484, %v2485
        %v2487 = vrot.slane %v2486, 1
        %v2488 = vmax.f32 %v2486, %v2487
        %v2489 = vpack.i.bf16 %v2488, %v2488
        %v2490 = vunpack.i.l.bf16 %v2147
        %v2491 = vunpack.i.h.bf16 %v2147
        %v2492 = vmax.f32 %v2490, %v2491
        %v2493 = vrot.slane %v2492, 4
        %v2494 = vmax.f32 %v2492, %v2493
        %v2495 = vrot.slane %v2494, 2
        %v2496 = vmax.f32 %v2494, %v2495
        %v2497 = vrot.slane %v2496, 1
        %v2498 = vmax.f32 %v2496, %v2497
        %v2499 = vpack.i.bf16 %v2498, %v2498
        %v2500 = vunpack.i.l.bf16 %v2148
        %v2501 = vunpack.i.h.bf16 %v2148
        %v2502 = vmax.f32 %v2500, %v2501
        %v2503 = vrot.slane %v2502, 4
        %v2504 = vmax.f32 %v2502, %v2503
        %v2505 = vrot.slane %v2504, 2
        %v2506 = vmax.f32 %v2504, %v2505
        %v2507 = vrot.slane %v2506, 1
        %v2508 = vmax.f32 %v2506, %v2507
        %v2509 = vpack.i.bf16 %v2508, %v2508
        %v2510 = vunpack.i.l.bf16 %v2149
        %v2511 = vunpack.i.h.bf16 %v2149
        %v2512 = vmax.f32 %v2510, %v2511
        %v2513 = vrot.slane %v2512, 4
        %v2514 = vmax.f32 %v2512, %v2513
        %v2515 = vrot.slane %v2514, 2
        %v2516 = vmax.f32 %v2514, %v2515
        %v2517 = vrot.slane %v2516, 1
        %v2518 = vmax.f32 %v2516, %v2517
        %v2519 = vpack.i.bf16 %v2518, %v2518
        %v2520 = vunpack.i.l.bf16 %v2150
        %v2521 = vunpack.i.h.bf16 %v2150
        %v2522 = vmax.f32 %v2520, %v2521
        %v2523 = vrot.slane %v2522, 4
        %v2524 = vmax.f32 %v2522, %v2523
        %v2525 = vrot.slane %v2524, 2
        %v2526 = vmax.f32 %v2524, %v2525
        %v2527 = vrot.slane %v2526, 1
        %v2528 = vmax.f32 %v2526, %v2527
        %v2529 = vpack.i.bf16 %v2528, %v2528
        %v2530 = vunpack.i.l.bf16 %v2151
        %v2531 = vunpack.i.h.bf16 %v2151
        %v2532 = vmax.f32 %v2530, %v2531
        %v2533 = vrot.slane %v2532, 4
        %v2534 = vmax.f32 %v2532, %v2533
        %v2535 = vrot.slane %v2534, 2
        %v2536 = vmax.f32 %v2534, %v2535
        %v2537 = vrot.slane %v2536, 1
        %v2538 = vmax.f32 %v2536, %v2537
        %v2539 = vpack.i.bf16 %v2538, %v2538
        %v2540 = vunpack.i.l.bf16 %v2152
        %v2541 = vunpack.i.h.bf16 %v2152
        %v2542 = vmax.f32 %v2540, %v2541
        %v2543 = vrot.slane %v2542, 4
        %v2544 = vmax.f32 %v2542, %v2543
        %v2545 = vrot.slane %v2544, 2
        %v2546 = vmax.f32 %v2544, %v2545
        %v2547 = vrot.slane %v2546, 1
        %v2548 = vmax.f32 %v2546, %v2547
        %v2549 = vpack.i.bf16 %v2548, %v2548
        %v2550 = vunpack.i.l.bf16 %v2153
        %v2551 = vunpack.i.h.bf16 %v2153
        %v2552 = vmax.f32 %v2550, %v2551
        %v2553 = vrot.slane %v2552, 4
        %v2554 = vmax.f32 %v2552, %v2553
        %v2555 = vrot.slane %v2554, 2
        %v2556 = vmax.f32 %v2554, %v2555
        %v2557 = vrot.slane %v2556, 1
        %v2558 = vmax.f32 %v2556, %v2557
        %v2559 = vpack.i.bf16 %v2558, %v2558
        %v2560 = vunpack.i.l.bf16 %v2154
        %v2561 = vunpack.i.h.bf16 %v2154
        %v2562 = vmax.f32 %v2560, %v2561
        %v2563 = vrot.slane %v2562, 4
        %v2564 = vmax.f32 %v2562, %v2563
        %v2565 = vrot.slane %v2564, 2
        %v2566 = vmax.f32 %v2564, %v2565
        %v2567 = vrot.slane %v2566, 1
        %v2568 = vmax.f32 %v2566, %v2567
        %v2569 = vpack.i.bf16 %v2568, %v2568
        %v2570 = vunpack.i.l.bf16 %v2155
        %v2571 = vunpack.i.h.bf16 %v2155
        %v2572 = vmax.f32 %v2570, %v2571
        %v2573 = vrot.slane %v2572, 4
        %v2574 = vmax.f32 %v2572, %v2573
        %v2575 = vrot.slane %v2574, 2
        %v2576 = vmax.f32 %v2574, %v2575
        %v2577 = vrot.slane %v2576, 1
        %v2578 = vmax.f32 %v2576, %v2577
        %v2579 = vpack.i.bf16 %v2578, %v2578
        %v2580 = vunpack.i.l.bf16 %v2156
        %v2581 = vunpack.i.h.bf16 %v2156
        %v2582 = vmax.f32 %v2580, %v2581
        %v2583 = vrot.slane %v2582, 4
        %v2584 = vmax.f32 %v2582, %v2583
        %v2585 = vrot.slane %v2584, 2
        %v2586 = vmax.f32 %v2584, %v2585
        %v2587 = vrot.slane %v2586, 1
        %v2588 = vmax.f32 %v2586, %v2587
        %v2589 = vpack.i.bf16 %v2588, %v2588
        %v2590 = vunpack.i.l.bf16 %v2157
        %v2591 = vunpack.i.h.bf16 %v2157
        %v2592 = vmax.f32 %v2590, %v2591
        %v2593 = vrot.slane %v2592, 4
        %v2594 = vmax.f32 %v2592, %v2593
        %v2595 = vrot.slane %v2594, 2
        %v2596 = vmax.f32 %v2594, %v2595
        %v2597 = vrot.slane %v2596, 1
        %v2598 = vmax.f32 %v2596, %v2597
        %v2599 = vpack.i.bf16 %v2598, %v2598
        %v2600 = vunpack.i.l.bf16 %v2158
        %v2601 = vunpack.i.h.bf16 %v2158
        %v2602 = vmax.f32 %v2600, %v2601
        %v2603 = vrot.slane %v2602, 4
        %v2604 = vmax.f32 %v2602, %v2603
        %v2605 = vrot.slane %v2604, 2
        %v2606 = vmax.f32 %v2604, %v2605
        %v2607 = vrot.slane %v2606, 1
        %v2608 = vmax.f32 %v2606, %v2607
        %v2609 = vpack.i.bf16 %v2608, %v2608
        %v2610 = vunpack.i.l.bf16 %v2159
        %v2611 = vunpack.i.h.bf16 %v2159
        %v2612 = vmax.f32 %v2610, %v2611
        %v2613 = vrot.slane %v2612, 4
        %v2614 = vmax.f32 %v2612, %v2613
        %v2615 = vrot.slane %v2614, 2
        %v2616 = vmax.f32 %v2614, %v2615
        %v2617 = vrot.slane %v2616, 1
        %v2618 = vmax.f32 %v2616, %v2617
        %v2619 = vpack.i.bf16 %v2618, %v2618
        %v2620 = vunpack.i.l.bf16 %v2160
        %v2621 = vunpack.i.h.bf16 %v2160
        %v2622 = vmax.f32 %v2620, %v2621
        %v2623 = vrot.slane %v2622, 4
        %v2624 = vmax.f32 %v2622, %v2623
        %v2625 = vrot.slane %v2624, 2
        %v2626 = vmax.f32 %v2624, %v2625
        %v2627 = vrot.slane %v2626, 1
        %v2628 = vmax.f32 %v2626, %v2627
        %v2629 = vpack.i.bf16 %v2628, %v2628
        %v2630 = vunpack.i.l.bf16 %v2161
        %v2631 = vunpack.i.h.bf16 %v2161
        %v2632 = vmax.f32 %v2630, %v2631
        %v2633 = vrot.slane %v2632, 4
        %v2634 = vmax.f32 %v2632, %v2633
        %v2635 = vrot.slane %v2634, 2
        %v2636 = vmax.f32 %v2634, %v2635
        %v2637 = vrot.slane %v2636, 1
        %v2638 = vmax.f32 %v2636, %v2637
        %v2639 = vpack.i.bf16 %v2638, %v2638
        %v2640 = vunpack.i.l.bf16 %v2162
        %v2641 = vunpack.i.h.bf16 %v2162
        %v2642 = vmax.f32 %v2640, %v2641
        %v2643 = vrot.slane %v2642, 4
        %v2644 = vmax.f32 %v2642, %v2643
        %v2645 = vrot.slane %v2644, 2
        %v2646 = vmax.f32 %v2644, %v2645
        %v2647 = vrot.slane %v2646, 1
        %v2648 = vmax.f32 %v2646, %v2647
        %v2649 = vpack.i.bf16 %v2648, %v2648
        %v2650 = vunpack.i.l.bf16 %v2163
        %v2651 = vunpack.i.h.bf16 %v2163
        %v2652 = vmax.f32 %v2650, %v2651
        %v2653 = vrot.slane %v2652, 4
        %v2654 = vmax.f32 %v2652, %v2653
        %v2655 = vrot.slane %v2654, 2
        %v2656 = vmax.f32 %v2654, %v2655
        %v2657 = vrot.slane %v2656, 1
        %v2658 = vmax.f32 %v2656, %v2657
        %v2659 = vpack.i.bf16 %v2658, %v2658
        %v2660 = vunpack.i.l.bf16 %v2164
        %v2661 = vunpack.i.h.bf16 %v2164
        %v2662 = vmax.f32 %v2660, %v2661
        %v2663 = vrot.slane %v2662, 4
        %v2664 = vmax.f32 %v2662, %v2663
        %v2665 = vrot.slane %v2664, 2
        %v2666 = vmax.f32 %v2664, %v2665
        %v2667 = vrot.slane %v2666, 1
        %v2668 = vmax.f32 %v2666, %v2667
        %v2669 = vpack.i.bf16 %v2668, %v2668
        %v2670 = vunpack.i.l.bf16 %v2165
        %v2671 = vunpack.i.h.bf16 %v2165
        %v2672 = vmax.f32 %v2670, %v2671
        %v2673 = vrot.slane %v2672, 4
        %v2674 = vmax.f32 %v2672, %v2673
        %v2675 = vrot.slane %v2674, 2
        %v2676 = vmax.f32 %v2674, %v2675
        %v2677 = vrot.slane %v2676, 1
        %v2678 = vmax.f32 %v2676, %v2677
        %v2679 = vpack.i.bf16 %v2678, %v2678
        %v2680 = vunpack.i.l.bf16 %v2166
        %v2681 = vunpack.i.h.bf16 %v2166
        %v2682 = vmax.f32 %v2680, %v2681
        %v2683 = vrot.slane %v2682, 4
        %v2684 = vmax.f32 %v2682, %v2683
        %v2685 = vrot.slane %v2684, 2
        %v2686 = vmax.f32 %v2684, %v2685
        %v2687 = vrot.slane %v2686, 1
        %v2688 = vmax.f32 %v2686, %v2687
        %v2689 = vpack.i.bf16 %v2688, %v2688
        %v2690 = vunpack.i.l.bf16 %v2167
        %v2691 = vunpack.i.h.bf16 %v2167
        %v2692 = vmax.f32 %v2690, %v2691
        %v2693 = vrot.slane %v2692, 4
        %v2694 = vmax.f32 %v2692, %v2693
        %v2695 = vrot.slane %v2694, 2
        %v2696 = vmax.f32 %v2694, %v2695
        %v2697 = vrot.slane %v2696, 1
        %v2698 = vmax.f32 %v2696, %v2697
        %v2699 = vpack.i.bf16 %v2698, %v2698
        %v2700 = vunpack.i.l.bf16 %v2168
        %v2701 = vunpack.i.h.bf16 %v2168
        %v2702 = vmax.f32 %v2700, %v2701
        %v2703 = vrot.slane %v2702, 4
        %v2704 = vmax.f32 %v2702, %v2703
        %v2705 = vrot.slane %v2704, 2
        %v2706 = vmax.f32 %v2704, %v2705
        %v2707 = vrot.slane %v2706, 1
        %v2708 = vmax.f32 %v2706, %v2707
        %v2709 = vpack.i.bf16 %v2708, %v2708
        %v2710 = vunpack.i.l.bf16 %v2169
        %v2711 = vunpack.i.h.bf16 %v2169
        %v2712 = vmax.f32 %v2710, %v2711
        %v2713 = vrot.slane %v2712, 4
        %v2714 = vmax.f32 %v2712, %v2713
        %v2715 = vrot.slane %v2714, 2
        %v2716 = vmax.f32 %v2714, %v2715
        %v2717 = vrot.slane %v2716, 1
        %v2718 = vmax.f32 %v2716, %v2717
        %v2719 = vpack.i.bf16 %v2718, %v2718
        %v2720 = vunpack.i.l.bf16 %v2170
        %v2721 = vunpack.i.h.bf16 %v2170
        %v2722 = vmax.f32 %v2720, %v2721
        %v2723 = vrot.slane %v2722, 4
        %v2724 = vmax.f32 %v2722, %v2723
        %v2725 = vrot.slane %v2724, 2
        %v2726 = vmax.f32 %v2724, %v2725
        %v2727 = vrot.slane %v2726, 1
        %v2728 = vmax.f32 %v2726, %v2727
        %v2729 = vpack.i.bf16 %v2728, %v2728
        %v2730 = vunpack.i.l.bf16 %v2171
        %v2731 = vunpack.i.h.bf16 %v2171
        %v2732 = vmax.f32 %v2730, %v2731
        %v2733 = vrot.slane %v2732, 4
        %v2734 = vmax.f32 %v2732, %v2733
        %v2735 = vrot.slane %v2734, 2
        %v2736 = vmax.f32 %v2734, %v2735
        %v2737 = vrot.slane %v2736, 1
        %v2738 = vmax.f32 %v2736, %v2737
        %v2739 = vpack.i.bf16 %v2738, %v2738
        %v2740 = vunpack.i.l.bf16 %v2172
        %v2741 = vunpack.i.h.bf16 %v2172
        %v2742 = vmax.f32 %v2740, %v2741
        %v2743 = vrot.slane %v2742, 4
        %v2744 = vmax.f32 %v2742, %v2743
        %v2745 = vrot.slane %v2744, 2
        %v2746 = vmax.f32 %v2744, %v2745
        %v2747 = vrot.slane %v2746, 1
        %v2748 = vmax.f32 %v2746, %v2747
        %v2749 = vpack.i.bf16 %v2748, %v2748
        %v2750 = vunpack.i.l.bf16 %v2173
        %v2751 = vunpack.i.h.bf16 %v2173
        %v2752 = vmax.f32 %v2750, %v2751
        %v2753 = vrot.slane %v2752, 4
        %v2754 = vmax.f32 %v2752, %v2753
        %v2755 = vrot.slane %v2754, 2
        %v2756 = vmax.f32 %v2754, %v2755
        %v2757 = vrot.slane %v2756, 1
        %v2758 = vmax.f32 %v2756, %v2757
        %v2759 = vpack.i.bf16 %v2758, %v2758
        %v2760 = vunpack.i.l.bf16 %v2174
        %v2761 = vunpack.i.h.bf16 %v2174
        %v2762 = vmax.f32 %v2760, %v2761
        %v2763 = vrot.slane %v2762, 4
        %v2764 = vmax.f32 %v2762, %v2763
        %v2765 = vrot.slane %v2764, 2
        %v2766 = vmax.f32 %v2764, %v2765
        %v2767 = vrot.slane %v2766, 1
        %v2768 = vmax.f32 %v2766, %v2767
        %v2769 = vpack.i.bf16 %v2768, %v2768
        %v2770 = vunpack.i.l.bf16 %v2175
        %v2771 = vunpack.i.h.bf16 %v2175
        %v2772 = vmax.f32 %v2770, %v2771
        %v2773 = vrot.slane %v2772, 4
        %v2774 = vmax.f32 %v2772, %v2773
        %v2775 = vrot.slane %v2774, 2
        %v2776 = vmax.f32 %v2774, %v2775
        %v2777 = vrot.slane %v2776, 1
        %v2778 = vmax.f32 %v2776, %v2777
        %v2779 = vpack.i.bf16 %v2778, %v2778
        %v2780 = vunpack.i.l.bf16 %v2176
        %v2781 = vunpack.i.h.bf16 %v2176
        %v2782 = vmax.f32 %v2780, %v2781
        %v2783 = vrot.slane %v2782, 4
        %v2784 = vmax.f32 %v2782, %v2783
        %v2785 = vrot.slane %v2784, 2
        %v2786 = vmax.f32 %v2784, %v2785
        %v2787 = vrot.slane %v2786, 1
        %v2788 = vmax.f32 %v2786, %v2787
        %v2789 = vpack.i.bf16 %v2788, %v2788
        %v2790 = vunpack.i.l.bf16 %v2177
        %v2791 = vunpack.i.h.bf16 %v2177
        %v2792 = vmax.f32 %v2790, %v2791
        %v2793 = vrot.slane %v2792, 4
        %v2794 = vmax.f32 %v2792, %v2793
        %v2795 = vrot.slane %v2794, 2
        %v2796 = vmax.f32 %v2794, %v2795
        %v2797 = vrot.slane %v2796, 1
        %v2798 = vmax.f32 %v2796, %v2797
        %v2799 = vpack.i.bf16 %v2798, %v2798
        %v2800 = vunpack.i.l.bf16 %v2178
        %v2801 = vunpack.i.h.bf16 %v2178
        %v2802 = vmax.f32 %v2800, %v2801
        %v2803 = vrot.slane %v2802, 4
        %v2804 = vmax.f32 %v2802, %v2803
        %v2805 = vrot.slane %v2804, 2
        %v2806 = vmax.f32 %v2804, %v2805
        %v2807 = vrot.slane %v2806, 1
        %v2808 = vmax.f32 %v2806, %v2807
        %v2809 = vpack.i.bf16 %v2808, %v2808
        %v2810 = vunpack.i.l.bf16 %v2179
        %v2811 = vunpack.i.h.bf16 %v2179
        %v2812 = vmax.f32 %v2810, %v2811
        %v2813 = vrot.slane %v2812, 4
        %v2814 = vmax.f32 %v2812, %v2813
        %v2815 = vrot.slane %v2814, 2
        %v2816 = vmax.f32 %v2814, %v2815
        %v2817 = vrot.slane %v2816, 1
        %v2818 = vmax.f32 %v2816, %v2817
        %v2819 = vpack.i.bf16 %v2818, %v2818
        %p2820 = scmp.eq.s32.totalorder %s36, 0
        // Predicated region
        $region97: #{tpu_custom_call.1} parent=71 // pred_check
          %p2821 = pneg %p2820
        $region98: #{tpu_custom_call.1} parent=71 // pred_check_branch
          %2823 = sbr.rel (%p2821) target = $region100
        $region99: #{tpu_custom_call.1} parent=71 // pred_region
          %2824 = vst [vmem:[#allocation2] sm:$0xff] 4286644096
          %2825 = vst [vmem:[#allocation2 + $0x8] sm:$0xff] 4286644096
          %2826 = vst [vmem:[#allocation2 + $0x10] sm:$0xff] 4286644096
          %2827 = vst [vmem:[#allocation2 + $0x18] sm:$0xff] 4286644096
        $region100: #{tpu_custom_call.1} parent=71 // pred_fallthru
          _
        %v2828 = vld [vmem:[#allocation2] sm:$0xff]
        %v2829 = vld [vmem:[#allocation2 + $0x8] sm:$0xff]
        %v2830 = vld [vmem:[#allocation2 + $0x10] sm:$0xff]
        %v2831 = vld [vmem:[#allocation2 + $0x18] sm:$0xff]
        %v2896 = vunpack.c.l.b16 %v2189
        %v2897 = vunpack.c.l.b16 %v2199
        %v2898 = vunpack.c.l.b16 %v2209
        %v2899 = vunpack.c.l.b16 %v2219
        %v2900 = vunpack.c.l.b16 %v2229
        %v2901 = vunpack.c.l.b16 %v2239
        %v2902 = vunpack.c.l.b16 %v2249
        %v2903 = vunpack.c.l.b16 %v2259
        %v2904 = vunpack.c.l.b16 %v2269
        %v2905 = vunpack.c.l.b16 %v2279
        %v2906 = vunpack.c.l.b16 %v2289
        %v2907 = vunpack.c.l.b16 %v2299
        %v2908 = vunpack.c.l.b16 %v2309
        %v2909 = vunpack.c.l.b16 %v2319
        %v2910 = vunpack.c.l.b16 %v2329
        %v2911 = vunpack.c.l.b16 %v2339
        %v2912 = vunpack.c.l.b16 %v2349
        %v2913 = vunpack.c.l.b16 %v2359
        %v2914 = vunpack.c.l.b16 %v2369
        %v2915 = vunpack.c.l.b16 %v2379
        %v2916 = vunpack.c.l.b16 %v2389
        %v2917 = vunpack.c.l.b16 %v2399
        %v2918 = vunpack.c.l.b16 %v2409
        %v2919 = vunpack.c.l.b16 %v2419
        %v2920 = vunpack.c.l.b16 %v2429
        %v2921 = vunpack.c.l.b16 %v2439
        %v2922 = vunpack.c.l.b16 %v2449
        %v2923 = vunpack.c.l.b16 %v2459
        %v2924 = vunpack.c.l.b16 %v2469
        %v2925 = vunpack.c.l.b16 %v2479
        %v2926 = vunpack.c.l.b16 %v2489
        %v2927 = vunpack.c.l.b16 %v2499
        %v2928 = vunpack.c.l.b16 %v2509
        %v2929 = vunpack.c.l.b16 %v2519
        %v2930 = vunpack.c.l.b16 %v2529
        %v2931 = vunpack.c.l.b16 %v2539
        %v2932 = vunpack.c.l.b16 %v2549
        %v2933 = vunpack.c.l.b16 %v2559
        %v2934 = vunpack.c.l.b16 %v2569
        %v2935 = vunpack.c.l.b16 %v2579
        %v2936 = vunpack.c.l.b16 %v2589
        %v2937 = vunpack.c.l.b16 %v2599
        %v2938 = vunpack.c.l.b16 %v2609
        %v2939 = vunpack.c.l.b16 %v2619
        %v2940 = vunpack.c.l.b16 %v2629
        %v2941 = vunpack.c.l.b16 %v2639
        %v2942 = vunpack.c.l.b16 %v2649
        %v2943 = vunpack.c.l.b16 %v2659
        %v2944 = vunpack.c.l.b16 %v2669
        %v2945 = vunpack.c.l.b16 %v2679
        %v2946 = vunpack.c.l.b16 %v2689
        %v2947 = vunpack.c.l.b16 %v2699
        %v2948 = vunpack.c.l.b16 %v2709
        %v2949 = vunpack.c.l.b16 %v2719
        %v2950 = vunpack.c.l.b16 %v2729
        %v2951 = vunpack.c.l.b16 %v2739
        %v2952 = vunpack.c.l.b16 %v2749
        %v2953 = vunpack.c.l.b16 %v2759
        %v2954 = vunpack.c.l.b16 %v2769
        %v2955 = vunpack.c.l.b16 %v2779
        %v2956 = vunpack.c.l.b16 %v2789
        %v2957 = vunpack.c.l.b16 %v2799
        %v2958 = vunpack.c.l.b16 %v2809
        %v2959 = vunpack.c.l.b16 %v2819
        %v2960 = vpack.c.b16 %v2897, %v2896
        %v2961 = vpack.c.b16 %v2899, %v2898
        %v2962 = vpack.c.b16 %v2901, %v2900
        %v2963 = vpack.c.b16 %v2903, %v2902
        %v2964 = vpack.c.b16 %v2905, %v2904
        %v2965 = vpack.c.b16 %v2907, %v2906
        %v2966 = vpack.c.b16 %v2909, %v2908
        %v2967 = vpack.c.b16 %v2911, %v2910
        %v2968 = vpack.c.b16 %v2913, %v2912
        %v2969 = vpack.c.b16 %v2915, %v2914
        %v2970 = vpack.c.b16 %v2917, %v2916
        %v2971 = vpack.c.b16 %v2919, %v2918
        %v2972 = vpack.c.b16 %v2921, %v2920
        %v2973 = vpack.c.b16 %v2923, %v2922
        %v2974 = vpack.c.b16 %v2925, %v2924
        %v2975 = vpack.c.b16 %v2927, %v2926
        %v2976 = vpack.c.b16 %v2929, %v2928
        %v2977 = vpack.c.b16 %v2931, %v2930
        %v2978 = vpack.c.b16 %v2933, %v2932
        %v2979 = vpack.c.b16 %v2935, %v2934
        %v2980 = vpack.c.b16 %v2937, %v2936
        %v2981 = vpack.c.b16 %v2939, %v2938
        %v2982 = vpack.c.b16 %v2941, %v2940
        %v2983 = vpack.c.b16 %v2943, %v2942
        %v2984 = vpack.c.b16 %v2945, %v2944
        %v2985 = vpack.c.b16 %v2947, %v2946
        %v2986 = vpack.c.b16 %v2949, %v2948
        %v2987 = vpack.c.b16 %v2951, %v2950
        %v2988 = vpack.c.b16 %v2953, %v2952
        %v2989 = vpack.c.b16 %v2955, %v2954
        %v2990 = vpack.c.b16 %v2957, %v2956
        %v2991 = vpack.c.b16 %v2959, %v2958
        %v2992 = vunpack.c.l.b16 %v2960
        %v2993 = vunpack.c.h.b16 %v2960
        %v2994 = vunpack.c.l.b16 %v2961
        %v2995 = vunpack.c.h.b16 %v2961
        %v2996 = vunpack.c.l.b16 %v2962
        %v2997 = vunpack.c.h.b16 %v2962
        %v2998 = vunpack.c.l.b16 %v2963
        %v2999 = vunpack.c.h.b16 %v2963
        %v3000 = vunpack.c.l.b16 %v2964
        %v3001 = vunpack.c.h.b16 %v2964
        %v3002 = vunpack.c.l.b16 %v2965
        %v3003 = vunpack.c.h.b16 %v2965
        %v3004 = vunpack.c.l.b16 %v2966
        %v3005 = vunpack.c.h.b16 %v2966
        %v3006 = vunpack.c.l.b16 %v2967
        %v3007 = vunpack.c.h.b16 %v2967
        %v3008 = vunpack.c.l.b16 %v2968
        %v3009 = vunpack.c.h.b16 %v2968
        %v3010 = vunpack.c.l.b16 %v2969
        %v3011 = vunpack.c.h.b16 %v2969
        %v3012 = vunpack.c.l.b16 %v2970
        %v3013 = vunpack.c.h.b16 %v2970
        %v3014 = vunpack.c.l.b16 %v2971
        %v3015 = vunpack.c.h.b16 %v2971
        %v3016 = vunpack.c.l.b16 %v2972
        %v3017 = vunpack.c.h.b16 %v2972
        %v3018 = vunpack.c.l.b16 %v2973
        %v3019 = vunpack.c.h.b16 %v2973
        %v3020 = vunpack.c.l.b16 %v2974
        %v3021 = vunpack.c.h.b16 %v2974
        %v3022 = vunpack.c.l.b16 %v2975
        %v3023 = vunpack.c.h.b16 %v2975
        %v3024 = vunpack.c.l.b16 %v2976
        %v3025 = vunpack.c.h.b16 %v2976
        %v3026 = vunpack.c.l.b16 %v2977
        %v3027 = vunpack.c.h.b16 %v2977
        %v3028 = vunpack.c.l.b16 %v2978
        %v3029 = vunpack.c.h.b16 %v2978
        %v3030 = vunpack.c.l.b16 %v2979
        %v3031 = vunpack.c.h.b16 %v2979
        %v3032 = vunpack.c.l.b16 %v2980
        %v3033 = vunpack.c.h.b16 %v2980
        %v3034 = vunpack.c.l.b16 %v2981
        %v3035 = vunpack.c.h.b16 %v2981
        %v3036 = vunpack.c.l.b16 %v2982
        %v3037 = vunpack.c.h.b16 %v2982
        %v3038 = vunpack.c.l.b16 %v2983
        %v3039 = vunpack.c.h.b16 %v2983
        %v3040 = vunpack.c.l.b16 %v2984
        %v3041 = vunpack.c.h.b16 %v2984
        %v3042 = vunpack.c.l.b16 %v2985
        %v3043 = vunpack.c.h.b16 %v2985
        %v3044 = vunpack.c.l.b16 %v2986
        %v3045 = vunpack.c.h.b16 %v2986
        %v3046 = vunpack.c.l.b16 %v2987
        %v3047 = vunpack.c.h.b16 %v2987
        %v3048 = vunpack.c.l.b16 %v2988
        %v3049 = vunpack.c.h.b16 %v2988
        %v3050 = vunpack.c.l.b16 %v2989
        %v3051 = vunpack.c.h.b16 %v2989
        %v3052 = vunpack.c.l.b16 %v2990
        %v3053 = vunpack.c.h.b16 %v2990
        %v3054 = vunpack.c.l.b16 %v2991
        %v3055 = vunpack.c.h.b16 %v2991
        %vm3056 = vcmask 1041409
        %v3057 = vsel %vm3056, %v3000, %v2992
        %vm3058 = vcmask 1042434
        %v3059 = vsel %vm3058, %v3008, %v3057
        %vm3060 = vcmask 1043459
        %v3061 = vsel %vm3060, %v3016, %v3059
        %vm3062 = vcmask 1044484
        %v3063 = vsel %vm3062, %v3024, %v3061
        %vm3064 = vcmask 1045509
        %v3065 = vsel %vm3064, %v3032, %v3063
        %vm3066 = vcmask 1046534
        %v3067 = vsel %vm3066, %v3040, %v3065
        %vm3068 = vcmask 1047559
        %v3069 = vsel %vm3068, %v3048, %v3067
        %v3070 = vsel %vm3056, %v3001, %v2993
        %v3071 = vsel %vm3058, %v3009, %v3070
        %v3072 = vsel %vm3060, %v3017, %v3071
        %v3073 = vsel %vm3062, %v3025, %v3072
        %v3074 = vsel %vm3064, %v3033, %v3073
        %v3075 = vsel %vm3066, %v3041, %v3074
        %v3076 = vsel %vm3068, %v3049, %v3075
        %v3077 = vsel %vm3056, %v3002, %v2994
        %v3078 = vsel %vm3058, %v3010, %v3077
        %v3079 = vsel %vm3060, %v3018, %v3078
        %v3080 = vsel %vm3062, %v3026, %v3079
        %v3081 = vsel %vm3064, %v3034, %v3080
        %v3082 = vsel %vm3066, %v3042, %v3081
        %v3083 = vsel %vm3068, %v3050, %v3082
        %v3084 = vsel %vm3056, %v3003, %v2995
        %v3085 = vsel %vm3058, %v3011, %v3084
        %v3086 = vsel %vm3060, %v3019, %v3085
        %v3087 = vsel %vm3062, %v3027, %v3086
        %v3088 = vsel %vm3064, %v3035, %v3087
        %v3089 = vsel %vm3066, %v3043, %v3088
        %v3090 = vsel %vm3068, %v3051, %v3089
        %v3091 = vsel %vm3056, %v3004, %v2996
        %v3092 = vsel %vm3058, %v3012, %v3091
        %v3093 = vsel %vm3060, %v3020, %v3092
        %v3094 = vsel %vm3062, %v3028, %v3093
        %v3095 = vsel %vm3064, %v3036, %v3094
        %v3096 = vsel %vm3066, %v3044, %v3095
        %v3097 = vsel %vm3068, %v3052, %v3096
        %v3098 = vsel %vm3056, %v3005, %v2997
        %v3099 = vsel %vm3058, %v3013, %v3098
        %v3100 = vsel %vm3060, %v3021, %v3099
        %v3101 = vsel %vm3062, %v3029, %v3100
        %v3102 = vsel %vm3064, %v3037, %v3101
        %v3103 = vsel %vm3066, %v3045, %v3102
        %v3104 = vsel %vm3068, %v3053, %v3103
        %v3105 = vsel %vm3056, %v3006, %v2998
        %v3106 = vsel %vm3058, %v3014, %v3105
        %v3107 = vsel %vm3060, %v3022, %v3106
        %v3108 = vsel %vm3062, %v3030, %v3107
        %v3109 = vsel %vm3064, %v3038, %v3108
        %v3110 = vsel %vm3066, %v3046, %v3109
        %v3111 = vsel %vm3068, %v3054, %v3110
        %v3112 = vsel %vm3056, %v3007, %v2999
        %v3113 = vsel %vm3058, %v3015, %v3112
        %v3114 = vsel %vm3060, %v3023, %v3113
        %v3115 = vsel %vm3062, %v3031, %v3114
        %v3116 = vsel %vm3064, %v3039, %v3115
        %v3117 = vsel %vm3066, %v3047, %v3116
        %v3118 = vsel %vm3068, %v3055, %v3117
        %v3119 = vpack.c.b16 %v3076, %v3069
        %v3120 = vpack.c.b16 %v3090, %v3083
        %v3121 = vpack.c.b16 %v3104, %v3097
        %v3122 = vpack.c.b16 %v3118, %v3111
        %v3127 = vmax.bf16 %v2828, %v3119
        %v3128 = vmax.bf16 %v2829, %v3120
        %v3129 = vmax.bf16 %v2830, %v3121
        %v3130 = vmax.bf16 %v2831, %v3122
        %3131 = vst [vmem:[#allocation2] sm:$0xff] %v3127
        %3132 = vst [vmem:[#allocation2 + $0x8] sm:$0xff] %v3128
        %3133 = vst [vmem:[#allocation2 + $0x10] sm:$0xff] %v3129
        %3134 = vst [vmem:[#allocation2 + $0x18] sm:$0xff] %v3130
        // Predicated region
        $region101: #{tpu_custom_call.1} parent=71 // pred_check
          %p3135 = pneg %p2820
        $region102: #{tpu_custom_call.1} parent=71 // pred_check_branch
          %3137 = sbr.rel (%p3135) target = $region104
        $region103: #{tpu_custom_call.1} parent=71 // pred_region
          %v3138 = vld [vmem:[#allocation2] sm:$0xff]
          %v3139 = vld [vmem:[#allocation2 + $0x8] sm:$0xff]
          %v3140 = vld [vmem:[#allocation2 + $0x10] sm:$0xff]
          %v3141 = vld [vmem:[#allocation2 + $0x18] sm:$0xff]
          %v3142 = vld [vmem:[#allocation9] sm:$0xff]
          %v3143 = vld [vmem:[#allocation9 + $0x8] sm:$0xff]
          %v3144 = vld [vmem:[#allocation9 + $0x10] sm:$0xff]
          %v3145 = vld [vmem:[#allocation9 + $0x18] sm:$0xff]
          %v3146 = vld [vmem:[#allocation9 + $0x20] sm:$0xff]
          %v3147 = vld [vmem:[#allocation9 + $0x28] sm:$0xff]
          %v3148 = vld [vmem:[#allocation9 + $0x30] sm:$0xff]
          %v3149 = vld [vmem:[#allocation9 + $0x38] sm:$0xff]
          %v3150 = vld [vmem:[#allocation9 + $0x40] sm:$0xff]
          %v3151 = vld [vmem:[#allocation9 + $0x48] sm:$0xff]
          %v3152 = vld [vmem:[#allocation9 + $0x50] sm:$0xff]
          %v3153 = vld [vmem:[#allocation9 + $0x58] sm:$0xff]
          %v3154 = vld [vmem:[#allocation9 + $0x60] sm:$0xff]
          %v3155 = vld [vmem:[#allocation9 + $0x68] sm:$0xff]
          %v3156 = vld [vmem:[#allocation9 + $0x70] sm:$0xff]
          %v3157 = vld [vmem:[#allocation9 + $0x78] sm:$0xff]
          %v3158 = vld [vmem:[#allocation9 + $0x80] sm:$0xff]
          %v3159 = vld [vmem:[#allocation9 + $0x88] sm:$0xff]
          %v3160 = vld [vmem:[#allocation9 + $0x90] sm:$0xff]
          %v3161 = vld [vmem:[#allocation9 + $0x98] sm:$0xff]
          %v3162 = vld [vmem:[#allocation9 + $0xa0] sm:$0xff]
          %v3163 = vld [vmem:[#allocation9 + $0xa8] sm:$0xff]
          %v3164 = vld [vmem:[#allocation9 + $0xb0] sm:$0xff]
          %v3165 = vld [vmem:[#allocation9 + $0xb8] sm:$0xff]
          %v3166 = vld [vmem:[#allocation9 + $0xc0] sm:$0xff]
          %v3167 = vld [vmem:[#allocation9 + $0xc8] sm:$0xff]
          %v3168 = vld [vmem:[#allocation9 + $0xd0] sm:$0xff]
          %v3169 = vld [vmem:[#allocation9 + $0xd8] sm:$0xff]
          %v3170 = vld [vmem:[#allocation9 + $0xe0] sm:$0xff]
          %v3171 = vld [vmem:[#allocation9 + $0xe8] sm:$0xff]
          %v3172 = vld [vmem:[#allocation9 + $0xf0] sm:$0xff]
          %v3173 = vld [vmem:[#allocation9 + $0xf8] sm:$0xff]
          %v3174 = vld [vmem:[#allocation9 + $0x100] sm:$0xff]
          %v3175 = vld [vmem:[#allocation9 + $0x108] sm:$0xff]
          %v3176 = vld [vmem:[#allocation9 + $0x110] sm:$0xff]
          %v3177 = vld [vmem:[#allocation9 + $0x118] sm:$0xff]
          %v3178 = vld [vmem:[#allocation9 + $0x120] sm:$0xff]
          %v3179 = vld [vmem:[#allocation9 + $0x128] sm:$0xff]
          %v3180 = vld [vmem:[#allocation9 + $0x130] sm:$0xff]
          %v3181 = vld [vmem:[#allocation9 + $0x138] sm:$0xff]
          %v3182 = vld [vmem:[#allocation9 + $0x140] sm:$0xff]
          %v3183 = vld [vmem:[#allocation9 + $0x148] sm:$0xff]
          %v3184 = vld [vmem:[#allocation9 + $0x150] sm:$0xff]
          %v3185 = vld [vmem:[#allocation9 + $0x158] sm:$0xff]
          %v3186 = vld [vmem:[#allocation9 + $0x160] sm:$0xff]
          %v3187 = vld [vmem:[#allocation9 + $0x168] sm:$0xff]
          %v3188 = vld [vmem:[#allocation9 + $0x170] sm:$0xff]
          %v3189 = vld [vmem:[#allocation9 + $0x178] sm:$0xff]
          %v3190 = vld [vmem:[#allocation9 + $0x180] sm:$0xff]
          %v3191 = vld [vmem:[#allocation9 + $0x188] sm:$0xff]
          %v3192 = vld [vmem:[#allocation9 + $0x190] sm:$0xff]
          %v3193 = vld [vmem:[#allocation9 + $0x198] sm:$0xff]
          %v3194 = vld [vmem:[#allocation9 + $0x1a0] sm:$0xff]
          %v3195 = vld [vmem:[#allocation9 + $0x1a8] sm:$0xff]
          %v3196 = vld [vmem:[#allocation9 + $0x1b0] sm:$0xff]
          %v3197 = vld [vmem:[#allocation9 + $0x1b8] sm:$0xff]
          %v3198 = vld [vmem:[#allocation9 + $0x1c0] sm:$0xff]
          %v3199 = vld [vmem:[#allocation9 + $0x1c8] sm:$0xff]
          %v3200 = vld [vmem:[#allocation9 + $0x1d0] sm:$0xff]
          %v3201 = vld [vmem:[#allocation9 + $0x1d8] sm:$0xff]
          %v3202 = vld [vmem:[#allocation9 + $0x1e0] sm:$0xff]
          %v3203 = vld [vmem:[#allocation9 + $0x1e8] sm:$0xff]
          %v3204 = vld [vmem:[#allocation9 + $0x1f0] sm:$0xff]
          %v3205 = vld [vmem:[#allocation9 + $0x1f8] sm:$0xff]
          %v3206 = vld [vmem:[#allocation9 + $0x200] sm:$0xff]
          %v3207 = vld [vmem:[#allocation9 + $0x208] sm:$0xff]
          %v3208 = vld [vmem:[#allocation9 + $0x210] sm:$0xff]
          %v3209 = vld [vmem:[#allocation9 + $0x218] sm:$0xff]
          %v3210 = vld [vmem:[#allocation9 + $0x220] sm:$0xff]
          %v3211 = vld [vmem:[#allocation9 + $0x228] sm:$0xff]
          %v3212 = vld [vmem:[#allocation9 + $0x230] sm:$0xff]
          %v3213 = vld [vmem:[#allocation9 + $0x238] sm:$0xff]
          %v3214 = vld [vmem:[#allocation9 + $0x240] sm:$0xff]
          %v3215 = vld [vmem:[#allocation9 + $0x248] sm:$0xff]
          %v3216 = vld [vmem:[#allocation9 + $0x250] sm:$0xff]
          %v3217 = vld [vmem:[#allocation9 + $0x258] sm:$0xff]
          %v3218 = vld [vmem:[#allocation9 + $0x260] sm:$0xff]
          %v3219 = vld [vmem:[#allocation9 + $0x268] sm:$0xff]
          %v3220 = vld [vmem:[#allocation9 + $0x270] sm:$0xff]
          %v3221 = vld [vmem:[#allocation9 + $0x278] sm:$0xff]
          %v3222 = vld [vmem:[#allocation9 + $0x280] sm:$0xff]
          %v3223 = vld [vmem:[#allocation9 + $0x288] sm:$0xff]
          %v3224 = vld [vmem:[#allocation9 + $0x290] sm:$0xff]
          %v3225 = vld [vmem:[#allocation9 + $0x298] sm:$0xff]
          %v3226 = vld [vmem:[#allocation9 + $0x2a0] sm:$0xff]
          %v3227 = vld [vmem:[#allocation9 + $0x2a8] sm:$0xff]
          %v3228 = vld [vmem:[#allocation9 + $0x2b0] sm:$0xff]
          %v3229 = vld [vmem:[#allocation9 + $0x2b8] sm:$0xff]
          %v3230 = vld [vmem:[#allocation9 + $0x2c0] sm:$0xff]
          %v3231 = vld [vmem:[#allocation9 + $0x2c8] sm:$0xff]
          %v3232 = vld [vmem:[#allocation9 + $0x2d0] sm:$0xff]
          %v3233 = vld [vmem:[#allocation9 + $0x2d8] sm:$0xff]
          %v3234 = vld [vmem:[#allocation9 + $0x2e0] sm:$0xff]
          %v3235 = vld [vmem:[#allocation9 + $0x2e8] sm:$0xff]
          %v3236 = vld [vmem:[#allocation9 + $0x2f0] sm:$0xff]
          %v3237 = vld [vmem:[#allocation9 + $0x2f8] sm:$0xff]
          %v3238 = vld [vmem:[#allocation9 + $0x300] sm:$0xff]
          %v3239 = vld [vmem:[#allocation9 + $0x308] sm:$0xff]
          %v3240 = vld [vmem:[#allocation9 + $0x310] sm:$0xff]
          %v3241 = vld [vmem:[#allocation9 + $0x318] sm:$0xff]
          %v3242 = vld [vmem:[#allocation9 + $0x320] sm:$0xff]
          %v3243 = vld [vmem:[#allocation9 + $0x328] sm:$0xff]
          %v3244 = vld [vmem:[#allocation9 + $0x330] sm:$0xff]
          %v3245 = vld [vmem:[#allocation9 + $0x338] sm:$0xff]
          %v3246 = vld [vmem:[#allocation9 + $0x340] sm:$0xff]
          %v3247 = vld [vmem:[#allocation9 + $0x348] sm:$0xff]
          %v3248 = vld [vmem:[#allocation9 + $0x350] sm:$0xff]
          %v3249 = vld [vmem:[#allocation9 + $0x358] sm:$0xff]
          %v3250 = vld [vmem:[#allocation9 + $0x360] sm:$0xff]
          %v3251 = vld [vmem:[#allocation9 + $0x368] sm:$0xff]
          %v3252 = vld [vmem:[#allocation9 + $0x370] sm:$0xff]
          %v3253 = vld [vmem:[#allocation9 + $0x378] sm:$0xff]
          %v3254 = vld [vmem:[#allocation9 + $0x380] sm:$0xff]
          %v3255 = vld [vmem:[#allocation9 + $0x388] sm:$0xff]
          %v3256 = vld [vmem:[#allocation9 + $0x390] sm:$0xff]
          %v3257 = vld [vmem:[#allocation9 + $0x398] sm:$0xff]
          %v3258 = vld [vmem:[#allocation9 + $0x3a0] sm:$0xff]
          %v3259 = vld [vmem:[#allocation9 + $0x3a8] sm:$0xff]
          %v3260 = vld [vmem:[#allocation9 + $0x3b0] sm:$0xff]
          %v3261 = vld [vmem:[#allocation9 + $0x3b8] sm:$0xff]
          %v3262 = vld [vmem:[#allocation9 + $0x3c0] sm:$0xff]
          %v3263 = vld [vmem:[#allocation9 + $0x3c8] sm:$0xff]
          %v3264 = vld [vmem:[#allocation9 + $0x3d0] sm:$0xff]
          %v3265 = vld [vmem:[#allocation9 + $0x3d8] sm:$0xff]
          %v3266 = vld [vmem:[#allocation9 + $0x3e0] sm:$0xff]
          %v3267 = vld [vmem:[#allocation9 + $0x3e8] sm:$0xff]
          %v3268 = vld [vmem:[#allocation9 + $0x3f0] sm:$0xff]
          %v3269 = vld [vmem:[#allocation9 + $0x3f8] sm:$0xff]
          %v3270 = vld [vmem:[#allocation9 + $0x400] sm:$0xff]
          %v3271 = vld [vmem:[#allocation9 + $0x408] sm:$0xff]
          %v3272 = vld [vmem:[#allocation9 + $0x410] sm:$0xff]
          %v3273 = vld [vmem:[#allocation9 + $0x418] sm:$0xff]
          %v3274 = vld [vmem:[#allocation9 + $0x420] sm:$0xff]
          %v3275 = vld [vmem:[#allocation9 + $0x428] sm:$0xff]
          %v3276 = vld [vmem:[#allocation9 + $0x430] sm:$0xff]
          %v3277 = vld [vmem:[#allocation9 + $0x438] sm:$0xff]
          %v3278 = vld [vmem:[#allocation9 + $0x440] sm:$0xff]
          %v3279 = vld [vmem:[#allocation9 + $0x448] sm:$0xff]
          %v3280 = vld [vmem:[#allocation9 + $0x450] sm:$0xff]
          %v3281 = vld [vmem:[#allocation9 + $0x458] sm:$0xff]
          %v3282 = vld [vmem:[#allocation9 + $0x460] sm:$0xff]
          %v3283 = vld [vmem:[#allocation9 + $0x468] sm:$0xff]
          %v3284 = vld [vmem:[#allocation9 + $0x470] sm:$0xff]
          %v3285 = vld [vmem:[#allocation9 + $0x478] sm:$0xff]
          %v3286 = vld [vmem:[#allocation9 + $0x480] sm:$0xff]
          %v3287 = vld [vmem:[#allocation9 + $0x488] sm:$0xff]
          %v3288 = vld [vmem:[#allocation9 + $0x490] sm:$0xff]
          %v3289 = vld [vmem:[#allocation9 + $0x498] sm:$0xff]
          %v3290 = vld [vmem:[#allocation9 + $0x4a0] sm:$0xff]
          %v3291 = vld [vmem:[#allocation9 + $0x4a8] sm:$0xff]
          %v3292 = vld [vmem:[#allocation9 + $0x4b0] sm:$0xff]
          %v3293 = vld [vmem:[#allocation9 + $0x4b8] sm:$0xff]
          %v3294 = vld [vmem:[#allocation9 + $0x4c0] sm:$0xff]
          %v3295 = vld [vmem:[#allocation9 + $0x4c8] sm:$0xff]
          %v3296 = vld [vmem:[#allocation9 + $0x4d0] sm:$0xff]
          %v3297 = vld [vmem:[#allocation9 + $0x4d8] sm:$0xff]
          %v3298 = vld [vmem:[#allocation9 + $0x4e0] sm:$0xff]
          %v3299 = vld [vmem:[#allocation9 + $0x4e8] sm:$0xff]
          %v3300 = vld [vmem:[#allocation9 + $0x4f0] sm:$0xff]
          %v3301 = vld [vmem:[#allocation9 + $0x4f8] sm:$0xff]
          %v3302 = vld [vmem:[#allocation9 + $0x500] sm:$0xff]
          %v3303 = vld [vmem:[#allocation9 + $0x508] sm:$0xff]
          %v3304 = vld [vmem:[#allocation9 + $0x510] sm:$0xff]
          %v3305 = vld [vmem:[#allocation9 + $0x518] sm:$0xff]
          %v3306 = vld [vmem:[#allocation9 + $0x520] sm:$0xff]
          %v3307 = vld [vmem:[#allocation9 + $0x528] sm:$0xff]
          %v3308 = vld [vmem:[#allocation9 + $0x530] sm:$0xff]
          %v3309 = vld [vmem:[#allocation9 + $0x538] sm:$0xff]
          %v3310 = vld [vmem:[#allocation9 + $0x540] sm:$0xff]
          %v3311 = vld [vmem:[#allocation9 + $0x548] sm:$0xff]
          %v3312 = vld [vmem:[#allocation9 + $0x550] sm:$0xff]
          %v3313 = vld [vmem:[#allocation9 + $0x558] sm:$0xff]
          %v3314 = vld [vmem:[#allocation9 + $0x560] sm:$0xff]
          %v3315 = vld [vmem:[#allocation9 + $0x568] sm:$0xff]
          %v3316 = vld [vmem:[#allocation9 + $0x570] sm:$0xff]
          %v3317 = vld [vmem:[#allocation9 + $0x578] sm:$0xff]
          %v3318 = vld [vmem:[#allocation9 + $0x580] sm:$0xff]
          %v3319 = vld [vmem:[#allocation9 + $0x588] sm:$0xff]
          %v3320 = vld [vmem:[#allocation9 + $0x590] sm:$0xff]
          %v3321 = vld [vmem:[#allocation9 + $0x598] sm:$0xff]
          %v3322 = vld [vmem:[#allocation9 + $0x5a0] sm:$0xff]
          %v3323 = vld [vmem:[#allocation9 + $0x5a8] sm:$0xff]
          %v3324 = vld [vmem:[#allocation9 + $0x5b0] sm:$0xff]
          %v3325 = vld [vmem:[#allocation9 + $0x5b8] sm:$0xff]
          %v3326 = vld [vmem:[#allocation9 + $0x5c0] sm:$0xff]
          %v3327 = vld [vmem:[#allocation9 + $0x5c8] sm:$0xff]
          %v3328 = vld [vmem:[#allocation9 + $0x5d0] sm:$0xff]
          %v3329 = vld [vmem:[#allocation9 + $0x5d8] sm:$0xff]
          %v3330 = vld [vmem:[#allocation9 + $0x5e0] sm:$0xff]
          %v3331 = vld [vmem:[#allocation9 + $0x5e8] sm:$0xff]
          %v3332 = vld [vmem:[#allocation9 + $0x5f0] sm:$0xff]
          %v3333 = vld [vmem:[#allocation9 + $0x5f8] sm:$0xff]
          %v3334 = vld [vmem:[#allocation9 + $0x600] sm:$0xff]
          %v3335 = vld [vmem:[#allocation9 + $0x608] sm:$0xff]
          %v3336 = vld [vmem:[#allocation9 + $0x610] sm:$0xff]
          %v3337 = vld [vmem:[#allocation9 + $0x618] sm:$0xff]
          %v3338 = vld [vmem:[#allocation9 + $0x620] sm:$0xff]
          %v3339 = vld [vmem:[#allocation9 + $0x628] sm:$0xff]
          %v3340 = vld [vmem:[#allocation9 + $0x630] sm:$0xff]
          %v3341 = vld [vmem:[#allocation9 + $0x638] sm:$0xff]
          %v3342 = vld [vmem:[#allocation9 + $0x640] sm:$0xff]
          %v3343 = vld [vmem:[#allocation9 + $0x648] sm:$0xff]
          %v3344 = vld [vmem:[#allocation9 + $0x650] sm:$0xff]
          %v3345 = vld [vmem:[#allocation9 + $0x658] sm:$0xff]
          %v3346 = vld [vmem:[#allocation9 + $0x660] sm:$0xff]
          %v3347 = vld [vmem:[#allocation9 + $0x668] sm:$0xff]
          %v3348 = vld [vmem:[#allocation9 + $0x670] sm:$0xff]
          %v3349 = vld [vmem:[#allocation9 + $0x678] sm:$0xff]
          %v3350 = vld [vmem:[#allocation9 + $0x680] sm:$0xff]
          %v3351 = vld [vmem:[#allocation9 + $0x688] sm:$0xff]
          %v3352 = vld [vmem:[#allocation9 + $0x690] sm:$0xff]
          %v3353 = vld [vmem:[#allocation9 + $0x698] sm:$0xff]
          %v3354 = vld [vmem:[#allocation9 + $0x6a0] sm:$0xff]
          %v3355 = vld [vmem:[#allocation9 + $0x6a8] sm:$0xff]
          %v3356 = vld [vmem:[#allocation9 + $0x6b0] sm:$0xff]
          %v3357 = vld [vmem:[#allocation9 + $0x6b8] sm:$0xff]
          %v3358 = vld [vmem:[#allocation9 + $0x6c0] sm:$0xff]
          %v3359 = vld [vmem:[#allocation9 + $0x6c8] sm:$0xff]
          %v3360 = vld [vmem:[#allocation9 + $0x6d0] sm:$0xff]
          %v3361 = vld [vmem:[#allocation9 + $0x6d8] sm:$0xff]
          %v3362 = vld [vmem:[#allocation9 + $0x6e0] sm:$0xff]
          %v3363 = vld [vmem:[#allocation9 + $0x6e8] sm:$0xff]
          %v3364 = vld [vmem:[#allocation9 + $0x6f0] sm:$0xff]
          %v3365 = vld [vmem:[#allocation9 + $0x6f8] sm:$0xff]
          %v3366 = vld [vmem:[#allocation9 + $0x700] sm:$0xff]
          %v3367 = vld [vmem:[#allocation9 + $0x708] sm:$0xff]
          %v3368 = vld [vmem:[#allocation9 + $0x710] sm:$0xff]
          %v3369 = vld [vmem:[#allocation9 + $0x718] sm:$0xff]
          %v3370 = vld [vmem:[#allocation9 + $0x720] sm:$0xff]
          %v3371 = vld [vmem:[#allocation9 + $0x728] sm:$0xff]
          %v3372 = vld [vmem:[#allocation9 + $0x730] sm:$0xff]
          %v3373 = vld [vmem:[#allocation9 + $0x738] sm:$0xff]
          %v3374 = vld [vmem:[#allocation9 + $0x740] sm:$0xff]
          %v3375 = vld [vmem:[#allocation9 + $0x748] sm:$0xff]
          %v3376 = vld [vmem:[#allocation9 + $0x750] sm:$0xff]
          %v3377 = vld [vmem:[#allocation9 + $0x758] sm:$0xff]
          %v3378 = vld [vmem:[#allocation9 + $0x760] sm:$0xff]
          %v3379 = vld [vmem:[#allocation9 + $0x768] sm:$0xff]
          %v3380 = vld [vmem:[#allocation9 + $0x770] sm:$0xff]
          %v3381 = vld [vmem:[#allocation9 + $0x778] sm:$0xff]
          %v3382 = vld [vmem:[#allocation9 + $0x780] sm:$0xff]
          %v3383 = vld [vmem:[#allocation9 + $0x788] sm:$0xff]
          %v3384 = vld [vmem:[#allocation9 + $0x790] sm:$0xff]
          %v3385 = vld [vmem:[#allocation9 + $0x798] sm:$0xff]
          %v3386 = vld [vmem:[#allocation9 + $0x7a0] sm:$0xff]
          %v3387 = vld [vmem:[#allocation9 + $0x7a8] sm:$0xff]
          %v3388 = vld [vmem:[#allocation9 + $0x7b0] sm:$0xff]
          %v3389 = vld [vmem:[#allocation9 + $0x7b8] sm:$0xff]
          %v3390 = vld [vmem:[#allocation9 + $0x7c0] sm:$0xff]
          %v3391 = vld [vmem:[#allocation9 + $0x7c8] sm:$0xff]
          %v3392 = vld [vmem:[#allocation9 + $0x7d0] sm:$0xff]
          %v3393 = vld [vmem:[#allocation9 + $0x7d8] sm:$0xff]
          %v3394 = vld [vmem:[#allocation9 + $0x7e0] sm:$0xff]
          %v3395 = vld [vmem:[#allocation9 + $0x7e8] sm:$0xff]
          %v3396 = vld [vmem:[#allocation9 + $0x7f0] sm:$0xff]
          %v3397 = vld [vmem:[#allocation9 + $0x7f8] sm:$0xff]
          %v3398 = vld [vmem:[%s8] sm:$0xf]
          %v3400 = vlaneseq
          %v3401 = vshrl.u32 %v3400, 7
          %v3402 = vsub.s32 0, %v3401
          %v3403 = vrot.slane %v3398, %v3402
          %v3404 = vlaneseq
          %v3405 = vshrl.u32 %v3404, 7
          %v3406 = vsub.s32 1, %v3405
          %v3407 = vrot.slane %v3398, %v3406
          %v3408 = vlaneseq
          %v3409 = vshrl.u32 %v3408, 7
          %v3410 = vsub.s32 2, %v3409
          %v3411 = vrot.slane %v3398, %v3410
          %v3412 = vlaneseq
          %v3413 = vshrl.u32 %v3412, 7
          %v3414 = vsub.s32 3, %v3413
          %v3415 = vrot.slane %v3398, %v3414
          %v3424 = vunpack.c.l.b16 %v3138
          %v3425 = vunpack.c.h.b16 %v3138
          %v3426 = vunpack.c.l.b16 %v3139
          %v3427 = vunpack.c.h.b16 %v3139
          %v3428 = vunpack.c.l.b16 %v3140
          %v3429 = vunpack.c.h.b16 %v3140
          %v3430 = vunpack.c.l.b16 %v3141
          %v3431 = vunpack.c.h.b16 %v3141
          %v3432 = vpack.c.b16 %v3424, %v3424
          %v3433 = vpack.c.b16 %v3425, %v3425
          %v3434 = vpack.c.b16 %v3426, %v3426
          %v3435 = vpack.c.b16 %v3427, %v3427
          %v3436 = vpack.c.b16 %v3428, %v3428
          %v3437 = vpack.c.b16 %v3429, %v3429
          %v3438 = vpack.c.b16 %v3430, %v3430
          %v3439 = vpack.c.b16 %v3431, %v3431
          %v3704 = vunpack.c.l.b16 %v3142
          %v3705 = vunpack.c.h.b16 %v3142
          %v3706 = vunpack.c.l.b16 %v3143
          %v3707 = vunpack.c.h.b16 %v3143
          %v3708 = vunpack.c.l.b16 %v3144
          %v3709 = vunpack.c.h.b16 %v3144
          %v3710 = vunpack.c.l.b16 %v3145
          %v3711 = vunpack.c.h.b16 %v3145
          %v3712 = vunpack.c.l.b16 %v3146
          %v3713 = vunpack.c.h.b16 %v3146
          %v3714 = vunpack.c.l.b16 %v3147
          %v3715 = vunpack.c.h.b16 %v3147
          %v3716 = vunpack.c.l.b16 %v3148
          %v3717 = vunpack.c.h.b16 %v3148
          %v3718 = vunpack.c.l.b16 %v3149
          %v3719 = vunpack.c.h.b16 %v3149
          %v3720 = vunpack.c.l.b16 %v3150
          %v3721 = vunpack.c.h.b16 %v3150
          %v3722 = vunpack.c.l.b16 %v3151
          %v3723 = vunpack.c.h.b16 %v3151
          %v3724 = vunpack.c.l.b16 %v3152
          %v3725 = vunpack.c.h.b16 %v3152
          %v3726 = vunpack.c.l.b16 %v3153
          %v3727 = vunpack.c.h.b16 %v3153
          %v3728 = vunpack.c.l.b16 %v3154
          %v3729 = vunpack.c.h.b16 %v3154
          %v3730 = vunpack.c.l.b16 %v3155
          %v3731 = vunpack.c.h.b16 %v3155
          %v3732 = vunpack.c.l.b16 %v3156
          %v3733 = vunpack.c.h.b16 %v3156
          %v3734 = vunpack.c.l.b16 %v3157
          %v3735 = vunpack.c.h.b16 %v3157
          %v3736 = vunpack.c.l.b16 %v3158
          %v3737 = vunpack.c.h.b16 %v3158
          %v3738 = vunpack.c.l.b16 %v3159
          %v3739 = vunpack.c.h.b16 %v3159
          %v3740 = vunpack.c.l.b16 %v3160
          %v3741 = vunpack.c.h.b16 %v3160
          %v3742 = vunpack.c.l.b16 %v3161
          %v3743 = vunpack.c.h.b16 %v3161
          %v3744 = vunpack.c.l.b16 %v3162
          %v3745 = vunpack.c.h.b16 %v3162
          %v3746 = vunpack.c.l.b16 %v3163
          %v3747 = vunpack.c.h.b16 %v3163
          %v3748 = vunpack.c.l.b16 %v3164
          %v3749 = vunpack.c.h.b16 %v3164
          %v3750 = vunpack.c.l.b16 %v3165
          %v3751 = vunpack.c.h.b16 %v3165
          %v3752 = vunpack.c.l.b16 %v3166
          %v3753 = vunpack.c.h.b16 %v3166
          %v3754 = vunpack.c.l.b16 %v3167
          %v3755 = vunpack.c.h.b16 %v3167
          %v3756 = vunpack.c.l.b16 %v3168
          %v3757 = vunpack.c.h.b16 %v3168
          %v3758 = vunpack.c.l.b16 %v3169
          %v3759 = vunpack.c.h.b16 %v3169
          %v3760 = vunpack.c.l.b16 %v3170
          %v3761 = vunpack.c.h.b16 %v3170
          %v3762 = vunpack.c.l.b16 %v3171
          %v3763 = vunpack.c.h.b16 %v3171
          %v3764 = vunpack.c.l.b16 %v3172
          %v3765 = vunpack.c.h.b16 %v3172
          %v3766 = vunpack.c.l.b16 %v3173
          %v3767 = vunpack.c.h.b16 %v3173
          %v3768 = vunpack.c.l.b16 %v3174
          %v3769 = vunpack.c.h.b16 %v3174
          %v3770 = vunpack.c.l.b16 %v3175
          %v3771 = vunpack.c.h.b16 %v3175
          %v3772 = vunpack.c.l.b16 %v3176
          %v3773 = vunpack.c.h.b16 %v3176
          %v3774 = vunpack.c.l.b16 %v3177
          %v3775 = vunpack.c.h.b16 %v3177
          %v3776 = vunpack.c.l.b16 %v3178
          %v3777 = vunpack.c.h.b16 %v3178
          %v3778 = vunpack.c.l.b16 %v3179
          %v3779 = vunpack.c.h.b16 %v3179
          %v3780 = vunpack.c.l.b16 %v3180
          %v3781 = vunpack.c.h.b16 %v3180
          %v3782 = vunpack.c.l.b16 %v3181
          %v3783 = vunpack.c.h.b16 %v3181
          %v3784 = vunpack.c.l.b16 %v3182
          %v3785 = vunpack.c.h.b16 %v3182
          %v3786 = vunpack.c.l.b16 %v3183
          %v3787 = vunpack.c.h.b16 %v3183
          %v3788 = vunpack.c.l.b16 %v3184
          %v3789 = vunpack.c.h.b16 %v3184
          %v3790 = vunpack.c.l.b16 %v3185
          %v3791 = vunpack.c.h.b16 %v3185
          %v3792 = vunpack.c.l.b16 %v3186
          %v3793 = vunpack.c.h.b16 %v3186
          %v3794 = vunpack.c.l.b16 %v3187
          %v3795 = vunpack.c.h.b16 %v3187
          %v3796 = vunpack.c.l.b16 %v3188
          %v3797 = vunpack.c.h.b16 %v3188
          %v3798 = vunpack.c.l.b16 %v3189
          %v3799 = vunpack.c.h.b16 %v3189
          %v3800 = vunpack.c.l.b16 %v3190
          %v3801 = vunpack.c.h.b16 %v3190
          %v3802 = vunpack.c.l.b16 %v3191
          %v3803 = vunpack.c.h.b16 %v3191
          %v3804 = vunpack.c.l.b16 %v3192
          %v3805 = vunpack.c.h.b16 %v3192
          %v3806 = vunpack.c.l.b16 %v3193
          %v3807 = vunpack.c.h.b16 %v3193
          %v3808 = vunpack.c.l.b16 %v3194
          %v3809 = vunpack.c.h.b16 %v3194
          %v3810 = vunpack.c.l.b16 %v3195
          %v3811 = vunpack.c.h.b16 %v3195
          %v3812 = vunpack.c.l.b16 %v3196
          %v3813 = vunpack.c.h.b16 %v3196
          %v3814 = vunpack.c.l.b16 %v3197
          %v3815 = vunpack.c.h.b16 %v3197
          %v3816 = vunpack.c.l.b16 %v3198
          %v3817 = vunpack.c.h.b16 %v3198
          %v3818 = vunpack.c.l.b16 %v3199
          %v3819 = vunpack.c.h.b16 %v3199
          %v3820 = vunpack.c.l.b16 %v3200
          %v3821 = vunpack.c.h.b16 %v3200
          %v3822 = vunpack.c.l.b16 %v3201
          %v3823 = vunpack.c.h.b16 %v3201
          %v3824 = vunpack.c.l.b16 %v3202
          %v3825 = vunpack.c.h.b16 %v3202
          %v3826 = vunpack.c.l.b16 %v3203
          %v3827 = vunpack.c.h.b16 %v3203
          %v3828 = vunpack.c.l.b16 %v3204
          %v3829 = vunpack.c.h.b16 %v3204
          %v3830 = vunpack.c.l.b16 %v3205
          %v3831 = vunpack.c.h.b16 %v3205
          %v3832 = vunpack.c.l.b16 %v3206
          %v3833 = vunpack.c.h.b16 %v3206
          %v3834 = vunpack.c.l.b16 %v3207
          %v3835 = vunpack.c.h.b16 %v3207
          %v3836 = vunpack.c.l.b16 %v3208
          %v3837 = vunpack.c.h.b16 %v3208
          %v3838 = vunpack.c.l.b16 %v3209
          %v3839 = vunpack.c.h.b16 %v3209
          %v3840 = vunpack.c.l.b16 %v3210
          %v3841 = vunpack.c.h.b16 %v3210
          %v3842 = vunpack.c.l.b16 %v3211
          %v3843 = vunpack.c.h.b16 %v3211
          %v3844 = vunpack.c.l.b16 %v3212
          %v3845 = vunpack.c.h.b16 %v3212
          %v3846 = vunpack.c.l.b16 %v3213
          %v3847 = vunpack.c.h.b16 %v3213
          %v3848 = vunpack.c.l.b16 %v3214
          %v3849 = vunpack.c.h.b16 %v3214
          %v3850 = vunpack.c.l.b16 %v3215
          %v3851 = vunpack.c.h.b16 %v3215
          %v3852 = vunpack.c.l.b16 %v3216
          %v3853 = vunpack.c.h.b16 %v3216
          %v3854 = vunpack.c.l.b16 %v3217
          %v3855 = vunpack.c.h.b16 %v3217
          %v3856 = vunpack.c.l.b16 %v3218
          %v3857 = vunpack.c.h.b16 %v3218
          %v3858 = vunpack.c.l.b16 %v3219
          %v3859 = vunpack.c.h.b16 %v3219
          %v3860 = vunpack.c.l.b16 %v3220
          %v3861 = vunpack.c.h.b16 %v3220
          %v3862 = vunpack.c.l.b16 %v3221
          %v3863 = vunpack.c.h.b16 %v3221
          %v3864 = vunpack.c.l.b16 %v3222
          %v3865 = vunpack.c.h.b16 %v3222
          %v3866 = vunpack.c.l.b16 %v3223
          %v3867 = vunpack.c.h.b16 %v3223
          %v3868 = vunpack.c.l.b16 %v3224
          %v3869 = vunpack.c.h.b16 %v3224
          %v3870 = vunpack.c.l.b16 %v3225
          %v3871 = vunpack.c.h.b16 %v3225
          %v3872 = vunpack.c.l.b16 %v3226
          %v3873 = vunpack.c.h.b16 %v3226
          %v3874 = vunpack.c.l.b16 %v3227
          %v3875 = vunpack.c.h.b16 %v3227
          %v3876 = vunpack.c.l.b16 %v3228
          %v3877 = vunpack.c.h.b16 %v3228
          %v3878 = vunpack.c.l.b16 %v3229
          %v3879 = vunpack.c.h.b16 %v3229
          %v3880 = vunpack.c.l.b16 %v3230
          %v3881 = vunpack.c.h.b16 %v3230
          %v3882 = vunpack.c.l.b16 %v3231
          %v3883 = vunpack.c.h.b16 %v3231
          %v3884 = vunpack.c.l.b16 %v3232
          %v3885 = vunpack.c.h.b16 %v3232
          %v3886 = vunpack.c.l.b16 %v3233
          %v3887 = vunpack.c.h.b16 %v3233
          %v3888 = vunpack.c.l.b16 %v3234
          %v3889 = vunpack.c.h.b16 %v3234
          %v3890 = vunpack.c.l.b16 %v3235
          %v3891 = vunpack.c.h.b16 %v3235
          %v3892 = vunpack.c.l.b16 %v3236
          %v3893 = vunpack.c.h.b16 %v3236
          %v3894 = vunpack.c.l.b16 %v3237
          %v3895 = vunpack.c.h.b16 %v3237
          %v3896 = vunpack.c.l.b16 %v3238
          %v3897 = vunpack.c.h.b16 %v3238
          %v3898 = vunpack.c.l.b16 %v3239
          %v3899 = vunpack.c.h.b16 %v3239
          %v3900 = vunpack.c.l.b16 %v3240
          %v3901 = vunpack.c.h.b16 %v3240
          %v3902 = vunpack.c.l.b16 %v3241
          %v3903 = vunpack.c.h.b16 %v3241
          %v3904 = vunpack.c.l.b16 %v3242
          %v3905 = vunpack.c.h.b16 %v3242
          %v3906 = vunpack.c.l.b16 %v3243
          %v3907 = vunpack.c.h.b16 %v3243
          %v3908 = vunpack.c.l.b16 %v3244
          %v3909 = vunpack.c.h.b16 %v3244
          %v3910 = vunpack.c.l.b16 %v3245
          %v3911 = vunpack.c.h.b16 %v3245
          %v3912 = vunpack.c.l.b16 %v3246
          %v3913 = vunpack.c.h.b16 %v3246
          %v3914 = vunpack.c.l.b16 %v3247
          %v3915 = vunpack.c.h.b16 %v3247
          %v3916 = vunpack.c.l.b16 %v3248
          %v3917 = vunpack.c.h.b16 %v3248
          %v3918 = vunpack.c.l.b16 %v3249
          %v3919 = vunpack.c.h.b16 %v3249
          %v3920 = vunpack.c.l.b16 %v3250
          %v3921 = vunpack.c.h.b16 %v3250
          %v3922 = vunpack.c.l.b16 %v3251
          %v3923 = vunpack.c.h.b16 %v3251
          %v3924 = vunpack.c.l.b16 %v3252
          %v3925 = vunpack.c.h.b16 %v3252
          %v3926 = vunpack.c.l.b16 %v3253
          %v3927 = vunpack.c.h.b16 %v3253
          %v3928 = vunpack.c.l.b16 %v3254
          %v3929 = vunpack.c.h.b16 %v3254
          %v3930 = vunpack.c.l.b16 %v3255
          %v3931 = vunpack.c.h.b16 %v3255
          %v3932 = vunpack.c.l.b16 %v3256
          %v3933 = vunpack.c.h.b16 %v3256
          %v3934 = vunpack.c.l.b16 %v3257
          %v3935 = vunpack.c.h.b16 %v3257
          %v3936 = vunpack.c.l.b16 %v3258
          %v3937 = vunpack.c.h.b16 %v3258
          %v3938 = vunpack.c.l.b16 %v3259
          %v3939 = vunpack.c.h.b16 %v3259
          %v3940 = vunpack.c.l.b16 %v3260
          %v3941 = vunpack.c.h.b16 %v3260
          %v3942 = vunpack.c.l.b16 %v3261
          %v3943 = vunpack.c.h.b16 %v3261
          %v3944 = vunpack.c.l.b16 %v3262
          %v3945 = vunpack.c.h.b16 %v3262
          %v3946 = vunpack.c.l.b16 %v3263
          %v3947 = vunpack.c.h.b16 %v3263
          %v3948 = vunpack.c.l.b16 %v3264
          %v3949 = vunpack.c.h.b16 %v3264
          %v3950 = vunpack.c.l.b16 %v3265
          %v3951 = vunpack.c.h.b16 %v3265
          %v3952 = vunpack.c.l.b16 %v3266
          %v3953 = vunpack.c.h.b16 %v3266
          %v3954 = vunpack.c.l.b16 %v3267
          %v3955 = vunpack.c.h.b16 %v3267
          %v3956 = vunpack.c.l.b16 %v3268
          %v3957 = vunpack.c.h.b16 %v3268
          %v3958 = vunpack.c.l.b16 %v3269
          %v3959 = vunpack.c.h.b16 %v3269
          %v3960 = vunpack.c.l.b16 %v3270
          %v3961 = vunpack.c.h.b16 %v3270
          %v3962 = vunpack.c.l.b16 %v3271
          %v3963 = vunpack.c.h.b16 %v3271
          %v3964 = vunpack.c.l.b16 %v3272
          %v3965 = vunpack.c.h.b16 %v3272
          %v3966 = vunpack.c.l.b16 %v3273
          %v3967 = vunpack.c.h.b16 %v3273
          %v3968 = vunpack.c.l.b16 %v3274
          %v3969 = vunpack.c.h.b16 %v3274
          %v3970 = vunpack.c.l.b16 %v3275
          %v3971 = vunpack.c.h.b16 %v3275
          %v3972 = vunpack.c.l.b16 %v3276
          %v3973 = vunpack.c.h.b16 %v3276
          %v3974 = vunpack.c.l.b16 %v3277
          %v3975 = vunpack.c.h.b16 %v3277
          %v3976 = vunpack.c.l.b16 %v3278
          %v3977 = vunpack.c.h.b16 %v3278
          %v3978 = vunpack.c.l.b16 %v3279
          %v3979 = vunpack.c.h.b16 %v3279
          %v3980 = vunpack.c.l.b16 %v3280
          %v3981 = vunpack.c.h.b16 %v3280
          %v3982 = vunpack.c.l.b16 %v3281
          %v3983 = vunpack.c.h.b16 %v3281
          %v3984 = vunpack.c.l.b16 %v3282
          %v3985 = vunpack.c.h.b16 %v3282
          %v3986 = vunpack.c.l.b16 %v3283
          %v3987 = vunpack.c.h.b16 %v3283
          %v3988 = vunpack.c.l.b16 %v3284
          %v3989 = vunpack.c.h.b16 %v3284
          %v3990 = vunpack.c.l.b16 %v3285
          %v3991 = vunpack.c.h.b16 %v3285
          %v3992 = vunpack.c.l.b16 %v3286
          %v3993 = vunpack.c.h.b16 %v3286
          %v3994 = vunpack.c.l.b16 %v3287
          %v3995 = vunpack.c.h.b16 %v3287
          %v3996 = vunpack.c.l.b16 %v3288
          %v3997 = vunpack.c.h.b16 %v3288
          %v3998 = vunpack.c.l.b16 %v3289
          %v3999 = vunpack.c.h.b16 %v3289
          %v4000 = vunpack.c.l.b16 %v3290
          %v4001 = vunpack.c.h.b16 %v3290
          %v4002 = vunpack.c.l.b16 %v3291
          %v4003 = vunpack.c.h.b16 %v3291
          %v4004 = vunpack.c.l.b16 %v3292
          %v4005 = vunpack.c.h.b16 %v3292
          %v4006 = vunpack.c.l.b16 %v3293
          %v4007 = vunpack.c.h.b16 %v3293
          %v4008 = vunpack.c.l.b16 %v3294
          %v4009 = vunpack.c.h.b16 %v3294
          %v4010 = vunpack.c.l.b16 %v3295
          %v4011 = vunpack.c.h.b16 %v3295
          %v4012 = vunpack.c.l.b16 %v3296
          %v4013 = vunpack.c.h.b16 %v3296
          %v4014 = vunpack.c.l.b16 %v3297
          %v4015 = vunpack.c.h.b16 %v3297
          %v4016 = vunpack.c.l.b16 %v3298
          %v4017 = vunpack.c.h.b16 %v3298
          %v4018 = vunpack.c.l.b16 %v3299
          %v4019 = vunpack.c.h.b16 %v3299
          %v4020 = vunpack.c.l.b16 %v3300
          %v4021 = vunpack.c.h.b16 %v3300
          %v4022 = vunpack.c.l.b16 %v3301
          %v4023 = vunpack.c.h.b16 %v3301
          %v4024 = vunpack.c.l.b16 %v3302
          %v4025 = vunpack.c.h.b16 %v3302
          %v4026 = vunpack.c.l.b16 %v3303
          %v4027 = vunpack.c.h.b16 %v3303
          %v4028 = vunpack.c.l.b16 %v3304
          %v4029 = vunpack.c.h.b16 %v3304
          %v4030 = vunpack.c.l.b16 %v3305
          %v4031 = vunpack.c.h.b16 %v3305
          %v4032 = vunpack.c.l.b16 %v3306
          %v4033 = vunpack.c.h.b16 %v3306
          %v4034 = vunpack.c.l.b16 %v3307
          %v4035 = vunpack.c.h.b16 %v3307
          %v4036 = vunpack.c.l.b16 %v3308
          %v4037 = vunpack.c.h.b16 %v3308
          %v4038 = vunpack.c.l.b16 %v3309
          %v4039 = vunpack.c.h.b16 %v3309
          %v4040 = vunpack.c.l.b16 %v3310
          %v4041 = vunpack.c.h.b16 %v3310
          %v4042 = vunpack.c.l.b16 %v3311
          %v4043 = vunpack.c.h.b16 %v3311
          %v4044 = vunpack.c.l.b16 %v3312
          %v4045 = vunpack.c.h.b16 %v3312
          %v4046 = vunpack.c.l.b16 %v3313
          %v4047 = vunpack.c.h.b16 %v3313
          %v4048 = vunpack.c.l.b16 %v3314
          %v4049 = vunpack.c.h.b16 %v3314
          %v4050 = vunpack.c.l.b16 %v3315
          %v4051 = vunpack.c.h.b16 %v3315
          %v4052 = vunpack.c.l.b16 %v3316
          %v4053 = vunpack.c.h.b16 %v3316
          %v4054 = vunpack.c.l.b16 %v3317
          %v4055 = vunpack.c.h.b16 %v3317
          %v4056 = vunpack.c.l.b16 %v3318
          %v4057 = vunpack.c.h.b16 %v3318
          %v4058 = vunpack.c.l.b16 %v3319
          %v4059 = vunpack.c.h.b16 %v3319
          %v4060 = vunpack.c.l.b16 %v3320
          %v4061 = vunpack.c.h.b16 %v3320
          %v4062 = vunpack.c.l.b16 %v3321
          %v4063 = vunpack.c.h.b16 %v3321
          %v4064 = vunpack.c.l.b16 %v3322
          %v4065 = vunpack.c.h.b16 %v3322
          %v4066 = vunpack.c.l.b16 %v3323
          %v4067 = vunpack.c.h.b16 %v3323
          %v4068 = vunpack.c.l.b16 %v3324
          %v4069 = vunpack.c.h.b16 %v3324
          %v4070 = vunpack.c.l.b16 %v3325
          %v4071 = vunpack.c.h.b16 %v3325
          %v4072 = vunpack.c.l.b16 %v3326
          %v4073 = vunpack.c.h.b16 %v3326
          %v4074 = vunpack.c.l.b16 %v3327
          %v4075 = vunpack.c.h.b16 %v3327
          %v4076 = vunpack.c.l.b16 %v3328
          %v4077 = vunpack.c.h.b16 %v3328
          %v4078 = vunpack.c.l.b16 %v3329
          %v4079 = vunpack.c.h.b16 %v3329
          %v4080 = vunpack.c.l.b16 %v3330
          %v4081 = vunpack.c.h.b16 %v3330
          %v4082 = vunpack.c.l.b16 %v3331
          %v4083 = vunpack.c.h.b16 %v3331
          %v4084 = vunpack.c.l.b16 %v3332
          %v4085 = vunpack.c.h.b16 %v3332
          %v4086 = vunpack.c.l.b16 %v3333
          %v4087 = vunpack.c.h.b16 %v3333
          %v4088 = vunpack.c.l.b16 %v3334
          %v4089 = vunpack.c.h.b16 %v3334
          %v4090 = vunpack.c.l.b16 %v3335
          %v4091 = vunpack.c.h.b16 %v3335
          %v4092 = vunpack.c.l.b16 %v3336
          %v4093 = vunpack.c.h.b16 %v3336
          %v4094 = vunpack.c.l.b16 %v3337
          %v4095 = vunpack.c.h.b16 %v3337
          %v4096 = vunpack.c.l.b16 %v3338
          %v4097 = vunpack.c.h.b16 %v3338
          %v4098 = vunpack.c.l.b16 %v3339
          %v4099 = vunpack.c.h.b16 %v3339
          %v4100 = vunpack.c.l.b16 %v3340
          %v4101 = vunpack.c.h.b16 %v3340
          %v4102 = vunpack.c.l.b16 %v3341
          %v4103 = vunpack.c.h.b16 %v3341
          %v4104 = vunpack.c.l.b16 %v3342
          %v4105 = vunpack.c.h.b16 %v3342
          %v4106 = vunpack.c.l.b16 %v3343
          %v4107 = vunpack.c.h.b16 %v3343
          %v4108 = vunpack.c.l.b16 %v3344
          %v4109 = vunpack.c.h.b16 %v3344
          %v4110 = vunpack.c.l.b16 %v3345
          %v4111 = vunpack.c.h.b16 %v3345
          %v4112 = vunpack.c.l.b16 %v3346
          %v4113 = vunpack.c.h.b16 %v3346
          %v4114 = vunpack.c.l.b16 %v3347
          %v4115 = vunpack.c.h.b16 %v3347
          %v4116 = vunpack.c.l.b16 %v3348
          %v4117 = vunpack.c.h.b16 %v3348
          %v4118 = vunpack.c.l.b16 %v3349
          %v4119 = vunpack.c.h.b16 %v3349
          %v4120 = vunpack.c.l.b16 %v3350
          %v4121 = vunpack.c.h.b16 %v3350
          %v4122 = vunpack.c.l.b16 %v3351
          %v4123 = vunpack.c.h.b16 %v3351
          %v4124 = vunpack.c.l.b16 %v3352
          %v4125 = vunpack.c.h.b16 %v3352
          %v4126 = vunpack.c.l.b16 %v3353
          %v4127 = vunpack.c.h.b16 %v3353
          %v4128 = vunpack.c.l.b16 %v3354
          %v4129 = vunpack.c.h.b16 %v3354
          %v4130 = vunpack.c.l.b16 %v3355
          %v4131 = vunpack.c.h.b16 %v3355
          %v4132 = vunpack.c.l.b16 %v3356
          %v4133 = vunpack.c.h.b16 %v3356
          %v4134 = vunpack.c.l.b16 %v3357
          %v4135 = vunpack.c.h.b16 %v3357
          %v4136 = vunpack.c.l.b16 %v3358
          %v4137 = vunpack.c.h.b16 %v3358
          %v4138 = vunpack.c.l.b16 %v3359
          %v4139 = vunpack.c.h.b16 %v3359
          %v4140 = vunpack.c.l.b16 %v3360
          %v4141 = vunpack.c.h.b16 %v3360
          %v4142 = vunpack.c.l.b16 %v3361
          %v4143 = vunpack.c.h.b16 %v3361
          %v4144 = vunpack.c.l.b16 %v3362
          %v4145 = vunpack.c.h.b16 %v3362
          %v4146 = vunpack.c.l.b16 %v3363
          %v4147 = vunpack.c.h.b16 %v3363
          %v4148 = vunpack.c.l.b16 %v3364
          %v4149 = vunpack.c.h.b16 %v3364
          %v4150 = vunpack.c.l.b16 %v3365
          %v4151 = vunpack.c.h.b16 %v3365
          %v4152 = vunpack.c.l.b16 %v3366
          %v4153 = vunpack.c.h.b16 %v3366
          %v4154 = vunpack.c.l.b16 %v3367
          %v4155 = vunpack.c.h.b16 %v3367
          %v4156 = vunpack.c.l.b16 %v3368
          %v4157 = vunpack.c.h.b16 %v3368
          %v4158 = vunpack.c.l.b16 %v3369
          %v4159 = vunpack.c.h.b16 %v3369
          %v4160 = vunpack.c.l.b16 %v3370
          %v4161 = vunpack.c.h.b16 %v3370
          %v4162 = vunpack.c.l.b16 %v3371
          %v4163 = vunpack.c.h.b16 %v3371
          %v4164 = vunpack.c.l.b16 %v3372
          %v4165 = vunpack.c.h.b16 %v3372
          %v4166 = vunpack.c.l.b16 %v3373
          %v4167 = vunpack.c.h.b16 %v3373
          %v4168 = vunpack.c.l.b16 %v3374
          %v4169 = vunpack.c.h.b16 %v3374
          %v4170 = vunpack.c.l.b16 %v3375
          %v4171 = vunpack.c.h.b16 %v3375
          %v4172 = vunpack.c.l.b16 %v3376
          %v4173 = vunpack.c.h.b16 %v3376
          %v4174 = vunpack.c.l.b16 %v3377
          %v4175 = vunpack.c.h.b16 %v3377
          %v4176 = vunpack.c.l.b16 %v3378
          %v4177 = vunpack.c.h.b16 %v3378
          %v4178 = vunpack.c.l.b16 %v3379
          %v4179 = vunpack.c.h.b16 %v3379
          %v4180 = vunpack.c.l.b16 %v3380
          %v4181 = vunpack.c.h.b16 %v3380
          %v4182 = vunpack.c.l.b16 %v3381
          %v4183 = vunpack.c.h.b16 %v3381
          %v4184 = vunpack.c.l.b16 %v3382
          %v4185 = vunpack.c.h.b16 %v3382
          %v4186 = vunpack.c.l.b16 %v3383
          %v4187 = vunpack.c.h.b16 %v3383
          %v4188 = vunpack.c.l.b16 %v3384
          %v4189 = vunpack.c.h.b16 %v3384
          %v4190 = vunpack.c.l.b16 %v3385
          %v4191 = vunpack.c.h.b16 %v3385
          %v4192 = vunpack.c.l.b16 %v3386
          %v4193 = vunpack.c.h.b16 %v3386
          %v4194 = vunpack.c.l.b16 %v3387
          %v4195 = vunpack.c.h.b16 %v3387
          %v4196 = vunpack.c.l.b16 %v3388
          %v4197 = vunpack.c.h.b16 %v3388
          %v4198 = vunpack.c.l.b16 %v3389
          %v4199 = vunpack.c.h.b16 %v3389
          %v4200 = vunpack.c.l.b16 %v3390
          %v4201 = vunpack.c.h.b16 %v3390
          %v4202 = vunpack.c.l.b16 %v3391
          %v4203 = vunpack.c.h.b16 %v3391
          %v4204 = vunpack.c.l.b16 %v3392
          %v4205 = vunpack.c.h.b16 %v3392
          %v4206 = vunpack.c.l.b16 %v3393
          %v4207 = vunpack.c.h.b16 %v3393
          %v4208 = vunpack.c.l.b16 %v3394
          %v4209 = vunpack.c.h.b16 %v3394
          %v4210 = vunpack.c.l.b16 %v3395
          %v4211 = vunpack.c.h.b16 %v3395
          %v4212 = vunpack.c.l.b16 %v3396
          %v4213 = vunpack.c.h.b16 %v3396
          %v4214 = vunpack.c.l.b16 %v3397
          %v4215 = vunpack.c.h.b16 %v3397
          %v4216 = vpack.c.b16 %v3708, %v3704
          %v4217 = vpack.c.b16 %v3709, %v3705
          %v4218 = vpack.c.b16 %v3710, %v3706
          %v4219 = vpack.c.b16 %v3711, %v3707
          %v4220 = vpack.c.b16 %v3716, %v3712
          %v4221 = vpack.c.b16 %v3717, %v3713
          %v4222 = vpack.c.b16 %v3718, %v3714
          %v4223 = vpack.c.b16 %v3719, %v3715
          %v4224 = vpack.c.b16 %v3724, %v3720
          %v4225 = vpack.c.b16 %v3725, %v3721
          %v4226 = vpack.c.b16 %v3726, %v3722
          %v4227 = vpack.c.b16 %v3727, %v3723
          %v4228 = vpack.c.b16 %v3732, %v3728
          %v4229 = vpack.c.b16 %v3733, %v3729
          %v4230 = vpack.c.b16 %v3734, %v3730
          %v4231 = vpack.c.b16 %v3735, %v3731
          %v4232 = vpack.c.b16 %v3740, %v3736
          %v4233 = vpack.c.b16 %v3741, %v3737
          %v4234 = vpack.c.b16 %v3742, %v3738
          %v4235 = vpack.c.b16 %v3743, %v3739
          %v4236 = vpack.c.b16 %v3748, %v3744
          %v4237 = vpack.c.b16 %v3749, %v3745
          %v4238 = vpack.c.b16 %v3750, %v3746
          %v4239 = vpack.c.b16 %v3751, %v3747
          %v4240 = vpack.c.b16 %v3756, %v3752
          %v4241 = vpack.c.b16 %v3757, %v3753
          %v4242 = vpack.c.b16 %v3758, %v3754
          %v4243 = vpack.c.b16 %v3759, %v3755
          %v4244 = vpack.c.b16 %v3764, %v3760
          %v4245 = vpack.c.b16 %v3765, %v3761
          %v4246 = vpack.c.b16 %v3766, %v3762
          %v4247 = vpack.c.b16 %v3767, %v3763
          %v4248 = vpack.c.b16 %v3772, %v3768
          %v4249 = vpack.c.b16 %v3773, %v3769
          %v4250 = vpack.c.b16 %v3774, %v3770
          %v4251 = vpack.c.b16 %v3775, %v3771
          %v4252 = vpack.c.b16 %v3780, %v3776
          %v4253 = vpack.c.b16 %v3781, %v3777
          %v4254 = vpack.c.b16 %v3782, %v3778
          %v4255 = vpack.c.b16 %v3783, %v3779
          %v4256 = vpack.c.b16 %v3788, %v3784
          %v4257 = vpack.c.b16 %v3789, %v3785
          %v4258 = vpack.c.b16 %v3790, %v3786
          %v4259 = vpack.c.b16 %v3791, %v3787
          %v4260 = vpack.c.b16 %v3796, %v3792
          %v4261 = vpack.c.b16 %v3797, %v3793
          %v4262 = vpack.c.b16 %v3798, %v3794
          %v4263 = vpack.c.b16 %v3799, %v3795
          %v4264 = vpack.c.b16 %v3804, %v3800
          %v4265 = vpack.c.b16 %v3805, %v3801
          %v4266 = vpack.c.b16 %v3806, %v3802
          %v4267 = vpack.c.b16 %v3807, %v3803
          %v4268 = vpack.c.b16 %v3812, %v3808
          %v4269 = vpack.c.b16 %v3813, %v3809
          %v4270 = vpack.c.b16 %v3814, %v3810
          %v4271 = vpack.c.b16 %v3815, %v3811
          %v4272 = vpack.c.b16 %v3820, %v3816
          %v4273 = vpack.c.b16 %v3821, %v3817
          %v4274 = vpack.c.b16 %v3822, %v3818
          %v4275 = vpack.c.b16 %v3823, %v3819
          %v4276 = vpack.c.b16 %v3828, %v3824
          %v4277 = vpack.c.b16 %v3829, %v3825
          %v4278 = vpack.c.b16 %v3830, %v3826
          %v4279 = vpack.c.b16 %v3831, %v3827
          %v4280 = vpack.c.b16 %v3836, %v3832
          %v4281 = vpack.c.b16 %v3837, %v3833
          %v4282 = vpack.c.b16 %v3838, %v3834
          %v4283 = vpack.c.b16 %v3839, %v3835
          %v4284 = vpack.c.b16 %v3844, %v3840
          %v4285 = vpack.c.b16 %v3845, %v3841
          %v4286 = vpack.c.b16 %v3846, %v3842
          %v4287 = vpack.c.b16 %v3847, %v3843
          %v4288 = vpack.c.b16 %v3852, %v3848
          %v4289 = vpack.c.b16 %v3853, %v3849
          %v4290 = vpack.c.b16 %v3854, %v3850
          %v4291 = vpack.c.b16 %v3855, %v3851
          %v4292 = vpack.c.b16 %v3860, %v3856
          %v4293 = vpack.c.b16 %v3861, %v3857
          %v4294 = vpack.c.b16 %v3862, %v3858
          %v4295 = vpack.c.b16 %v3863, %v3859
          %v4296 = vpack.c.b16 %v3868, %v3864
          %v4297 = vpack.c.b16 %v3869, %v3865
          %v4298 = vpack.c.b16 %v3870, %v3866
          %v4299 = vpack.c.b16 %v3871, %v3867
          %v4300 = vpack.c.b16 %v3876, %v3872
          %v4301 = vpack.c.b16 %v3877, %v3873
          %v4302 = vpack.c.b16 %v3878, %v3874
          %v4303 = vpack.c.b16 %v3879, %v3875
          %v4304 = vpack.c.b16 %v3884, %v3880
          %v4305 = vpack.c.b16 %v3885, %v3881
          %v4306 = vpack.c.b16 %v3886, %v3882
          %v4307 = vpack.c.b16 %v3887, %v3883
          %v4308 = vpack.c.b16 %v3892, %v3888
          %v4309 = vpack.c.b16 %v3893, %v3889
          %v4310 = vpack.c.b16 %v3894, %v3890
          %v4311 = vpack.c.b16 %v3895, %v3891
          %v4312 = vpack.c.b16 %v3900, %v3896
          %v4313 = vpack.c.b16 %v3901, %v3897
          %v4314 = vpack.c.b16 %v3902, %v3898
          %v4315 = vpack.c.b16 %v3903, %v3899
          %v4316 = vpack.c.b16 %v3908, %v3904
          %v4317 = vpack.c.b16 %v3909, %v3905
          %v4318 = vpack.c.b16 %v3910, %v3906
          %v4319 = vpack.c.b16 %v3911, %v3907
          %v4320 = vpack.c.b16 %v3916, %v3912
          %v4321 = vpack.c.b16 %v3917, %v3913
          %v4322 = vpack.c.b16 %v3918, %v3914
          %v4323 = vpack.c.b16 %v3919, %v3915
          %v4324 = vpack.c.b16 %v3924, %v3920
          %v4325 = vpack.c.b16 %v3925, %v3921
          %v4326 = vpack.c.b16 %v3926, %v3922
          %v4327 = vpack.c.b16 %v3927, %v3923
          %v4328 = vpack.c.b16 %v3932, %v3928
          %v4329 = vpack.c.b16 %v3933, %v3929
          %v4330 = vpack.c.b16 %v3934, %v3930
          %v4331 = vpack.c.b16 %v3935, %v3931
          %v4332 = vpack.c.b16 %v3940, %v3936
          %v4333 = vpack.c.b16 %v3941, %v3937
          %v4334 = vpack.c.b16 %v3942, %v3938
          %v4335 = vpack.c.b16 %v3943, %v3939
          %v4336 = vpack.c.b16 %v3948, %v3944
          %v4337 = vpack.c.b16 %v3949, %v3945
          %v4338 = vpack.c.b16 %v3950, %v3946
          %v4339 = vpack.c.b16 %v3951, %v3947
          %v4340 = vpack.c.b16 %v3956, %v3952
          %v4341 = vpack.c.b16 %v3957, %v3953
          %v4342 = vpack.c.b16 %v3958, %v3954
          %v4343 = vpack.c.b16 %v3959, %v3955
          %v4344 = vpack.c.b16 %v3964, %v3960
          %v4345 = vpack.c.b16 %v3965, %v3961
          %v4346 = vpack.c.b16 %v3966, %v3962
          %v4347 = vpack.c.b16 %v3967, %v3963
          %v4348 = vpack.c.b16 %v3972, %v3968
          %v4349 = vpack.c.b16 %v3973, %v3969
          %v4350 = vpack.c.b16 %v3974, %v3970
          %v4351 = vpack.c.b16 %v3975, %v3971
          %v4352 = vpack.c.b16 %v3980, %v3976
          %v4353 = vpack.c.b16 %v3981, %v3977
          %v4354 = vpack.c.b16 %v3982, %v3978
          %v4355 = vpack.c.b16 %v3983, %v3979
          %v4356 = vpack.c.b16 %v3988, %v3984
          %v4357 = vpack.c.b16 %v3989, %v3985
          %v4358 = vpack.c.b16 %v3990, %v3986
          %v4359 = vpack.c.b16 %v3991, %v3987
          %v4360 = vpack.c.b16 %v3996, %v3992
          %v4361 = vpack.c.b16 %v3997, %v3993
          %v4362 = vpack.c.b16 %v3998, %v3994
          %v4363 = vpack.c.b16 %v3999, %v3995
          %v4364 = vpack.c.b16 %v4004, %v4000
          %v4365 = vpack.c.b16 %v4005, %v4001
          %v4366 = vpack.c.b16 %v4006, %v4002
          %v4367 = vpack.c.b16 %v4007, %v4003
          %v4368 = vpack.c.b16 %v4012, %v4008
          %v4369 = vpack.c.b16 %v4013, %v4009
          %v4370 = vpack.c.b16 %v4014, %v4010
          %v4371 = vpack.c.b16 %v4015, %v4011
          %v4372 = vpack.c.b16 %v4020, %v4016
          %v4373 = vpack.c.b16 %v4021, %v4017
          %v4374 = vpack.c.b16 %v4022, %v4018
          %v4375 = vpack.c.b16 %v4023, %v4019
          %v4376 = vpack.c.b16 %v4028, %v4024
          %v4377 = vpack.c.b16 %v4029, %v4025
          %v4378 = vpack.c.b16 %v4030, %v4026
          %v4379 = vpack.c.b16 %v4031, %v4027
          %v4380 = vpack.c.b16 %v4036, %v4032
          %v4381 = vpack.c.b16 %v4037, %v4033
          %v4382 = vpack.c.b16 %v4038, %v4034
          %v4383 = vpack.c.b16 %v4039, %v4035
          %v4384 = vpack.c.b16 %v4044, %v4040
          %v4385 = vpack.c.b16 %v4045, %v4041
          %v4386 = vpack.c.b16 %v4046, %v4042
          %v4387 = vpack.c.b16 %v4047, %v4043
          %v4388 = vpack.c.b16 %v4052, %v4048
          %v4389 = vpack.c.b16 %v4053, %v4049
          %v4390 = vpack.c.b16 %v4054, %v4050
          %v4391 = vpack.c.b16 %v4055, %v4051
          %v4392 = vpack.c.b16 %v4060, %v4056
          %v4393 = vpack.c.b16 %v4061, %v4057
          %v4394 = vpack.c.b16 %v4062, %v4058
          %v4395 = vpack.c.b16 %v4063, %v4059
          %v4396 = vpack.c.b16 %v4068, %v4064
          %v4397 = vpack.c.b16 %v4069, %v4065
          %v4398 = vpack.c.b16 %v4070, %v4066
          %v4399 = vpack.c.b16 %v4071, %v4067
          %v4400 = vpack.c.b16 %v4076, %v4072
          %v4401 = vpack.c.b16 %v4077, %v4073
          %v4402 = vpack.c.b16 %v4078, %v4074
          %v4403 = vpack.c.b16 %v4079, %v4075
          %v4404 = vpack.c.b16 %v4084, %v4080
          %v4405 = vpack.c.b16 %v4085, %v4081
          %v4406 = vpack.c.b16 %v4086, %v4082
          %v4407 = vpack.c.b16 %v4087, %v4083
          %v4408 = vpack.c.b16 %v4092, %v4088
          %v4409 = vpack.c.b16 %v4093, %v4089
          %v4410 = vpack.c.b16 %v4094, %v4090
          %v4411 = vpack.c.b16 %v4095, %v4091
          %v4412 = vpack.c.b16 %v4100, %v4096
          %v4413 = vpack.c.b16 %v4101, %v4097
          %v4414 = vpack.c.b16 %v4102, %v4098
          %v4415 = vpack.c.b16 %v4103, %v4099
          %v4416 = vpack.c.b16 %v4108, %v4104
          %v4417 = vpack.c.b16 %v4109, %v4105
          %v4418 = vpack.c.b16 %v4110, %v4106
          %v4419 = vpack.c.b16 %v4111, %v4107
          %v4420 = vpack.c.b16 %v4116, %v4112
          %v4421 = vpack.c.b16 %v4117, %v4113
          %v4422 = vpack.c.b16 %v4118, %v4114
          %v4423 = vpack.c.b16 %v4119, %v4115
          %v4424 = vpack.c.b16 %v4124, %v4120
          %v4425 = vpack.c.b16 %v4125, %v4121
          %v4426 = vpack.c.b16 %v4126, %v4122
          %v4427 = vpack.c.b16 %v4127, %v4123
          %v4428 = vpack.c.b16 %v4132, %v4128
          %v4429 = vpack.c.b16 %v4133, %v4129
          %v4430 = vpack.c.b16 %v4134, %v4130
          %v4431 = vpack.c.b16 %v4135, %v4131
          %v4432 = vpack.c.b16 %v4140, %v4136
          %v4433 = vpack.c.b16 %v4141, %v4137
          %v4434 = vpack.c.b16 %v4142, %v4138
          %v4435 = vpack.c.b16 %v4143, %v4139
          %v4436 = vpack.c.b16 %v4148, %v4144
          %v4437 = vpack.c.b16 %v4149, %v4145
          %v4438 = vpack.c.b16 %v4150, %v4146
          %v4439 = vpack.c.b16 %v4151, %v4147
          %v4440 = vpack.c.b16 %v4156, %v4152
          %v4441 = vpack.c.b16 %v4157, %v4153
          %v4442 = vpack.c.b16 %v4158, %v4154
          %v4443 = vpack.c.b16 %v4159, %v4155
          %v4444 = vpack.c.b16 %v4164, %v4160
          %v4445 = vpack.c.b16 %v4165, %v4161
          %v4446 = vpack.c.b16 %v4166, %v4162
          %v4447 = vpack.c.b16 %v4167, %v4163
          %v4448 = vpack.c.b16 %v4172, %v4168
          %v4449 = vpack.c.b16 %v4173, %v4169
          %v4450 = vpack.c.b16 %v4174, %v4170
          %v4451 = vpack.c.b16 %v4175, %v4171
          %v4452 = vpack.c.b16 %v4180, %v4176
          %v4453 = vpack.c.b16 %v4181, %v4177
          %v4454 = vpack.c.b16 %v4182, %v4178
          %v4455 = vpack.c.b16 %v4183, %v4179
          %v4456 = vpack.c.b16 %v4188, %v4184
          %v4457 = vpack.c.b16 %v4189, %v4185
          %v4458 = vpack.c.b16 %v4190, %v4186
          %v4459 = vpack.c.b16 %v4191, %v4187
          %v4460 = vpack.c.b16 %v4196, %v4192
          %v4461 = vpack.c.b16 %v4197, %v4193
          %v4462 = vpack.c.b16 %v4198, %v4194
          %v4463 = vpack.c.b16 %v4199, %v4195
          %v4464 = vpack.c.b16 %v4204, %v4200
          %v4465 = vpack.c.b16 %v4205, %v4201
          %v4466 = vpack.c.b16 %v4206, %v4202
          %v4467 = vpack.c.b16 %v4207, %v4203
          %v4468 = vpack.c.b16 %v4212, %v4208
          %v4469 = vpack.c.b16 %v4213, %v4209
          %v4470 = vpack.c.b16 %v4214, %v4210
          %v4471 = vpack.c.b16 %v4215, %v4211
          %4728 = vmatprep.subr.bf16.mxu0 %v4217
          %4729 = vmatpush1.bf16.msra.mxu0 %v4216
          %4730 = vmatprep.subr.bf16.mxu0 %v4221
          %4731 = vmatpush1.bf16.msra.mxu0 %v4220
          %4732 = vmatprep.subr.bf16.mxu0 %v4225
          %4733 = vmatpush1.bf16.msra.mxu0 %v4224
          %4734 = vmatprep.subr.bf16.mxu0 %v4229
          %4735 = vmatpush1.bf16.msra.mxu0 %v4228
          %4736 = vmatprep.subr.bf16.mxu0 %v4233
          %4737 = vmatpush1.bf16.msra.mxu0 %v4232
          %4738 = vmatprep.subr.bf16.mxu0 %v4237
          %4739 = vmatpush1.bf16.msra.mxu0 %v4236
          %4740 = vmatprep.subr.bf16.mxu0 %v4241
          %4741 = vmatpush1.bf16.msra.mxu0 %v4240
          %4742 = vmatprep.subr.bf16.mxu0 %v4245
          %4743 = vmatpush1.bf16.msra.mxu0 %v4244
          %4744 = vmatprep.subr.bf16.mxu0 %v4249
          %4745 = vmatpush1.bf16.msra.mxu0 %v4248
          %4746 = vmatprep.subr.bf16.mxu0 %v4253
          %4747 = vmatpush1.bf16.msra.mxu0 %v4252
          %4748 = vmatprep.subr.bf16.mxu0 %v4257
          %4749 = vmatpush1.bf16.msra.mxu0 %v4256
          %4750 = vmatprep.subr.bf16.mxu0 %v4261
          %4751 = vmatpush1.bf16.msra.mxu0 %v4260
          %4752 = vmatprep.subr.bf16.mxu0 %v4265
          %4753 = vmatpush1.bf16.msra.mxu0 %v4264
          %4754 = vmatprep.subr.bf16.mxu0 %v4269
          %4755 = vmatpush1.bf16.msra.mxu0 %v4268
          %4756 = vmatprep.subr.bf16.mxu0 %v4273
          %4757 = vmatpush1.bf16.msra.mxu0 %v4272
          %4758 = vmatprep.subr.bf16.mxu0 %v4277
          %4759 = vmatpush1.bf16.msra.mxu0 %v4276
          %4760 = vmatprep.mubr.bf16.mxu0 %v3433
          %4761 = vmatmul.mubr.bf16.gmra.mrb[0].mxu0 %v3432
          %v4762 = vpop.f32.mrb[0].mxu0
          %v4763 = vadd.f32 %v3403, %v4762
          %v4764 = vpop.f32.mrb[0].mxu0
          %v4765 = vadd.f32 %v3407, %v4764
          %v4766 = vpop.f32.mrb[0].mxu0
          %v4767 = vpop.f32.mrb[0].mxu0
          %4768 = vdwg.mxu0
          %4769 = vmatprep.subr.bf16.mxu0 %v4281
          %4770 = vmatpush1.bf16.msra.mxu0 %v4280
          %4771 = vmatprep.subr.bf16.mxu0 %v4285
          %4772 = vmatpush1.bf16.msra.mxu0 %v4284
          %4773 = vmatprep.subr.bf16.mxu0 %v4289
          %4774 = vmatpush1.bf16.msra.mxu0 %v4288
          %4775 = vmatprep.subr.bf16.mxu0 %v4293
          %4776 = vmatpush1.bf16.msra.mxu0 %v4292
          %4777 = vmatprep.subr.bf16.mxu0 %v4297
          %4778 = vmatpush1.bf16.msra.mxu0 %v4296
          %4779 = vmatprep.subr.bf16.mxu0 %v4301
          %4780 = vmatpush1.bf16.msra.mxu0 %v4300
          %4781 = vmatprep.subr.bf16.mxu0 %v4305
          %4782 = vmatpush1.bf16.msra.mxu0 %v4304
          %4783 = vmatprep.subr.bf16.mxu0 %v4309
          %4784 = vmatpush1.bf16.msra.mxu0 %v4308
          %4785 = vmatprep.subr.bf16.mxu0 %v4313
          %4786 = vmatpush1.bf16.msra.mxu0 %v4312
          %4787 = vmatprep.subr.bf16.mxu0 %v4317
          %4788 = vmatpush1.bf16.msra.mxu0 %v4316
          %4789 = vmatprep.subr.bf16.mxu0 %v4321
          %4790 = vmatpush1.bf16.msra.mxu0 %v4320
          %4791 = vmatprep.subr.bf16.mxu0 %v4325
          %4792 = vmatpush1.bf16.msra.mxu0 %v4324
          %4793 = vmatprep.subr.bf16.mxu0 %v4329
          %4794 = vmatpush1.bf16.msra.mxu0 %v4328
          %4795 = vmatprep.subr.bf16.mxu0 %v4333
          %4796 = vmatpush1.bf16.msra.mxu0 %v4332
          %4797 = vmatprep.subr.bf16.mxu0 %v4337
          %4798 = vmatpush1.bf16.msra.mxu0 %v4336
          %4799 = vmatprep.subr.bf16.mxu0 %v4341
          %4800 = vmatpush1.bf16.msra.mxu0 %v4340
          %4801 = vmatprep.mubr.bf16.mxu0 %v3435
          %4802 = vmatmul.mubr.bf16.gmra.mrb[0].mxu0 %v3434
          %v4803 = vpop.f32.mrb[0].mxu0
          %v4804 = vadd.f32 %v4763, %v4803
          %v4805 = vpop.f32.mrb[0].mxu0
          %v4806 = vadd.f32 %v4765, %v4805
          %v4807 = vpop.f32.mrb[0].mxu0
          %v4808 = vpop.f32.mrb[0].mxu0
          %4809 = vdwg.mxu0
          %4810 = vmatprep.subr.bf16.mxu0 %v4345
          %4811 = vmatpush1.bf16.msra.mxu0 %v4344
          %4812 = vmatprep.subr.bf16.mxu0 %v4349
          %4813 = vmatpush1.bf16.msra.mxu0 %v4348
          %4814 = vmatprep.subr.bf16.mxu0 %v4353
          %4815 = vmatpush1.bf16.msra.mxu0 %v4352
          %4816 = vmatprep.subr.bf16.mxu0 %v4357
          %4817 = vmatpush1.bf16.msra.mxu0 %v4356
          %4818 = vmatprep.subr.bf16.mxu0 %v4361
          %4819 = vmatpush1.bf16.msra.mxu0 %v4360
          %4820 = vmatprep.subr.bf16.mxu0 %v4365
          %4821 = vmatpush1.bf16.msra.mxu0 %v4364
          %4822 = vmatprep.subr.bf16.mxu0 %v4369
          %4823 = vmatpush1.bf16.msra.mxu0 %v4368
          %4824 = vmatprep.subr.bf16.mxu0 %v4373
          %4825 = vmatpush1.bf16.msra.mxu0 %v4372
          %4826 = vmatprep.subr.bf16.mxu0 %v4377
          %4827 = vmatpush1.bf16.msra.mxu0 %v4376
          %4828 = vmatprep.subr.bf16.mxu0 %v4381
          %4829 = vmatpush1.bf16.msra.mxu0 %v4380
          %4830 = vmatprep.subr.bf16.mxu0 %v4385
          %4831 = vmatpush1.bf16.msra.mxu0 %v4384
          %4832 = vmatprep.subr.bf16.mxu0 %v4389
          %4833 = vmatpush1.bf16.msra.mxu0 %v4388
          %4834 = vmatprep.subr.bf16.mxu0 %v4393
          %4835 = vmatpush1.bf16.msra.mxu0 %v4392
          %4836 = vmatprep.subr.bf16.mxu0 %v4397
          %4837 = vmatpush1.bf16.msra.mxu0 %v4396
          %4838 = vmatprep.subr.bf16.mxu0 %v4401
          %4839 = vmatpush1.bf16.msra.mxu0 %v4400
          %4840 = vmatprep.subr.bf16.mxu0 %v4405
          %4841 = vmatpush1.bf16.msra.mxu0 %v4404
          %4842 = vmatprep.mubr.bf16.mxu0 %v3437
          %4843 = vmatmul.mubr.bf16.gmra.mrb[0].mxu0 %v3436
          %v4844 = vpop.f32.mrb[0].mxu0
          %v4845 = vadd.f32 %v4804, %v4844
          %v4846 = vpop.f32.mrb[0].mxu0
          %v4847 = vadd.f32 %v4806, %v4846
          %v4848 = vpop.f32.mrb[0].mxu0
          %v4849 = vpop.f32.mrb[0].mxu0
          %4850 = vdwg.mxu0
          %4851 = vmatprep.subr.bf16.mxu0 %v4409
          %4852 = vmatpush1.bf16.msra.mxu0 %v4408
          %4853 = vmatprep.subr.bf16.mxu0 %v4413
          %4854 = vmatpush1.bf16.msra.mxu0 %v4412
          %4855 = vmatprep.subr.bf16.mxu0 %v4417
          %4856 = vmatpush1.bf16.msra.mxu0 %v4416
          %4857 = vmatprep.subr.bf16.mxu0 %v4421
          %4858 = vmatpush1.bf16.msra.mxu0 %v4420
          %4859 = vmatprep.subr.bf16.mxu0 %v4425
          %4860 = vmatpush1.bf16.msra.mxu0 %v4424
          %4861 = vmatprep.subr.bf16.mxu0 %v4429
          %4862 = vmatpush1.bf16.msra.mxu0 %v4428
          %4863 = vmatprep.subr.bf16.mxu0 %v4433
          %4864 = vmatpush1.bf16.msra.mxu0 %v4432
          %4865 = vmatprep.subr.bf16.mxu0 %v4437
          %4866 = vmatpush1.bf16.msra.mxu0 %v4436
          %4867 = vmatprep.subr.bf16.mxu0 %v4441
          %4868 = vmatpush1.bf16.msra.mxu0 %v4440
          %4869 = vmatprep.subr.bf16.mxu0 %v4445
          %4870 = vmatpush1.bf16.msra.mxu0 %v4444
          %4871 = vmatprep.subr.bf16.mxu0 %v4449
          %4872 = vmatpush1.bf16.msra.mxu0 %v4448
          %4873 = vmatprep.subr.bf16.mxu0 %v4453
          %4874 = vmatpush1.bf16.msra.mxu0 %v4452
          %4875 = vmatprep.subr.bf16.mxu0 %v4457
          %4876 = vmatpush1.bf16.msra.mxu0 %v4456
          %4877 = vmatprep.subr.bf16.mxu0 %v4461
          %4878 = vmatpush1.bf16.msra.mxu0 %v4460
          %4879 = vmatprep.subr.bf16.mxu0 %v4465
          %4880 = vmatpush1.bf16.msra.mxu0 %v4464
          %4881 = vmatprep.subr.bf16.mxu0 %v4469
          %4882 = vmatpush1.bf16.msra.mxu0 %v4468
          %4883 = vmatprep.mubr.bf16.mxu0 %v3439
          %4884 = vmatmul.mubr.bf16.gmra.mrb[0].mxu0 %v3438
          %v4885 = vpop.f32.mrb[0].mxu0
          %v4886 = vadd.f32 %v4845, %v4885
          %v4887 = vpop.f32.mrb[0].mxu0
          %v4888 = vadd.f32 %v4847, %v4887
          %v4889 = vpop.f32.mrb[0].mxu0
          %v4890 = vpop.f32.mrb[0].mxu0
          %4891 = vdwg.mxu0
          %4892 = vmatprep.subr.bf16.mxu0 %v4219
          %4893 = vmatpush1.bf16.msra.mxu0 %v4218
          %4894 = vmatprep.subr.bf16.mxu0 %v4223
          %4895 = vmatpush1.bf16.msra.mxu0 %v4222
          %4896 = vmatprep.subr.bf16.mxu0 %v4227
          %4897 = vmatpush1.bf16.msra.mxu0 %v4226
          %4898 = vmatprep.subr.bf16.mxu0 %v4231
          %4899 = vmatpush1.bf16.msra.mxu0 %v4230
          %4900 = vmatprep.subr.bf16.mxu0 %v4235
          %4901 = vmatpush1.bf16.msra.mxu0 %v4234
          %4902 = vmatprep.subr.bf16.mxu0 %v4239
          %4903 = vmatpush1.bf16.msra.mxu0 %v4238
          %4904 = vmatprep.subr.bf16.mxu0 %v4243
          %4905 = vmatpush1.bf16.msra.mxu0 %v4242
          %4906 = vmatprep.subr.bf16.mxu0 %v4247
          %4907 = vmatpush1.bf16.msra.mxu0 %v4246
          %4908 = vmatprep.subr.bf16.mxu0 %v4251
          %4909 = vmatpush1.bf16.msra.mxu0 %v4250
          %4910 = vmatprep.subr.bf16.mxu0 %v4255
          %4911 = vmatpush1.bf16.msra.mxu0 %v4254
          %4912 = vmatprep.subr.bf16.mxu0 %v4259
          %4913 = vmatpush1.bf16.msra.mxu0 %v4258
          %4914 = vmatprep.subr.bf16.mxu0 %v4263
          %4915 = vmatpush1.bf16.msra.mxu0 %v4262
          %4916 = vmatprep.subr.bf16.mxu0 %v4267
          %4917 = vmatpush1.bf16.msra.mxu0 %v4266
          %4918 = vmatprep.subr.bf16.mxu0 %v4271
          %4919 = vmatpush1.bf16.msra.mxu0 %v4270
          %4920 = vmatprep.subr.bf16.mxu0 %v4275
          %4921 = vmatpush1.bf16.msra.mxu0 %v4274
          %4922 = vmatprep.subr.bf16.mxu0 %v4279
          %4923 = vmatpush1.bf16.msra.mxu0 %v4278
          %4924 = vmatprep.mubr.bf16.mxu0 %v3433
          %4925 = vmatmul.mubr.bf16.gmra.mrb[0].mxu0 %v3432
          %v4926 = vpop.f32.mrb[0].mxu0
          %v4927 = vadd.f32 %v3411, %v4926
          %v4928 = vpop.f32.mrb[0].mxu0
          %v4929 = vadd.f32 %v3415, %v4928
          %v4930 = vpop.f32.mrb[0].mxu0
          %v4931 = vpop.f32.mrb[0].mxu0
          %4932 = vdwg.mxu0
          %4933 = vmatprep.subr.bf16.mxu0 %v4283
          %4934 = vmatpush1.bf16.msra.mxu0 %v4282
          %4935 = vmatprep.subr.bf16.mxu0 %v4287
          %4936 = vmatpush1.bf16.msra.mxu0 %v4286
          %4937 = vmatprep.subr.bf16.mxu0 %v4291
          %4938 = vmatpush1.bf16.msra.mxu0 %v4290
          %4939 = vmatprep.subr.bf16.mxu0 %v4295
          %4940 = vmatpush1.bf16.msra.mxu0 %v4294
          %4941 = vmatprep.subr.bf16.mxu0 %v4299
          %4942 = vmatpush1.bf16.msra.mxu0 %v4298
          %4943 = vmatprep.subr.bf16.mxu0 %v4303
          %4944 = vmatpush1.bf16.msra.mxu0 %v4302
          %4945 = vmatprep.subr.bf16.mxu0 %v4307
          %4946 = vmatpush1.bf16.msra.mxu0 %v4306
          %4947 = vmatprep.subr.bf16.mxu0 %v4311
          %4948 = vmatpush1.bf16.msra.mxu0 %v4310
          %4949 = vmatprep.subr.bf16.mxu0 %v4315
          %4950 = vmatpush1.bf16.msra.mxu0 %v4314
          %4951 = vmatprep.subr.bf16.mxu0 %v4319
          %4952 = vmatpush1.bf16.msra.mxu0 %v4318
          %4953 = vmatprep.subr.bf16.mxu0 %v4323
          %4954 = vmatpush1.bf16.msra.mxu0 %v4322
          %4955 = vmatprep.subr.bf16.mxu0 %v4327
          %4956 = vmatpush1.bf16.msra.mxu0 %v4326
          %4957 = vmatprep.subr.bf16.mxu0 %v4331
          %4958 = vmatpush1.bf16.msra.mxu0 %v4330
          %4959 = vmatprep.subr.bf16.mxu0 %v4335
          %4960 = vmatpush1.bf16.msra.mxu0 %v4334
          %4961 = vmatprep.subr.bf16.mxu0 %v4339
          %4962 = vmatpush1.bf16.msra.mxu0 %v4338
          %4963 = vmatprep.subr.bf16.mxu0 %v4343
          %4964 = vmatpush1.bf16.msra.mxu0 %v4342
          %4965 = vmatprep.mubr.bf16.mxu0 %v3435
          %4966 = vmatmul.mubr.bf16.gmra.mrb[0].mxu0 %v3434
          %v4967 = vpop.f32.mrb[0].mxu0
          %v4968 = vadd.f32 %v4927, %v4967
          %v4969 = vpop.f32.mrb[0].mxu0
          %v4970 = vadd.f32 %v4929, %v4969
          %v4971 = vpop.f32.mrb[0].mxu0
          %v4972 = vpop.f32.mrb[0].mxu0
          %4973 = vdwg.mxu0
          %4974 = vmatprep.subr.bf16.mxu0 %v4347
          %4975 = vmatpush1.bf16.msra.mxu0 %v4346
          %4976 = vmatprep.subr.bf16.mxu0 %v4351
          %4977 = vmatpush1.bf16.msra.mxu0 %v4350
          %4978 = vmatprep.subr.bf16.mxu0 %v4355
          %4979 = vmatpush1.bf16.msra.mxu0 %v4354
          %4980 = vmatprep.subr.bf16.mxu0 %v4359
          %4981 = vmatpush1.bf16.msra.mxu0 %v4358
          %4982 = vmatprep.subr.bf16.mxu0 %v4363
          %4983 = vmatpush1.bf16.msra.mxu0 %v4362
          %4984 = vmatprep.subr.bf16.mxu0 %v4367
          %4985 = vmatpush1.bf16.msra.mxu0 %v4366
          %4986 = vmatprep.subr.bf16.mxu0 %v4371
          %4987 = vmatpush1.bf16.msra.mxu0 %v4370
          %4988 = vmatprep.subr.bf16.mxu0 %v4375
          %4989 = vmatpush1.bf16.msra.mxu0 %v4374
          %4990 = vmatprep.subr.bf16.mxu0 %v4379
          %4991 = vmatpush1.bf16.msra.mxu0 %v4378
          %4992 = vmatprep.subr.bf16.mxu0 %v4383
          %4993 = vmatpush1.bf16.msra.mxu0 %v4382
          %4994 = vmatprep.subr.bf16.mxu0 %v4387
          %4995 = vmatpush1.bf16.msra.mxu0 %v4386
          %4996 = vmatprep.subr.bf16.mxu0 %v4391
          %4997 = vmatpush1.bf16.msra.mxu0 %v4390
          %4998 = vmatprep.subr.bf16.mxu0 %v4395
          %4999 = vmatpush1.bf16.msra.mxu0 %v4394
          %5000 = vmatprep.subr.bf16.mxu0 %v4399
          %5001 = vmatpush1.bf16.msra.mxu0 %v4398
          %5002 = vmatprep.subr.bf16.mxu0 %v4403
          %5003 = vmatpush1.bf16.msra.mxu0 %v4402
          %5004 = vmatprep.subr.bf16.mxu0 %v4407
          %5005 = vmatpush1.bf16.msra.mxu0 %v4406
          %5006 = vmatprep.mubr.bf16.mxu0 %v3437
          %5007 = vmatmul.mubr.bf16.gmra.mrb[0].mxu0 %v3436
          %v5008 = vpop.f32.mrb[0].mxu0
          %v5009 = vadd.f32 %v4968, %v5008
          %v5010 = vpop.f32.mrb[0].mxu0
          %v5011 = vadd.f32 %v4970, %v5010
          %v5012 = vpop.f32.mrb[0].mxu0
          %v5013 = vpop.f32.mrb[0].mxu0
          %5014 = vdwg.mxu0
          %5015 = vmatprep.subr.bf16.mxu0 %v4411
          %5016 = vmatpush1.bf16.msra.mxu0 %v4410
          %5017 = vmatprep.subr.bf16.mxu0 %v4415
          %5018 = vmatpush1.bf16.msra.mxu0 %v4414
          %5019 = vmatprep.subr.bf16.mxu0 %v4419
          %5020 = vmatpush1.bf16.msra.mxu0 %v4418
          %5021 = vmatprep.subr.bf16.mxu0 %v4423
          %5022 = vmatpush1.bf16.msra.mxu0 %v4422
          %5023 = vmatprep.subr.bf16.mxu0 %v4427
          %5024 = vmatpush1.bf16.msra.mxu0 %v4426
          %5025 = vmatprep.subr.bf16.mxu0 %v4431
          %5026 = vmatpush1.bf16.msra.mxu0 %v4430
          %5027 = vmatprep.subr.bf16.mxu0 %v4435
          %5028 = vmatpush1.bf16.msra.mxu0 %v4434
          %5029 = vmatprep.subr.bf16.mxu0 %v4439
          %5030 = vmatpush1.bf16.msra.mxu0 %v4438
          %5031 = vmatprep.subr.bf16.mxu0 %v4443
          %5032 = vmatpush1.bf16.msra.mxu0 %v4442
          %5033 = vmatprep.subr.bf16.mxu0 %v4447
          %5034 = vmatpush1.bf16.msra.mxu0 %v4446
          %5035 = vmatprep.subr.bf16.mxu0 %v4451
          %5036 = vmatpush1.bf16.msra.mxu0 %v4450
          %5037 = vmatprep.subr.bf16.mxu0 %v4455
          %5038 = vmatpush1.bf16.msra.mxu0 %v4454
          %5039 = vmatprep.subr.bf16.mxu0 %v4459
          %5040 = vmatpush1.bf16.msra.mxu0 %v4458
          %5041 = vmatprep.subr.bf16.mxu0 %v4463
          %5042 = vmatpush1.bf16.msra.mxu0 %v4462
          %5043 = vmatprep.subr.bf16.mxu0 %v4467
          %5044 = vmatpush1.bf16.msra.mxu0 %v4466
          %5045 = vmatprep.subr.bf16.mxu0 %v4471
          %5046 = vmatpush1.bf16.msra.mxu0 %v4470
          %5047 = vmatprep.mubr.bf16.mxu0 %v3439
          %5048 = vmatmul.mubr.bf16.gmra.mrb[0].mxu0 %v3438
          %v5049 = vpop.f32.mrb[0].mxu0
          %v5050 = vadd.f32 %v5009, %v5049
          %v5051 = vpop.f32.mrb[0].mxu0
          %v5052 = vadd.f32 %v5011, %v5051
          %v5053 = vpop.f32.mrb[0].mxu0
          %v5054 = vpop.f32.mrb[0].mxu0
          %5055 = vdwg.mxu0
          %v5056 = vmax.f32 %v4886, 0.0
          %v5057 = vmax.f32 %v4888, 0.0
          %v5058 = vmax.f32 %v5050, 0.0
          %v5059 = vmax.f32 %v5052, 0.0
          %v5060 = vpack.c.bf16 %v5056, %v5056
          %v5061 = vpack.c.bf16 %v5057, %v5057
          %v5062 = vpack.c.bf16 %v5058, %v5058
          %v5063 = vpack.c.bf16 %v5059, %v5059
          %v5064 = vld [vmem:[#allocation11] sm:$0xff]
          %v5065 = vld [vmem:[#allocation11 + $0x8] sm:$0xff]
          %v5066 = vld [vmem:[#allocation11 + $0x10] sm:$0xff]
          %v5067 = vld [vmem:[#allocation11 + $0x18] sm:$0xff]
          %v5068 = vld [vmem:[#allocation11 + $0x20] sm:$0xff]
          %v5069 = vld [vmem:[#allocation11 + $0x28] sm:$0xff]
          %v5070 = vld [vmem:[#allocation11 + $0x30] sm:$0xff]
          %v5071 = vld [vmem:[#allocation11 + $0x38] sm:$0xff]
          %v5072 = vld [vmem:[#allocation11 + $0x40] sm:$0xff]
          %v5073 = vld [vmem:[#allocation11 + $0x48] sm:$0xff]
          %v5074 = vld [vmem:[#allocation11 + $0x50] sm:$0xff]
          %v5075 = vld [vmem:[#allocation11 + $0x58] sm:$0xff]
          %v5076 = vld [vmem:[#allocation11 + $0x60] sm:$0xff]
          %v5077 = vld [vmem:[#allocation11 + $0x68] sm:$0xff]
          %v5078 = vld [vmem:[#allocation11 + $0x70] sm:$0xff]
          %v5079 = vld [vmem:[#allocation11 + $0x78] sm:$0xff]
          %v5080 = vld [vmem:[#allocation11 + $0x80] sm:$0xff]
          %v5081 = vld [vmem:[#allocation11 + $0x88] sm:$0xff]
          %v5082 = vld [vmem:[#allocation11 + $0x90] sm:$0xff]
          %v5083 = vld [vmem:[#allocation11 + $0x98] sm:$0xff]
          %v5084 = vld [vmem:[#allocation11 + $0xa0] sm:$0xff]
          %v5085 = vld [vmem:[#allocation11 + $0xa8] sm:$0xff]
          %v5086 = vld [vmem:[#allocation11 + $0xb0] sm:$0xff]
          %v5087 = vld [vmem:[#allocation11 + $0xb8] sm:$0xff]
          %v5088 = vld [vmem:[#allocation11 + $0xc0] sm:$0xff]
          %v5089 = vld [vmem:[#allocation11 + $0xc8] sm:$0xff]
          %v5090 = vld [vmem:[#allocation11 + $0xd0] sm:$0xff]
          %v5091 = vld [vmem:[#allocation11 + $0xd8] sm:$0xff]
          %v5092 = vld [vmem:[#allocation11 + $0xe0] sm:$0xff]
          %v5093 = vld [vmem:[#allocation11 + $0xe8] sm:$0xff]
          %v5094 = vld [vmem:[#allocation11 + $0xf0] sm:$0xff]
          %v5095 = vld [vmem:[#allocation11 + $0xf8] sm:$0xff]
          %v5096 = vld [vmem:[#allocation11 + $0x100] sm:$0xff]
          %v5097 = vld [vmem:[#allocation11 + $0x108] sm:$0xff]
          %v5098 = vld [vmem:[#allocation11 + $0x110] sm:$0xff]
          %v5099 = vld [vmem:[#allocation11 + $0x118] sm:$0xff]
          %v5100 = vld [vmem:[#allocation11 + $0x120] sm:$0xff]
          %v5101 = vld [vmem:[#allocation11 + $0x128] sm:$0xff]
          %v5102 = vld [vmem:[#allocation11 + $0x130] sm:$0xff]
          %v5103 = vld [vmem:[#allocation11 + $0x138] sm:$0xff]
          %v5104 = vld [vmem:[#allocation11 + $0x140] sm:$0xff]
          %v5105 = vld [vmem:[#allocation11 + $0x148] sm:$0xff]
          %v5106 = vld [vmem:[#allocation11 + $0x150] sm:$0xff]
          %v5107 = vld [vmem:[#allocation11 + $0x158] sm:$0xff]
          %v5108 = vld [vmem:[#allocation11 + $0x160] sm:$0xff]
          %v5109 = vld [vmem:[#allocation11 + $0x168] sm:$0xff]
          %v5110 = vld [vmem:[#allocation11 + $0x170] sm:$0xff]
          %v5111 = vld [vmem:[#allocation11 + $0x178] sm:$0xff]
          %v5112 = vld [vmem:[#allocation11 + $0x180] sm:$0xff]
          %v5113 = vld [vmem:[#allocation11 + $0x188] sm:$0xff]
          %v5114 = vld [vmem:[#allocation11 + $0x190] sm:$0xff]
          %v5115 = vld [vmem:[#allocation11 + $0x198] sm:$0xff]
          %v5116 = vld [vmem:[#allocation11 + $0x1a0] sm:$0xff]
          %v5117 = vld [vmem:[#allocation11 + $0x1a8] sm:$0xff]
          %v5118 = vld [vmem:[#allocation11 + $0x1b0] sm:$0xff]
          %v5119 = vld [vmem:[#allocation11 + $0x1b8] sm:$0xff]
          %v5120 = vld [vmem:[#allocation11 + $0x1c0] sm:$0xff]
          %v5121 = vld [vmem:[#allocation11 + $0x1c8] sm:$0xff]
          %v5122 = vld [vmem:[#allocation11 + $0x1d0] sm:$0xff]
          %v5123 = vld [vmem:[#allocation11 + $0x1d8] sm:$0xff]
          %v5124 = vld [vmem:[#allocation11 + $0x1e0] sm:$0xff]
          %v5125 = vld [vmem:[#allocation11 + $0x1e8] sm:$0xff]
          %v5126 = vld [vmem:[#allocation11 + $0x1f0] sm:$0xff]
          %v5127 = vld [vmem:[#allocation11 + $0x1f8] sm:$0xff]
          %v5128 = vld [vmem:[#allocation12] sm:$0x3]
          %v5130 = vlaneseq
          %v5131 = vshrl.u32 %v5130, 7
          %v5132 = vsub.s32 0, %v5131
          %v5133 = vrot.slane %v5128, %v5132
          %v5134 = vlaneseq
          %v5135 = vshrl.u32 %v5134, 7
          %v5136 = vsub.s32 1, %v5135
          %v5137 = vrot.slane %v5128, %v5136
          %v5204 = vunpack.c.l.b16 %v5064
          %v5205 = vunpack.c.h.b16 %v5064
          %v5206 = vunpack.c.l.b16 %v5065
          %v5207 = vunpack.c.h.b16 %v5065
          %v5208 = vunpack.c.l.b16 %v5066
          %v5209 = vunpack.c.h.b16 %v5066
          %v5210 = vunpack.c.l.b16 %v5067
          %v5211 = vunpack.c.h.b16 %v5067
          %v5212 = vunpack.c.l.b16 %v5068
          %v5213 = vunpack.c.h.b16 %v5068
          %v5214 = vunpack.c.l.b16 %v5069
          %v5215 = vunpack.c.h.b16 %v5069
          %v5216 = vunpack.c.l.b16 %v5070
          %v5217 = vunpack.c.h.b16 %v5070
          %v5218 = vunpack.c.l.b16 %v5071
          %v5219 = vunpack.c.h.b16 %v5071
          %v5220 = vunpack.c.l.b16 %v5072
          %v5221 = vunpack.c.h.b16 %v5072
          %v5222 = vunpack.c.l.b16 %v5073
          %v5223 = vunpack.c.h.b16 %v5073
          %v5224 = vunpack.c.l.b16 %v5074
          %v5225 = vunpack.c.h.b16 %v5074
          %v5226 = vunpack.c.l.b16 %v5075
          %v5227 = vunpack.c.h.b16 %v5075
          %v5228 = vunpack.c.l.b16 %v5076
          %v5229 = vunpack.c.h.b16 %v5076
          %v5230 = vunpack.c.l.b16 %v5077
          %v5231 = vunpack.c.h.b16 %v5077
          %v5232 = vunpack.c.l.b16 %v5078
          %v5233 = vunpack.c.h.b16 %v5078
          %v5234 = vunpack.c.l.b16 %v5079
          %v5235 = vunpack.c.h.b16 %v5079
          %v5236 = vunpack.c.l.b16 %v5080
          %v5237 = vunpack.c.h.b16 %v5080
          %v5238 = vunpack.c.l.b16 %v5081
          %v5239 = vunpack.c.h.b16 %v5081
          %v5240 = vunpack.c.l.b16 %v5082
          %v5241 = vunpack.c.h.b16 %v5082
          %v5242 = vunpack.c.l.b16 %v5083
          %v5243 = vunpack.c.h.b16 %v5083
          %v5244 = vunpack.c.l.b16 %v5084
          %v5245 = vunpack.c.h.b16 %v5084
          %v5246 = vunpack.c.l.b16 %v5085
          %v5247 = vunpack.c.h.b16 %v5085
          %v5248 = vunpack.c.l.b16 %v5086
          %v5249 = vunpack.c.h.b16 %v5086
          %v5250 = vunpack.c.l.b16 %v5087
          %v5251 = vunpack.c.h.b16 %v5087
          %v5252 = vunpack.c.l.b16 %v5088
          %v5253 = vunpack.c.h.b16 %v5088
          %v5254 = vunpack.c.l.b16 %v5089
          %v5255 = vunpack.c.h.b16 %v5089
          %v5256 = vunpack.c.l.b16 %v5090
          %v5257 = vunpack.c.h.b16 %v5090
          %v5258 = vunpack.c.l.b16 %v5091
          %v5259 = vunpack.c.h.b16 %v5091
          %v5260 = vunpack.c.l.b16 %v5092
          %v5261 = vunpack.c.h.b16 %v5092
          %v5262 = vunpack.c.l.b16 %v5093
          %v5263 = vunpack.c.h.b16 %v5093
          %v5264 = vunpack.c.l.b16 %v5094
          %v5265 = vunpack.c.h.b16 %v5094
          %v5266 = vunpack.c.l.b16 %v5095
          %v5267 = vunpack.c.h.b16 %v5095
          %v5268 = vunpack.c.l.b16 %v5096
          %v5269 = vunpack.c.h.b16 %v5096
          %v5270 = vunpack.c.l.b16 %v5097
          %v5271 = vunpack.c.h.b16 %v5097
          %v5272 = vunpack.c.l.b16 %v5098
          %v5273 = vunpack.c.h.b16 %v5098
          %v5274 = vunpack.c.l.b16 %v5099
          %v5275 = vunpack.c.h.b16 %v5099
          %v5276 = vunpack.c.l.b16 %v5100
          %v5277 = vunpack.c.h.b16 %v5100
          %v5278 = vunpack.c.l.b16 %v5101
          %v5279 = vunpack.c.h.b16 %v5101
          %v5280 = vunpack.c.l.b16 %v5102
          %v5281 = vunpack.c.h.b16 %v5102
          %v5282 = vunpack.c.l.b16 %v5103
          %v5283 = vunpack.c.h.b16 %v5103
          %v5284 = vunpack.c.l.b16 %v5104
          %v5285 = vunpack.c.h.b16 %v5104
          %v5286 = vunpack.c.l.b16 %v5105
          %v5287 = vunpack.c.h.b16 %v5105
          %v5288 = vunpack.c.l.b16 %v5106
          %v5289 = vunpack.c.h.b16 %v5106
          %v5290 = vunpack.c.l.b16 %v5107
          %v5291 = vunpack.c.h.b16 %v5107
          %v5292 = vunpack.c.l.b16 %v5108
          %v5293 = vunpack.c.h.b16 %v5108
          %v5294 = vunpack.c.l.b16 %v5109
          %v5295 = vunpack.c.h.b16 %v5109
          %v5296 = vunpack.c.l.b16 %v5110
          %v5297 = vunpack.c.h.b16 %v5110
          %v5298 = vunpack.c.l.b16 %v5111
          %v5299 = vunpack.c.h.b16 %v5111
          %v5300 = vunpack.c.l.b16 %v5112
          %v5301 = vunpack.c.h.b16 %v5112
          %v5302 = vunpack.c.l.b16 %v5113
          %v5303 = vunpack.c.h.b16 %v5113
          %v5304 = vunpack.c.l.b16 %v5114
          %v5305 = vunpack.c.h.b16 %v5114
          %v5306 = vunpack.c.l.b16 %v5115
          %v5307 = vunpack.c.h.b16 %v5115
          %v5308 = vunpack.c.l.b16 %v5116
          %v5309 = vunpack.c.h.b16 %v5116
          %v5310 = vunpack.c.l.b16 %v5117
          %v5311 = vunpack.c.h.b16 %v5117
          %v5312 = vunpack.c.l.b16 %v5118
          %v5313 = vunpack.c.h.b16 %v5118
          %v5314 = vunpack.c.l.b16 %v5119
          %v5315 = vunpack.c.h.b16 %v5119
          %v5316 = vunpack.c.l.b16 %v5120
          %v5317 = vunpack.c.h.b16 %v5120
          %v5318 = vunpack.c.l.b16 %v5121
          %v5319 = vunpack.c.h.b16 %v5121
          %v5320 = vunpack.c.l.b16 %v5122
          %v5321 = vunpack.c.h.b16 %v5122
          %v5322 = vunpack.c.l.b16 %v5123
          %v5323 = vunpack.c.h.b16 %v5123
          %v5324 = vunpack.c.l.b16 %v5124
          %v5325 = vunpack.c.h.b16 %v5124
          %v5326 = vunpack.c.l.b16 %v5125
          %v5327 = vunpack.c.h.b16 %v5125
          %v5328 = vunpack.c.l.b16 %v5126
          %v5329 = vunpack.c.h.b16 %v5126
          %v5330 = vunpack.c.l.b16 %v5127
          %v5331 = vunpack.c.h.b16 %v5127
          %v5332 = vpack.c.b16 %v5206, %v5204
          %v5333 = vpack.c.b16 %v5207, %v5205
          %v5334 = vpack.c.b16 %v5210, %v5208
          %v5335 = vpack.c.b16 %v5211, %v5209
          %v5336 = vpack.c.b16 %v5214, %v5212
          %v5337 = vpack.c.b16 %v5215, %v5213
          %v5338 = vpack.c.b16 %v5218, %v5216
          %v5339 = vpack.c.b16 %v5219, %v5217
          %v5340 = vpack.c.b16 %v5222, %v5220
          %v5341 = vpack.c.b16 %v5223, %v5221
          %v5342 = vpack.c.b16 %v5226, %v5224
          %v5343 = vpack.c.b16 %v5227, %v5225
          %v5344 = vpack.c.b16 %v5230, %v5228
          %v5345 = vpack.c.b16 %v5231, %v5229
          %v5346 = vpack.c.b16 %v5234, %v5232
          %v5347 = vpack.c.b16 %v5235, %v5233
          %v5348 = vpack.c.b16 %v5238, %v5236
          %v5349 = vpack.c.b16 %v5239, %v5237
          %v5350 = vpack.c.b16 %v5242, %v5240
          %v5351 = vpack.c.b16 %v5243, %v5241
          %v5352 = vpack.c.b16 %v5246, %v5244
          %v5353 = vpack.c.b16 %v5247, %v5245
          %v5354 = vpack.c.b16 %v5250, %v5248
          %v5355 = vpack.c.b16 %v5251, %v5249
          %v5356 = vpack.c.b16 %v5254, %v5252
          %v5357 = vpack.c.b16 %v5255, %v5253
          %v5358 = vpack.c.b16 %v5258, %v5256
          %v5359 = vpack.c.b16 %v5259, %v5257
          %v5360 = vpack.c.b16 %v5262, %v5260
          %v5361 = vpack.c.b16 %v5263, %v5261
          %v5362 = vpack.c.b16 %v5266, %v5264
          %v5363 = vpack.c.b16 %v5267, %v5265
          %v5364 = vpack.c.b16 %v5270, %v5268
          %v5365 = vpack.c.b16 %v5271, %v5269
          %v5366 = vpack.c.b16 %v5274, %v5272
          %v5367 = vpack.c.b16 %v5275, %v5273
          %v5368 = vpack.c.b16 %v5278, %v5276
          %v5369 = vpack.c.b16 %v5279, %v5277
          %v5370 = vpack.c.b16 %v5282, %v5280
          %v5371 = vpack.c.b16 %v5283, %v5281
          %v5372 = vpack.c.b16 %v5286, %v5284
          %v5373 = vpack.c.b16 %v5287, %v5285
          %v5374 = vpack.c.b16 %v5290, %v5288
          %v5375 = vpack.c.b16 %v5291, %v5289
          %v5376 = vpack.c.b16 %v5294, %v5292
          %v5377 = vpack.c.b16 %v5295, %v5293
          %v5378 = vpack.c.b16 %v5298, %v5296
          %v5379 = vpack.c.b16 %v5299, %v5297
          %v5380 = vpack.c.b16 %v5302, %v5300
          %v5381 = vpack.c.b16 %v5303, %v5301
          %v5382 = vpack.c.b16 %v5306, %v5304
          %v5383 = vpack.c.b16 %v5307, %v5305
          %v5384 = vpack.c.b16 %v5310, %v5308
          %v5385 = vpack.c.b16 %v5311, %v5309
          %v5386 = vpack.c.b16 %v5314, %v5312
          %v5387 = vpack.c.b16 %v5315, %v5313
          %v5388 = vpack.c.b16 %v5318, %v5316
          %v5389 = vpack.c.b16 %v5319, %v5317
          %v5390 = vpack.c.b16 %v5322, %v5320
          %v5391 = vpack.c.b16 %v5323, %v5321
          %v5392 = vpack.c.b16 %v5326, %v5324
          %v5393 = vpack.c.b16 %v5327, %v5325
          %v5394 = vpack.c.b16 %v5330, %v5328
          %v5395 = vpack.c.b16 %v5331, %v5329
          %5460 = vmatprep.subr.bf16.mxu0 %v5333
          %5461 = vmatpush1.bf16.msra.mxu0 %v5332
          %5462 = vmatprep.subr.bf16.mxu0 %v5335
          %5463 = vmatpush1.bf16.msra.mxu0 %v5334
          %5464 = vmatprep.subr.bf16.mxu0 %v5337
          %5465 = vmatpush1.bf16.msra.mxu0 %v5336
          %5466 = vmatprep.subr.bf16.mxu0 %v5339
          %5467 = vmatpush1.bf16.msra.mxu0 %v5338
          %5468 = vmatprep.subr.bf16.mxu0 %v5341
          %5469 = vmatpush1.bf16.msra.mxu0 %v5340
          %5470 = vmatprep.subr.bf16.mxu0 %v5343
          %5471 = vmatpush1.bf16.msra.mxu0 %v5342
          %5472 = vmatprep.subr.bf16.mxu0 %v5345
          %5473 = vmatpush1.bf16.msra.mxu0 %v5344
          %5474 = vmatprep.subr.bf16.mxu0 %v5347
          %5475 = vmatpush1.bf16.msra.mxu0 %v5346
          %5476 = vmatprep.subr.bf16.mxu0 %v5349
          %5477 = vmatpush1.bf16.msra.mxu0 %v5348
          %5478 = vmatprep.subr.bf16.mxu0 %v5351
          %5479 = vmatpush1.bf16.msra.mxu0 %v5350
          %5480 = vmatprep.subr.bf16.mxu0 %v5353
          %5481 = vmatpush1.bf16.msra.mxu0 %v5352
          %5482 = vmatprep.subr.bf16.mxu0 %v5355
          %5483 = vmatpush1.bf16.msra.mxu0 %v5354
          %5484 = vmatprep.subr.bf16.mxu0 %v5357
          %5485 = vmatpush1.bf16.msra.mxu0 %v5356
          %5486 = vmatprep.subr.bf16.mxu0 %v5359
          %5487 = vmatpush1.bf16.msra.mxu0 %v5358
          %5488 = vmatprep.subr.bf16.mxu0 %v5361
          %5489 = vmatpush1.bf16.msra.mxu0 %v5360
          %5490 = vmatprep.subr.bf16.mxu0 %v5363
          %5491 = vmatpush1.bf16.msra.mxu0 %v5362
          %5492 = vmatprep.mubr.bf16.mxu0 %v5061
          %5493 = vmatmul.mubr.bf16.gmra.mrb[0].mxu0 %v5060
          %v5494 = vpop.f32.mrb[0].mxu0
          %v5495 = vadd.f32 %v5133, %v5494
          %v5496 = vpop.f32.mrb[0].mxu0
          %v5497 = vadd.f32 %v5137, %v5496
          %v5498 = vpop.f32.mrb[0].mxu0
          %v5499 = vpop.f32.mrb[0].mxu0
          %5500 = vdwg.mxu0
          %5501 = vmatprep.subr.bf16.mxu0 %v5365
          %5502 = vmatpush1.bf16.msra.mxu0 %v5364
          %5503 = vmatprep.subr.bf16.mxu0 %v5367
          %5504 = vmatpush1.bf16.msra.mxu0 %v5366
          %5505 = vmatprep.subr.bf16.mxu0 %v5369
          %5506 = vmatpush1.bf16.msra.mxu0 %v5368
          %5507 = vmatprep.subr.bf16.mxu0 %v5371
          %5508 = vmatpush1.bf16.msra.mxu0 %v5370
          %5509 = vmatprep.subr.bf16.mxu0 %v5373
          %5510 = vmatpush1.bf16.msra.mxu0 %v5372
          %5511 = vmatprep.subr.bf16.mxu0 %v5375
          %5512 = vmatpush1.bf16.msra.mxu0 %v5374
          %5513 = vmatprep.subr.bf16.mxu0 %v5377
          %5514 = vmatpush1.bf16.msra.mxu0 %v5376
          %5515 = vmatprep.subr.bf16.mxu0 %v5379
          %5516 = vmatpush1.bf16.msra.mxu0 %v5378
          %5517 = vmatprep.subr.bf16.mxu0 %v5381
          %5518 = vmatpush1.bf16.msra.mxu0 %v5380
          %5519 = vmatprep.subr.bf16.mxu0 %v5383
          %5520 = vmatpush1.bf16.msra.mxu0 %v5382
          %5521 = vmatprep.subr.bf16.mxu0 %v5385
          %5522 = vmatpush1.bf16.msra.mxu0 %v5384
          %5523 = vmatprep.subr.bf16.mxu0 %v5387
          %5524 = vmatpush1.bf16.msra.mxu0 %v5386
          %5525 = vmatprep.subr.bf16.mxu0 %v5389
          %5526 = vmatpush1.bf16.msra.mxu0 %v5388
          %5527 = vmatprep.subr.bf16.mxu0 %v5391
          %5528 = vmatpush1.bf16.msra.mxu0 %v5390
          %5529 = vmatprep.subr.bf16.mxu0 %v5393
          %5530 = vmatpush1.bf16.msra.mxu0 %v5392
          %5531 = vmatprep.subr.bf16.mxu0 %v5395
          %5532 = vmatpush1.bf16.msra.mxu0 %v5394
          %5533 = vmatprep.mubr.bf16.mxu0 %v5063
          %5534 = vmatmul.mubr.bf16.gmra.mrb[0].mxu0 %v5062
          %v5535 = vpop.f32.mrb[0].mxu0
          %v5536 = vadd.f32 %v5495, %v5535
          %v5537 = vpop.f32.mrb[0].mxu0
          %v5538 = vadd.f32 %v5497, %v5537
          %v5539 = vpop.f32.mrb[0].mxu0
          %v5540 = vpop.f32.mrb[0].mxu0
          %5541 = vdwg.mxu0
          %v5542 = vmax.f32 %v5536, 0.0
          %v5543 = vmax.f32 %v5538, 0.0
          %v5544 = vpack.c.bf16 %v5542, %v5542
          %v5545 = vpack.c.bf16 %v5543, %v5543
          %v5546 = vld [vmem:[%s11] sm:$0xf]
          %v5547 = vld [vmem:[%s11 + $0x4] sm:$0xf]
          %v5548 = vld [vmem:[%s11 + $0x8] sm:$0xf]
          %v5549 = vld [vmem:[%s11 + $0xc] sm:$0xf]
          %v5550 = vld [vmem:[%s11 + $0x10] sm:$0xf]
          %v5551 = vld [vmem:[%s11 + $0x14] sm:$0xf]
          %v5552 = vld [vmem:[%s11 + $0x18] sm:$0xf]
          %v5553 = vld [vmem:[%s11 + $0x1c] sm:$0xf]
          %v5554 = vld [vmem:[%s11 + $0x20] sm:$0xf]
          %v5555 = vld [vmem:[%s11 + $0x24] sm:$0xf]
          %v5556 = vld [vmem:[%s11 + $0x28] sm:$0xf]
          %v5557 = vld [vmem:[%s11 + $0x2c] sm:$0xf]
          %v5558 = vld [vmem:[%s11 + $0x30] sm:$0xf]
          %v5559 = vld [vmem:[%s11 + $0x34] sm:$0xf]
          %v5560 = vld [vmem:[%s11 + $0x38] sm:$0xf]
          %v5561 = vld [vmem:[%s11 + $0x3c] sm:$0xf]
          %v5562 = vld [vmem:[%s11 + $0x40] sm:$0xf]
          %v5563 = vld [vmem:[%s11 + $0x44] sm:$0xf]
          %v5564 = vld [vmem:[%s11 + $0x48] sm:$0xf]
          %v5565 = vld [vmem:[%s11 + $0x4c] sm:$0xf]
          %v5566 = vld [vmem:[%s11 + $0x50] sm:$0xf]
          %v5567 = vld [vmem:[%s11 + $0x54] sm:$0xf]
          %v5568 = vld [vmem:[%s11 + $0x58] sm:$0xf]
          %v5569 = vld [vmem:[%s11 + $0x5c] sm:$0xf]
          %v5570 = vld [vmem:[%s11 + $0x60] sm:$0xf]
          %v5571 = vld [vmem:[%s11 + $0x64] sm:$0xf]
          %v5572 = vld [vmem:[%s11 + $0x68] sm:$0xf]
          %v5573 = vld [vmem:[%s11 + $0x6c] sm:$0xf]
          %v5574 = vld [vmem:[%s11 + $0x70] sm:$0xf]
          %v5575 = vld [vmem:[%s11 + $0x74] sm:$0xf]
          %v5576 = vld [vmem:[%s11 + $0x78] sm:$0xf]
          %v5577 = vld [vmem:[%s11 + $0x7c] sm:$0xf]
          %v5578 = vld [vmem:[%s12] sm:$0x1]
          %v5580 = vlaneseq
          %v5581 = vshrl.u32 %v5580, 7
          %v5582 = vsub.s32 0, %v5581
          %v5583 = vrot.slane %v5578, %v5582
          %v5617 = vunpack.c.l.b16 %v5546
          %v5618 = vunpack.c.l.b16 %v5547
          %v5619 = vunpack.c.l.b16 %v5548
          %v5620 = vunpack.c.l.b16 %v5549
          %v5621 = vunpack.c.l.b16 %v5550
          %v5622 = vunpack.c.l.b16 %v5551
          %v5623 = vunpack.c.l.b16 %v5552
          %v5624 = vunpack.c.l.b16 %v5553
          %v5625 = vunpack.c.l.b16 %v5554
          %v5626 = vunpack.c.l.b16 %v5555
          %v5627 = vunpack.c.l.b16 %v5556
          %v5628 = vunpack.c.l.b16 %v5557
          %v5629 = vunpack.c.l.b16 %v5558
          %v5630 = vunpack.c.l.b16 %v5559
          %v5631 = vunpack.c.l.b16 %v5560
          %v5632 = vunpack.c.l.b16 %v5561
          %v5633 = vunpack.c.l.b16 %v5562
          %v5634 = vunpack.c.l.b16 %v5563
          %v5635 = vunpack.c.l.b16 %v5564
          %v5636 = vunpack.c.l.b16 %v5565
          %v5637 = vunpack.c.l.b16 %v5566
          %v5638 = vunpack.c.l.b16 %v5567
          %v5639 = vunpack.c.l.b16 %v5568
          %v5640 = vunpack.c.l.b16 %v5569
          %v5641 = vunpack.c.l.b16 %v5570
          %v5642 = vunpack.c.l.b16 %v5571
          %v5643 = vunpack.c.l.b16 %v5572
          %v5644 = vunpack.c.l.b16 %v5573
          %v5645 = vunpack.c.l.b16 %v5574
          %v5646 = vunpack.c.l.b16 %v5575
          %v5647 = vunpack.c.l.b16 %v5576
          %v5648 = vunpack.c.l.b16 %v5577
          %v5649 = vpack.c.b16 %v5618, %v5617
          %v5650 = vpack.c.b16 %v5620, %v5619
          %v5651 = vpack.c.b16 %v5622, %v5621
          %v5652 = vpack.c.b16 %v5624, %v5623
          %v5653 = vpack.c.b16 %v5626, %v5625
          %v5654 = vpack.c.b16 %v5628, %v5627
          %v5655 = vpack.c.b16 %v5630, %v5629
          %v5656 = vpack.c.b16 %v5632, %v5631
          %v5657 = vpack.c.b16 %v5634, %v5633
          %v5658 = vpack.c.b16 %v5636, %v5635
          %v5659 = vpack.c.b16 %v5638, %v5637
          %v5660 = vpack.c.b16 %v5640, %v5639
          %v5661 = vpack.c.b16 %v5642, %v5641
          %v5662 = vpack.c.b16 %v5644, %v5643
          %v5663 = vpack.c.b16 %v5646, %v5645
          %v5664 = vpack.c.b16 %v5648, %v5647
          %5681 = vmatprep.subr.bf16.mxu0 0
          %5682 = vmatpush1.bf16.msra.mxu0 %v5649
          %5683 = vmatprep.subr.bf16.mxu0 0
          %5684 = vmatpush1.bf16.msra.mxu0 %v5650
          %5685 = vmatprep.subr.bf16.mxu0 0
          %5686 = vmatpush1.bf16.msra.mxu0 %v5651
          %5687 = vmatprep.subr.bf16.mxu0 0
          %5688 = vmatpush1.bf16.msra.mxu0 %v5652
          %5689 = vmatprep.subr.bf16.mxu0 0
          %5690 = vmatpush1.bf16.msra.mxu0 %v5653
          %5691 = vmatprep.subr.bf16.mxu0 0
          %5692 = vmatpush1.bf16.msra.mxu0 %v5654
          %5693 = vmatprep.subr.bf16.mxu0 0
          %5694 = vmatpush1.bf16.msra.mxu0 %v5655
          %5695 = vmatprep.subr.bf16.mxu0 0
          %5696 = vmatpush1.bf16.msra.mxu0 %v5656
          %5697 = vmatprep.subr.bf16.mxu0 0
          %5698 = vmatpush1.bf16.msra.mxu0 %v5657
          %5699 = vmatprep.subr.bf16.mxu0 0
          %5700 = vmatpush1.bf16.msra.mxu0 %v5658
          %5701 = vmatprep.subr.bf16.mxu0 0
          %5702 = vmatpush1.bf16.msra.mxu0 %v5659
          %5703 = vmatprep.subr.bf16.mxu0 0
          %5704 = vmatpush1.bf16.msra.mxu0 %v5660
          %5705 = vmatprep.subr.bf16.mxu0 0
          %5706 = vmatpush1.bf16.msra.mxu0 %v5661
          %5707 = vmatprep.subr.bf16.mxu0 0
          %5708 = vmatpush1.bf16.msra.mxu0 %v5662
          %5709 = vmatprep.subr.bf16.mxu0 0
          %5710 = vmatpush1.bf16.msra.mxu0 %v5663
          %5711 = vmatprep.subr.bf16.mxu0 0
          %5712 = vmatpush1.bf16.msra.mxu0 %v5664
          %5713 = vmatprep.mubr.bf16.mxu0 %v5545
          %5714 = vmatmul.mubr.bf16.gmra.mrb[0].mxu0 %v5544
          %v5715 = vpop.f32.mrb[0].mxu0
          %v5716 = vadd.f32 %v5583, %v5715
          %v5717 = vpop.f32.mrb[0].mxu0
          %v5718 = vpop.f32.mrb[0].mxu0
          %v5719 = vpop.f32.mrb[0].mxu0
          %5720 = vdwg.mxu0
          %5721 = vst [vmem:[%s533] sm:$0xff] %v5716
        $region104: #{tpu_custom_call.1} parent=71 // pred_fallthru
          _
        %s5722 = sand.u32 %s331, 1
        %s5723 = scalar_lea.sflag [#allocation5], %s5722
        %s5724 = sand.u32 %s331, 1
        %s5725 = smul.addr %s5724, 8
        %s5726 = scalar_lea.vmem [#allocation14], %s5725
        // Predicated region
        $region105: #{tpu_custom_call.1} parent=71 // pred_check
          %p5727 = pneg %p341
        $region106: #{tpu_custom_call.1} parent=71 // pred_check_branch
          %5729 = sbr.rel (%p5727) target = $region108
        $region107: #{tpu_custom_call.1} parent=71 // pred_region
          %s5731 = ssub.s32 128, 128
          %5732 = vsyncadd %s5723, %s5731
          %s5733 = smul.addr %s35, 128
          %s5734 = scalar_lea.hbm %s13, %s5733
          %s5736 = sshll.u32 %s5726, 4
          %s5737 = int_to_ptr.vmem [resolvable:$true] %s5736
          %5739 = dma.vmem_to_hbm [thread:$0]  %s5737, 128, %s5734, %s5723
        $region108: #{tpu_custom_call.1} parent=71 // pred_fallthru
          _
      $region72: #{tpu_custom_call.1} parent=5 // pred_fallthru
        _
      %p5740 = scmp.le.s32.totalorder 2, %s26
      // Predicated region
      $region109: #{tpu_custom_call.1} parent=5 // pred_check
        %p5741 = pneg %p5740
      $region110: #{tpu_custom_call.1} parent=5 // pred_check_branch
        %5743 = sbr.rel (%p5741) target = $region112
      $region111: #{tpu_custom_call.1} parent=5 // pred_region
        %s5744 = ssub.s32 %s26, 2
        // Predicated region
        $region113: #{tpu_custom_call.1} parent=111 // pred_check
          %p5745 = pneg %p347
        $region114: #{tpu_custom_call.1} parent=111 // pred_check_branch
          %5747 = sbr.rel (%p5745) target = $region116
        $region115: #{tpu_custom_call.1} parent=111 // pred_region
          %s5748 = sand.u32 %s332, 1
          %s5749 = scalar_lea.sflag [#allocation5], %s5748
          %s5750 = sand.u32 %s332, 1
          %s5751 = smul.addr %s5750, 8
          %s5752 = scalar_lea.vmem [#allocation14], %s5751
          %5753 = dma.done %s5749, 128
        $region116: #{tpu_custom_call.1} parent=111 // pred_fallthru
          _
      $region112: #{tpu_custom_call.1} parent=5 // pred_fallthru
        _
    $region6: #{tpu_custom_call.1} parent=1 // loop_footer
      %s30 = sadd.s32 1, %s26
    $region7: #{tpu_custom_call.1} parent=1 // loop_footer_branch
      %25 = sbr.rel target = $region3
    $region8: #{tpu_custom_call.1} parent=1 // loop_exit
      _
    %5754 = vsyncpa [#allocation4], 1
    %s5755 = scalar_lea.sflag [#allocation4], 1
    %5756 = vsyncpa %s5755, 1
    %5757 = vsyncpa [#allocation7], 1
    %5758 = vsyncpa [#allocation10], 1
    %5759 = vsyncpa [#allocation13], 1
    %5760 = vsyncpa [#allocation5], 1
    %s5761 = scalar_lea.sflag [#allocation5], 1
    %5762 = vsyncpa %s5761, 1

</llo_original>
